<compile_context>
chip_gen: v7x
topology: tpu7x:2x2x1
jax: 0.10.0
libtpu: 0.0.40
codegen_flags: <defaults>
</compile_context>

<pallas_src>
import functools

import numpy as np
import jax
import jax.numpy as jnp
from jax.experimental import pallas as pl
from jax.experimental.pallas import tpu as pltpu

MXU_DTYPE = jnp.bfloat16      # bf16-native MXU on v5e / v6e / v7x; accum stays f32
ACT_DTYPE = jnp.bfloat16      # dtype of the wide (width-channel) HBM intermediates
VMEM_LIMIT_BYTES = 32 * 1024 * 1024   # > v5e's 16 MiB default, safe on v7x (64 MiB)
MAX_ROW_TILE = 1024


def _cparams(n_grid_axes=1):
    return pltpu.CompilerParams(
        dimension_semantics=("parallel",) * n_grid_axes,
        vmem_limit_bytes=VMEM_LIMIT_BYTES,
    )


def _row_tile(n, max_tile=MAX_ROW_TILE):
    """Largest row tile (multiple of 16, valid for bf16 blocks) dividing n, capped at
    max_tile; prefers >=2 grid steps so both v7x TensorCores get work."""
    if n % 16:
        return n
    t = (min(n, max_tile) // 16) * 16
    while t >= 16 and n % t:
        t -= 16
    if t < 16:
        return n
    if t == n and n >= 32:                 # split into (at least) two steps
        h = ((n // 2) // 16) * 16
        while h >= 16 and n % h:
            h -= 16
        if h >= 16:
            return h
    return t


def _batch_block(B, HW, target_rows=512, min_rows=128):
    """Images per grid step for the conv kernels: fatten matmul M (amortize per-step
    overhead / weight re-push) while keeping >=2 grid steps when M stays MXU-sized."""
    bb = max(1, min(B, max(1, target_rows // max(HW, 1))))
    while bb > 1 and B % bb:
        bb -= 1
    while B // bb < 2 and bb > 1 and (bb // 2) * HW >= min_rows and B % (bb // 2) == 0:
        bb //= 2
    if bb < B and (bb * HW) % 16:
        bb = B                              # full-array block is always layout-legal
    return bb


def _finalize_in_kernel(st_ref, count):
    """Per-channel (mean, 1/(std+1e-6)) from a (G, 2, C) partial-sum ref.
    Population std (torch.std unbiased=False) via E[x^2]-mean^2, f32 accumulators."""
    st = st_ref[...]                                   # (G, 2, C) f32
    s = jnp.sum(st[:, 0:1, :], axis=0)                 # (1, C)
    q = jnp.sum(st[:, 1:2, :], axis=0)                 # (1, C)
    inv_n = 1.0 / count
    mean = s * inv_n
    var = jnp.maximum(q * inv_n - mean * mean, 0.0)
    rscale = 1.0 / (jnp.sqrt(var) + 1e-6)
    return mean, rscale                                # (1, C) each


# --------------------------------------------------------------------------
# Kernel 0: tiled per-channel sum / sum-of-squares of the squeezed input
#           (feeds the first actnorm of the level), split per channel half.
# --------------------------------------------------------------------------
def _stats_kernel(x_ref, sa_ref, sb_ref, *, Ch):
    x = x_ref[...].astype(jnp.float32)                 # (tm, C)
    ps = jnp.sum(x, axis=0, keepdims=True)             # (1, C)
    pq = jnp.sum(x * x, axis=0, keepdims=True)
    st = jnp.concatenate([ps, pq], axis=0)             # (2, C)
    sa_ref[...] = st[:, :Ch].reshape(1, 2, Ch)
    sb_ref[...] = st[:, Ch:].reshape(1, 2, Ch)


def channel_stats(x, Ch):
    n, c = x.shape
    tm = _row_tile(n)
    g = n // tm
    return pl.pallas_call(
        functools.partial(_stats_kernel, Ch=Ch),
        grid=(g,),
        in_specs=[pl.BlockSpec((tm, c), lambda i: (i, 0))],
        out_specs=(pl.BlockSpec((1, 2, Ch), lambda i: (i, 0, 0)),
                   pl.BlockSpec((1, 2, Ch), lambda i: (i, 0, 0))),
        out_shape=(jax.ShapeDtypeStruct((g, 2, Ch), jnp.float32),
                   jax.ShapeDtypeStruct((g, 2, Ch), jnp.float32)),
        compiler_params=_cparams(),
    )(x)


# --------------------------------------------------------------------------
# Kernel 1: actnorm + invertible 1x1 conv + conv1 (3x3, zero halo, im2col dot)
# --------------------------------------------------------------------------
def _mix_conv1_kernel(xa_ref, xb_ref, sa_ref, sb_ref, wma_ref, wmb_ref, w1_ref,
                      ya_ref, yb_ref, h1_ref, st1_ref, stb_ref,
                      col_ref, *, Bblk, H, W, Ch, Wd, count):
    # Actnorm: finalize stats from the tiled partial sums (in-kernel, no XLA glue).
    ma, ra = _finalize_in_kernel(sa_ref, count)
    mb, rb = _finalize_in_kernel(sb_ref, count)
    na = (xa_ref[...] - ma) * ra                       # (M, Ch) f32
    nb = (xb_ref[...] - mb) * rb
    # Invertible 1x1 conv: y = [na, nb] @ W^T  (bf16 operands, f32 accumulation).
    y = (jnp.dot(na.astype(MXU_DTYPE), wma_ref[...],
                 preferred_element_type=jnp.float32) +
         jnp.dot(nb.astype(MXU_DTYPE), wmb_ref[...],
                 preferred_element_type=jnp.float32))  # (M, 2*Ch)
    y_a = y[:, :Ch]
    y_b = y[:, Ch:]
    ya_ref[...] = y_a
    yb_ref[...] = y_b
    # Partial stats of y_b (== z_b): b-half of the NEXT step's actnorm.
    psb = jnp.sum(y_b, axis=0, keepdims=True)
    pqb = jnp.sum(y_b * y_b, axis=0, keepdims=True)
    stb_ref[...] = jnp.concatenate([psb, pqb], axis=0).reshape(1, 2, Ch)

    # conv1: 3x3, stride 1, zero pad 1, no bias -- in-VMEM im2col + ONE MXU dot.
    # Border cells of the im2col scratch are zero and grid-invariant: fill once.
    @pl.when(pl.program_id(0) == 0)
    def _():
        col_ref[...] = jnp.zeros_like(col_ref)

    src = y_b.astype(MXU_DTYPE).reshape(Bblk, H, W, Ch)
    for dy in range(3):
        for dx in range(3):
            oy, ox = dy - 1, dx - 1
            r0, r1 = max(0, -oy), H - max(0, oy)
            c0, c1 = max(0, -ox), W - max(0, ox)
            k = dy * 3 + dx
            col_ref[:, r0:r1, c0:c1, k * Ch:(k + 1) * Ch] = \
                src[:, r0 + oy:r1 + oy, c0 + ox:c1 + ox, :]
    col = col_ref[...].reshape(Bblk * H * W, 9 * Ch)
    h1 = jnp.dot(col, w1_ref[...], preferred_element_type=jnp.float32)  # (M, Wd)
    h1_ref[...] = h1.astype(h1_ref.dtype)
    # Partial stats of conv1 output (actnorm1), accumulated in f32.
    ps1 = jnp.sum(h1, axis=0, keepdims=True)
    pq1 = jnp.sum(h1 * h1, axis=0, keepdims=True)
    st1_ref[...] = jnp.concatenate([ps1, pq1], axis=0).reshape(1, 2, Wd)


def mix_conv1(xa, xb, sa, sb, wma, wmb, w1col, B, H, W, Bblk):
    n, Ch = xa.shape
    C = 2 * Ch
    Wd = w1col.shape[-1]
    M = Bblk * H * W
    G = B // Bblk
    Ga, Gb = sa.shape[0], sb.shape[0]
    kernel = functools.partial(_mix_conv1_kernel, Bblk=Bblk, H=H, W=W, Ch=Ch, Wd=Wd,
                               count=float(n))
    row_ch = pl.BlockSpec((M, Ch), lambda b: (b, 0))
    row_wd = pl.BlockSpec((M, Wd), lambda b: (b, 0))

    def full(shape):
        return pl.BlockSpec(shape, lambda b: (0,) * len(shape))

    return pl.pallas_call(
        kernel,
        grid=(G,),
        in_specs=[row_ch, row_ch,
                  full((Ga, 2, Ch)), full((Gb, 2, Ch)),
                  full((Ch, C)), full((Ch, C)), full((9 * Ch, Wd))],
        out_specs=(row_ch, row_ch, row_wd,
                   pl.BlockSpec((1, 2, Wd), lambda b: (b, 0, 0)),
                   pl.BlockSpec((1, 2, Ch), lambda b: (b, 0, 0))),
        out_shape=(jax.ShapeDtypeStruct((n, Ch), jnp.float32),    # y_a
                   jax.ShapeDtypeStruct((n, Ch), jnp.float32),    # y_b (== z_b)
                   jax.ShapeDtypeStruct((n, Wd), ACT_DTYPE),      # conv1 output
                   jax.ShapeDtypeStruct((G, 2, Wd), jnp.float32),  # actnorm1 partials
                   jax.ShapeDtypeStruct((G, 2, Ch), jnp.float32)),  # z_b partials
        scratch_shapes=[pltpu.VMEM((Bblk, H, W, 9 * Ch), MXU_DTYPE)],
        compiler_params=_cparams(),
    )(xa, xb, sa, sb, wma, wmb, w1col)


# --------------------------------------------------------------------------
# Kernel 2: actnorm1 + ReLU + conv2 (1x1 conv == matmul, no bias) + partial stats
# --------------------------------------------------------------------------
def _an_relu_conv2_kernel(h1_ref, st1_ref, w2_ref, h2_ref, st2_ref, *, count):
    m1, r1 = _finalize_in_kernel(st1_ref, count)
    a = jnp.maximum((h1_ref[...].astype(jnp.float32) - m1) * r1, 0.0)
    h2 = jnp.dot(a.astype(MXU_DTYPE), w2_ref[...],
                 preferred_element_type=jnp.float32)
    h2_ref[...] = h2.astype(h2_ref.dtype)
    wd = h2.shape[1]
    ps = jnp.sum(h2, axis=0, keepdims=True)
    pq = jnp.sum(h2 * h2, axis=0, keepdims=True)
    st2_ref[...] = jnp.concatenate([ps, pq], axis=0).reshape(1, 2, wd)


def an_relu_conv2(h1, st1, w2, count):
    n, Wd = h1.shape
    G1 = st1.shape[0]
    tm = _row_tile(n)
    g = n // tm
    return pl.pallas_call(
        functools.partial(_an_relu_conv2_kernel, count=float(count)),
        grid=(g,),
        in_specs=[pl.BlockSpec((tm, Wd), lambda i: (i, 0)),
                  pl.BlockSpec((G1, 2, Wd), lambda i: (0, 0, 0)),
                  pl.BlockSpec((Wd, Wd), lambda i: (0, 0))],
        out_specs=(pl.BlockSpec((tm, Wd), lambda i: (i, 0)),
                   pl.BlockSpec((1, 2, Wd), lambda i: (i, 0, 0))),
        out_shape=(jax.ShapeDtypeStruct((n, Wd), ACT_DTYPE),
                   jax.ShapeDtypeStruct((g, 2, Wd), jnp.float32)),
        compiler_params=_cparams(),
    )(h1, st1, w2)


# --------------------------------------------------------------------------
# Kernel 3: actnorm2 + ReLU + conv3 (3x3 valid, constant halo) + coupling tail
# --------------------------------------------------------------------------
def _tail_kernel(h2_ref, ya_ref, st2_ref, w3_ref, b3_ref,
                 za_ref, sta_ref, col_ref, *, Bblk, H, W, Wd, Ch, count_pad):
    m2, r2 = _finalize_in_kernel(st2_ref, count_pad)
    # conv2 had padding=1, so its (H+2, W+2) map has a zero border; after actnorm2 +
    # ReLU that border is the per-channel constant relu(-mean2*rscale2).  It is
    # grid-invariant within this pallas_call -> fill the scratch's halo cells once.
    border = jnp.maximum(-m2 * r2, 0.0).astype(MXU_DTYPE)            # (1, Wd)
    a2 = jnp.maximum((h2_ref[...].astype(jnp.float32) - m2) * r2, 0.0)

    @pl.when(pl.program_id(0) == 0)
    def _():
        bcast = jnp.broadcast_to(border.reshape(1, 1, 1, Wd), (Bblk, H, W, Wd))
        for k in range(9):
            col_ref[:, :, :, k * Wd:(k + 1) * Wd] = bcast

    src = a2.astype(MXU_DTYPE).reshape(Bblk, H, W, Wd)
    for dy in range(3):
        for dx in range(3):
            oy, ox = dy - 1, dx - 1
            r0, r1 = max(0, -oy), H - max(0, oy)
            c0, c1 = max(0, -ox), W - max(0, ox)
            k = dy * 3 + dx
            col_ref[:, r0:r1, c0:c1, k * Wd:(k + 1) * Wd] = \
                src[:, r0 + oy:r1 + oy, c0 + ox:c1 + ox, :]
    col = col_ref[...].reshape(Bblk * H * W, 9 * Wd)
    # conv3: exp(log_scale_factor) folded into w3/b3; output channels pre-ordered
    # [even(t)..., odd(s)...] so the coupling split is a cheap lane slice.
    h3 = jnp.dot(col, w3_ref[...], preferred_element_type=jnp.float32) + b3_ref[...]
    t = h3[:, :Ch]
    s = jax.nn.sigmoid(h3[:, Ch:] + 2.0)
    z_a = jnp.clip(s * ya_ref[...] + t, -1e9, 1e9)
    za_ref[...] = z_a
    # Partial stats of z_a: a-half of the NEXT step's actnorm.
    psa = jnp.sum(z_a, axis=0, keepdims=True)
    pqa = jnp.sum(z_a * z_a, axis=0, keepdims=True)
    sta_ref[...] = jnp.concatenate([psa, pqa], axis=0).reshape(1, 2, Ch)


def tail_coupling(h2, ya, st2, w3col, b3, B, H, W, Bblk):
    n, Wd = h2.shape
    Ch = ya.shape[1]
    C = 2 * Ch
    M = Bblk * H * W
    G = B // Bblk
    G2 = st2.shape[0]
    count_pad = float(B * (H + 2) * (W + 2))   # actnorm2 stats include the zero border
    kernel = functools.partial(_tail_kernel, Bblk=Bblk, H=H, W=W, Wd=Wd, Ch=Ch,
                               count_pad=count_pad)
    return pl.pallas_call(
        kernel,
        grid=(G,),
        in_specs=[pl.BlockSpec((M, Wd), lambda b: (b, 0)),
                  pl.BlockSpec((M, Ch), lambda b: (b, 0)),
                  pl.BlockSpec((G2, 2, Wd), lambda b: (0, 0, 0)),
                  pl.BlockSpec((9 * Wd, C), lambda b: (0, 0)),
                  pl.BlockSpec((1, C), lambda b: (0, 0))],
        out_specs=(pl.BlockSpec((M, Ch), lambda b: (b, 0)),
                   pl.BlockSpec((1, 2, Ch), lambda b: (b, 0, 0))),
        out_shape=(jax.ShapeDtypeStruct((n, Ch), jnp.float32),
                   jax.ShapeDtypeStruct((G, 2, Ch), jnp.float32)),
        scratch_shapes=[pltpu.VMEM((Bblk, H, W, 9 * Wd), MXU_DTYPE)],
        compiler_params=_cparams(),
    )(h2, ya, st2, w3col, b3)


# ------------------------------- JAX glue ----------------------------------
def squeeze_nchw(x):
    """Exact RealNVP/Glow squeeze (matches the PyTorch reshape/permute)."""
    B, C, H, W = x.shape
    x = x.reshape(B, C, H // 2, 2, W // 2, 2)
    x = x.transpose(0, 1, 3, 5, 2, 4)
    return x.reshape(B, 4 * C, H // 2, W // 2)


def init_flow_level_params(n_channels, width, depth, rng):
    """Deterministic synthetic parameters; shapes follow the PyTorch __init__.
    NOTE: PyTorch zero-inits conv3 / its bias / log_scale_factor; we use small random
    values so the hot path is numerically non-trivial (zero them to recover the exact
    fresh-model init).  Matmul weights are stored as bf16 (MXU-native)."""
    C = 4 * n_channels
    Ch = C // 2
    steps = []
    for _ in range(depth):
        q, _ = np.linalg.qr(rng.standard_normal((C, C)).astype(np.float32))  # inv 1x1
        w1 = (0.1 * rng.standard_normal((width, Ch, 3, 3))).astype(np.float32)
        w2 = (0.1 * rng.standard_normal((width, width, 1, 1))).astype(np.float32)
        w3 = (0.05 * rng.standard_normal((C, width, 3, 3))).astype(np.float32)
        b3 = (0.05 * rng.standard_normal((C,))).astype(np.float32)
        lsf = (0.05 * rng.standard_normal((C,))).astype(np.float32)

        wT = q.T.astype(np.float32)                       # y = x @ W^T
        order = np.array(list(range(0, C, 2)) + list(range(1, C, 2)))
        elsf = np.exp(lsf)
        # Conv weights in im2col layout (9*Cin, Cout), row index = (dy*3+dx)*Cin + cin.
        w1_col = np.ascontiguousarray(w1.transpose(2, 3, 1, 0)).reshape(9 * Ch, width)
        w3_fold = (w3 * elsf[:, None, None, None]).transpose(2, 3, 1, 0)
        w3_col = np.ascontiguousarray(w3_fold).reshape(9 * width, C)[:, order]
        b3_fold = (b3 * elsf)[order].reshape(1, C)

        steps.append(dict(
            w_mix_a=jnp.asarray(wT[:Ch, :], dtype=MXU_DTYPE),   # top half of W^T
            w_mix_b=jnp.asarray(wT[Ch:, :], dtype=MXU_DTYPE),   # bottom half of W^T
            w1=jnp.asarray(w1_col, dtype=MXU_DTYPE),
            w2=jnp.asarray(w2[:, :, 0, 0].T, dtype=MXU_DTYPE),
            w3=jnp.asarray(w3_col, dtype=MXU_DTYPE),
            b3=jnp.asarray(b3_fold, dtype=jnp.float32),
        ))
    return steps


def flow_step(xa, xb, sa, sb, p, B, H, W, Bblk):
    """Actnorm -> Invertible 1x1 conv -> AffineCoupling on channel-half state.
    sa/sb are (G, 2, C/2) per-channel partial (sum, sumsq) arrays for the step's
    actnorm; finalization happens inside the consuming kernels."""
    n = xa.shape[0]
    ya, yb, h1, st1, stb = mix_conv1(xa, xb, sa, sb, p['w_mix_a'], p['w_mix_b'],
                                     p['w1'], B, H, W, Bblk)
    h2, st2 = an_relu_conv2(h1, st1, p['w2'], count=n)
    za, sta = tail_coupling(h2, ya, st2, p['w3'], p['b3'], B, H, W, Bblk)
    return za, yb, sta, stb


def flow_level_forward(x_nchw, params):
    """FlowLevel.forward: Squeeze -> FlowStep x depth -> Split.  Returns (x1, z2) NCHW."""
    xs = squeeze_nchw(x_nchw)                              # (B, 4C, H/2, W/2)
    B, C, H, W = xs.shape
    Ch = C // 2
    x = xs.transpose(0, 2, 3, 1).reshape(B * H * W, C)     # channel-last rows
    assert (H * W) % 8 == 0, "squeezed spatial size must be a multiple of 8"
    Bblk = _batch_block(B, H * W)
    sa, sb = channel_stats(x, Ch)                          # first actnorm's partials
    xa, xb = x[:, :Ch], x[:, Ch:]
    for p in params:
        xa, xb, sa, sb = flow_step(xa, xb, sa, sb, p, B, H, W, Bblk)
    # Split.forward == chunk(2, dim=1): the a-half / b-half are already separate.
    x1 = xa.reshape(B, H, W, Ch).transpose(0, 3, 1, 2)
    z2 = xb.reshape(B, H, W, Ch).transpose(0, 3, 1, 2)
    return x1, z2
    # TODO(synk): Actnorm's persistent `initialized` buffer mutation has no Pallas
    # equivalent; we always take the (first-forward) data-dependent stats path.


if __name__ == "__main__":
    n_channels, width, depth = 4, 32, 2
    B, H, W = 2, 16, 16

    key = jax.random.PRNGKey(0)
    x = jax.random.normal(key, (B, n_channels, H, W), dtype=jnp.float32)
    params = init_flow_level_params(n_channels, width, depth, np.random.default_rng(42))

    fwd = jax.jit(lambda inp: flow_level_forward(inp, params))
    x1, z2 = fwd(x)
    jax.block_until_ready((x1, z2))

    assert x1.shape == (B, 2 * n_channels, H // 2, W // 2), x1.shape
    assert z2.shape == (B, 2 * n_channels, H // 2, W // 2), z2.shape
    assert bool(jnp.all(jnp.isfinite(x1))) and bool(jnp.all(jnp.isfinite(z2)))
    print("KERNEL_OK")
</pallas_src>

<mosaic_0001>
module attributes {stable_mosaic.version = 11 : i64} {
  func.func @_stats_kernel(%arg0: i32, %arg1: memref<64x16xf32, #tpu.memory_space<vmem>>, %arg2: memref<1x2x8xf32, #tpu.memory_space<vmem>>, %arg3: memref<1x2x8xf32, #tpu.memory_space<vmem>>) attributes {dimension_semantics = [#tpu.dimension_semantics<parallel>], iteration_bounds = array<i64: 2>, scalar_prefetch = 0 : i64, scratch_operands = 0 : i64, tpu.core_type = #tpu.core_type<tc>, window_params = [{transform_indices = @transform_0, window_bounds = array<i64: 64, 16>}, {transform_indices = @transform_1, window_bounds = array<i64: 1, 2, 8>}, {transform_indices = @transform_2, window_bounds = array<i64: 1, 2, 8>}]} {
    %c0 = arith.constant 0 : index
    %c0_0 = arith.constant 0 : index
    %0 = vector.load %arg1[%c0, %c0_0] : memref<64x16xf32, #tpu.memory_space<vmem>>, vector<64x16xf32>
    %cst = arith.constant dense<0.000000e+00> : vector<16xf32>
    %1 = vector.multi_reduction <add>, %0, %cst [0] : vector<64x16xf32> to vector<16xf32>
    %2 = vector.shape_cast %1 : vector<16xf32> to vector<1x16xf32>
    %3 = arith.mulf %0, %0 : vector<64x16xf32>
    %cst_1 = arith.constant dense<0.000000e+00> : vector<16xf32>
    %4 = vector.multi_reduction <add>, %3, %cst_1 [0] : vector<64x16xf32> to vector<16xf32>
    %5 = vector.shape_cast %4 : vector<16xf32> to vector<1x16xf32>
    %6 = tpu.concatenate %2, %5 in 0 : vector<1x16xf32>, vector<1x16xf32> -> vector<2x16xf32>
    %7 = vector.extract_strided_slice %6 {offsets = [0, 0], sizes = [2, 8], strides = [1, 1]} : vector<2x16xf32> to vector<2x8xf32>
    %8 = vector.shape_cast %7 : vector<2x8xf32> to vector<1x2x8xf32>
    %c0_2 = arith.constant 0 : index
    %c0_3 = arith.constant 0 : index
    %c0_4 = arith.constant 0 : index
    %9 = vector.load %arg2[%c0_2, %c0_3, %c0_4] : memref<1x2x8xf32, #tpu.memory_space<vmem>>, vector<1x2x8xf32>
    tpu.vector_store %arg2[%c0_2, %c0_3, %c0_4], %8 {strides = array<i32>} : memref<1x2x8xf32, #tpu.memory_space<vmem>>, vector<1x2x8xf32>,
    %10 = vector.extract_strided_slice %6 {offsets = [0, 8], sizes = [2, 8], strides = [1, 1]} : vector<2x16xf32> to vector<2x8xf32>
    %11 = vector.shape_cast %10 : vector<2x8xf32> to vector<1x2x8xf32>
    %c0_5 = arith.constant 0 : index
    %c0_6 = arith.constant 0 : index
    %c0_7 = arith.constant 0 : index
    %12 = vector.load %arg3[%c0_5, %c0_6, %c0_7] : memref<1x2x8xf32, #tpu.memory_space<vmem>>, vector<1x2x8xf32>
    tpu.vector_store %arg3[%c0_5, %c0_6, %c0_7], %11 {strides = array<i32>} : memref<1x2x8xf32, #tpu.memory_space<vmem>>, vector<1x2x8xf32>,
    return
  }
  func.func @transform_0(%arg0: i32) -> (i32, i32) {
    %c0_i32 = arith.constant 0 : i32
    %c0_i32_0 = arith.constant 0 : i32
    return %arg0, %c0_i32 : i32, i32
  }
  func.func @transform_1(%arg0: i32) -> (i32, i32, i32) {
    %c0_i32 = arith.constant 0 : i32
    %c0_i32_0 = arith.constant 0 : i32
    %c0_i32_1 = arith.constant 0 : i32
    return %arg0, %c0_i32, %c0_i32_0 : i32, i32, i32
  }
  func.func @transform_2(%arg0: i32) -> (i32, i32, i32) {
    %c0_i32 = arith.constant 0 : i32
    %c0_i32_0 = arith.constant 0 : i32
    %c0_i32_1 = arith.constant 0 : i32
    return %arg0, %c0_i32, %c0_i32_0 : i32, i32, i32
  }
}

module attributes {stable_mosaic.version = 11 : i64} {
  func.func @_an_relu_conv2_kernel(%arg0: i32, %arg1: memref<64x32xbf16, #tpu.memory_space<vmem>>, %arg2: memref<1x2x32xf32, #tpu.memory_space<vmem>>, %arg3: memref<32x32xbf16, #tpu.memory_space<vmem>>, %arg4: memref<64x32xbf16, #tpu.memory_space<vmem>>, %arg5: memref<1x2x32xf32, #tpu.memory_space<vmem>>) attributes {dimension_semantics = [#tpu.dimension_semantics<parallel>], iteration_bounds = array<i64: 2>, scalar_prefetch = 0 : i64, scratch_operands = 0 : i64, tpu.core_type = #tpu.core_type<tc>, window_params = [{transform_indices = @transform_0, window_bounds = array<i64: 64, 32>}, {pipeline_mode = #tpu.pipeline_mode<synchronous>, transform_indices = @transform_1, window_bounds = array<i64: 1, 2, 32>}, {pipeline_mode = #tpu.pipeline_mode<synchronous>, transform_indices = @transform_2, window_bounds = array<i64: 32, 32>}, {transform_indices = @transform_3, window_bounds = array<i64: 64, 32>}, {transform_indices = @transform_4, window_bounds = array<i64: 1, 2, 32>}]} {
    %c0 = arith.constant 0 : index
    %c0_0 = arith.constant 0 : index
    %c0_1 = arith.constant 0 : index
    %0 = vector.load %arg2[%c0, %c0_0, %c0_1] : memref<1x2x32xf32, #tpu.memory_space<vmem>>, vector<1x2x32xf32>
    %1 = vector.extract_strided_slice %0 {offsets = [0, 0, 0], sizes = [1, 1, 32], strides = [1, 1, 1]} : vector<1x2x32xf32> to vector<1x1x32xf32>
    %cst = arith.constant dense<0.000000e+00> : vector<1x32xf32>
    %2 = vector.multi_reduction <add>, %1, %cst [0] : vector<1x1x32xf32> to vector<1x32xf32>
    %3 = vector.extract_strided_slice %0 {offsets = [0, 1, 0], sizes = [1, 1, 32], strides = [1, 1, 1]} : vector<1x2x32xf32> to vector<1x1x32xf32>
    %cst_2 = arith.constant dense<0.000000e+00> : vector<1x32xf32>
    %4 = vector.multi_reduction <add>, %3, %cst_2 [0] : vector<1x1x32xf32> to vector<1x32xf32>
    %cst_3 = arith.constant 7.812500e-03 : f32
    %5 = vector.broadcast %cst_3 : f32 to vector<1x32xf32>
    %6 = arith.mulf %2, %5 : vector<1x32xf32>
    %cst_4 = arith.constant 7.812500e-03 : f32
    %7 = vector.broadcast %cst_4 : f32 to vector<1x32xf32>
    %8 = arith.mulf %4, %7 : vector<1x32xf32>
    %9 = arith.mulf %6, %6 : vector<1x32xf32>
    %10 = arith.subf %8, %9 : vector<1x32xf32>
    %cst_5 = arith.constant 0.000000e+00 : f32
    %11 = vector.broadcast %cst_5 : f32 to vector<1x32xf32>
    %12 = arith.maximumf %10, %11 : vector<1x32xf32>
    %13 = math.sqrt %12 : vector<1x32xf32>
    %cst_6 = arith.constant 9.99999997E-7 : f32
    %14 = vector.broadcast %cst_6 : f32 to vector<1x32xf32>
    %15 = arith.addf %13, %14 : vector<1x32xf32>
    %cst_7 = arith.constant 1.000000e+00 : f32
    %16 = vector.broadcast %cst_7 : f32 to vector<1x32xf32>
    %17 = arith.divf %16, %15 : vector<1x32xf32>
    %c0_8 = arith.constant 0 : index
    %c0_9 = arith.constant 0 : index
    %18 = vector.load %arg1[%c0_8, %c0_9] : memref<64x32xbf16, #tpu.memory_space<vmem>>, vector<64x32xbf16>
    %19 = arith.extf %18 : vector<64x32xbf16> to vector<64x32xf32>
    %20 = vector.broadcast %6 : vector<1x32xf32> to vector<64x32xf32>
    %21 = arith.subf %19, %20 : vector<64x32xf32>
    %22 = vector.broadcast %17 : vector<1x32xf32> to vector<64x32xf32>
    %23 = arith.mulf %21, %22 : vector<64x32xf32>
    %cst_10 = arith.constant 0.000000e+00 : f32
    %24 = vector.broadcast %cst_10 : f32 to vector<64x32xf32>
    %25 = arith.maximumf %23, %24 : vector<64x32xf32>
    %26 = arith.truncf %25 : vector<64x32xf32> to vector<64x32xbf16>
    %c0_11 = arith.constant 0 : index
    %c0_12 = arith.constant 0 : index
    %27 = vector.load %arg3[%c0_11, %c0_12] : memref<32x32xbf16, #tpu.memory_space<vmem>>, vector<32x32xbf16>
    %cst_13 = arith.constant dense<0.000000e+00> : vector<64x32xf32>
    %28 = tpu.matmul %26, %27, %cst_13 {dimension_numbers = #tpu.dot_dimension_numbers<[1], [0], [0], [1], [0, 0, 1, 1], [], []>} : vector<64x32xbf16>, vector<32x32xbf16>, vector<64x32xf32> -> vector<64x32xf32>
    %29 = arith.truncf %28 : vector<64x32xf32> to vector<64x32xbf16>
    %c0_14 = arith.constant 0 : index
    %c0_15 = arith.constant 0 : index
    %30 = vector.load %arg4[%c0_14, %c0_15] : memref<64x32xbf16, #tpu.memory_space<vmem>>, vector<64x32xbf16>
    tpu.vector_store %arg4[%c0_14, %c0_15], %29 {strides = array<i32>} : memref<64x32xbf16, #tpu.memory_space<vmem>>, vector<64x32xbf16>,
    %cst_16 = arith.constant dense<0.000000e+00> : vector<32xf32>
    %31 = vector.multi_reduction <add>, %28, %cst_16 [0] : vector<64x32xf32> to vector<32xf32>
    %32 = vector.shape_cast %31 : vector<32xf32> to vector<1x32xf32>
    %33 = arith.mulf %28, %28 : vector<64x32xf32>
    %cst_17 = arith.constant dense<0.000000e+00> : vector<32xf32>
    %34 = vector.multi_reduction <add>, %33, %cst_17 [0] : vector<64x32xf32> to vector<32xf32>
    %35 = vector.shape_cast %34 : vector<32xf32> to vector<1x32xf32>
    %36 = tpu.concatenate %32, %35 in 0 : vector<1x32xf32>, vector<1x32xf32> -> vector<2x32xf32>
    %37 = vector.shape_cast %36 : vector<2x32xf32> to vector<1x2x32xf32>
    %c0_18 = arith.constant 0 : index
    %c0_19 = arith.constant 0 : index
    %c0_20 = arith.constant 0 : index
    %38 = vector.load %arg5[%c0_18, %c0_19, %c0_20] : memref<1x2x32xf32, #tpu.memory_space<vmem>>, vector<1x2x32xf32>
    tpu.vector_store %arg5[%c0_18, %c0_19, %c0_20], %37 {strides = array<i32>} : memref<1x2x32xf32, #tpu.memory_space<vmem>>, vector<1x2x32xf32>,
    return
  }
  func.func @transform_0(%arg0: i32) -> (i32, i32) {
    %c0_i32 = arith.constant 0 : i32
    %c0_i32_0 = arith.constant 0 : i32
    return %arg0, %c0_i32 : i32, i32
  }
  func.func @transform_1(%arg0: i32) -> (i32, i32, i32) {
    %c0_i32 = arith.constant 0 : i32
    %c0_i32_0 = arith.constant 0 : i32
    %c0_i32_1 = arith.constant 0 : i32
    %c0_i32_2 = arith.constant 0 : i32
    return %c0_i32, %c0_i32_0, %c0_i32_1 : i32, i32, i32
  }
  func.func @transform_2(%arg0: i32) -> (i32, i32) {
    %c0_i32 = arith.constant 0 : i32
    %c0_i32_0 = arith.constant 0 : i32
    %c0_i32_1 = arith.constant 0 : i32
    return %c0_i32, %c0_i32_0 : i32, i32
  }
  func.func @transform_3(%arg0: i32) -> (i32, i32) {
    %c0_i32 = arith.constant 0 : i32
    %c0_i32_0 = arith.constant 0 : i32
    return %arg0, %c0_i32 : i32, i32
  }
  func.func @transform_4(%arg0: i32) -> (i32, i32, i32) {
    %c0_i32 = arith.constant 0 : i32
    %c0_i32_0 = arith.constant 0 : i32
    %c0_i32_1 = arith.constant 0 : i32
    return %arg0, %c0_i32, %c0_i32_0 : i32, i32, i32
  }
}

module attributes {stable_mosaic.version = 11 : i64} {
  func.func @_mix_conv1_kernel(%arg0: i32, %arg1: memref<128x8xf32, #tpu.memory_space<vmem>>, %arg2: memref<128x8xf32, #tpu.memory_space<vmem>>, %arg3: memref<2x2x8xf32, #tpu.memory_space<vmem>>, %arg4: memref<2x2x8xf32, #tpu.memory_space<vmem>>, %arg5: memref<8x16xbf16, #tpu.memory_space<vmem>>, %arg6: memref<8x16xbf16, #tpu.memory_space<vmem>>, %arg7: memref<72x32xbf16, #tpu.memory_space<vmem>>, %arg8: memref<128x8xf32, #tpu.memory_space<vmem>>, %arg9: memref<128x8xf32, #tpu.memory_space<vmem>>, %arg10: memref<128x32xbf16, #tpu.memory_space<vmem>>, %arg11: memref<1x2x32xf32, #tpu.memory_space<vmem>>, %arg12: memref<1x2x8xf32, #tpu.memory_space<vmem>>, %arg13: memref<2x8x8x72xbf16, #tpu.memory_space<vmem>>) attributes {dimension_semantics = [#tpu.dimension_semantics<parallel>], iteration_bounds = array<i64: 1>, scalar_prefetch = 0 : i64, scratch_operands = 1 : i64, tpu.core_type = #tpu.core_type<tc>, window_params = [{transform_indices = @transform_0, window_bounds = array<i64: 128, 8>}, {transform_indices = @transform_1, window_bounds = array<i64: 128, 8>}, {pipeline_mode = #tpu.pipeline_mode<synchronous>, transform_indices = @transform_2, window_bounds = array<i64: 2, 2, 8>}, {pipeline_mode = #tpu.pipeline_mode<synchronous>, transform_indices = @transform_3, window_bounds = array<i64: 2, 2, 8>}, {pipeline_mode = #tpu.pipeline_mode<synchronous>, transform_indices = @transform_4, window_bounds = array<i64: 8, 16>}, {pipeline_mode = #tpu.pipeline_mode<synchronous>, transform_indices = @transform_5, window_bounds = array<i64: 8, 16>}, {pipeline_mode = #tpu.pipeline_mode<synchronous>, transform_indices = @transform_6, window_bounds = array<i64: 72, 32>}, {transform_indices = @transform_7, window_bounds = array<i64: 128, 8>}, {transform_indices = @transform_8, window_bounds = array<i64: 128, 8>}, {transform_indices = @transform_9, window_bounds = array<i64: 128, 32>}, {transform_indices = @transform_10, window_bounds = array<i64: 1, 2, 32>}, {transform_indices = @transform_11, window_bounds = array<i64: 1, 2, 8>}]} {
    %c0 = arith.constant 0 : index
    %c0_0 = arith.constant 0 : index
    %c0_1 = arith.constant 0 : index
    %0 = vector.load %arg3[%c0, %c0_0, %c0_1] : memref<2x2x8xf32, #tpu.memory_space<vmem>>, vector<2x2x8xf32>
    %1 = vector.extract_strided_slice %0 {offsets = [0, 0, 0], sizes = [2, 1, 8], strides = [1, 1, 1]} : vector<2x2x8xf32> to vector<2x1x8xf32>
    %cst = arith.constant dense<0.000000e+00> : vector<1x8xf32>
    %2 = vector.multi_reduction <add>, %1, %cst [0] : vector<2x1x8xf32> to vector<1x8xf32>
    %3 = vector.extract_strided_slice %0 {offsets = [0, 1, 0], sizes = [2, 1, 8], strides = [1, 1, 1]} : vector<2x2x8xf32> to vector<2x1x8xf32>
    %cst_2 = arith.constant dense<0.000000e+00> : vector<1x8xf32>
    %4 = vector.multi_reduction <add>, %3, %cst_2 [0] : vector<2x1x8xf32> to vector<1x8xf32>
    %cst_3 = arith.constant 7.812500e-03 : f32
    %5 = vector.broadcast %cst_3 : f32 to vector<1x8xf32>
    %6 = arith.mulf %2, %5 : vector<1x8xf32>
    %cst_4 = arith.constant 7.812500e-03 : f32
    %7 = vector.broadcast %cst_4 : f32 to vector<1x8xf32>
    %8 = arith.mulf %4, %7 : vector<1x8xf32>
    %9 = arith.mulf %6, %6 : vector<1x8xf32>
    %10 = arith.subf %8, %9 : vector<1x8xf32>
    %cst_5 = arith.constant 0.000000e+00 : f32
    %11 = vector.broadcast %cst_5 : f32 to vector<1x8xf32>
    %12 = arith.maximumf %10, %11 : vector<1x8xf32>
    %13 = math.sqrt %12 : vector<1x8xf32>
    %cst_6 = arith.constant 9.99999997E-7 : f32
    %14 = vector.broadcast %cst_6 : f32 to vector<1x8xf32>
    %15 = arith.addf %13, %14 : vector<1x8xf32>
    %cst_7 = arith.constant 1.000000e+00 : f32
    %16 = vector.broadcast %cst_7 : f32 to vector<1x8xf32>
    %17 = arith.divf %16, %15 : vector<1x8xf32>
    %c0_8 = arith.constant 0 : index
    %c0_9 = arith.constant 0 : index
    %c0_10 = arith.constant 0 : index
    %18 = vector.load %arg4[%c0_8, %c0_9, %c0_10] : memref<2x2x8xf32, #tpu.memory_space<vmem>>, vector<2x2x8xf32>
    %19 = vector.extract_strided_slice %18 {offsets = [0, 0, 0], sizes = [2, 1, 8], strides = [1, 1, 1]} : vector<2x2x8xf32> to vector<2x1x8xf32>
    %cst_11 = arith.constant dense<0.000000e+00> : vector<1x8xf32>
    %20 = vector.multi_reduction <add>, %19, %cst_11 [0] : vector<2x1x8xf32> to vector<1x8xf32>
    %21 = vector.extract_strided_slice %18 {offsets = [0, 1, 0], sizes = [2, 1, 8], strides = [1, 1, 1]} : vector<2x2x8xf32> to vector<2x1x8xf32>
    %cst_12 = arith.constant dense<0.000000e+00> : vector<1x8xf32>
    %22 = vector.multi_reduction <add>, %21, %cst_12 [0] : vector<2x1x8xf32> to vector<1x8xf32>
    %cst_13 = arith.constant 7.812500e-03 : f32
    %23 = vector.broadcast %cst_13 : f32 to vector<1x8xf32>
    %24 = arith.mulf %20, %23 : vector<1x8xf32>
    %cst_14 = arith.constant 7.812500e-03 : f32
    %25 = vector.broadcast %cst_14 : f32 to vector<1x8xf32>
    %26 = arith.mulf %22, %25 : vector<1x8xf32>
    %27 = arith.mulf %24, %24 : vector<1x8xf32>
    %28 = arith.subf %26, %27 : vector<1x8xf32>
    %cst_15 = arith.constant 0.000000e+00 : f32
    %29 = vector.broadcast %cst_15 : f32 to vector<1x8xf32>
    %30 = arith.maximumf %28, %29 : vector<1x8xf32>
    %31 = math.sqrt %30 : vector<1x8xf32>
    %cst_16 = arith.constant 9.99999997E-7 : f32
    %32 = vector.broadcast %cst_16 : f32 to vector<1x8xf32>
    %33 = arith.addf %31, %32 : vector<1x8xf32>
    %cst_17 = arith.constant 1.000000e+00 : f32
    %34 = vector.broadcast %cst_17 : f32 to vector<1x8xf32>
    %35 = arith.divf %34, %33 : vector<1x8xf32>
    %c0_18 = arith.constant 0 : index
    %c0_19 = arith.constant 0 : index
    %36 = vector.load %arg1[%c0_18, %c0_19] : memref<128x8xf32, #tpu.memory_space<vmem>>, vector<128x8xf32>
    %37 = vector.broadcast %6 : vector<1x8xf32> to vector<128x8xf32>
    %38 = arith.subf %36, %37 : vector<128x8xf32>
    %39 = vector.broadcast %17 : vector<1x8xf32> to vector<128x8xf32>
    %40 = arith.mulf %38, %39 : vector<128x8xf32>
    %c0_20 = arith.constant 0 : index
    %c0_21 = arith.constant 0 : index
    %41 = vector.load %arg2[%c0_20, %c0_21] : memref<128x8xf32, #tpu.memory_space<vmem>>, vector<128x8xf32>
    %42 = vector.broadcast %24 : vector<1x8xf32> to vector<128x8xf32>
    %43 = arith.subf %41, %42 : vector<128x8xf32>
    %44 = vector.broadcast %35 : vector<1x8xf32> to vector<128x8xf32>
    %45 = arith.mulf %43, %44 : vector<128x8xf32>
    %46 = arith.truncf %40 : vector<128x8xf32> to vector<128x8xbf16>
    %c0_22 = arith.constant 0 : index
    %c0_23 = arith.constant 0 : index
    %47 = vector.load %arg5[%c0_22, %c0_23] : memref<8x16xbf16, #tpu.memory_space<vmem>>, vector<8x16xbf16>
    %cst_24 = arith.constant dense<0.000000e+00> : vector<128x16xf32>
    %48 = tpu.matmul %46, %47, %cst_24 {dimension_numbers = #tpu.dot_dimension_numbers<[1], [0], [0], [1], [0, 0, 1, 1], [], []>} : vector<128x8xbf16>, vector<8x16xbf16>, vector<128x16xf32> -> vector<128x16xf32>
    %49 = arith.truncf %45 : vector<128x8xf32> to vector<128x8xbf16>
    %c0_25 = arith.constant 0 : index
    %c0_26 = arith.constant 0 : index
    %50 = vector.load %arg6[%c0_25, %c0_26] : memref<8x16xbf16, #tpu.memory_space<vmem>>, vector<8x16xbf16>
    %cst_27 = arith.constant dense<0.000000e+00> : vector<128x16xf32>
    %51 = tpu.matmul %49, %50, %cst_27 {dimension_numbers = #tpu.dot_dimension_numbers<[1], [0], [0], [1], [0, 0, 1, 1], [], []>} : vector<128x8xbf16>, vector<8x16xbf16>, vector<128x16xf32> -> vector<128x16xf32>
    %52 = arith.addf %48, %51 : vector<128x16xf32>
    %53 = vector.extract_strided_slice %52 {offsets = [0, 0], sizes = [128, 8], strides = [1, 1]} : vector<128x16xf32> to vector<128x8xf32>
    %54 = vector.extract_strided_slice %52 {offsets = [0, 8], sizes = [128, 8], strides = [1, 1]} : vector<128x16xf32> to vector<128x8xf32>
    %c0_28 = arith.constant 0 : index
    %c0_29 = arith.constant 0 : index
    %55 = vector.load %arg8[%c0_28, %c0_29] : memref<128x8xf32, #tpu.memory_space<vmem>>, vector<128x8xf32>
    tpu.vector_store %arg8[%c0_28, %c0_29], %53 {strides = array<i32>} : memref<128x8xf32, #tpu.memory_space<vmem>>, vector<128x8xf32>,
    %c0_30 = arith.constant 0 : index
    %c0_31 = arith.constant 0 : index
    %56 = vector.load %arg9[%c0_30, %c0_31] : memref<128x8xf32, #tpu.memory_space<vmem>>, vector<128x8xf32>
    tpu.vector_store %arg9[%c0_30, %c0_31], %54 {strides = array<i32>} : memref<128x8xf32, #tpu.memory_space<vmem>>, vector<128x8xf32>,
    %cst_32 = arith.constant dense<0.000000e+00> : vector<8xf32>
    %57 = vector.multi_reduction <add>, %54, %cst_32 [0] : vector<128x8xf32> to vector<8xf32>
    %58 = vector.shape_cast %57 : vector<8xf32> to vector<1x8xf32>
    %59 = arith.mulf %54, %54 : vector<128x8xf32>
    %cst_33 = arith.constant dense<0.000000e+00> : vector<8xf32>
    %60 = vector.multi_reduction <add>, %59, %cst_33 [0] : vector<128x8xf32> to vector<8xf32>
    %61 = vector.shape_cast %60 : vector<8xf32> to vector<1x8xf32>
    %62 = tpu.concatenate %58, %61 in 0 : vector<1x8xf32>, vector<1x8xf32> -> vector<2x8xf32>
    %63 = vector.shape_cast %62 : vector<2x8xf32> to vector<1x2x8xf32>
    %c0_34 = arith.constant 0 : index
    %c0_35 = arith.constant 0 : index
    %c0_36 = arith.constant 0 : index
    %64 = vector.load %arg12[%c0_34, %c0_35, %c0_36] : memref<1x2x8xf32, #tpu.memory_space<vmem>>, vector<1x2x8xf32>
    tpu.vector_store %arg12[%c0_34, %c0_35, %c0_36], %63 {strides = array<i32>} : memref<1x2x8xf32, #tpu.memory_space<vmem>>, vector<1x2x8xf32>,
    %c0_i32 = arith.constant 0 : i32
    %65 = arith.cmpi eq, %arg0, %c0_i32 : i32
    %66 = arith.extui %65 : i1 to i32
    %c0_i32_37 = arith.constant 0 : i32
    %67 = arith.cmpi ne, %66, %c0_i32_37 : i32
    scf.if %67 {
      %cst_79 = arith.constant 0.000000e+00 : bf16
      %101 = vector.broadcast %cst_79 : bf16 to vector<2x8x8x72xbf16>
      %c0_80 = arith.constant 0 : index
      %c0_81 = arith.constant 0 : index
      %c0_82 = arith.constant 0 : index
      %c0_83 = arith.constant 0 : index
      %102 = vector.load %arg13[%c0_80, %c0_81, %c0_82, %c0_83] : memref<2x8x8x72xbf16, #tpu.memory_space<vmem>>, vector<2x8x8x72xbf16>
      tpu.vector_store %arg13[%c0_80, %c0_81, %c0_82, %c0_83], %101 {strides = array<i32>} : memref<2x8x8x72xbf16, #tpu.memory_space<vmem>>, vector<2x8x8x72xbf16>,
    } else {
    }
    %68 = arith.truncf %54 : vector<128x8xf32> to vector<128x8xbf16>
    %69 = vector.shape_cast %68 : vector<128x8xbf16> to vector<2x8x8x8xbf16>
    %70 = vector.extract_strided_slice %69 {offsets = [0, 0, 0, 0], sizes = [2, 7, 7, 8], strides = [1, 1, 1, 1]} : vector<2x8x8x8xbf16> to vector<2x7x7x8xbf16>
    %c0_38 = arith.constant 0 : index
    %c1 = arith.constant 1 : index
    %c1_39 = arith.constant 1 : index
    %c0_40 = arith.constant 0 : index
    %71 = vector.load %arg13[%c0_38, %c1, %c1_39, %c0_40] : memref<2x8x8x72xbf16, #tpu.memory_space<vmem>>, vector<2x7x7x8xbf16>
    tpu.vector_store %arg13[%c0_38, %c1, %c1_39, %c0_40], %70 {strides = array<i32>} : memref<2x8x8x72xbf16, #tpu.memory_space<vmem>>, vector<2x7x7x8xbf16>,
    %72 = vector.extract_strided_slice %69 {offsets = [0, 0, 0, 0], sizes = [2, 7, 8, 8], strides = [1, 1, 1, 1]} : vector<2x8x8x8xbf16> to vector<2x7x8x8xbf16>
    %c0_41 = arith.constant 0 : index
    %c1_42 = arith.constant 1 : index
    %c0_43 = arith.constant 0 : index
    %c8 = arith.constant 8 : index
    %73 = vector.load %arg13[%c0_41, %c1_42, %c0_43, %c8] : memref<2x8x8x72xbf16, #tpu.memory_space<vmem>>, vector<2x7x8x8xbf16>
    tpu.vector_store %arg13[%c0_41, %c1_42, %c0_43, %c8], %72 {strides = array<i32>} : memref<2x8x8x72xbf16, #tpu.memory_space<vmem>>, vector<2x7x8x8xbf16>,
    %74 = vector.extract_strided_slice %69 {offsets = [0, 0, 1, 0], sizes = [2, 7, 7, 8], strides = [1, 1, 1, 1]} : vector<2x8x8x8xbf16> to vector<2x7x7x8xbf16>
    %c0_44 = arith.constant 0 : index
    %c1_45 = arith.constant 1 : index
    %c0_46 = arith.constant 0 : index
    %c16 = arith.constant 16 : index
    %75 = vector.load %arg13[%c0_44, %c1_45, %c0_46, %c16] : memref<2x8x8x72xbf16, #tpu.memory_space<vmem>>, vector<2x7x7x8xbf16>
    tpu.vector_store %arg13[%c0_44, %c1_45, %c0_46, %c16], %74 {strides = array<i32>} : memref<2x8x8x72xbf16, #tpu.memory_space<vmem>>, vector<2x7x7x8xbf16>,
    %76 = vector.extract_strided_slice %69 {offsets = [0, 0, 0, 0], sizes = [2, 8, 7, 8], strides = [1, 1, 1, 1]} : vector<2x8x8x8xbf16> to vector<2x8x7x8xbf16>
    %c0_47 = arith.constant 0 : index
    %c0_48 = arith.constant 0 : index
    %c1_49 = arith.constant 1 : index
    %c24 = arith.constant 24 : index
    %77 = vector.load %arg13[%c0_47, %c0_48, %c1_49, %c24] : memref<2x8x8x72xbf16, #tpu.memory_space<vmem>>, vector<2x8x7x8xbf16>
    tpu.vector_store %arg13[%c0_47, %c0_48, %c1_49, %c24], %76 {strides = array<i32>} : memref<2x8x8x72xbf16, #tpu.memory_space<vmem>>, vector<2x8x7x8xbf16>,
    %c0_50 = arith.constant 0 : index
    %c0_51 = arith.constant 0 : index
    %c0_52 = arith.constant 0 : index
    %c32 = arith.constant 32 : index
    %78 = vector.load %arg13[%c0_50, %c0_51, %c0_52, %c32] : memref<2x8x8x72xbf16, #tpu.memory_space<vmem>>, vector<2x8x8x8xbf16>
    tpu.vector_store %arg13[%c0_50, %c0_51, %c0_52, %c32], %69 {strides = array<i32>} : memref<2x8x8x72xbf16, #tpu.memory_space<vmem>>, vector<2x8x8x8xbf16>,
    %79 = vector.extract_strided_slice %69 {offsets = [0, 0, 1, 0], sizes = [2, 8, 7, 8], strides = [1, 1, 1, 1]} : vector<2x8x8x8xbf16> to vector<2x8x7x8xbf16>
    %c0_53 = arith.constant 0 : index
    %c0_54 = arith.constant 0 : index
    %c0_55 = arith.constant 0 : index
    %c40 = arith.constant 40 : index
    %80 = vector.load %arg13[%c0_53, %c0_54, %c0_55, %c40] : memref<2x8x8x72xbf16, #tpu.memory_space<vmem>>, vector<2x8x7x8xbf16>
    tpu.vector_store %arg13[%c0_53, %c0_54, %c0_55, %c40], %79 {strides = array<i32>} : memref<2x8x8x72xbf16, #tpu.memory_space<vmem>>, vector<2x8x7x8xbf16>,
    %81 = vector.extract_strided_slice %69 {offsets = [0, 1, 0, 0], sizes = [2, 7, 7, 8], strides = [1, 1, 1, 1]} : vector<2x8x8x8xbf16> to vector<2x7x7x8xbf16>
    %c0_56 = arith.constant 0 : index
    %c0_57 = arith.constant 0 : index
    %c1_58 = arith.constant 1 : index
    %c48 = arith.constant 48 : index
    %82 = vector.load %arg13[%c0_56, %c0_57, %c1_58, %c48] : memref<2x8x8x72xbf16, #tpu.memory_space<vmem>>, vector<2x7x7x8xbf16>
    tpu.vector_store %arg13[%c0_56, %c0_57, %c1_58, %c48], %81 {strides = array<i32>} : memref<2x8x8x72xbf16, #tpu.memory_space<vmem>>, vector<2x7x7x8xbf16>,
    %83 = vector.extract_strided_slice %69 {offsets = [0, 1, 0, 0], sizes = [2, 7, 8, 8], strides = [1, 1, 1, 1]} : vector<2x8x8x8xbf16> to vector<2x7x8x8xbf16>
    %c0_59 = arith.constant 0 : index
    %c0_60 = arith.constant 0 : index
    %c0_61 = arith.constant 0 : index
    %c56 = arith.constant 56 : index
    %84 = vector.load %arg13[%c0_59, %c0_60, %c0_61, %c56] : memref<2x8x8x72xbf16, #tpu.memory_space<vmem>>, vector<2x7x8x8xbf16>
    tpu.vector_store %arg13[%c0_59, %c0_60, %c0_61, %c56], %83 {strides = array<i32>} : memref<2x8x8x72xbf16, #tpu.memory_space<vmem>>, vector<2x7x8x8xbf16>,
    %85 = vector.extract_strided_slice %69 {offsets = [0, 1, 1, 0], sizes = [2, 7, 7, 8], strides = [1, 1, 1, 1]} : vector<2x8x8x8xbf16> to vector<2x7x7x8xbf16>
    %c0_62 = arith.constant 0 : index
    %c0_63 = arith.constant 0 : index
    %c0_64 = arith.constant 0 : index
    %c64 = arith.constant 64 : index
    %86 = vector.load %arg13[%c0_62, %c0_63, %c0_64, %c64] : memref<2x8x8x72xbf16, #tpu.memory_space<vmem>>, vector<2x7x7x8xbf16>
    tpu.vector_store %arg13[%c0_62, %c0_63, %c0_64, %c64], %85 {strides = array<i32>} : memref<2x8x8x72xbf16, #tpu.memory_space<vmem>>, vector<2x7x7x8xbf16>,
    %c0_65 = arith.constant 0 : index
    %c0_66 = arith.constant 0 : index
    %c0_67 = arith.constant 0 : index
    %c0_68 = arith.constant 0 : index
    %87 = vector.load %arg13[%c0_65, %c0_66, %c0_67, %c0_68] : memref<2x8x8x72xbf16, #tpu.memory_space<vmem>>, vector<2x8x8x72xbf16>
    %88 = vector.shape_cast %87 : vector<2x8x8x72xbf16> to vector<128x72xbf16>
    %c0_69 = arith.constant 0 : index
    %c0_70 = arith.constant 0 : index
    %89 = vector.load %arg7[%c0_69, %c0_70] : memref<72x32xbf16, #tpu.memory_space<vmem>>, vector<72x32xbf16>
    %cst_71 = arith.constant dense<0.000000e+00> : vector<128x32xf32>
    %90 = tpu.matmul %88, %89, %cst_71 {dimension_numbers = #tpu.dot_dimension_numbers<[1], [0], [0], [1], [0, 0, 1, 1], [], []>} : vector<128x72xbf16>, vector<72x32xbf16>, vector<128x32xf32> -> vector<128x32xf32>
    %91 = arith.truncf %90 : vector<128x32xf32> to vector<128x32xbf16>
    %c0_72 = arith.constant 0 : index
    %c0_73 = arith.constant 0 : index
    %92 = vector.load %arg10[%c0_72, %c0_73] : memref<128x32xbf16, #tpu.memory_space<vmem>>, vector<128x32xbf16>
    tpu.vector_store %arg10[%c0_72, %c0_73], %91 {strides = array<i32>} : memref<128x32xbf16, #tpu.memory_space<vmem>>, vector<128x32xbf16>,
    %cst_74 = arith.constant dense<0.000000e+00> : vector<32xf32>
    %93 = vector.multi_reduction <add>, %90, %cst_74 [0] : vector<128x32xf32> to vector<32xf32>
    %94 = vector.shape_cast %93 : vector<32xf32> to vector<1x32xf32>
    %95 = arith.mulf %90, %90 : vector<128x32xf32>
    %cst_75 = arith.constant dense<0.000000e+00> : vector<32xf32>
    %96 = vector.multi_reduction <add>, %95, %cst_75 [0] : vector<128x32xf32> to vector<32xf32>
    %97 = vector.shape_cast %96 : vector<32xf32> to vector<1x32xf32>
    %98 = tpu.concatenate %94, %97 in 0 : vector<1x32xf32>, vector<1x32xf32> -> vector<2x32xf32>
    %99 = vector.shape_cast %98 : vector<2x32xf32> to vector<1x2x32xf32>
    %c0_76 = arith.constant 0 : index
    %c0_77 = arith.constant 0 : index
    %c0_78 = arith.constant 0 : index
    %100 = vector.load %arg11[%c0_76, %c0_77, %c0_78] : memref<1x2x32xf32, #tpu.memory_space<vmem>>, vector<1x2x32xf32>
    tpu.vector_store %arg11[%c0_76, %c0_77, %c0_78], %99 {strides = array<i32>} : memref<1x2x32xf32, #tpu.memory_space<vmem>>, vector<1x2x32xf32>,
    return
  }
  func.func @transform_0(%arg0: i32) -> (i32, i32) {
    %c0_i32 = arith.constant 0 : i32
    %c0_i32_0 = arith.constant 0 : i32
    return %arg0, %c0_i32 : i32, i32
  }
  func.func @transform_1(%arg0: i32) -> (i32, i32) {
    %c0_i32 = arith.constant 0 : i32
    %c0_i32_0 = arith.constant 0 : i32
    return %arg0, %c0_i32 : i32, i32
  }
  func.func @transform_2(%arg0: i32) -> (i32, i32, i32) {
    %c0_i32 = arith.constant 0 : i32
    %c0_i32_0 = arith.constant 0 : i32
    %c0_i32_1 = arith.constant 0 : i32
    %c0_i32_2 = arith.constant 0 : i32
    return %c0_i32, %c0_i32_0, %c0_i32_1 : i32, i32, i32
  }
  func.func @transform_3(%arg0: i32) -> (i32, i32, i32) {
    %c0_i32 = arith.constant 0 : i32
    %c0_i32_0 = arith.constant 0 : i32
    %c0_i32_1 = arith.constant 0 : i32
    %c0_i32_2 = arith.constant 0 : i32
    return %c0_i32, %c0_i32_0, %c0_i32_1 : i32, i32, i32
  }
  func.func @transform_4(%arg0: i32) -> (i32, i32) {
    %c0_i32 = arith.constant 0 : i32
    %c0_i32_0 = arith.constant 0 : i32
    %c0_i32_1 = arith.constant 0 : i32
    return %c0_i32, %c0_i32_0 : i32, i32
  }
  func.func @transform_5(%arg0: i32) -> (i32, i32) {
    %c0_i32 = arith.constant 0 : i32
    %c0_i32_0 = arith.constant 0 : i32
    %c0_i32_1 = arith.constant 0 : i32
    return %c0_i32, %c0_i32_0 : i32, i32
  }
  func.func @transform_6(%arg0: i32) -> (i32, i32) {
    %c0_i32 = arith.constant 0 : i32
    %c0_i32_0 = arith.constant 0 : i32
    %c0_i32_1 = arith.constant 0 : i32
    return %c0_i32, %c0_i32_0 : i32, i32
  }
  func.func @transform_7(%arg0: i32) -> (i32, i32) {
    %c0_i32 = arith.constant 0 : i32
    %c0_i32_0 = arith.constant 0 : i32
    return %arg0, %c0_i32 : i32, i32
  }
  func.func @transform_8(%arg0: i32) -> (i32, i32) {
    %c0_i32 = arith.constant 0 : i32
    %c0_i32_0 = arith.constant 0 : i32
    return %arg0, %c0_i32 : i32, i32
  }
  func.func @transform_9(%arg0: i32) -> (i32, i32) {
    %c0_i32 = arith.constant 0 : i32
    %c0_i32_0 = arith.constant 0 : i32
    return %arg0, %c0_i32 : i32, i32
  }
  func.func @transform_10(%arg0: i32) -> (i32, i32, i32) {
    %c0_i32 = arith.constant 0 : i32
    %c0_i32_0 = arith.constant 0 : i32
    %c0_i32_1 = arith.constant 0 : i32
    return %arg0, %c0_i32, %c0_i32_0 : i32, i32, i32
  }
  func.func @transform_11(%arg0: i32) -> (i32, i32, i32) {
    %c0_i32 = arith.constant 0 : i32
    %c0_i32_0 = arith.constant 0 : i32
    %c0_i32_1 = arith.constant 0 : i32
    return %arg0, %c0_i32, %c0_i32_0 : i32, i32, i32
  }
}

module attributes {stable_mosaic.version = 11 : i64} {
  func.func @_tail_kernel(%arg0: i32, %arg1: memref<128x32xbf16, #tpu.memory_space<vmem>>, %arg2: memref<128x8xf32, #tpu.memory_space<vmem>>, %arg3: memref<2x2x32xf32, #tpu.memory_space<vmem>>, %arg4: memref<288x16xbf16, #tpu.memory_space<vmem>>, %arg5: memref<1x16xf32, #tpu.memory_space<vmem>>, %arg6: memref<128x8xf32, #tpu.memory_space<vmem>>, %arg7: memref<1x2x8xf32, #tpu.memory_space<vmem>>, %arg8: memref<2x8x8x288xbf16, #tpu.memory_space<vmem>>) attributes {dimension_semantics = [#tpu.dimension_semantics<parallel>], iteration_bounds = array<i64: 1>, scalar_prefetch = 0 : i64, scratch_operands = 1 : i64, tpu.core_type = #tpu.core_type<tc>, window_params = [{transform_indices = @transform_0, window_bounds = array<i64: 128, 32>}, {transform_indices = @transform_1, window_bounds = array<i64: 128, 8>}, {pipeline_mode = #tpu.pipeline_mode<synchronous>, transform_indices = @transform_2, window_bounds = array<i64: 2, 2, 32>}, {pipeline_mode = #tpu.pipeline_mode<synchronous>, transform_indices = @transform_3, window_bounds = array<i64: 288, 16>}, {pipeline_mode = #tpu.pipeline_mode<synchronous>, transform_indices = @transform_4, window_bounds = array<i64: 1, 16>}, {transform_indices = @transform_5, window_bounds = array<i64: 128, 8>}, {transform_indices = @transform_6, window_bounds = array<i64: 1, 2, 8>}]} {
    %c0 = arith.constant 0 : index
    %c0_0 = arith.constant 0 : index
    %c0_1 = arith.constant 0 : index
    %0 = vector.load %arg3[%c0, %c0_0, %c0_1] : memref<2x2x32xf32, #tpu.memory_space<vmem>>, vector<2x2x32xf32>
    %1 = vector.extract_strided_slice %0 {offsets = [0, 0, 0], sizes = [2, 1, 32], strides = [1, 1, 1]} : vector<2x2x32xf32> to vector<2x1x32xf32>
    %cst = arith.constant dense<0.000000e+00> : vector<1x32xf32>
    %2 = vector.multi_reduction <add>, %1, %cst [0] : vector<2x1x32xf32> to vector<1x32xf32>
    %3 = vector.extract_strided_slice %0 {offsets = [0, 1, 0], sizes = [2, 1, 32], strides = [1, 1, 1]} : vector<2x2x32xf32> to vector<2x1x32xf32>
    %cst_2 = arith.constant dense<0.000000e+00> : vector<1x32xf32>
    %4 = vector.multi_reduction <add>, %3, %cst_2 [0] : vector<2x1x32xf32> to vector<1x32xf32>
    %cst_3 = arith.constant 5.000000e-03 : f32
    %5 = vector.broadcast %cst_3 : f32 to vector<1x32xf32>
    %6 = arith.mulf %2, %5 : vector<1x32xf32>
    %cst_4 = arith.constant 5.000000e-03 : f32
    %7 = vector.broadcast %cst_4 : f32 to vector<1x32xf32>
    %8 = arith.mulf %4, %7 : vector<1x32xf32>
    %9 = arith.mulf %6, %6 : vector<1x32xf32>
    %10 = arith.subf %8, %9 : vector<1x32xf32>
    %cst_5 = arith.constant 0.000000e+00 : f32
    %11 = vector.broadcast %cst_5 : f32 to vector<1x32xf32>
    %12 = arith.maximumf %10, %11 : vector<1x32xf32>
    %13 = math.sqrt %12 : vector<1x32xf32>
    %cst_6 = arith.constant 9.99999997E-7 : f32
    %14 = vector.broadcast %cst_6 : f32 to vector<1x32xf32>
    %15 = arith.addf %13, %14 : vector<1x32xf32>
    %cst_7 = arith.constant 1.000000e+00 : f32
    %16 = vector.broadcast %cst_7 : f32 to vector<1x32xf32>
    %17 = arith.divf %16, %15 : vector<1x32xf32>
    %cst_8 = arith.constant 0.000000e+00 : f32
    %18 = vector.broadcast %cst_8 : f32 to vector<1x32xf32>
    %19 = arith.subf %18, %6 : vector<1x32xf32>
    %20 = arith.mulf %19, %17 : vector<1x32xf32>
    %cst_9 = arith.constant 0.000000e+00 : f32
    %21 = vector.broadcast %cst_9 : f32 to vector<1x32xf32>
    %22 = arith.maximumf %20, %21 : vector<1x32xf32>
    %23 = arith.truncf %22 : vector<1x32xf32> to vector<1x32xbf16>
    %c0_10 = arith.constant 0 : index
    %c0_11 = arith.constant 0 : index
    %24 = vector.load %arg1[%c0_10, %c0_11] : memref<128x32xbf16, #tpu.memory_space<vmem>>, vector<128x32xbf16>
    %25 = arith.extf %24 : vector<128x32xbf16> to vector<128x32xf32>
    %26 = vector.broadcast %6 : vector<1x32xf32> to vector<128x32xf32>
    %27 = arith.subf %25, %26 : vector<128x32xf32>
    %28 = vector.broadcast %17 : vector<1x32xf32> to vector<128x32xf32>
    %29 = arith.mulf %27, %28 : vector<128x32xf32>
    %cst_12 = arith.constant 0.000000e+00 : f32
    %30 = vector.broadcast %cst_12 : f32 to vector<128x32xf32>
    %31 = arith.maximumf %29, %30 : vector<128x32xf32>
    %c0_i32 = arith.constant 0 : i32
    %32 = arith.cmpi eq, %arg0, %c0_i32 : i32
    %33 = arith.extui %32 : i1 to i32
    %c0_i32_13 = arith.constant 0 : i32
    %34 = arith.cmpi ne, %33, %c0_i32_13 : i32
    scf.if %34 {
      %86 = vector.shape_cast %23 : vector<1x32xbf16> to vector<1x1x1x32xbf16>
      %87 = vector.shape_cast %86 : vector<1x1x1x32xbf16> to vector<1x1x1x32xbf16>
      %88 = vector.broadcast %87 : vector<1x1x1x32xbf16> to vector<2x8x8x32xbf16>
      %c0_63 = arith.constant 0 : index
      %c0_64 = arith.constant 0 : index
      %c0_65 = arith.constant 0 : index
      %c0_66 = arith.constant 0 : index
      %89 = vector.load %arg8[%c0_63, %c0_64, %c0_65, %c0_66] : memref<2x8x8x288xbf16, #tpu.memory_space<vmem>>, vector<2x8x8x32xbf16>
      tpu.vector_store %arg8[%c0_63, %c0_64, %c0_65, %c0_66], %88 {strides = array<i32>} : memref<2x8x8x288xbf16, #tpu.memory_space<vmem>>, vector<2x8x8x32xbf16>,
      %c0_67 = arith.constant 0 : index
      %c0_68 = arith.constant 0 : index
      %c0_69 = arith.constant 0 : index
      %c32_70 = arith.constant 32 : index
      %90 = vector.load %arg8[%c0_67, %c0_68, %c0_69, %c32_70] : memref<2x8x8x288xbf16, #tpu.memory_space<vmem>>, vector<2x8x8x32xbf16>
      tpu.vector_store %arg8[%c0_67, %c0_68, %c0_69, %c32_70], %88 {strides = array<i32>} : memref<2x8x8x288xbf16, #tpu.memory_space<vmem>>, vector<2x8x8x32xbf16>,
      %c0_71 = arith.constant 0 : index
      %c0_72 = arith.constant 0 : index
      %c0_73 = arith.constant 0 : index
      %c64_74 = arith.constant 64 : index
      %91 = vector.load %arg8[%c0_71, %c0_72, %c0_73, %c64_74] : memref<2x8x8x288xbf16, #tpu.memory_space<vmem>>, vector<2x8x8x32xbf16>
      tpu.vector_store %arg8[%c0_71, %c0_72, %c0_73, %c64_74], %88 {strides = array<i32>} : memref<2x8x8x288xbf16, #tpu.memory_space<vmem>>, vector<2x8x8x32xbf16>,
      %c0_75 = arith.constant 0 : index
      %c0_76 = arith.constant 0 : index
      %c0_77 = arith.constant 0 : index
      %c96_78 = arith.constant 96 : index
      %92 = vector.load %arg8[%c0_75, %c0_76, %c0_77, %c96_78] : memref<2x8x8x288xbf16, #tpu.memory_space<vmem>>, vector<2x8x8x32xbf16>
      tpu.vector_store %arg8[%c0_75, %c0_76, %c0_77, %c96_78], %88 {strides = array<i32>} : memref<2x8x8x288xbf16, #tpu.memory_space<vmem>>, vector<2x8x8x32xbf16>,
      %c0_79 = arith.constant 0 : index
      %c0_80 = arith.constant 0 : index
      %c0_81 = arith.constant 0 : index
      %c128_82 = arith.constant 128 : index
      %93 = vector.load %arg8[%c0_79, %c0_80, %c0_81, %c128_82] : memref<2x8x8x288xbf16, #tpu.memory_space<vmem>>, vector<2x8x8x32xbf16>
      tpu.vector_store %arg8[%c0_79, %c0_80, %c0_81, %c128_82], %88 {strides = array<i32>} : memref<2x8x8x288xbf16, #tpu.memory_space<vmem>>, vector<2x8x8x32xbf16>,
      %c0_83 = arith.constant 0 : index
      %c0_84 = arith.constant 0 : index
      %c0_85 = arith.constant 0 : index
      %c160_86 = arith.constant 160 : index
      %94 = vector.load %arg8[%c0_83, %c0_84, %c0_85, %c160_86] : memref<2x8x8x288xbf16, #tpu.memory_space<vmem>>, vector<2x8x8x32xbf16>
      tpu.vector_store %arg8[%c0_83, %c0_84, %c0_85, %c160_86], %88 {strides = array<i32>} : memref<2x8x8x288xbf16, #tpu.memory_space<vmem>>, vector<2x8x8x32xbf16>,
      %c0_87 = arith.constant 0 : index
      %c0_88 = arith.constant 0 : index
      %c0_89 = arith.constant 0 : index
      %c192_90 = arith.constant 192 : index
      %95 = vector.load %arg8[%c0_87, %c0_88, %c0_89, %c192_90] : memref<2x8x8x288xbf16, #tpu.memory_space<vmem>>, vector<2x8x8x32xbf16>
      tpu.vector_store %arg8[%c0_87, %c0_88, %c0_89, %c192_90], %88 {strides = array<i32>} : memref<2x8x8x288xbf16, #tpu.memory_space<vmem>>, vector<2x8x8x32xbf16>,
      %c0_91 = arith.constant 0 : index
      %c0_92 = arith.constant 0 : index
      %c0_93 = arith.constant 0 : index
      %c224_94 = arith.constant 224 : index
      %96 = vector.load %arg8[%c0_91, %c0_92, %c0_93, %c224_94] : memref<2x8x8x288xbf16, #tpu.memory_space<vmem>>, vector<2x8x8x32xbf16>
      tpu.vector_store %arg8[%c0_91, %c0_92, %c0_93, %c224_94], %88 {strides = array<i32>} : memref<2x8x8x288xbf16, #tpu.memory_space<vmem>>, vector<2x8x8x32xbf16>,
      %c0_95 = arith.constant 0 : index
      %c0_96 = arith.constant 0 : index
      %c0_97 = arith.constant 0 : index
      %c256_98 = arith.constant 256 : index
      %97 = vector.load %arg8[%c0_95, %c0_96, %c0_97, %c256_98] : memref<2x8x8x288xbf16, #tpu.memory_space<vmem>>, vector<2x8x8x32xbf16>
      tpu.vector_store %arg8[%c0_95, %c0_96, %c0_97, %c256_98], %88 {strides = array<i32>} : memref<2x8x8x288xbf16, #tpu.memory_space<vmem>>, vector<2x8x8x32xbf16>,
    } else {
    }
    %35 = arith.truncf %31 : vector<128x32xf32> to vector<128x32xbf16>
    %36 = vector.shape_cast %35 : vector<128x32xbf16> to vector<2x8x8x32xbf16>
    %37 = vector.extract_strided_slice %36 {offsets = [0, 0, 0, 0], sizes = [2, 7, 7, 32], strides = [1, 1, 1, 1]} : vector<2x8x8x32xbf16> to vector<2x7x7x32xbf16>
    %c0_14 = arith.constant 0 : index
    %c1 = arith.constant 1 : index
    %c1_15 = arith.constant 1 : index
    %c0_16 = arith.constant 0 : index
    %38 = vector.load %arg8[%c0_14, %c1, %c1_15, %c0_16] : memref<2x8x8x288xbf16, #tpu.memory_space<vmem>>, vector<2x7x7x32xbf16>
    tpu.vector_store %arg8[%c0_14, %c1, %c1_15, %c0_16], %37 {strides = array<i32>} : memref<2x8x8x288xbf16, #tpu.memory_space<vmem>>, vector<2x7x7x32xbf16>,
    %39 = vector.extract_strided_slice %36 {offsets = [0, 0, 0, 0], sizes = [2, 7, 8, 32], strides = [1, 1, 1, 1]} : vector<2x8x8x32xbf16> to vector<2x7x8x32xbf16>
    %c0_17 = arith.constant 0 : index
    %c1_18 = arith.constant 1 : index
    %c0_19 = arith.constant 0 : index
    %c32 = arith.constant 32 : index
    %40 = vector.load %arg8[%c0_17, %c1_18, %c0_19, %c32] : memref<2x8x8x288xbf16, #tpu.memory_space<vmem>>, vector<2x7x8x32xbf16>
    tpu.vector_store %arg8[%c0_17, %c1_18, %c0_19, %c32], %39 {strides = array<i32>} : memref<2x8x8x288xbf16, #tpu.memory_space<vmem>>, vector<2x7x8x32xbf16>,
    %41 = vector.extract_strided_slice %36 {offsets = [0, 0, 1, 0], sizes = [2, 7, 7, 32], strides = [1, 1, 1, 1]} : vector<2x8x8x32xbf16> to vector<2x7x7x32xbf16>
    %c0_20 = arith.constant 0 : index
    %c1_21 = arith.constant 1 : index
    %c0_22 = arith.constant 0 : index
    %c64 = arith.constant 64 : index
    %42 = vector.load %arg8[%c0_20, %c1_21, %c0_22, %c64] : memref<2x8x8x288xbf16, #tpu.memory_space<vmem>>, vector<2x7x7x32xbf16>
    tpu.vector_store %arg8[%c0_20, %c1_21, %c0_22, %c64], %41 {strides = array<i32>} : memref<2x8x8x288xbf16, #tpu.memory_space<vmem>>, vector<2x7x7x32xbf16>,
    %43 = vector.extract_strided_slice %36 {offsets = [0, 0, 0, 0], sizes = [2, 8, 7, 32], strides = [1, 1, 1, 1]} : vector<2x8x8x32xbf16> to vector<2x8x7x32xbf16>
    %c0_23 = arith.constant 0 : index
    %c0_24 = arith.constant 0 : index
    %c1_25 = arith.constant 1 : index
    %c96 = arith.constant 96 : index
    %44 = vector.load %arg8[%c0_23, %c0_24, %c1_25, %c96] : memref<2x8x8x288xbf16, #tpu.memory_space<vmem>>, vector<2x8x7x32xbf16>
    tpu.vector_store %arg8[%c0_23, %c0_24, %c1_25, %c96], %43 {strides = array<i32>} : memref<2x8x8x288xbf16, #tpu.memory_space<vmem>>, vector<2x8x7x32xbf16>,
    %c0_26 = arith.constant 0 : index
    %c0_27 = arith.constant 0 : index
    %c0_28 = arith.constant 0 : index
    %c128 = arith.constant 128 : index
    %45 = vector.load %arg8[%c0_26, %c0_27, %c0_28, %c128] : memref<2x8x8x288xbf16, #tpu.memory_space<vmem>>, vector<2x8x8x32xbf16>
    tpu.vector_store %arg8[%c0_26, %c0_27, %c0_28, %c128], %36 {strides = array<i32>} : memref<2x8x8x288xbf16, #tpu.memory_space<vmem>>, vector<2x8x8x32xbf16>,
    %46 = vector.extract_strided_slice %36 {offsets = [0, 0, 1, 0], sizes = [2, 8, 7, 32], strides = [1, 1, 1, 1]} : vector<2x8x8x32xbf16> to vector<2x8x7x32xbf16>
    %c0_29 = arith.constant 0 : index
    %c0_30 = arith.constant 0 : index
    %c0_31 = arith.constant 0 : index
    %c160 = arith.constant 160 : index
    %47 = vector.load %arg8[%c0_29, %c0_30, %c0_31, %c160] : memref<2x8x8x288xbf16, #tpu.memory_space<vmem>>, vector<2x8x7x32xbf16>
    tpu.vector_store %arg8[%c0_29, %c0_30, %c0_31, %c160], %46 {strides = array<i32>} : memref<2x8x8x288xbf16, #tpu.memory_space<vmem>>, vector<2x8x7x32xbf16>,
    %48 = vector.extract_strided_slice %36 {offsets = [0, 1, 0, 0], sizes = [2, 7, 7, 32], strides = [1, 1, 1, 1]} : vector<2x8x8x32xbf16> to vector<2x7x7x32xbf16>
    %c0_32 = arith.constant 0 : index
    %c0_33 = arith.constant 0 : index
    %c1_34 = arith.constant 1 : index
    %c192 = arith.constant 192 : index
    %49 = vector.load %arg8[%c0_32, %c0_33, %c1_34, %c192] : memref<2x8x8x288xbf16, #tpu.memory_space<vmem>>, vector<2x7x7x32xbf16>
    tpu.vector_store %arg8[%c0_32, %c0_33, %c1_34, %c192], %48 {strides = array<i32>} : memref<2x8x8x288xbf16, #tpu.memory_space<vmem>>, vector<2x7x7x32xbf16>,
    %50 = vector.extract_strided_slice %36 {offsets = [0, 1, 0, 0], sizes = [2, 7, 8, 32], strides = [1, 1, 1, 1]} : vector<2x8x8x32xbf16> to vector<2x7x8x32xbf16>
    %c0_35 = arith.constant 0 : index
    %c0_36 = arith.constant 0 : index
    %c0_37 = arith.constant 0 : index
    %c224 = arith.constant 224 : index
    %51 = vector.load %arg8[%c0_35, %c0_36, %c0_37, %c224] : memref<2x8x8x288xbf16, #tpu.memory_space<vmem>>, vector<2x7x8x32xbf16>
    tpu.vector_store %arg8[%c0_35, %c0_36, %c0_37, %c224], %50 {strides = array<i32>} : memref<2x8x8x288xbf16, #tpu.memory_space<vmem>>, vector<2x7x8x32xbf16>,
    %52 = vector.extract_strided_slice %36 {offsets = [0, 1, 1, 0], sizes = [2, 7, 7, 32], strides = [1, 1, 1, 1]} : vector<2x8x8x32xbf16> to vector<2x7x7x32xbf16>
    %c0_38 = arith.constant 0 : index
    %c0_39 = arith.constant 0 : index
    %c0_40 = arith.constant 0 : index
    %c256 = arith.constant 256 : index
    %53 = vector.load %arg8[%c0_38, %c0_39, %c0_40, %c256] : memref<2x8x8x288xbf16, #tpu.memory_space<vmem>>, vector<2x7x7x32xbf16>
    tpu.vector_store %arg8[%c0_38, %c0_39, %c0_40, %c256], %52 {strides = array<i32>} : memref<2x8x8x288xbf16, #tpu.memory_space<vmem>>, vector<2x7x7x32xbf16>,
    %c0_41 = arith.constant 0 : index
    %c0_42 = arith.constant 0 : index
    %c0_43 = arith.constant 0 : index
    %c0_44 = arith.constant 0 : index
    %54 = vector.load %arg8[%c0_41, %c0_42, %c0_43, %c0_44] : memref<2x8x8x288xbf16, #tpu.memory_space<vmem>>, vector<2x8x8x288xbf16>
    %55 = vector.shape_cast %54 : vector<2x8x8x288xbf16> to vector<128x288xbf16>
    %c0_45 = arith.constant 0 : index
    %c0_46 = arith.constant 0 : index
    %56 = vector.load %arg4[%c0_45, %c0_46] : memref<288x16xbf16, #tpu.memory_space<vmem>>, vector<288x16xbf16>
    %cst_47 = arith.constant dense<0.000000e+00> : vector<128x16xf32>
    %57 = tpu.matmul %55, %56, %cst_47 {dimension_numbers = #tpu.dot_dimension_numbers<[1], [0], [0], [1], [0, 0, 1, 1], [], []>} : vector<128x288xbf16>, vector<288x16xbf16>, vector<128x16xf32> -> vector<128x16xf32>
    %c0_48 = arith.constant 0 : index
    %c0_49 = arith.constant 0 : index
    %58 = vector.load %arg5[%c0_48, %c0_49] : memref<1x16xf32, #tpu.memory_space<vmem>>, vector<1x16xf32>
    %59 = vector.broadcast %58 : vector<1x16xf32> to vector<128x16xf32>
    %60 = arith.addf %57, %59 : vector<128x16xf32>
    %61 = vector.extract_strided_slice %60 {offsets = [0, 0], sizes = [128, 8], strides = [1, 1]} : vector<128x16xf32> to vector<128x8xf32>
    %62 = vector.extract_strided_slice %60 {offsets = [0, 8], sizes = [128, 8], strides = [1, 1]} : vector<128x16xf32> to vector<128x8xf32>
    %cst_50 = arith.constant 2.000000e+00 : f32
    %63 = vector.broadcast %cst_50 : f32 to vector<128x8xf32>
    %64 = arith.addf %62, %63 : vector<128x8xf32>
    %65 = arith.negf %64 : vector<128x8xf32>
    %66 = math.exp %65 : vector<128x8xf32>
    %cst_51 = arith.constant 1.000000e+00 : f32
    %67 = vector.broadcast %cst_51 : f32 to vector<128x8xf32>
    %68 = arith.addf %67, %66 : vector<128x8xf32>
    %69 = arith.divf %67, %68 : vector<128x8xf32>
    %c0_52 = arith.constant 0 : index
    %c0_53 = arith.constant 0 : index
    %70 = vector.load %arg2[%c0_52, %c0_53] : memref<128x8xf32, #tpu.memory_space<vmem>>, vector<128x8xf32>
    %71 = arith.mulf %69, %70 : vector<128x8xf32>
    %72 = arith.addf %71, %61 : vector<128x8xf32>
    %cst_54 = arith.constant -1.000000e+09 : f32
    %cst_55 = arith.constant 1.000000e+09 : f32
    %73 = vector.broadcast %cst_54 : f32 to vector<128x8xf32>
    %74 = arith.maximumf %73, %72 : vector<128x8xf32>
    %75 = vector.broadcast %cst_55 : f32 to vector<128x8xf32>
    %76 = arith.minimumf %75, %74 : vector<128x8xf32>
    %c0_56 = arith.constant 0 : index
    %c0_57 = arith.constant 0 : index
    %77 = vector.load %arg6[%c0_56, %c0_57] : memref<128x8xf32, #tpu.memory_space<vmem>>, vector<128x8xf32>
    tpu.vector_store %arg6[%c0_56, %c0_57], %76 {strides = array<i32>} : memref<128x8xf32, #tpu.memory_space<vmem>>, vector<128x8xf32>,
    %cst_58 = arith.constant dense<0.000000e+00> : vector<8xf32>
    %78 = vector.multi_reduction <add>, %76, %cst_58 [0] : vector<128x8xf32> to vector<8xf32>
    %79 = vector.shape_cast %78 : vector<8xf32> to vector<1x8xf32>
    %80 = arith.mulf %76, %76 : vector<128x8xf32>
    %cst_59 = arith.constant dense<0.000000e+00> : vector<8xf32>
    %81 = vector.multi_reduction <add>, %80, %cst_59 [0] : vector<128x8xf32> to vector<8xf32>
    %82 = vector.shape_cast %81 : vector<8xf32> to vector<1x8xf32>
    %83 = tpu.concatenate %79, %82 in 0 : vector<1x8xf32>, vector<1x8xf32> -> vector<2x8xf32>
    %84 = vector.shape_cast %83 : vector<2x8xf32> to vector<1x2x8xf32>
    %c0_60 = arith.constant 0 : index
    %c0_61 = arith.constant 0 : index
    %c0_62 = arith.constant 0 : index
    %85 = vector.load %arg7[%c0_60, %c0_61, %c0_62] : memref<1x2x8xf32, #tpu.memory_space<vmem>>, vector<1x2x8xf32>
    tpu.vector_store %arg7[%c0_60, %c0_61, %c0_62], %84 {strides = array<i32>} : memref<1x2x8xf32, #tpu.memory_space<vmem>>, vector<1x2x8xf32>,
    return
  }
  func.func @transform_0(%arg0: i32) -> (i32, i32) {
    %c0_i32 = arith.constant 0 : i32
    %c0_i32_0 = arith.constant 0 : i32
    return %arg0, %c0_i32 : i32, i32
  }
  func.func @transform_1(%arg0: i32) -> (i32, i32) {
    %c0_i32 = arith.constant 0 : i32
    %c0_i32_0 = arith.constant 0 : i32
    return %arg0, %c0_i32 : i32, i32
  }
  func.func @transform_2(%arg0: i32) -> (i32, i32, i32) {
    %c0_i32 = arith.constant 0 : i32
    %c0_i32_0 = arith.constant 0 : i32
    %c0_i32_1 = arith.constant 0 : i32
    %c0_i32_2 = arith.constant 0 : i32
    return %c0_i32, %c0_i32_0, %c0_i32_1 : i32, i32, i32
  }
  func.func @transform_3(%arg0: i32) -> (i32, i32) {
    %c0_i32 = arith.constant 0 : i32
    %c0_i32_0 = arith.constant 0 : i32
    %c0_i32_1 = arith.constant 0 : i32
    return %c0_i32, %c0_i32_0 : i32, i32
  }
  func.func @transform_4(%arg0: i32) -> (i32, i32) {
    %c0_i32 = arith.constant 0 : i32
    %c0_i32_0 = arith.constant 0 : i32
    %c0_i32_1 = arith.constant 0 : i32
    return %c0_i32, %c0_i32_0 : i32, i32
  }
  func.func @transform_5(%arg0: i32) -> (i32, i32) {
    %c0_i32 = arith.constant 0 : i32
    %c0_i32_0 = arith.constant 0 : i32
    return %arg0, %c0_i32 : i32, i32
  }
  func.func @transform_6(%arg0: i32) -> (i32, i32, i32) {
    %c0_i32 = arith.constant 0 : i32
    %c0_i32_0 = arith.constant 0 : i32
    %c0_i32_1 = arith.constant 0 : i32
    return %arg0, %c0_i32, %c0_i32_0 : i32, i32, i32
  }
}

module attributes {stable_mosaic.version = 11 : i64} {
  func.func @_mix_conv1_kernel(%arg0: i32, %arg1: memref<128x8xf32, #tpu.memory_space<vmem>>, %arg2: memref<128x8xf32, #tpu.memory_space<vmem>>, %arg3: memref<1x2x8xf32, #tpu.memory_space<vmem>>, %arg4: memref<1x2x8xf32, #tpu.memory_space<vmem>>, %arg5: memref<8x16xbf16, #tpu.memory_space<vmem>>, %arg6: memref<8x16xbf16, #tpu.memory_space<vmem>>, %arg7: memref<72x32xbf16, #tpu.memory_space<vmem>>, %arg8: memref<128x8xf32, #tpu.memory_space<vmem>>, %arg9: memref<128x8xf32, #tpu.memory_space<vmem>>, %arg10: memref<128x32xbf16, #tpu.memory_space<vmem>>, %arg11: memref<1x2x32xf32, #tpu.memory_space<vmem>>, %arg12: memref<1x2x8xf32, #tpu.memory_space<vmem>>, %arg13: memref<2x8x8x72xbf16, #tpu.memory_space<vmem>>) attributes {dimension_semantics = [#tpu.dimension_semantics<parallel>], iteration_bounds = array<i64: 1>, scalar_prefetch = 0 : i64, scratch_operands = 1 : i64, tpu.core_type = #tpu.core_type<tc>, window_params = [{transform_indices = @transform_0, window_bounds = array<i64: 128, 8>}, {transform_indices = @transform_1, window_bounds = array<i64: 128, 8>}, {pipeline_mode = #tpu.pipeline_mode<synchronous>, transform_indices = @transform_2, window_bounds = array<i64: 1, 2, 8>}, {pipeline_mode = #tpu.pipeline_mode<synchronous>, transform_indices = @transform_3, window_bounds = array<i64: 1, 2, 8>}, {pipeline_mode = #tpu.pipeline_mode<synchronous>, transform_indices = @transform_4, window_bounds = array<i64: 8, 16>}, {pipeline_mode = #tpu.pipeline_mode<synchronous>, transform_indices = @transform_5, window_bounds = array<i64: 8, 16>}, {pipeline_mode = #tpu.pipeline_mode<synchronous>, transform_indices = @transform_6, window_bounds = array<i64: 72, 32>}, {transform_indices = @transform_7, window_bounds = array<i64: 128, 8>}, {transform_indices = @transform_8, window_bounds = array<i64: 128, 8>}, {transform_indices = @transform_9, window_bounds = array<i64: 128, 32>}, {transform_indices = @transform_10, window_bounds = array<i64: 1, 2, 32>}, {transform_indices = @transform_11, window_bounds = array<i64: 1, 2, 8>}]} {
    %c0 = arith.constant 0 : index
    %c0_0 = arith.constant 0 : index
    %c0_1 = arith.constant 0 : index
    %0 = vector.load %arg3[%c0, %c0_0, %c0_1] : memref<1x2x8xf32, #tpu.memory_space<vmem>>, vector<1x2x8xf32>
    %1 = vector.extract_strided_slice %0 {offsets = [0, 0, 0], sizes = [1, 1, 8], strides = [1, 1, 1]} : vector<1x2x8xf32> to vector<1x1x8xf32>
    %cst = arith.constant dense<0.000000e+00> : vector<1x8xf32>
    %2 = vector.multi_reduction <add>, %1, %cst [0] : vector<1x1x8xf32> to vector<1x8xf32>
    %3 = vector.extract_strided_slice %0 {offsets = [0, 1, 0], sizes = [1, 1, 8], strides = [1, 1, 1]} : vector<1x2x8xf32> to vector<1x1x8xf32>
    %cst_2 = arith.constant dense<0.000000e+00> : vector<1x8xf32>
    %4 = vector.multi_reduction <add>, %3, %cst_2 [0] : vector<1x1x8xf32> to vector<1x8xf32>
    %cst_3 = arith.constant 7.812500e-03 : f32
    %5 = vector.broadcast %cst_3 : f32 to vector<1x8xf32>
    %6 = arith.mulf %2, %5 : vector<1x8xf32>
    %cst_4 = arith.constant 7.812500e-03 : f32
    %7 = vector.broadcast %cst_4 : f32 to vector<1x8xf32>
    %8 = arith.mulf %4, %7 : vector<1x8xf32>
    %9 = arith.mulf %6, %6 : vector<1x8xf32>
    %10 = arith.subf %8, %9 : vector<1x8xf32>
    %cst_5 = arith.constant 0.000000e+00 : f32
    %11 = vector.broadcast %cst_5 : f32 to vector<1x8xf32>
    %12 = arith.maximumf %10, %11 : vector<1x8xf32>
    %13 = math.sqrt %12 : vector<1x8xf32>
    %cst_6 = arith.constant 9.99999997E-7 : f32
    %14 = vector.broadcast %cst_6 : f32 to vector<1x8xf32>
    %15 = arith.addf %13, %14 : vector<1x8xf32>
    %cst_7 = arith.constant 1.000000e+00 : f32
    %16 = vector.broadcast %cst_7 : f32 to vector<1x8xf32>
    %17 = arith.divf %16, %15 : vector<1x8xf32>
    %c0_8 = arith.constant 0 : index
    %c0_9 = arith.constant 0 : index
    %c0_10 = arith.constant 0 : index
    %18 = vector.load %arg4[%c0_8, %c0_9, %c0_10] : memref<1x2x8xf32, #tpu.memory_space<vmem>>, vector<1x2x8xf32>
    %19 = vector.extract_strided_slice %18 {offsets = [0, 0, 0], sizes = [1, 1, 8], strides = [1, 1, 1]} : vector<1x2x8xf32> to vector<1x1x8xf32>
    %cst_11 = arith.constant dense<0.000000e+00> : vector<1x8xf32>
    %20 = vector.multi_reduction <add>, %19, %cst_11 [0] : vector<1x1x8xf32> to vector<1x8xf32>
    %21 = vector.extract_strided_slice %18 {offsets = [0, 1, 0], sizes = [1, 1, 8], strides = [1, 1, 1]} : vector<1x2x8xf32> to vector<1x1x8xf32>
    %cst_12 = arith.constant dense<0.000000e+00> : vector<1x8xf32>
    %22 = vector.multi_reduction <add>, %21, %cst_12 [0] : vector<1x1x8xf32> to vector<1x8xf32>
    %cst_13 = arith.constant 7.812500e-03 : f32
    %23 = vector.broadcast %cst_13 : f32 to vector<1x8xf32>
    %24 = arith.mulf %20, %23 : vector<1x8xf32>
    %cst_14 = arith.constant 7.812500e-03 : f32
    %25 = vector.broadcast %cst_14 : f32 to vector<1x8xf32>
    %26 = arith.mulf %22, %25 : vector<1x8xf32>
    %27 = arith.mulf %24, %24 : vector<1x8xf32>
    %28 = arith.subf %26, %27 : vector<1x8xf32>
    %cst_15 = arith.constant 0.000000e+00 : f32
    %29 = vector.broadcast %cst_15 : f32 to vector<1x8xf32>
    %30 = arith.maximumf %28, %29 : vector<1x8xf32>
    %31 = math.sqrt %30 : vector<1x8xf32>
    %cst_16 = arith.constant 9.99999997E-7 : f32
    %32 = vector.broadcast %cst_16 : f32 to vector<1x8xf32>
    %33 = arith.addf %31, %32 : vector<1x8xf32>
    %cst_17 = arith.constant 1.000000e+00 : f32
    %34 = vector.broadcast %cst_17 : f32 to vector<1x8xf32>
    %35 = arith.divf %34, %33 : vector<1x8xf32>
    %c0_18 = arith.constant 0 : index
    %c0_19 = arith.constant 0 : index
    %36 = vector.load %arg1[%c0_18, %c0_19] : memref<128x8xf32, #tpu.memory_space<vmem>>, vector<128x8xf32>
    %37 = vector.broadcast %6 : vector<1x8xf32> to vector<128x8xf32>
    %38 = arith.subf %36, %37 : vector<128x8xf32>
    %39 = vector.broadcast %17 : vector<1x8xf32> to vector<128x8xf32>
    %40 = arith.mulf %38, %39 : vector<128x8xf32>
    %c0_20 = arith.constant 0 : index
    %c0_21 = arith.constant 0 : index
    %41 = vector.load %arg2[%c0_20, %c0_21] : memref<128x8xf32, #tpu.memory_space<vmem>>, vector<128x8xf32>
    %42 = vector.broadcast %24 : vector<1x8xf32> to vector<128x8xf32>
    %43 = arith.subf %41, %42 : vector<128x8xf32>
    %44 = vector.broadcast %35 : vector<1x8xf32> to vector<128x8xf32>
    %45 = arith.mulf %43, %44 : vector<128x8xf32>
    %46 = arith.truncf %40 : vector<128x8xf32> to vector<128x8xbf16>
    %c0_22 = arith.constant 0 : index
    %c0_23 = arith.constant 0 : index
    %47 = vector.load %arg5[%c0_22, %c0_23] : memref<8x16xbf16, #tpu.memory_space<vmem>>, vector<8x16xbf16>
    %cst_24 = arith.constant dense<0.000000e+00> : vector<128x16xf32>
    %48 = tpu.matmul %46, %47, %cst_24 {dimension_numbers = #tpu.dot_dimension_numbers<[1], [0], [0], [1], [0, 0, 1, 1], [], []>} : vector<128x8xbf16>, vector<8x16xbf16>, vector<128x16xf32> -> vector<128x16xf32>
    %49 = arith.truncf %45 : vector<128x8xf32> to vector<128x8xbf16>
    %c0_25 = arith.constant 0 : index
    %c0_26 = arith.constant 0 : index
    %50 = vector.load %arg6[%c0_25, %c0_26] : memref<8x16xbf16, #tpu.memory_space<vmem>>, vector<8x16xbf16>
    %cst_27 = arith.constant dense<0.000000e+00> : vector<128x16xf32>
    %51 = tpu.matmul %49, %50, %cst_27 {dimension_numbers = #tpu.dot_dimension_numbers<[1], [0], [0], [1], [0, 0, 1, 1], [], []>} : vector<128x8xbf16>, vector<8x16xbf16>, vector<128x16xf32> -> vector<128x16xf32>
    %52 = arith.addf %48, %51 : vector<128x16xf32>
    %53 = vector.extract_strided_slice %52 {offsets = [0, 0], sizes = [128, 8], strides = [1, 1]} : vector<128x16xf32> to vector<128x8xf32>
    %54 = vector.extract_strided_slice %52 {offsets = [0, 8], sizes = [128, 8], strides = [1, 1]} : vector<128x16xf32> to vector<128x8xf32>
    %c0_28 = arith.constant 0 : index
    %c0_29 = arith.constant 0 : index
    %55 = vector.load %arg8[%c0_28, %c0_29] : memref<128x8xf32, #tpu.memory_space<vmem>>, vector<128x8xf32>
    tpu.vector_store %arg8[%c0_28, %c0_29], %53 {strides = array<i32>} : memref<128x8xf32, #tpu.memory_space<vmem>>, vector<128x8xf32>,
    %c0_30 = arith.constant 0 : index
    %c0_31 = arith.constant 0 : index
    %56 = vector.load %arg9[%c0_30, %c0_31] : memref<128x8xf32, #tpu.memory_space<vmem>>, vector<128x8xf32>
    tpu.vector_store %arg9[%c0_30, %c0_31], %54 {strides = array<i32>} : memref<128x8xf32, #tpu.memory_space<vmem>>, vector<128x8xf32>,
    %cst_32 = arith.constant dense<0.000000e+00> : vector<8xf32>
    %57 = vector.multi_reduction <add>, %54, %cst_32 [0] : vector<128x8xf32> to vector<8xf32>
    %58 = vector.shape_cast %57 : vector<8xf32> to vector<1x8xf32>
    %59 = arith.mulf %54, %54 : vector<128x8xf32>
    %cst_33 = arith.constant dense<0.000000e+00> : vector<8xf32>
    %60 = vector.multi_reduction <add>, %59, %cst_33 [0] : vector<128x8xf32> to vector<8xf32>
    %61 = vector.shape_cast %60 : vector<8xf32> to vector<1x8xf32>
    %62 = tpu.concatenate %58, %61 in 0 : vector<1x8xf32>, vector<1x8xf32> -> vector<2x8xf32>
    %63 = vector.shape_cast %62 : vector<2x8xf32> to vector<1x2x8xf32>
    %c0_34 = arith.constant 0 : index
    %c0_35 = arith.constant 0 : index
    %c0_36 = arith.constant 0 : index
    %64 = vector.load %arg12[%c0_34, %c0_35, %c0_36] : memref<1x2x8xf32, #tpu.memory_space<vmem>>, vector<1x2x8xf32>
    tpu.vector_store %arg12[%c0_34, %c0_35, %c0_36], %63 {strides = array<i32>} : memref<1x2x8xf32, #tpu.memory_space<vmem>>, vector<1x2x8xf32>,
    %c0_i32 = arith.constant 0 : i32
    %65 = arith.cmpi eq, %arg0, %c0_i32 : i32
    %66 = arith.extui %65 : i1 to i32
    %c0_i32_37 = arith.constant 0 : i32
    %67 = arith.cmpi ne, %66, %c0_i32_37 : i32
    scf.if %67 {
      %cst_79 = arith.constant 0.000000e+00 : bf16
      %101 = vector.broadcast %cst_79 : bf16 to vector<2x8x8x72xbf16>
      %c0_80 = arith.constant 0 : index
      %c0_81 = arith.constant 0 : index
      %c0_82 = arith.constant 0 : index
      %c0_83 = arith.constant 0 : index
      %102 = vector.load %arg13[%c0_80, %c0_81, %c0_82, %c0_83] : memref<2x8x8x72xbf16, #tpu.memory_space<vmem>>, vector<2x8x8x72xbf16>
      tpu.vector_store %arg13[%c0_80, %c0_81, %c0_82, %c0_83], %101 {strides = array<i32>} : memref<2x8x8x72xbf16, #tpu.memory_space<vmem>>, vector<2x8x8x72xbf16>,
    } else {
    }
    %68 = arith.truncf %54 : vector<128x8xf32> to vector<128x8xbf16>
    %69 = vector.shape_cast %68 : vector<128x8xbf16> to vector<2x8x8x8xbf16>
    %70 = vector.extract_strided_slice %69 {offsets = [0, 0, 0, 0], sizes = [2, 7, 7, 8], strides = [1, 1, 1, 1]} : vector<2x8x8x8xbf16> to vector<2x7x7x8xbf16>
    %c0_38 = arith.constant 0 : index
    %c1 = arith.constant 1 : index
    %c1_39 = arith.constant 1 : index
    %c0_40 = arith.constant 0 : index
    %71 = vector.load %arg13[%c0_38, %c1, %c1_39, %c0_40] : memref<2x8x8x72xbf16, #tpu.memory_space<vmem>>, vector<2x7x7x8xbf16>
    tpu.vector_store %arg13[%c0_38, %c1, %c1_39, %c0_40], %70 {strides = array<i32>} : memref<2x8x8x72xbf16, #tpu.memory_space<vmem>>, vector<2x7x7x8xbf16>,
    %72 = vector.extract_strided_slice %69 {offsets = [0, 0, 0, 0], sizes = [2, 7, 8, 8], strides = [1, 1, 1, 1]} : vector<2x8x8x8xbf16> to vector<2x7x8x8xbf16>
    %c0_41 = arith.constant 0 : index
    %c1_42 = arith.constant 1 : index
    %c0_43 = arith.constant 0 : index
    %c8 = arith.constant 8 : index
    %73 = vector.load %arg13[%c0_41, %c1_42, %c0_43, %c8] : memref<2x8x8x72xbf16, #tpu.memory_space<vmem>>, vector<2x7x8x8xbf16>
    tpu.vector_store %arg13[%c0_41, %c1_42, %c0_43, %c8], %72 {strides = array<i32>} : memref<2x8x8x72xbf16, #tpu.memory_space<vmem>>, vector<2x7x8x8xbf16>,
    %74 = vector.extract_strided_slice %69 {offsets = [0, 0, 1, 0], sizes = [2, 7, 7, 8], strides = [1, 1, 1, 1]} : vector<2x8x8x8xbf16> to vector<2x7x7x8xbf16>
    %c0_44 = arith.constant 0 : index
    %c1_45 = arith.constant 1 : index
    %c0_46 = arith.constant 0 : index
    %c16 = arith.constant 16 : index
    %75 = vector.load %arg13[%c0_44, %c1_45, %c0_46, %c16] : memref<2x8x8x72xbf16, #tpu.memory_space<vmem>>, vector<2x7x7x8xbf16>
    tpu.vector_store %arg13[%c0_44, %c1_45, %c0_46, %c16], %74 {strides = array<i32>} : memref<2x8x8x72xbf16, #tpu.memory_space<vmem>>, vector<2x7x7x8xbf16>,
    %76 = vector.extract_strided_slice %69 {offsets = [0, 0, 0, 0], sizes = [2, 8, 7, 8], strides = [1, 1, 1, 1]} : vector<2x8x8x8xbf16> to vector<2x8x7x8xbf16>
    %c0_47 = arith.constant 0 : index
    %c0_48 = arith.constant 0 : index
    %c1_49 = arith.constant 1 : index
    %c24 = arith.constant 24 : index
    %77 = vector.load %arg13[%c0_47, %c0_48, %c1_49, %c24] : memref<2x8x8x72xbf16, #tpu.memory_space<vmem>>, vector<2x8x7x8xbf16>
    tpu.vector_store %arg13[%c0_47, %c0_48, %c1_49, %c24], %76 {strides = array<i32>} : memref<2x8x8x72xbf16, #tpu.memory_space<vmem>>, vector<2x8x7x8xbf16>,
    %c0_50 = arith.constant 0 : index
    %c0_51 = arith.constant 0 : index
    %c0_52 = arith.constant 0 : index
    %c32 = arith.constant 32 : index
    %78 = vector.load %arg13[%c0_50, %c0_51, %c0_52, %c32] : memref<2x8x8x72xbf16, #tpu.memory_space<vmem>>, vector<2x8x8x8xbf16>
    tpu.vector_store %arg13[%c0_50, %c0_51, %c0_52, %c32], %69 {strides = array<i32>} : memref<2x8x8x72xbf16, #tpu.memory_space<vmem>>, vector<2x8x8x8xbf16>,
    %79 = vector.extract_strided_slice %69 {offsets = [0, 0, 1, 0], sizes = [2, 8, 7, 8], strides = [1, 1, 1, 1]} : vector<2x8x8x8xbf16> to vector<2x8x7x8xbf16>
    %c0_53 = arith.constant 0 : index
    %c0_54 = arith.constant 0 : index
    %c0_55 = arith.constant 0 : index
    %c40 = arith.constant 40 : index
    %80 = vector.load %arg13[%c0_53, %c0_54, %c0_55, %c40] : memref<2x8x8x72xbf16, #tpu.memory_space<vmem>>, vector<2x8x7x8xbf16>
    tpu.vector_store %arg13[%c0_53, %c0_54, %c0_55, %c40], %79 {strides = array<i32>} : memref<2x8x8x72xbf16, #tpu.memory_space<vmem>>, vector<2x8x7x8xbf16>,
    %81 = vector.extract_strided_slice %69 {offsets = [0, 1, 0, 0], sizes = [2, 7, 7, 8], strides = [1, 1, 1, 1]} : vector<2x8x8x8xbf16> to vector<2x7x7x8xbf16>
    %c0_56 = arith.constant 0 : index
    %c0_57 = arith.constant 0 : index
    %c1_58 = arith.constant 1 : index
    %c48 = arith.constant 48 : index
    %82 = vector.load %arg13[%c0_56, %c0_57, %c1_58, %c48] : memref<2x8x8x72xbf16, #tpu.memory_space<vmem>>, vector<2x7x7x8xbf16>
    tpu.vector_store %arg13[%c0_56, %c0_57, %c1_58, %c48], %81 {strides = array<i32>} : memref<2x8x8x72xbf16, #tpu.memory_space<vmem>>, vector<2x7x7x8xbf16>,
    %83 = vector.extract_strided_slice %69 {offsets = [0, 1, 0, 0], sizes = [2, 7, 8, 8], strides = [1, 1, 1, 1]} : vector<2x8x8x8xbf16> to vector<2x7x8x8xbf16>
    %c0_59 = arith.constant 0 : index
    %c0_60 = arith.constant 0 : index
    %c0_61 = arith.constant 0 : index
    %c56 = arith.constant 56 : index
    %84 = vector.load %arg13[%c0_59, %c0_60, %c0_61, %c56] : memref<2x8x8x72xbf16, #tpu.memory_space<vmem>>, vector<2x7x8x8xbf16>
    tpu.vector_store %arg13[%c0_59, %c0_60, %c0_61, %c56], %83 {strides = array<i32>} : memref<2x8x8x72xbf16, #tpu.memory_space<vmem>>, vector<2x7x8x8xbf16>,
    %85 = vector.extract_strided_slice %69 {offsets = [0, 1, 1, 0], sizes = [2, 7, 7, 8], strides = [1, 1, 1, 1]} : vector<2x8x8x8xbf16> to vector<2x7x7x8xbf16>
    %c0_62 = arith.constant 0 : index
    %c0_63 = arith.constant 0 : index
    %c0_64 = arith.constant 0 : index
    %c64 = arith.constant 64 : index
    %86 = vector.load %arg13[%c0_62, %c0_63, %c0_64, %c64] : memref<2x8x8x72xbf16, #tpu.memory_space<vmem>>, vector<2x7x7x8xbf16>
    tpu.vector_store %arg13[%c0_62, %c0_63, %c0_64, %c64], %85 {strides = array<i32>} : memref<2x8x8x72xbf16, #tpu.memory_space<vmem>>, vector<2x7x7x8xbf16>,
    %c0_65 = arith.constant 0 : index
    %c0_66 = arith.constant 0 : index
    %c0_67 = arith.constant 0 : index
    %c0_68 = arith.constant 0 : index
    %87 = vector.load %arg13[%c0_65, %c0_66, %c0_67, %c0_68] : memref<2x8x8x72xbf16, #tpu.memory_space<vmem>>, vector<2x8x8x72xbf16>
    %88 = vector.shape_cast %87 : vector<2x8x8x72xbf16> to vector<128x72xbf16>
    %c0_69 = arith.constant 0 : index
    %c0_70 = arith.constant 0 : index
    %89 = vector.load %arg7[%c0_69, %c0_70] : memref<72x32xbf16, #tpu.memory_space<vmem>>, vector<72x32xbf16>
    %cst_71 = arith.constant dense<0.000000e+00> : vector<128x32xf32>
    %90 = tpu.matmul %88, %89, %cst_71 {dimension_numbers = #tpu.dot_dimension_numbers<[1], [0], [0], [1], [0, 0, 1, 1], [], []>} : vector<128x72xbf16>, vector<72x32xbf16>, vector<128x32xf32> -> vector<128x32xf32>
    %91 = arith.truncf %90 : vector<128x32xf32> to vector<128x32xbf16>
    %c0_72 = arith.constant 0 : index
    %c0_73 = arith.constant 0 : index
    %92 = vector.load %arg10[%c0_72, %c0_73] : memref<128x32xbf16, #tpu.memory_space<vmem>>, vector<128x32xbf16>
    tpu.vector_store %arg10[%c0_72, %c0_73], %91 {strides = array<i32>} : memref<128x32xbf16, #tpu.memory_space<vmem>>, vector<128x32xbf16>,
    %cst_74 = arith.constant dense<0.000000e+00> : vector<32xf32>
    %93 = vector.multi_reduction <add>, %90, %cst_74 [0] : vector<128x32xf32> to vector<32xf32>
    %94 = vector.shape_cast %93 : vector<32xf32> to vector<1x32xf32>
    %95 = arith.mulf %90, %90 : vector<128x32xf32>
    %cst_75 = arith.constant dense<0.000000e+00> : vector<32xf32>
    %96 = vector.multi_reduction <add>, %95, %cst_75 [0] : vector<128x32xf32> to vector<32xf32>
    %97 = vector.shape_cast %96 : vector<32xf32> to vector<1x32xf32>
    %98 = tpu.concatenate %94, %97 in 0 : vector<1x32xf32>, vector<1x32xf32> -> vector<2x32xf32>
    %99 = vector.shape_cast %98 : vector<2x32xf32> to vector<1x2x32xf32>
    %c0_76 = arith.constant 0 : index
    %c0_77 = arith.constant 0 : index
    %c0_78 = arith.constant 0 : index
    %100 = vector.load %arg11[%c0_76, %c0_77, %c0_78] : memref<1x2x32xf32, #tpu.memory_space<vmem>>, vector<1x2x32xf32>
    tpu.vector_store %arg11[%c0_76, %c0_77, %c0_78], %99 {strides = array<i32>} : memref<1x2x32xf32, #tpu.memory_space<vmem>>, vector<1x2x32xf32>,
    return
  }
  func.func @transform_0(%arg0: i32) -> (i32, i32) {
    %c0_i32 = arith.constant 0 : i32
    %c0_i32_0 = arith.constant 0 : i32
    return %arg0, %c0_i32 : i32, i32
  }
  func.func @transform_1(%arg0: i32) -> (i32, i32) {
    %c0_i32 = arith.constant 0 : i32
    %c0_i32_0 = arith.constant 0 : i32
    return %arg0, %c0_i32 : i32, i32
  }
  func.func @transform_2(%arg0: i32) -> (i32, i32, i32) {
    %c0_i32 = arith.constant 0 : i32
    %c0_i32_0 = arith.constant 0 : i32
    %c0_i32_1 = arith.constant 0 : i32
    %c0_i32_2 = arith.constant 0 : i32
    return %c0_i32, %c0_i32_0, %c0_i32_1 : i32, i32, i32
  }
  func.func @transform_3(%arg0: i32) -> (i32, i32, i32) {
    %c0_i32 = arith.constant 0 : i32
    %c0_i32_0 = arith.constant 0 : i32
    %c0_i32_1 = arith.constant 0 : i32
    %c0_i32_2 = arith.constant 0 : i32
    return %c0_i32, %c0_i32_0, %c0_i32_1 : i32, i32, i32
  }
  func.func @transform_4(%arg0: i32) -> (i32, i32) {
    %c0_i32 = arith.constant 0 : i32
    %c0_i32_0 = arith.constant 0 : i32
    %c0_i32_1 = arith.constant 0 : i32
    return %c0_i32, %c0_i32_0 : i32, i32
  }
  func.func @transform_5(%arg0: i32) -> (i32, i32) {
    %c0_i32 = arith.constant 0 : i32
    %c0_i32_0 = arith.constant 0 : i32
    %c0_i32_1 = arith.constant 0 : i32
    return %c0_i32, %c0_i32_0 : i32, i32
  }
  func.func @transform_6(%arg0: i32) -> (i32, i32) {
    %c0_i32 = arith.constant 0 : i32
    %c0_i32_0 = arith.constant 0 : i32
    %c0_i32_1 = arith.constant 0 : i32
    return %c0_i32, %c0_i32_0 : i32, i32
  }
  func.func @transform_7(%arg0: i32) -> (i32, i32) {
    %c0_i32 = arith.constant 0 : i32
    %c0_i32_0 = arith.constant 0 : i32
    return %arg0, %c0_i32 : i32, i32
  }
  func.func @transform_8(%arg0: i32) -> (i32, i32) {
    %c0_i32 = arith.constant 0 : i32
    %c0_i32_0 = arith.constant 0 : i32
    return %arg0, %c0_i32 : i32, i32
  }
  func.func @transform_9(%arg0: i32) -> (i32, i32) {
    %c0_i32 = arith.constant 0 : i32
    %c0_i32_0 = arith.constant 0 : i32
    return %arg0, %c0_i32 : i32, i32
  }
  func.func @transform_10(%arg0: i32) -> (i32, i32, i32) {
    %c0_i32 = arith.constant 0 : i32
    %c0_i32_0 = arith.constant 0 : i32
    %c0_i32_1 = arith.constant 0 : i32
    return %arg0, %c0_i32, %c0_i32_0 : i32, i32, i32
  }
  func.func @transform_11(%arg0: i32) -> (i32, i32, i32) {
    %c0_i32 = arith.constant 0 : i32
    %c0_i32_0 = arith.constant 0 : i32
    %c0_i32_1 = arith.constant 0 : i32
    return %arg0, %c0_i32, %c0_i32_0 : i32, i32, i32
  }
}

module attributes {stable_mosaic.version = 11 : i64} {
  func.func @_tail_kernel(%arg0: i32, %arg1: memref<128x32xbf16, #tpu.memory_space<vmem>>, %arg2: memref<128x8xf32, #tpu.memory_space<vmem>>, %arg3: memref<2x2x32xf32, #tpu.memory_space<vmem>>, %arg4: memref<288x16xbf16, #tpu.memory_space<vmem>>, %arg5: memref<1x16xf32, #tpu.memory_space<vmem>>, %arg6: memref<128x8xf32, #tpu.memory_space<vmem>>, %arg7: memref<1x2x8xf32, #tpu.memory_space<vmem>>, %arg8: memref<2x8x8x288xbf16, #tpu.memory_space<vmem>>) attributes {dimension_semantics = [#tpu.dimension_semantics<parallel>], iteration_bounds = array<i64: 1>, scalar_prefetch = 0 : i64, scratch_operands = 1 : i64, tpu.core_type = #tpu.core_type<tc>, window_params = [{transform_indices = @transform_0, window_bounds = array<i64: 128, 32>}, {transform_indices = @transform_1, window_bounds = array<i64: 128, 8>}, {pipeline_mode = #tpu.pipeline_mode<synchronous>, transform_indices = @transform_2, window_bounds = array<i64: 2, 2, 32>}, {pipeline_mode = #tpu.pipeline_mode<synchronous>, transform_indices = @transform_3, window_bounds = array<i64: 288, 16>}, {pipeline_mode = #tpu.pipeline_mode<synchronous>, transform_indices = @transform_4, window_bounds = array<i64: 1, 16>}, {transform_indices = @transform_5, window_bounds = array<i64: 128, 8>}, {transform_indices = @transform_6, window_bounds = array<i64: 1, 2, 8>}]} {
    %c0 = arith.constant 0 : index
    %c0_0 = arith.constant 0 : index
    %c0_1 = arith.constant 0 : index
    %0 = vector.load %arg3[%c0, %c0_0, %c0_1] : memref<2x2x32xf32, #tpu.memory_space<vmem>>, vector<2x2x32xf32>
    %1 = vector.extract_strided_slice %0 {offsets = [0, 0, 0], sizes = [2, 1, 32], strides = [1, 1, 1]} : vector<2x2x32xf32> to vector<2x1x32xf32>
    %cst = arith.constant dense<0.000000e+00> : vector<1x32xf32>
    %2 = vector.multi_reduction <add>, %1, %cst [0] : vector<2x1x32xf32> to vector<1x32xf32>
    %3 = vector.extract_strided_slice %0 {offsets = [0, 1, 0], sizes = [2, 1, 32], strides = [1, 1, 1]} : vector<2x2x32xf32> to vector<2x1x32xf32>
    %cst_2 = arith.constant dense<0.000000e+00> : vector<1x32xf32>
    %4 = vector.multi_reduction <add>, %3, %cst_2 [0] : vector<2x1x32xf32> to vector<1x32xf32>
    %cst_3 = arith.constant 5.000000e-03 : f32
    %5 = vector.broadcast %cst_3 : f32 to vector<1x32xf32>
    %6 = arith.mulf %2, %5 : vector<1x32xf32>
    %cst_4 = arith.constant 5.000000e-03 : f32
    %7 = vector.broadcast %cst_4 : f32 to vector<1x32xf32>
    %8 = arith.mulf %4, %7 : vector<1x32xf32>
    %9 = arith.mulf %6, %6 : vector<1x32xf32>
    %10 = arith.subf %8, %9 : vector<1x32xf32>
    %cst_5 = arith.constant 0.000000e+00 : f32
    %11 = vector.broadcast %cst_5 : f32 to vector<1x32xf32>
    %12 = arith.maximumf %10, %11 : vector<1x32xf32>
    %13 = math.sqrt %12 : vector<1x32xf32>
    %cst_6 = arith.constant 9.99999997E-7 : f32
    %14 = vector.broadcast %cst_6 : f32 to vector<1x32xf32>
    %15 = arith.addf %13, %14 : vector<1x32xf32>
    %cst_7 = arith.constant 1.000000e+00 : f32
    %16 = vector.broadcast %cst_7 : f32 to vector<1x32xf32>
    %17 = arith.divf %16, %15 : vector<1x32xf32>
    %cst_8 = arith.constant 0.000000e+00 : f32
    %18 = vector.broadcast %cst_8 : f32 to vector<1x32xf32>
    %19 = arith.subf %18, %6 : vector<1x32xf32>
    %20 = arith.mulf %19, %17 : vector<1x32xf32>
    %cst_9 = arith.constant 0.000000e+00 : f32
    %21 = vector.broadcast %cst_9 : f32 to vector<1x32xf32>
    %22 = arith.maximumf %20, %21 : vector<1x32xf32>
    %23 = arith.truncf %22 : vector<1x32xf32> to vector<1x32xbf16>
    %c0_10 = arith.constant 0 : index
    %c0_11 = arith.constant 0 : index
    %24 = vector.load %arg1[%c0_10, %c0_11] : memref<128x32xbf16, #tpu.memory_space<vmem>>, vector<128x32xbf16>
    %25 = arith.extf %24 : vector<128x32xbf16> to vector<128x32xf32>
    %26 = vector.broadcast %6 : vector<1x32xf32> to vector<128x32xf32>
    %27 = arith.subf %25, %26 : vector<128x32xf32>
    %28 = vector.broadcast %17 : vector<1x32xf32> to vector<128x32xf32>
    %29 = arith.mulf %27, %28 : vector<128x32xf32>
    %cst_12 = arith.constant 0.000000e+00 : f32
    %30 = vector.broadcast %cst_12 : f32 to vector<128x32xf32>
    %31 = arith.maximumf %29, %30 : vector<128x32xf32>
    %c0_i32 = arith.constant 0 : i32
    %32 = arith.cmpi eq, %arg0, %c0_i32 : i32
    %33 = arith.extui %32 : i1 to i32
    %c0_i32_13 = arith.constant 0 : i32
    %34 = arith.cmpi ne, %33, %c0_i32_13 : i32
    scf.if %34 {
      %86 = vector.shape_cast %23 : vector<1x32xbf16> to vector<1x1x1x32xbf16>
      %87 = vector.shape_cast %86 : vector<1x1x1x32xbf16> to vector<1x1x1x32xbf16>
      %88 = vector.broadcast %87 : vector<1x1x1x32xbf16> to vector<2x8x8x32xbf16>
      %c0_63 = arith.constant 0 : index
      %c0_64 = arith.constant 0 : index
      %c0_65 = arith.constant 0 : index
      %c0_66 = arith.constant 0 : index
      %89 = vector.load %arg8[%c0_63, %c0_64, %c0_65, %c0_66] : memref<2x8x8x288xbf16, #tpu.memory_space<vmem>>, vector<2x8x8x32xbf16>
      tpu.vector_store %arg8[%c0_63, %c0_64, %c0_65, %c0_66], %88 {strides = array<i32>} : memref<2x8x8x288xbf16, #tpu.memory_space<vmem>>, vector<2x8x8x32xbf16>,
      %c0_67 = arith.constant 0 : index
      %c0_68 = arith.constant 0 : index
      %c0_69 = arith.constant 0 : index
      %c32_70 = arith.constant 32 : index
      %90 = vector.load %arg8[%c0_67, %c0_68, %c0_69, %c32_70] : memref<2x8x8x288xbf16, #tpu.memory_space<vmem>>, vector<2x8x8x32xbf16>
      tpu.vector_store %arg8[%c0_67, %c0_68, %c0_69, %c32_70], %88 {strides = array<i32>} : memref<2x8x8x288xbf16, #tpu.memory_space<vmem>>, vector<2x8x8x32xbf16>,
      %c0_71 = arith.constant 0 : index
      %c0_72 = arith.constant 0 : index
      %c0_73 = arith.constant 0 : index
      %c64_74 = arith.constant 64 : index
      %91 = vector.load %arg8[%c0_71, %c0_72, %c0_73, %c64_74] : memref<2x8x8x288xbf16, #tpu.memory_space<vmem>>, vector<2x8x8x32xbf16>
      tpu.vector_store %arg8[%c0_71, %c0_72, %c0_73, %c64_74], %88 {strides = array<i32>} : memref<2x8x8x288xbf16, #tpu.memory_space<vmem>>, vector<2x8x8x32xbf16>,
      %c0_75 = arith.constant 0 : index
      %c0_76 = arith.constant 0 : index
      %c0_77 = arith.constant 0 : index
      %c96_78 = arith.constant 96 : index
      %92 = vector.load %arg8[%c0_75, %c0_76, %c0_77, %c96_78] : memref<2x8x8x288xbf16, #tpu.memory_space<vmem>>, vector<2x8x8x32xbf16>
      tpu.vector_store %arg8[%c0_75, %c0_76, %c0_77, %c96_78], %88 {strides = array<i32>} : memref<2x8x8x288xbf16, #tpu.memory_space<vmem>>, vector<2x8x8x32xbf16>,
      %c0_79 = arith.constant 0 : index
      %c0_80 = arith.constant 0 : index
      %c0_81 = arith.constant 0 : index
      %c128_82 = arith.constant 128 : index
      %93 = vector.load %arg8[%c0_79, %c0_80, %c0_81, %c128_82] : memref<2x8x8x288xbf16, #tpu.memory_space<vmem>>, vector<2x8x8x32xbf16>
      tpu.vector_store %arg8[%c0_79, %c0_80, %c0_81, %c128_82], %88 {strides = array<i32>} : memref<2x8x8x288xbf16, #tpu.memory_space<vmem>>, vector<2x8x8x32xbf16>,
      %c0_83 = arith.constant 0 : index
      %c0_84 = arith.constant 0 : index
      %c0_85 = arith.constant 0 : index
      %c160_86 = arith.constant 160 : index
      %94 = vector.load %arg8[%c0_83, %c0_84, %c0_85, %c160_86] : memref<2x8x8x288xbf16, #tpu.memory_space<vmem>>, vector<2x8x8x32xbf16>
      tpu.vector_store %arg8[%c0_83, %c0_84, %c0_85, %c160_86], %88 {strides = array<i32>} : memref<2x8x8x288xbf16, #tpu.memory_space<vmem>>, vector<2x8x8x32xbf16>,
      %c0_87 = arith.constant 0 : index
      %c0_88 = arith.constant 0 : index
      %c0_89 = arith.constant 0 : index
      %c192_90 = arith.constant 192 : index
      %95 = vector.load %arg8[%c0_87, %c0_88, %c0_89, %c192_90] : memref<2x8x8x288xbf16, #tpu.memory_space<vmem>>, vector<2x8x8x32xbf16>
      tpu.vector_store %arg8[%c0_87, %c0_88, %c0_89, %c192_90], %88 {strides = array<i32>} : memref<2x8x8x288xbf16, #tpu.memory_space<vmem>>, vector<2x8x8x32xbf16>,
      %c0_91 = arith.constant 0 : index
      %c0_92 = arith.constant 0 : index
      %c0_93 = arith.constant 0 : index
      %c224_94 = arith.constant 224 : index
      %96 = vector.load %arg8[%c0_91, %c0_92, %c0_93, %c224_94] : memref<2x8x8x288xbf16, #tpu.memory_space<vmem>>, vector<2x8x8x32xbf16>
      tpu.vector_store %arg8[%c0_91, %c0_92, %c0_93, %c224_94], %88 {strides = array<i32>} : memref<2x8x8x288xbf16, #tpu.memory_space<vmem>>, vector<2x8x8x32xbf16>,
      %c0_95 = arith.constant 0 : index
      %c0_96 = arith.constant 0 : index
      %c0_97 = arith.constant 0 : index
      %c256_98 = arith.constant 256 : index
      %97 = vector.load %arg8[%c0_95, %c0_96, %c0_97, %c256_98] : memref<2x8x8x288xbf16, #tpu.memory_space<vmem>>, vector<2x8x8x32xbf16>
      tpu.vector_store %arg8[%c0_95, %c0_96, %c0_97, %c256_98], %88 {strides = array<i32>} : memref<2x8x8x288xbf16, #tpu.memory_space<vmem>>, vector<2x8x8x32xbf16>,
    } else {
    }
    %35 = arith.truncf %31 : vector<128x32xf32> to vector<128x32xbf16>
    %36 = vector.shape_cast %35 : vector<128x32xbf16> to vector<2x8x8x32xbf16>
    %37 = vector.extract_strided_slice %36 {offsets = [0, 0, 0, 0], sizes = [2, 7, 7, 32], strides = [1, 1, 1, 1]} : vector<2x8x8x32xbf16> to vector<2x7x7x32xbf16>
    %c0_14 = arith.constant 0 : index
    %c1 = arith.constant 1 : index
    %c1_15 = arith.constant 1 : index
    %c0_16 = arith.constant 0 : index
    %38 = vector.load %arg8[%c0_14, %c1, %c1_15, %c0_16] : memref<2x8x8x288xbf16, #tpu.memory_space<vmem>>, vector<2x7x7x32xbf16>
    tpu.vector_store %arg8[%c0_14, %c1, %c1_15, %c0_16], %37 {strides = array<i32>} : memref<2x8x8x288xbf16, #tpu.memory_space<vmem>>, vector<2x7x7x32xbf16>,
    %39 = vector.extract_strided_slice %36 {offsets = [0, 0, 0, 0], sizes = [2, 7, 8, 32], strides = [1, 1, 1, 1]} : vector<2x8x8x32xbf16> to vector<2x7x8x32xbf16>
    %c0_17 = arith.constant 0 : index
    %c1_18 = arith.constant 1 : index
    %c0_19 = arith.constant 0 : index
    %c32 = arith.constant 32 : index
    %40 = vector.load %arg8[%c0_17, %c1_18, %c0_19, %c32] : memref<2x8x8x288xbf16, #tpu.memory_space<vmem>>, vector<2x7x8x32xbf16>
    tpu.vector_store %arg8[%c0_17, %c1_18, %c0_19, %c32], %39 {strides = array<i32>} : memref<2x8x8x288xbf16, #tpu.memory_space<vmem>>, vector<2x7x8x32xbf16>,
    %41 = vector.extract_strided_slice %36 {offsets = [0, 0, 1, 0], sizes = [2, 7, 7, 32], strides = [1, 1, 1, 1]} : vector<2x8x8x32xbf16> to vector<2x7x7x32xbf16>
    %c0_20 = arith.constant 0 : index
    %c1_21 = arith.constant 1 : index
    %c0_22 = arith.constant 0 : index
    %c64 = arith.constant 64 : index
    %42 = vector.load %arg8[%c0_20, %c1_21, %c0_22, %c64] : memref<2x8x8x288xbf16, #tpu.memory_space<vmem>>, vector<2x7x7x32xbf16>
    tpu.vector_store %arg8[%c0_20, %c1_21, %c0_22, %c64], %41 {strides = array<i32>} : memref<2x8x8x288xbf16, #tpu.memory_space<vmem>>, vector<2x7x7x32xbf16>,
    %43 = vector.extract_strided_slice %36 {offsets = [0, 0, 0, 0], sizes = [2, 8, 7, 32], strides = [1, 1, 1, 1]} : vector<2x8x8x32xbf16> to vector<2x8x7x32xbf16>
    %c0_23 = arith.constant 0 : index
    %c0_24 = arith.constant 0 : index
    %c1_25 = arith.constant 1 : index
    %c96 = arith.constant 96 : index
    %44 = vector.load %arg8[%c0_23, %c0_24, %c1_25, %c96] : memref<2x8x8x288xbf16, #tpu.memory_space<vmem>>, vector<2x8x7x32xbf16>
    tpu.vector_store %arg8[%c0_23, %c0_24, %c1_25, %c96], %43 {strides = array<i32>} : memref<2x8x8x288xbf16, #tpu.memory_space<vmem>>, vector<2x8x7x32xbf16>,
    %c0_26 = arith.constant 0 : index
    %c0_27 = arith.constant 0 : index
    %c0_28 = arith.constant 0 : index
    %c128 = arith.constant 128 : index
    %45 = vector.load %arg8[%c0_26, %c0_27, %c0_28, %c128] : memref<2x8x8x288xbf16, #tpu.memory_space<vmem>>, vector<2x8x8x32xbf16>
    tpu.vector_store %arg8[%c0_26, %c0_27, %c0_28, %c128], %36 {strides = array<i32>} : memref<2x8x8x288xbf16, #tpu.memory_space<vmem>>, vector<2x8x8x32xbf16>,
    %46 = vector.extract_strided_slice %36 {offsets = [0, 0, 1, 0], sizes = [2, 8, 7, 32], strides = [1, 1, 1, 1]} : vector<2x8x8x32xbf16> to vector<2x8x7x32xbf16>
    %c0_29 = arith.constant 0 : index
    %c0_30 = arith.constant 0 : index
    %c0_31 = arith.constant 0 : index
    %c160 = arith.constant 160 : index
    %47 = vector.load %arg8[%c0_29, %c0_30, %c0_31, %c160] : memref<2x8x8x288xbf16, #tpu.memory_space<vmem>>, vector<2x8x7x32xbf16>
    tpu.vector_store %arg8[%c0_29, %c0_30, %c0_31, %c160], %46 {strides = array<i32>} : memref<2x8x8x288xbf16, #tpu.memory_space<vmem>>, vector<2x8x7x32xbf16>,
    %48 = vector.extract_strided_slice %36 {offsets = [0, 1, 0, 0], sizes = [2, 7, 7, 32], strides = [1, 1, 1, 1]} : vector<2x8x8x32xbf16> to vector<2x7x7x32xbf16>
    %c0_32 = arith.constant 0 : index
    %c0_33 = arith.constant 0 : index
    %c1_34 = arith.constant 1 : index
    %c192 = arith.constant 192 : index
    %49 = vector.load %arg8[%c0_32, %c0_33, %c1_34, %c192] : memref<2x8x8x288xbf16, #tpu.memory_space<vmem>>, vector<2x7x7x32xbf16>
    tpu.vector_store %arg8[%c0_32, %c0_33, %c1_34, %c192], %48 {strides = array<i32>} : memref<2x8x8x288xbf16, #tpu.memory_space<vmem>>, vector<2x7x7x32xbf16>,
    %50 = vector.extract_strided_slice %36 {offsets = [0, 1, 0, 0], sizes = [2, 7, 8, 32], strides = [1, 1, 1, 1]} : vector<2x8x8x32xbf16> to vector<2x7x8x32xbf16>
    %c0_35 = arith.constant 0 : index
    %c0_36 = arith.constant 0 : index
    %c0_37 = arith.constant 0 : index
    %c224 = arith.constant 224 : index
    %51 = vector.load %arg8[%c0_35, %c0_36, %c0_37, %c224] : memref<2x8x8x288xbf16, #tpu.memory_space<vmem>>, vector<2x7x8x32xbf16>
    tpu.vector_store %arg8[%c0_35, %c0_36, %c0_37, %c224], %50 {strides = array<i32>} : memref<2x8x8x288xbf16, #tpu.memory_space<vmem>>, vector<2x7x8x32xbf16>,
    %52 = vector.extract_strided_slice %36 {offsets = [0, 1, 1, 0], sizes = [2, 7, 7, 32], strides = [1, 1, 1, 1]} : vector<2x8x8x32xbf16> to vector<2x7x7x32xbf16>
    %c0_38 = arith.constant 0 : index
    %c0_39 = arith.constant 0 : index
    %c0_40 = arith.constant 0 : index
    %c256 = arith.constant 256 : index
    %53 = vector.load %arg8[%c0_38, %c0_39, %c0_40, %c256] : memref<2x8x8x288xbf16, #tpu.memory_space<vmem>>, vector<2x7x7x32xbf16>
    tpu.vector_store %arg8[%c0_38, %c0_39, %c0_40, %c256], %52 {strides = array<i32>} : memref<2x8x8x288xbf16, #tpu.memory_space<vmem>>, vector<2x7x7x32xbf16>,
    %c0_41 = arith.constant 0 : index
    %c0_42 = arith.constant 0 : index
    %c0_43 = arith.constant 0 : index
    %c0_44 = arith.constant 0 : index
    %54 = vector.load %arg8[%c0_41, %c0_42, %c0_43, %c0_44] : memref<2x8x8x288xbf16, #tpu.memory_space<vmem>>, vector<2x8x8x288xbf16>
    %55 = vector.shape_cast %54 : vector<2x8x8x288xbf16> to vector<128x288xbf16>
    %c0_45 = arith.constant 0 : index
    %c0_46 = arith.constant 0 : index
    %56 = vector.load %arg4[%c0_45, %c0_46] : memref<288x16xbf16, #tpu.memory_space<vmem>>, vector<288x16xbf16>
    %cst_47 = arith.constant dense<0.000000e+00> : vector<128x16xf32>
    %57 = tpu.matmul %55, %56, %cst_47 {dimension_numbers = #tpu.dot_dimension_numbers<[1], [0], [0], [1], [0, 0, 1, 1], [], []>} : vector<128x288xbf16>, vector<288x16xbf16>, vector<128x16xf32> -> vector<128x16xf32>
    %c0_48 = arith.constant 0 : index
    %c0_49 = arith.constant 0 : index
    %58 = vector.load %arg5[%c0_48, %c0_49] : memref<1x16xf32, #tpu.memory_space<vmem>>, vector<1x16xf32>
    %59 = vector.broadcast %58 : vector<1x16xf32> to vector<128x16xf32>
    %60 = arith.addf %57, %59 : vector<128x16xf32>
    %61 = vector.extract_strided_slice %60 {offsets = [0, 0], sizes = [128, 8], strides = [1, 1]} : vector<128x16xf32> to vector<128x8xf32>
    %62 = vector.extract_strided_slice %60 {offsets = [0, 8], sizes = [128, 8], strides = [1, 1]} : vector<128x16xf32> to vector<128x8xf32>
    %cst_50 = arith.constant 2.000000e+00 : f32
    %63 = vector.broadcast %cst_50 : f32 to vector<128x8xf32>
    %64 = arith.addf %62, %63 : vector<128x8xf32>
    %65 = arith.negf %64 : vector<128x8xf32>
    %66 = math.exp %65 : vector<128x8xf32>
    %cst_51 = arith.constant 1.000000e+00 : f32
    %67 = vector.broadcast %cst_51 : f32 to vector<128x8xf32>
    %68 = arith.addf %67, %66 : vector<128x8xf32>
    %69 = arith.divf %67, %68 : vector<128x8xf32>
    %c0_52 = arith.constant 0 : index
    %c0_53 = arith.constant 0 : index
    %70 = vector.load %arg2[%c0_52, %c0_53] : memref<128x8xf32, #tpu.memory_space<vmem>>, vector<128x8xf32>
    %71 = arith.mulf %69, %70 : vector<128x8xf32>
    %72 = arith.addf %71, %61 : vector<128x8xf32>
    %cst_54 = arith.constant -1.000000e+09 : f32
    %cst_55 = arith.constant 1.000000e+09 : f32
    %73 = vector.broadcast %cst_54 : f32 to vector<128x8xf32>
    %74 = arith.maximumf %73, %72 : vector<128x8xf32>
    %75 = vector.broadcast %cst_55 : f32 to vector<128x8xf32>
    %76 = arith.minimumf %75, %74 : vector<128x8xf32>
    %c0_56 = arith.constant 0 : index
    %c0_57 = arith.constant 0 : index
    %77 = vector.load %arg6[%c0_56, %c0_57] : memref<128x8xf32, #tpu.memory_space<vmem>>, vector<128x8xf32>
    tpu.vector_store %arg6[%c0_56, %c0_57], %76 {strides = array<i32>} : memref<128x8xf32, #tpu.memory_space<vmem>>, vector<128x8xf32>,
    %cst_58 = arith.constant dense<0.000000e+00> : vector<8xf32>
    %78 = vector.multi_reduction <add>, %76, %cst_58 [0] : vector<128x8xf32> to vector<8xf32>
    %79 = vector.shape_cast %78 : vector<8xf32> to vector<1x8xf32>
    %80 = arith.mulf %76, %76 : vector<128x8xf32>
    %cst_59 = arith.constant dense<0.000000e+00> : vector<8xf32>
    %81 = vector.multi_reduction <add>, %80, %cst_59 [0] : vector<128x8xf32> to vector<8xf32>
    %82 = vector.shape_cast %81 : vector<8xf32> to vector<1x8xf32>
    %83 = tpu.concatenate %79, %82 in 0 : vector<1x8xf32>, vector<1x8xf32> -> vector<2x8xf32>
    %84 = vector.shape_cast %83 : vector<2x8xf32> to vector<1x2x8xf32>
    %c0_60 = arith.constant 0 : index
    %c0_61 = arith.constant 0 : index
    %c0_62 = arith.constant 0 : index
    %85 = vector.load %arg7[%c0_60, %c0_61, %c0_62] : memref<1x2x8xf32, #tpu.memory_space<vmem>>, vector<1x2x8xf32>
    tpu.vector_store %arg7[%c0_60, %c0_61, %c0_62], %84 {strides = array<i32>} : memref<1x2x8xf32, #tpu.memory_space<vmem>>, vector<1x2x8xf32>,
    return
  }
  func.func @transform_0(%arg0: i32) -> (i32, i32) {
    %c0_i32 = arith.constant 0 : i32
    %c0_i32_0 = arith.constant 0 : i32
    return %arg0, %c0_i32 : i32, i32
  }
  func.func @transform_1(%arg0: i32) -> (i32, i32) {
    %c0_i32 = arith.constant 0 : i32
    %c0_i32_0 = arith.constant 0 : i32
    return %arg0, %c0_i32 : i32, i32
  }
  func.func @transform_2(%arg0: i32) -> (i32, i32, i32) {
    %c0_i32 = arith.constant 0 : i32
    %c0_i32_0 = arith.constant 0 : i32
    %c0_i32_1 = arith.constant 0 : i32
    %c0_i32_2 = arith.constant 0 : i32
    return %c0_i32, %c0_i32_0, %c0_i32_1 : i32, i32, i32
  }
  func.func @transform_3(%arg0: i32) -> (i32, i32) {
    %c0_i32 = arith.constant 0 : i32
    %c0_i32_0 = arith.constant 0 : i32
    %c0_i32_1 = arith.constant 0 : i32
    return %c0_i32, %c0_i32_0 : i32, i32
  }
  func.func @transform_4(%arg0: i32) -> (i32, i32) {
    %c0_i32 = arith.constant 0 : i32
    %c0_i32_0 = arith.constant 0 : i32
    %c0_i32_1 = arith.constant 0 : i32
    return %c0_i32, %c0_i32_0 : i32, i32
  }
  func.func @transform_5(%arg0: i32) -> (i32, i32) {
    %c0_i32 = arith.constant 0 : i32
    %c0_i32_0 = arith.constant 0 : i32
    return %arg0, %c0_i32 : i32, i32
  }
  func.func @transform_6(%arg0: i32) -> (i32, i32, i32) {
    %c0_i32 = arith.constant 0 : i32
    %c0_i32_0 = arith.constant 0 : i32
    %c0_i32_1 = arith.constant 0 : i32
    return %arg0, %c0_i32, %c0_i32_0 : i32, i32, i32
  }
}

</mosaic_0001>

<llo_original>
// kernel: _lambda_.7
$region0: #{_lambda_.7}
  #allocation0 [shape = 'u32[]', space=smem, size = 0x4, offset = 0x4, fixed_abs, tag = 'smem constant byte address 0x4 - core index']
  #allocation1 [shape = 'u32[144,128]{1,0:T(1,128)}', space=vmem, size = 0x12000, scoped, tag = 'internal scratch']
  %s0 = inlined_call_operand.vmem [shape: f32[128,16], index: 0, kind: input, shape index: {}]
  %s1 = inlined_call_operand.vmem [shape: f32[2,2,8], index: 1, kind: output, shape index: {0}]
  %s2 = inlined_call_operand.vmem [shape: f32[2,2,8], index: 2, kind: output, shape index: {1}]
  %3 = xla_tuple %s1, %s2
  %s4 = sld [smem:[#allocation0]]
  $region45: #{_lambda_.7} parent=0
    _
  %s6 = ssub.s32 1, %s4
  %s7 = scalar_select 0, %s6, %s4
  loop: start=0, step=1, limit=4
  $region2: #{_lambda_.7} parent=0 // loop_pre_header
    _
  $region3: #{_lambda_.7} parent=0 // loop_header
    %s9 = sphi 0, %s13
    %p10 = scmp.ge.s32.totalorder %s9, 4
    %s19 = sphi 0, %s21
    %s22 = sphi 0, %s19
    %s23 = sphi 0, %s22
    %s39 = sphi 0, %s23
    %s45 = sphi 0, %s47
    %s48 = sphi 0, %s45
    %s49 = sphi 0, %s48
    %s65 = sphi 0, %s49
    %s71 = sphi 0, %s73
    %s74 = sphi 0, %s71
    %s75 = sphi 0, %s74
    %s91 = sphi 0, %s75
  $region4: #{_lambda_.7} parent=0 // loop_header_branch
    %12 = sbr.rel (%p10) target = $region8
  $region5: #{_lambda_.7} parent=0 // loop_body
    %s14 = ssub.s32 %s9, 1
    %s15 = ssub.s32 %s9, 2
    %s16 = sadd.s32 %s9, 1
    %s17 = ssub.s32 %s9, %s16
    %p18 = scmp.eq.s32.totalorder %s17, 0
    %s20 = sadd.s32 %s19, 1
    %s21 = scalar_select %p18, %s19, %s20
    %p24 = pneg %p18
    %p25 = scmp.eq.s32.totalorder %s9, 1
    %p26 = por %p24, %p25
    %p27 = scmp.ne.s32.totalorder %s19, %s22
    %p28 = scmp.eq.s32.totalorder %s9, 0
    %p29 = por %p27, %p28
    %p30 = scmp.ne.s32.totalorder %s19, %s22
    %p31 = scmp.eq.s32.totalorder %s14, 1
    %p32 = por %p30, %p31
    %p33 = scmp.ne.s32.totalorder %s22, %s23
    %p34 = scmp.eq.s32.totalorder %s14, 0
    %p35 = por %p33, %p34
    %p36 = scmp.ne.s32.totalorder %s22, %s23
    %p37 = scmp.eq.s32.totalorder %s15, 1
    %p38 = por %p36, %p37
    %p40 = scmp.ne.s32.totalorder %s23, %s39
    %p41 = scmp.eq.s32.totalorder %s15, 0
    %p42 = por %p40, %p41
    %s43 = ssub.s32 %s9, %s16
    %p44 = scmp.eq.s32.totalorder %s43, 0
    %s46 = sadd.s32 %s45, 1
    %s47 = scalar_select %p44, %s45, %s46
    %p50 = pneg %p44
    %p51 = scmp.eq.s32.totalorder %s9, 1
    %p52 = por %p50, %p51
    %p53 = scmp.ne.s32.totalorder %s45, %s48
    %p54 = scmp.eq.s32.totalorder %s9, 0
    %p55 = por %p53, %p54
    %p56 = scmp.ne.s32.totalorder %s45, %s48
    %p57 = scmp.eq.s32.totalorder %s14, 1
    %p58 = por %p56, %p57
    %p59 = scmp.ne.s32.totalorder %s48, %s49
    %p60 = scmp.eq.s32.totalorder %s14, 0
    %p61 = por %p59, %p60
    %p62 = scmp.ne.s32.totalorder %s48, %s49
    %p63 = scmp.eq.s32.totalorder %s15, 1
    %p64 = por %p62, %p63
    %p66 = scmp.ne.s32.totalorder %s49, %s65
    %p67 = scmp.eq.s32.totalorder %s15, 0
    %p68 = por %p66, %p67
    %s69 = ssub.s32 %s9, %s16
    %p70 = scmp.eq.s32.totalorder %s69, 0
    %s72 = sadd.s32 %s71, 1
    %s73 = scalar_select %p70, %s71, %s72
    %p76 = pneg %p70
    %p77 = scmp.eq.s32.totalorder %s9, 1
    %p78 = por %p76, %p77
    %p79 = scmp.ne.s32.totalorder %s71, %s74
    %p80 = scmp.eq.s32.totalorder %s9, 0
    %p81 = por %p79, %p80
    %p82 = scmp.ne.s32.totalorder %s71, %s74
    %p83 = scmp.eq.s32.totalorder %s14, 1
    %p84 = por %p82, %p83
    %p85 = scmp.ne.s32.totalorder %s74, %s75
    %p86 = scmp.eq.s32.totalorder %s14, 0
    %p87 = por %p85, %p86
    %p88 = scmp.ne.s32.totalorder %s74, %s75
    %p89 = scmp.eq.s32.totalorder %s15, 1
    %p90 = por %p88, %p89
    %p92 = scmp.ne.s32.totalorder %s75, %s91
    %p93 = scmp.eq.s32.totalorder %s15, 0
    %p94 = por %p92, %p93
    %p95 = scmp.le.s32.totalorder 1, %s9
    %p96 = scmp.lt.s32.totalorder %s9, 3
    %p97 = pnand %p95, %p96
    %p98 = pneg %p97
    // Predicated region
    $region9: #{_lambda_.7} parent=5 // pred_check
      _
    $region10: #{_lambda_.7} parent=5 // pred_check_branch
      %100 = sbr.rel (%p97) target = $region12
    $region11: #{_lambda_.7} parent=5 // pred_region
      %s101 = ssub.s32 %s9, 1
    $region12: #{_lambda_.7} parent=5 // pred_fallthru
      _
    %p102 = scmp.lt.s32.totalorder %s9, 2
    // Predicated region
    $region13: #{_lambda_.7} parent=5 // pred_check
      %p103 = pneg %p102
    $region14: #{_lambda_.7} parent=5 // pred_check_branch
      %105 = sbr.rel (%p103) target = $region16
    $region15: #{_lambda_.7} parent=5 // pred_region
      // Predicated region
      $region17: #{_lambda_.7} parent=15 // pred_check
        %p106 = pneg %p29
      $region18: #{_lambda_.7} parent=15 // pred_check_branch
        %108 = sbr.rel (%p106) target = $region20
      $region19: #{_lambda_.7} parent=15 // pred_region
        %s109 = smul.u32 8, %s9
        %p110 = scmp.lt.s32.totalorder %s109, 15
        %s111 = scalar_select %p110, %s109, 15
        %s112 = smul.addr %s111, 8
        %s113 = scalar_lea.vmem %s0, %s112
        %s114 = smul.u32 8, %s9
      $region20: #{_lambda_.7} parent=15 // pred_fallthru
        _
    $region16: #{_lambda_.7} parent=5 // pred_fallthru
      _
    %p115 = scmp.le.s32.totalorder 1, %s9
    %p116 = scmp.lt.s32.totalorder %s9, 3
    %p117 = pnand %p115, %p116
    %p118 = pneg %p117
    // Predicated region
    $region21: #{_lambda_.7} parent=5 // pred_check
      _
    $region22: #{_lambda_.7} parent=5 // pred_check_branch
      %120 = sbr.rel (%p117) target = $region24
    $region23: #{_lambda_.7} parent=5 // pred_region
      %s121 = ssub.s32 %s9, 1
      %s122 = smul.u32 8, %s14
      %p123 = scmp.lt.s32.totalorder %s122, 15
      %s124 = scalar_select %p123, %s122, 15
      %s125 = smul.addr %s124, 8
      %s126 = scalar_lea.vmem %s0, %s125
      %p127 = pneg %p35
      %p128 = pneg %p32
      %p129 = pneg %p61
      %p130 = pneg %p58
      %p131 = scmp.lt.s32.totalorder %s14, 1
      %s132 = scalar_select %p131, %s14, 1
      %s133 = smul.addr %s132, 2
      %s134 = scalar_lea.vmem %s1, %s133
      %p135 = pneg %p87
      %p136 = pneg %p84
      %p137 = scmp.lt.s32.totalorder %s14, 1
      %s138 = scalar_select %p137, %s14, 1
      %s139 = smul.addr %s138, 2
      %s140 = scalar_lea.vmem %s2, %s139
      %s141 = smul.u32 8, %s14
      %p142 = scmp.lt.s32.totalorder %s141, 15
      %s143 = scalar_select %p142, %s141, 15
      %s144 = smul.addr %s143, 8
      %s145 = scalar_lea.vmem %s0, %s144
      %s146 = smul.u32 8, %s14
      %p147 = scmp.lt.s32.totalorder %s14, 1
      %s148 = scalar_select %p147, %s14, 1
      %s149 = smul.addr %s148, 2
      %s150 = scalar_lea.vmem %s1, %s149
      %p151 = scmp.lt.s32.totalorder %s14, 1
      %s152 = scalar_select %p151, %s14, 1
      %s153 = smul.addr %s152, 2
      %s154 = scalar_lea.vmem %s2, %s153
      %v155 = vld [vmem:[%s145] sm:$0xff]
      %v156 = vld [vmem:[%s145 + $0x8] sm:$0xff]
      %v157 = vld [vmem:[%s145 + $0x10] sm:$0xff]
      %v158 = vld [vmem:[%s145 + $0x18] sm:$0xff]
      %v159 = vld [vmem:[%s145 + $0x20] sm:$0xff]
      %v160 = vld [vmem:[%s145 + $0x28] sm:$0xff]
      %v161 = vld [vmem:[%s145 + $0x30] sm:$0xff]
      %v162 = vld [vmem:[%s145 + $0x38] sm:$0xff]
      %vm163 = vcmask 130048
      %v164 = vsel %vm163, %v155, 0.0
      %v165 = vsel %vm163, %v156, 0.0
      %v166 = vadd.f32 %v164, %v165
      %v167 = vsel %vm163, %v157, 0.0
      %v168 = vadd.f32 %v166, %v167
      %v169 = vsel %vm163, %v158, 0.0
      %v170 = vadd.f32 %v168, %v169
      %v171 = vsel %vm163, %v159, 0.0
      %v172 = vadd.f32 %v170, %v171
      %v173 = vsel %vm163, %v160, 0.0
      %v174 = vadd.f32 %v172, %v173
      %v175 = vsel %vm163, %v161, 0.0
      %v176 = vadd.f32 %v174, %v175
      %v177 = vsel %vm163, %v162, 0.0
      %v178 = vadd.f32 %v176, %v177
      %v179 = vrot.slane %v178, 4
      %v180 = vadd.f32 %v178, %v179
      %v181 = vrot.slane %v180, 2
      %v182 = vadd.f32 %v180, %v181
      %v183 = vrot.slane %v182, 1
      %v184 = vadd.f32 %v182, %v183
      %v185 = vmul.f32 %v155, %v155
      %v186 = vmul.f32 %v156, %v156
      %v187 = vmul.f32 %v157, %v157
      %v188 = vmul.f32 %v158, %v158
      %v189 = vmul.f32 %v159, %v159
      %v190 = vmul.f32 %v160, %v160
      %v191 = vmul.f32 %v161, %v161
      %v192 = vmul.f32 %v162, %v162
      %v193 = vsel %vm163, %v185, 0.0
      %v194 = vsel %vm163, %v186, 0.0
      %v195 = vadd.f32 %v193, %v194
      %v196 = vsel %vm163, %v187, 0.0
      %v197 = vadd.f32 %v195, %v196
      %v198 = vsel %vm163, %v188, 0.0
      %v199 = vadd.f32 %v197, %v198
      %v200 = vsel %vm163, %v189, 0.0
      %v201 = vadd.f32 %v199, %v200
      %v202 = vsel %vm163, %v190, 0.0
      %v203 = vadd.f32 %v201, %v202
      %v204 = vsel %vm163, %v191, 0.0
      %v205 = vadd.f32 %v203, %v204
      %v206 = vsel %vm163, %v192, 0.0
      %v207 = vadd.f32 %v205, %v206
      %v208 = vrot.slane %v207, 4
      %v209 = vadd.f32 %v207, %v208
      %v210 = vrot.slane %v209, 2
      %v211 = vadd.f32 %v209, %v210
      %v212 = vrot.slane %v211, 1
      %v213 = vadd.f32 %v211, %v212
      %vm214 = vcmask 1040384
      %v215 = vsel %vm214, %v184, %v213
      %vm216 = vcmask 58368
      %217 = vst.msk [vmem:[%s150] sm:$0x3] %vm216, %v215
      %219 = vrot.lane.b32.xlu0 %v215, 120
      %v220 = vpop.permute.xlu0 %219
      %222 = vst.msk [vmem:[%s154] sm:$0x3] %vm216, %v220
      %p223 = scmp.lt.s32.totalorder %s14, 1
      %s224 = scalar_select %p223, %s14, 1
      %s225 = smul.addr %s224, 2
      %s226 = scalar_lea.vmem %s1, %s225
      %p227 = scmp.lt.s32.totalorder %s14, 1
      %s228 = scalar_select %p227, %s14, 1
      %s229 = smul.addr %s228, 2
      %s230 = scalar_lea.vmem %s2, %s229
      // Predicated region
      $region25: #{_lambda_.7} parent=23 // pred_check
        %p231 = pneg %p58
      $region26: #{_lambda_.7} parent=23 // pred_check_branch
        %233 = sbr.rel (%p231) target = $region28
      $region27: #{_lambda_.7} parent=23 // pred_region
        _
      $region28: #{_lambda_.7} parent=23 // pred_fallthru
        _
      // Predicated region
      $region29: #{_lambda_.7} parent=23 // pred_check
        %p234 = pneg %p84
      $region30: #{_lambda_.7} parent=23 // pred_check_branch
        %236 = sbr.rel (%p234) target = $region32
      $region31: #{_lambda_.7} parent=23 // pred_region
        _
      $region32: #{_lambda_.7} parent=23 // pred_fallthru
        _
    $region24: #{_lambda_.7} parent=5 // pred_fallthru
      _
    %p237 = scmp.le.s32.totalorder 2, %s9
    // Predicated region
    $region33: #{_lambda_.7} parent=5 // pred_check
      %p238 = pneg %p237
    $region34: #{_lambda_.7} parent=5 // pred_check_branch
      %240 = sbr.rel (%p238) target = $region36
    $region35: #{_lambda_.7} parent=5 // pred_region
      %s241 = ssub.s32 %s9, 2
      // Predicated region
      $region37: #{_lambda_.7} parent=35 // pred_check
        %p242 = pneg %p64
      $region38: #{_lambda_.7} parent=35 // pred_check_branch
        %244 = sbr.rel (%p242) target = $region40
      $region39: #{_lambda_.7} parent=35 // pred_region
        %p245 = scmp.lt.s32.totalorder %s15, 1
        %s246 = scalar_select %p245, %s15, 1
        %s247 = smul.addr %s246, 2
        %s248 = scalar_lea.vmem %s1, %s247
      $region40: #{_lambda_.7} parent=35 // pred_fallthru
        _
      // Predicated region
      $region41: #{_lambda_.7} parent=35 // pred_check
        %p249 = pneg %p90
      $region42: #{_lambda_.7} parent=35 // pred_check_branch
        %251 = sbr.rel (%p249) target = $region44
      $region43: #{_lambda_.7} parent=35 // pred_region
        %p252 = scmp.lt.s32.totalorder %s15, 1
        %s253 = scalar_select %p252, %s15, 1
        %s254 = smul.addr %s253, 2
        %s255 = scalar_lea.vmem %s2, %s254
      $region44: #{_lambda_.7} parent=35 // pred_fallthru
        _
    $region36: #{_lambda_.7} parent=5 // pred_fallthru
      _
  $region6: #{_lambda_.7} parent=0 // loop_footer
    %s13 = sadd.s32 1, %s9
  $region7: #{_lambda_.7} parent=0 // loop_footer_branch
    %8 = sbr.rel target = $region3
  $region8: #{_lambda_.7} parent=0 // loop_exit
    _

// kernel: _lambda_.9
$region0: #{_lambda_.9}
  #allocation0 [shape = 'u32[]', space=smem, size = 0x4, offset = 0x4, fixed_abs, tag = 'smem constant byte address 0x4 - core index']
  #allocation1 [shape = 'u32[144,128]{1,0:T(1,128)}', space=vmem, size = 0x12000, scoped, tag = 'internal scratch']
  %s0 = inlined_call_operand.vmem [shape: bf16[128,32], index: 0, kind: input, shape index: {}]
  %s1 = inlined_call_operand.vmem [shape: f32[1,2,32], index: 1, kind: input, shape index: {}]
  %s2 = inlined_call_operand.vmem [shape: bf16[32,32], index: 2, kind: input, shape index: {}]
  %s3 = inlined_call_operand.vmem [shape: bf16[128,32], index: 3, kind: output, shape index: {0}]
  %s4 = inlined_call_operand.vmem [shape: f32[2,2,32], index: 4, kind: output, shape index: {1}]
  %5 = xla_tuple %s3, %s4
  %s6 = sld [smem:[#allocation0]]
  $region53: #{_lambda_.9} parent=0
    _
  %s8 = ssub.s32 1, %s6
  %s9 = scalar_select 0, %s8, %s6
  loop: start=0, step=1, limit=4
  $region2: #{_lambda_.9} parent=0 // loop_pre_header
    _
  $region3: #{_lambda_.9} parent=0 // loop_header
    %s11 = sphi 0, %s15
    %p12 = scmp.ge.s32.totalorder %s11, 4
    %s21 = sphi 0, %s23
    %s24 = sphi 0, %s21
    %s25 = sphi 0, %s24
    %s41 = sphi 0, %s25
    %s45 = sphi 0, %s45
    %s47 = sphi 0, %s45
    %s48 = sphi 0, %s47
    %s62 = sphi 0, %s48
    %s66 = sphi 0, %s66
    %s68 = sphi 0, %s66
    %s69 = sphi 0, %s68
    %s83 = sphi 0, %s69
    %s89 = sphi 0, %s91
    %s92 = sphi 0, %s89
    %s93 = sphi 0, %s92
    %s109 = sphi 0, %s93
    %s115 = sphi 0, %s117
    %s118 = sphi 0, %s115
    %s119 = sphi 0, %s118
    %s135 = sphi 0, %s119
  $region4: #{_lambda_.9} parent=0 // loop_header_branch
    %14 = sbr.rel (%p12) target = $region8
  $region5: #{_lambda_.9} parent=0 // loop_body
    %s16 = ssub.s32 %s11, 1
    %s17 = ssub.s32 %s11, 2
    %s18 = sadd.s32 %s11, 1
    %s19 = ssub.s32 %s11, %s18
    %p20 = scmp.eq.s32.totalorder %s19, 0
    %s22 = sadd.s32 %s21, 1
    %s23 = scalar_select %p20, %s21, %s22
    %p26 = pneg %p20
    %p27 = scmp.eq.s32.totalorder %s11, 1
    %p28 = por %p26, %p27
    %p29 = scmp.ne.s32.totalorder %s21, %s24
    %p30 = scmp.eq.s32.totalorder %s11, 0
    %p31 = por %p29, %p30
    %p32 = scmp.ne.s32.totalorder %s21, %s24
    %p33 = scmp.eq.s32.totalorder %s16, 1
    %p34 = por %p32, %p33
    %p35 = scmp.ne.s32.totalorder %s24, %s25
    %p36 = scmp.eq.s32.totalorder %s16, 0
    %p37 = por %p35, %p36
    %p38 = scmp.ne.s32.totalorder %s24, %s25
    %p39 = scmp.eq.s32.totalorder %s17, 1
    %p40 = por %p38, %p39
    %p42 = scmp.ne.s32.totalorder %s25, %s41
    %p43 = scmp.eq.s32.totalorder %s17, 0
    %p44 = por %p42, %p43
    %s46 = sadd.s32 %s45, 1
    %p49 = scmp.eq.s32.totalorder %s11, 1
    %p50 = scmp.ne.s32.totalorder %s45, %s47
    %p51 = scmp.eq.s32.totalorder %s11, 0
    %p52 = por %p50, %p51
    %p53 = scmp.ne.s32.totalorder %s45, %s47
    %p54 = scmp.eq.s32.totalorder %s16, 1
    %p55 = por %p53, %p54
    %p56 = scmp.ne.s32.totalorder %s47, %s48
    %p57 = scmp.eq.s32.totalorder %s16, 0
    %p58 = por %p56, %p57
    %p59 = scmp.ne.s32.totalorder %s47, %s48
    %p60 = scmp.eq.s32.totalorder %s17, 1
    %p61 = por %p59, %p60
    %p63 = scmp.ne.s32.totalorder %s48, %s62
    %p64 = scmp.eq.s32.totalorder %s17, 0
    %p65 = por %p63, %p64
    %s67 = sadd.s32 %s66, 1
    %p70 = scmp.eq.s32.totalorder %s11, 1
    %p71 = scmp.ne.s32.totalorder %s66, %s68
    %p72 = scmp.eq.s32.totalorder %s11, 0
    %p73 = por %p71, %p72
    %p74 = scmp.ne.s32.totalorder %s66, %s68
    %p75 = scmp.eq.s32.totalorder %s16, 1
    %p76 = por %p74, %p75
    %p77 = scmp.ne.s32.totalorder %s68, %s69
    %p78 = scmp.eq.s32.totalorder %s16, 0
    %p79 = por %p77, %p78
    %p80 = scmp.ne.s32.totalorder %s68, %s69
    %p81 = scmp.eq.s32.totalorder %s17, 1
    %p82 = por %p80, %p81
    %p84 = scmp.ne.s32.totalorder %s69, %s83
    %p85 = scmp.eq.s32.totalorder %s17, 0
    %p86 = por %p84, %p85
    %s87 = ssub.s32 %s11, %s18
    %p88 = scmp.eq.s32.totalorder %s87, 0
    %s90 = sadd.s32 %s89, 1
    %s91 = scalar_select %p88, %s89, %s90
    %p94 = pneg %p88
    %p95 = scmp.eq.s32.totalorder %s11, 1
    %p96 = por %p94, %p95
    %p97 = scmp.ne.s32.totalorder %s89, %s92
    %p98 = scmp.eq.s32.totalorder %s11, 0
    %p99 = por %p97, %p98
    %p100 = scmp.ne.s32.totalorder %s89, %s92
    %p101 = scmp.eq.s32.totalorder %s16, 1
    %p102 = por %p100, %p101
    %p103 = scmp.ne.s32.totalorder %s92, %s93
    %p104 = scmp.eq.s32.totalorder %s16, 0
    %p105 = por %p103, %p104
    %p106 = scmp.ne.s32.totalorder %s92, %s93
    %p107 = scmp.eq.s32.totalorder %s17, 1
    %p108 = por %p106, %p107
    %p110 = scmp.ne.s32.totalorder %s93, %s109
    %p111 = scmp.eq.s32.totalorder %s17, 0
    %p112 = por %p110, %p111
    %s113 = ssub.s32 %s11, %s18
    %p114 = scmp.eq.s32.totalorder %s113, 0
    %s116 = sadd.s32 %s115, 1
    %s117 = scalar_select %p114, %s115, %s116
    %p120 = pneg %p114
    %p121 = scmp.eq.s32.totalorder %s11, 1
    %p122 = por %p120, %p121
    %p123 = scmp.ne.s32.totalorder %s115, %s118
    %p124 = scmp.eq.s32.totalorder %s11, 0
    %p125 = por %p123, %p124
    %p126 = scmp.ne.s32.totalorder %s115, %s118
    %p127 = scmp.eq.s32.totalorder %s16, 1
    %p128 = por %p126, %p127
    %p129 = scmp.ne.s32.totalorder %s118, %s119
    %p130 = scmp.eq.s32.totalorder %s16, 0
    %p131 = por %p129, %p130
    %p132 = scmp.ne.s32.totalorder %s118, %s119
    %p133 = scmp.eq.s32.totalorder %s17, 1
    %p134 = por %p132, %p133
    %p136 = scmp.ne.s32.totalorder %s119, %s135
    %p137 = scmp.eq.s32.totalorder %s17, 0
    %p138 = por %p136, %p137
    %p139 = scmp.le.s32.totalorder 1, %s11
    %p140 = scmp.lt.s32.totalorder %s11, 3
    %p141 = pnand %p139, %p140
    %p142 = pneg %p141
    // Predicated region
    $region9: #{_lambda_.9} parent=5 // pred_check
      _
    $region10: #{_lambda_.9} parent=5 // pred_check_branch
      %144 = sbr.rel (%p141) target = $region12
    $region11: #{_lambda_.9} parent=5 // pred_region
      %s145 = ssub.s32 %s11, 1
      // Predicated region
      $region13: #{_lambda_.9} parent=11 // pred_check
        %p146 = pneg %p58
      $region14: #{_lambda_.9} parent=11 // pred_check_branch
        %148 = sbr.rel (%p146) target = $region16
      $region15: #{_lambda_.9} parent=11 // pred_region
        _
      $region16: #{_lambda_.9} parent=11 // pred_fallthru
        _
      // Predicated region
      $region17: #{_lambda_.9} parent=11 // pred_check
        %p149 = pneg %p79
      $region18: #{_lambda_.9} parent=11 // pred_check_branch
        %151 = sbr.rel (%p149) target = $region20
      $region19: #{_lambda_.9} parent=11 // pred_region
        _
      $region20: #{_lambda_.9} parent=11 // pred_fallthru
        _
    $region12: #{_lambda_.9} parent=5 // pred_fallthru
      _
    %p152 = scmp.lt.s32.totalorder %s11, 2
    // Predicated region
    $region21: #{_lambda_.9} parent=5 // pred_check
      %p153 = pneg %p152
    $region22: #{_lambda_.9} parent=5 // pred_check_branch
      %155 = sbr.rel (%p153) target = $region24
    $region23: #{_lambda_.9} parent=5 // pred_region
      // Predicated region
      $region25: #{_lambda_.9} parent=23 // pred_check
        %p156 = pneg %p31
      $region26: #{_lambda_.9} parent=23 // pred_check_branch
        %158 = sbr.rel (%p156) target = $region28
      $region27: #{_lambda_.9} parent=23 // pred_region
        %s159 = smul.u32 8, %s11
        %p160 = scmp.lt.s32.totalorder %s159, 15
        %s161 = scalar_select %p160, %s159, 15
        %s162 = smul.addr %s161, 4
        %s163 = scalar_lea.vmem %s0, %s162
        %s164 = smul.u32 8, %s11
      $region28: #{_lambda_.9} parent=23 // pred_fallthru
        _
    $region24: #{_lambda_.9} parent=5 // pred_fallthru
      _
    %p165 = scmp.le.s32.totalorder 1, %s11
    %p166 = scmp.lt.s32.totalorder %s11, 3
    %p167 = pnand %p165, %p166
    %p168 = pneg %p167
    // Predicated region
    $region29: #{_lambda_.9} parent=5 // pred_check
      _
    $region30: #{_lambda_.9} parent=5 // pred_check_branch
      %170 = sbr.rel (%p167) target = $region32
    $region31: #{_lambda_.9} parent=5 // pred_region
      %s171 = ssub.s32 %s11, 1
      %s172 = smul.u32 8, %s16
      %p173 = scmp.lt.s32.totalorder %s172, 15
      %s174 = scalar_select %p173, %s172, 15
      %s175 = smul.addr %s174, 4
      %s176 = scalar_lea.vmem %s0, %s175
      %p177 = pneg %p37
      %p178 = pneg %p34
      %p179 = pneg %p58
      %p180 = pneg %p55
      %p181 = pneg %p79
      %p182 = pneg %p76
      %p183 = pneg %p105
      %p184 = pneg %p102
      %s185 = smul.u32 8, %s16
      %p186 = scmp.lt.s32.totalorder %s185, 15
      %s187 = scalar_select %p186, %s185, 15
      %s188 = smul.addr %s187, 4
      %s189 = scalar_lea.vmem %s3, %s188
      %p190 = pneg %p131
      %p191 = pneg %p128
      %p192 = scmp.lt.s32.totalorder %s16, 1
      %s193 = scalar_select %p192, %s16, 1
      %s194 = smul.addr %s193, 2
      %s195 = scalar_lea.vmem %s4, %s194
      %s196 = smul.u32 8, %s16
      %p197 = scmp.lt.s32.totalorder %s196, 15
      %s198 = scalar_select %p197, %s196, 15
      %s199 = smul.addr %s198, 4
      %s200 = scalar_lea.vmem %s0, %s199
      %s201 = smul.u32 8, %s16
      %s202 = smul.u32 8, %s16
      %p203 = scmp.lt.s32.totalorder %s202, 15
      %s204 = scalar_select %p203, %s202, 15
      %s205 = smul.addr %s204, 4
      %s206 = scalar_lea.vmem %s3, %s205
      %s207 = smul.u32 8, %s16
      %p208 = scmp.lt.s32.totalorder %s16, 1
      %s209 = scalar_select %p208, %s16, 1
      %s210 = smul.addr %s209, 2
      %s211 = scalar_lea.vmem %s4, %s210
      %v213 = vld [vmem:[%s1] sm:$0x3]
      %v214 = vadd.f32 %v213, 0.0
      %v215 = vmul.f32 %v214, 0.0078125
      %v216 = vmul.f32 %v215, %v215
      %v218 = vrot.slane %v216, 7
      %v220 = vsub.f32 %v215, %v218
      %v221 = vmax.f32 %v220, 0.0
      %v222 = vrsqrt.pop %v221
      %v223 = vmul.f32 %v221, %v222
      %vm224 = vcmp.eq.f32.partialorder %v221, inf
      %v225 = vsel %vm224, %v221, %v223
      %vm226 = vcmp.eq.f32.partialorder %v221, 0.0
      %v227 = vand.u32 %v221, 2147483648
      %v228 = vsel %vm226, %v227, %v225
      %v229 = vadd.f32 %v228, 1e-06
      %v230 = vrcp.pop %v229
      %v231 = vmul.f32 1.0, %v230
      %v232 = vld [vmem:[%s200] sm:$0xf]
      %v233 = vld [vmem:[%s200 + $0x4] sm:$0xf]
      %v234 = vld [vmem:[%s200 + $0x8] sm:$0xf]
      %v235 = vld [vmem:[%s200 + $0xc] sm:$0xf]
      %v236 = vld [vmem:[%s200 + $0x10] sm:$0xf]
      %v237 = vld [vmem:[%s200 + $0x14] sm:$0xf]
      %v238 = vld [vmem:[%s200 + $0x18] sm:$0xf]
      %v239 = vld [vmem:[%s200 + $0x1c] sm:$0xf]
      %v240 = vunpack.c.l.bf16 %v232
      %v241 = vunpack.c.l.bf16 %v233
      %v242 = vunpack.c.l.bf16 %v234
      %v243 = vunpack.c.l.bf16 %v235
      %v244 = vunpack.c.l.bf16 %v236
      %v245 = vunpack.c.l.bf16 %v237
      %v246 = vunpack.c.l.bf16 %v238
      %v247 = vunpack.c.l.bf16 %v239
      %v248 = vlaneseq
      %v249 = vshrl.u32 %v248, 7
      %v250 = vsub.s32 0, %v249
      %v251 = vrot.slane %v215, %v250
      %v252 = vsub.f32 %v240, %v251
      %v253 = vsub.f32 %v241, %v251
      %v254 = vsub.f32 %v242, %v251
      %v255 = vsub.f32 %v243, %v251
      %v256 = vsub.f32 %v244, %v251
      %v257 = vsub.f32 %v245, %v251
      %v258 = vsub.f32 %v246, %v251
      %v259 = vsub.f32 %v247, %v251
      %v260 = vlaneseq
      %v261 = vshrl.u32 %v260, 7
      %v262 = vsub.s32 1, %v261
      %v263 = vrot.slane %v231, %v262
      %v264 = vmul.f32 %v252, %v263
      %v265 = vmul.f32 %v253, %v263
      %v266 = vmul.f32 %v254, %v263
      %v267 = vmul.f32 %v255, %v263
      %v268 = vmul.f32 %v256, %v263
      %v269 = vmul.f32 %v257, %v263
      %v270 = vmul.f32 %v258, %v263
      %v271 = vmul.f32 %v259, %v263
      %v272 = vmax.f32 %v264, 0.0
      %v273 = vmax.f32 %v265, 0.0
      %v274 = vmax.f32 %v266, 0.0
      %v275 = vmax.f32 %v267, 0.0
      %v276 = vmax.f32 %v268, 0.0
      %v277 = vmax.f32 %v269, 0.0
      %v278 = vmax.f32 %v270, 0.0
      %v279 = vmax.f32 %v271, 0.0
      %v280 = vpack.c.bf16 %v273, %v272
      %v281 = vpack.c.bf16 %v275, %v274
      %v282 = vpack.c.bf16 %v277, %v276
      %v283 = vpack.c.bf16 %v279, %v278
      %v284 = vld [vmem:[%s2] sm:$0xf]
      %v285 = vld [vmem:[%s2 + $0x4] sm:$0xf]
      %v286 = vld [vmem:[%s2 + $0x8] sm:$0xf]
      %v287 = vld [vmem:[%s2 + $0xc] sm:$0xf]
      %v292 = vunpack.c.l.b16 %v284
      %v293 = vunpack.c.l.b16 %v285
      %v294 = vunpack.c.l.b16 %v286
      %v295 = vunpack.c.l.b16 %v287
      %v296 = vpack.c.b16 %v293, %v292
      %v297 = vpack.c.b16 %v295, %v294
      %vm300 = vcmask 261120
      %v302 = vsel %vm300, %v280, 0
      %v305 = vsel %vm300, %v281, 0
      %v308 = vsel %vm300, %v282, 0
      %v311 = vsel %vm300, %v283, 0
      %313 = vmatprep.subr.bf16.mxu0 0
      %314 = vmatpush1.bf16.msra.mxu0 %v296
      %315 = vmatprep.subr.bf16.mxu0 0
      %316 = vmatpush1.bf16.msra.mxu0 %v297
      %317 = vmatprep.subr.bf16.mxu0 0
      %318 = vmatpush1.bf16.msra.mxu0 0
      %319 = vmatprep.subr.bf16.mxu0 0
      %320 = vmatpush1.bf16.msra.mxu0 0
      %321 = vmatprep.subr.bf16.mxu0 0
      %322 = vmatpush1.bf16.msra.mxu0 0
      %323 = vmatprep.subr.bf16.mxu0 0
      %324 = vmatpush1.bf16.msra.mxu0 0
      %325 = vmatprep.subr.bf16.mxu0 0
      %326 = vmatpush1.bf16.msra.mxu0 0
      %327 = vmatprep.subr.bf16.mxu0 0
      %328 = vmatpush1.bf16.msra.mxu0 0
      %329 = vmatprep.subr.bf16.mxu0 0
      %330 = vmatpush1.bf16.msra.mxu0 0
      %331 = vmatprep.subr.bf16.mxu0 0
      %332 = vmatpush1.bf16.msra.mxu0 0
      %333 = vmatprep.subr.bf16.mxu0 0
      %334 = vmatpush1.bf16.msra.mxu0 0
      %335 = vmatprep.subr.bf16.mxu0 0
      %336 = vmatpush1.bf16.msra.mxu0 0
      %337 = vmatprep.subr.bf16.mxu0 0
      %338 = vmatpush1.bf16.msra.mxu0 0
      %339 = vmatprep.subr.bf16.mxu0 0
      %340 = vmatpush1.bf16.msra.mxu0 0
      %341 = vmatprep.subr.bf16.mxu0 0
      %342 = vmatpush1.bf16.msra.mxu0 0
      %343 = vmatprep.subr.bf16.mxu0 0
      %344 = vmatpush1.bf16.msra.mxu0 0
      %345 = vmatprep.mubr.bf16.mxu0 0
      %346 = vmatmul.mubr.bf16.gmra.mrb[0].mxu0 %v302
      %v347 = vpop.f32.mrb[0].mxu0
      %v348 = vadd.f32 0.0, %v347
      %v349 = vpop.f32.mrb[0].mxu0
      %v350 = vpop.f32.mrb[0].mxu0
      %v351 = vadd.f32 0.0, %v350
      %v352 = vpop.f32.mrb[0].mxu0
      %353 = vmatprep.mubr.bf16.mxu0 0
      %354 = vmatmul.mubr.bf16.gmra.mrb[0].mxu0 %v305
      %v355 = vpop.f32.mrb[0].mxu0
      %v356 = vadd.f32 0.0, %v355
      %v357 = vpop.f32.mrb[0].mxu0
      %v358 = vpop.f32.mrb[0].mxu0
      %v359 = vadd.f32 0.0, %v358
      %v360 = vpop.f32.mrb[0].mxu0
      %361 = vmatprep.mubr.bf16.mxu0 0
      %362 = vmatmul.mubr.bf16.gmra.mrb[0].mxu0 %v308
      %v363 = vpop.f32.mrb[0].mxu0
      %v364 = vadd.f32 0.0, %v363
      %v365 = vpop.f32.mrb[0].mxu0
      %v366 = vpop.f32.mrb[0].mxu0
      %v367 = vadd.f32 0.0, %v366
      %v368 = vpop.f32.mrb[0].mxu0
      %369 = vmatprep.mubr.bf16.mxu0 0
      %370 = vmatmul.mubr.bf16.gmra.mrb[0].mxu0 %v311
      %v371 = vpop.f32.mrb[0].mxu0
      %v372 = vadd.f32 0.0, %v371
      %v373 = vpop.f32.mrb[0].mxu0
      %v374 = vpop.f32.mrb[0].mxu0
      %v375 = vadd.f32 0.0, %v374
      %v376 = vpop.f32.mrb[0].mxu0
      %377 = vdwg.mxu0
      %v378 = vpack.c.bf16 %v351, %v348
      %v379 = vpack.c.bf16 %v359, %v356
      %v380 = vpack.c.bf16 %v367, %v364
      %v381 = vpack.c.bf16 %v375, %v372
      %v386 = vunpack.c.l.b16 %v378
      %v387 = vunpack.c.h.b16 %v378
      %v388 = vunpack.c.l.b16 %v379
      %v389 = vunpack.c.h.b16 %v379
      %v390 = vunpack.c.l.b16 %v380
      %v391 = vunpack.c.h.b16 %v380
      %v392 = vunpack.c.l.b16 %v381
      %v393 = vunpack.c.h.b16 %v381
      %v394 = vpack.c.b16 %v386, %v386
      %v395 = vpack.c.b16 %v387, %v387
      %v396 = vpack.c.b16 %v388, %v388
      %v397 = vpack.c.b16 %v389, %v389
      %v398 = vpack.c.b16 %v390, %v390
      %v399 = vpack.c.b16 %v391, %v391
      %v400 = vpack.c.b16 %v392, %v392
      %v401 = vpack.c.b16 %v393, %v393
      %vm410 = vcmask 257024
      %411 = vst.msk [vmem:[%s206] sm:$0xf] %vm410, %v394
      %412 = vst.msk [vmem:[%s206 + $0x4] sm:$0xf] %vm410, %v395
      %413 = vst.msk [vmem:[%s206 + $0x8] sm:$0xf] %vm410, %v396
      %414 = vst.msk [vmem:[%s206 + $0xc] sm:$0xf] %vm410, %v397
      %415 = vst.msk [vmem:[%s206 + $0x10] sm:$0xf] %vm410, %v398
      %416 = vst.msk [vmem:[%s206 + $0x14] sm:$0xf] %vm410, %v399
      %417 = vst.msk [vmem:[%s206 + $0x18] sm:$0xf] %vm410, %v400
      %418 = vst.msk [vmem:[%s206 + $0x1c] sm:$0xf] %vm410, %v401
      %v419 = vsel %vm300, %v348, 0.0
      %v420 = vsel %vm300, %v351, 0.0
      %v421 = vadd.f32 %v419, %v420
      %v422 = vsel %vm300, %v356, 0.0
      %v423 = vadd.f32 %v421, %v422
      %v424 = vsel %vm300, %v359, 0.0
      %v425 = vadd.f32 %v423, %v424
      %v426 = vsel %vm300, %v364, 0.0
      %v427 = vadd.f32 %v425, %v426
      %v428 = vsel %vm300, %v367, 0.0
      %v429 = vadd.f32 %v427, %v428
      %v430 = vsel %vm300, %v372, 0.0
      %v431 = vadd.f32 %v429, %v430
      %v432 = vsel %vm300, %v375, 0.0
      %v433 = vadd.f32 %v431, %v432
      %v434 = vrot.slane %v433, 4
      %v435 = vadd.f32 %v433, %v434
      %v436 = vrot.slane %v435, 2
      %v437 = vadd.f32 %v435, %v436
      %v438 = vrot.slane %v437, 1
      %v439 = vadd.f32 %v437, %v438
      %v440 = vmul.f32 %v348, %v348
      %v441 = vmul.f32 %v351, %v351
      %v442 = vmul.f32 %v356, %v356
      %v443 = vmul.f32 %v359, %v359
      %v444 = vmul.f32 %v364, %v364
      %v445 = vmul.f32 %v367, %v367
      %v446 = vmul.f32 %v372, %v372
      %v447 = vmul.f32 %v375, %v375
      %v448 = vsel %vm300, %v440, 0.0
      %v449 = vsel %vm300, %v441, 0.0
      %v450 = vadd.f32 %v448, %v449
      %v451 = vsel %vm300, %v442, 0.0
      %v452 = vadd.f32 %v450, %v451
      %v453 = vsel %vm300, %v443, 0.0
      %v454 = vadd.f32 %v452, %v453
      %v455 = vsel %vm300, %v444, 0.0
      %v456 = vadd.f32 %v454, %v455
      %v457 = vsel %vm300, %v445, 0.0
      %v458 = vadd.f32 %v456, %v457
      %v459 = vsel %vm300, %v446, 0.0
      %v460 = vadd.f32 %v458, %v459
      %v461 = vsel %vm300, %v447, 0.0
      %v462 = vadd.f32 %v460, %v461
      %v463 = vrot.slane %v462, 4
      %v464 = vadd.f32 %v462, %v463
      %v465 = vrot.slane %v464, 2
      %v466 = vadd.f32 %v464, %v465
      %v467 = vrot.slane %v466, 1
      %v468 = vadd.f32 %v466, %v467
      %vm469 = vcmask 1040384
      %v470 = vsel %vm469, %v439, %v468
      %vm471 = vcmask 254976
      %472 = vst.msk [vmem:[%s211] sm:$0x3] %vm471, %v470
      %s473 = smul.u32 8, %s16
      %p474 = scmp.lt.s32.totalorder %s473, 15
      %s475 = scalar_select %p474, %s473, 15
      %s476 = smul.addr %s475, 4
      %s477 = scalar_lea.vmem %s3, %s476
      %p478 = scmp.lt.s32.totalorder %s16, 1
      %s479 = scalar_select %p478, %s16, 1
      %s480 = smul.addr %s479, 2
      %s481 = scalar_lea.vmem %s4, %s480
      // Predicated region
      $region33: #{_lambda_.9} parent=31 // pred_check
        %p482 = pneg %p102
      $region34: #{_lambda_.9} parent=31 // pred_check_branch
        %484 = sbr.rel (%p482) target = $region36
      $region35: #{_lambda_.9} parent=31 // pred_region
        %s485 = smul.u32 8, %s16
      $region36: #{_lambda_.9} parent=31 // pred_fallthru
        _
      // Predicated region
      $region37: #{_lambda_.9} parent=31 // pred_check
        %p486 = pneg %p128
      $region38: #{_lambda_.9} parent=31 // pred_check_branch
        %488 = sbr.rel (%p486) target = $region40
      $region39: #{_lambda_.9} parent=31 // pred_region
        _
      $region40: #{_lambda_.9} parent=31 // pred_fallthru
        _
    $region32: #{_lambda_.9} parent=5 // pred_fallthru
      _
    %p489 = scmp.le.s32.totalorder 2, %s11
    // Predicated region
    $region41: #{_lambda_.9} parent=5 // pred_check
      %p490 = pneg %p489
    $region42: #{_lambda_.9} parent=5 // pred_check_branch
      %492 = sbr.rel (%p490) target = $region44
    $region43: #{_lambda_.9} parent=5 // pred_region
      %s493 = ssub.s32 %s11, 2
      // Predicated region
      $region45: #{_lambda_.9} parent=43 // pred_check
        %p494 = pneg %p108
      $region46: #{_lambda_.9} parent=43 // pred_check_branch
        %496 = sbr.rel (%p494) target = $region48
      $region47: #{_lambda_.9} parent=43 // pred_region
        %s497 = smul.u32 8, %s17
        %p498 = scmp.lt.s32.totalorder %s497, 15
        %s499 = scalar_select %p498, %s497, 15
        %s500 = smul.addr %s499, 4
        %s501 = scalar_lea.vmem %s3, %s500
      $region48: #{_lambda_.9} parent=43 // pred_fallthru
        _
      // Predicated region
      $region49: #{_lambda_.9} parent=43 // pred_check
        %p502 = pneg %p134
      $region50: #{_lambda_.9} parent=43 // pred_check_branch
        %504 = sbr.rel (%p502) target = $region52
      $region51: #{_lambda_.9} parent=43 // pred_region
        %p505 = scmp.lt.s32.totalorder %s17, 1
        %s506 = scalar_select %p505, %s17, 1
        %s507 = smul.addr %s506, 2
        %s508 = scalar_lea.vmem %s4, %s507
      $region52: #{_lambda_.9} parent=43 // pred_fallthru
        _
    $region44: #{_lambda_.9} parent=5 // pred_fallthru
      _
  $region6: #{_lambda_.9} parent=0 // loop_footer
    %s15 = sadd.s32 1, %s11
  $region7: #{_lambda_.9} parent=0 // loop_footer_branch
    %10 = sbr.rel target = $region3
  $region8: #{_lambda_.9} parent=0 // loop_exit
    _

// kernel: _lambda_.8
$region0: #{_lambda_.8}
  #allocation0 [shape = 'u32[]', space=smem, size = 0x4, offset = 0x4, fixed_abs, tag = 'smem constant byte address 0x4 - core index']
  #allocation1 [shape = 'u32[144,128]{1,0:T(1,128)}', space=vmem, size = 0x12000, scoped, tag = 'internal scratch']
  #allocation2 [shape = 'bf16[2,8,8,72]{3,2,1,0:T(8,128)(2,1)}', space=vmem, size = 0x8000, scoped, tag = 'scratch operand']
  %s0 = inlined_call_operand.vmem [shape: f32[128,8], index: 0, kind: input, shape index: {}]
  %s1 = inlined_call_operand.vmem [shape: f32[128,8], index: 1, kind: input, shape index: {}]
  %s2 = inlined_call_operand.vmem [shape: f32[2,2,8], index: 2, kind: input, shape index: {}]
  %s3 = inlined_call_operand.vmem [shape: f32[2,2,8], index: 3, kind: input, shape index: {}]
  %s4 = inlined_call_operand.vmem [shape: bf16[8,16], index: 4, kind: input, shape index: {}]
  %s5 = inlined_call_operand.vmem [shape: bf16[8,16], index: 5, kind: input, shape index: {}]
  %s6 = inlined_call_operand.vmem [shape: bf16[72,32], index: 6, kind: input, shape index: {}]
  %s7 = inlined_call_operand.vmem [shape: f32[128,8], index: 7, kind: output, shape index: {0}]
  %s8 = inlined_call_operand.vmem [shape: f32[128,8], index: 8, kind: output, shape index: {1}]
  %s9 = inlined_call_operand.vmem [shape: bf16[128,32], index: 9, kind: output, shape index: {2}]
  %s10 = inlined_call_operand.vmem [shape: f32[1,2,32], index: 10, kind: output, shape index: {3}]
  %s11 = inlined_call_operand.vmem [shape: f32[1,2,8], index: 11, kind: output, shape index: {4}]
  %12 = xla_tuple %s7, %s8, %s9, %s10, %s11
  %s13 = sld [smem:[#allocation0]]
  $region74: #{_lambda_.8} parent=0
    _
  %s15 = ssub.s32 1, %s13
  %s16 = scalar_select 0, %s15, %s13
  // Predicated region
  $region2: #{_lambda_.8} parent=0 // pred_check
    _
  $region3: #{_lambda_.8} parent=0 // pred_check_branch
    %18 = sbr.rel (0) target = $region5
  $region4: #{_lambda_.8} parent=0 // pred_region
    _
  $region5: #{_lambda_.8} parent=0 // pred_fallthru
    _
  // Predicated region
  $region6: #{_lambda_.8} parent=0 // pred_check
    _
  $region7: #{_lambda_.8} parent=0 // pred_check_branch
    %20 = sbr.rel (0) target = $region9
  $region8: #{_lambda_.8} parent=0 // pred_region
    _
  $region9: #{_lambda_.8} parent=0 // pred_fallthru
    _
  // Predicated region
  $region10: #{_lambda_.8} parent=0 // pred_check
    _
  $region11: #{_lambda_.8} parent=0 // pred_check_branch
    %22 = sbr.rel (0) target = $region13
  $region12: #{_lambda_.8} parent=0 // pred_region
    _
  $region13: #{_lambda_.8} parent=0 // pred_fallthru
    _
  // Predicated region
  $region14: #{_lambda_.8} parent=0 // pred_check
    _
  $region15: #{_lambda_.8} parent=0 // pred_check_branch
    %24 = sbr.rel (0) target = $region17
  $region16: #{_lambda_.8} parent=0 // pred_region
    _
  $region17: #{_lambda_.8} parent=0 // pred_fallthru
    _
  // Predicated region
  $region18: #{_lambda_.8} parent=0 // pred_check
    _
  $region19: #{_lambda_.8} parent=0 // pred_check_branch
    %26 = sbr.rel (0) target = $region21
  $region20: #{_lambda_.8} parent=0 // pred_region
    _
  $region21: #{_lambda_.8} parent=0 // pred_fallthru
    _
  // Predicated region
  $region22: #{_lambda_.8} parent=0 // pred_check
    _
  $region23: #{_lambda_.8} parent=0 // pred_check_branch
    %28 = sbr.rel (0) target = $region25
  $region24: #{_lambda_.8} parent=0 // pred_region
    _
  $region25: #{_lambda_.8} parent=0 // pred_fallthru
    _
  // Predicated region
  $region26: #{_lambda_.8} parent=0 // pred_check
    _
  $region27: #{_lambda_.8} parent=0 // pred_check_branch
    %30 = sbr.rel (0) target = $region29
  $region28: #{_lambda_.8} parent=0 // pred_region
    _
  $region29: #{_lambda_.8} parent=0 // pred_fallthru
    _
  %v32 = vld [vmem:[%s2] sm:$0x3]
  %v33 = vld [vmem:[%s2 + $0x2] sm:$0x3]
  %vm34 = vcmask 57344
  %v35 = vsel %vm34, %v32, 0.0
  %v36 = vsel %vm34, %v33, 0.0
  %v37 = vadd.f32 %v35, %v36
  %vm38 = vcmask 58369
  %v39 = vsel %vm38, %v32, 0.0
  %v40 = vsel %vm38, %v33, 0.0
  %v41 = vadd.f32 %v39, %v40
  %v42 = vmul.f32 %v37, 0.0078125
  %v43 = vmul.f32 %v41, 0.0078125
  %v44 = vmul.f32 %v42, %v42
  %v46 = vrot.slane %v44, 7
  %v48 = vsub.f32 %v43, %v46
  %v49 = vmax.f32 %v48, 0.0
  %v50 = vrsqrt.pop %v49
  %v51 = vmul.f32 %v49, %v50
  %vm52 = vcmp.eq.f32.partialorder %v49, inf
  %v53 = vsel %vm52, %v49, %v51
  %vm54 = vcmp.eq.f32.partialorder %v49, 0.0
  %v55 = vand.u32 %v49, 2147483648
  %v56 = vsel %vm54, %v55, %v53
  %v57 = vadd.f32 %v56, 1e-06
  %v58 = vrcp.pop %v57
  %v59 = vmul.f32 1.0, %v58
  %v60 = vld [vmem:[%s3] sm:$0x3]
  %v61 = vld [vmem:[%s3 + $0x2] sm:$0x3]
  %v62 = vsel %vm34, %v60, 0.0
  %v63 = vsel %vm34, %v61, 0.0
  %v64 = vadd.f32 %v62, %v63
  %v65 = vsel %vm38, %v60, 0.0
  %v66 = vsel %vm38, %v61, 0.0
  %v67 = vadd.f32 %v65, %v66
  %v68 = vmul.f32 %v64, 0.0078125
  %v69 = vmul.f32 %v67, 0.0078125
  %v70 = vmul.f32 %v68, %v68
  %v72 = vrot.slane %v70, 7
  %v74 = vsub.f32 %v69, %v72
  %v75 = vmax.f32 %v74, 0.0
  %v76 = vrsqrt.pop %v75
  %v77 = vmul.f32 %v75, %v76
  %vm78 = vcmp.eq.f32.partialorder %v75, inf
  %v79 = vsel %vm78, %v75, %v77
  %vm80 = vcmp.eq.f32.partialorder %v75, 0.0
  %v81 = vand.u32 %v75, 2147483648
  %v82 = vsel %vm80, %v81, %v79
  %v83 = vadd.f32 %v82, 1e-06
  %v84 = vrcp.pop %v83
  %v85 = vmul.f32 1.0, %v84
  %v86 = vld [vmem:[%s0] sm:$0xff]
  %v87 = vld [vmem:[%s0 + $0x8] sm:$0xff]
  %v88 = vld [vmem:[%s0 + $0x10] sm:$0xff]
  %v89 = vld [vmem:[%s0 + $0x18] sm:$0xff]
  %v90 = vld [vmem:[%s0 + $0x20] sm:$0xff]
  %v91 = vld [vmem:[%s0 + $0x28] sm:$0xff]
  %v92 = vld [vmem:[%s0 + $0x30] sm:$0xff]
  %v93 = vld [vmem:[%s0 + $0x38] sm:$0xff]
  %v94 = vld [vmem:[%s0 + $0x40] sm:$0xff]
  %v95 = vld [vmem:[%s0 + $0x48] sm:$0xff]
  %v96 = vld [vmem:[%s0 + $0x50] sm:$0xff]
  %v97 = vld [vmem:[%s0 + $0x58] sm:$0xff]
  %v98 = vld [vmem:[%s0 + $0x60] sm:$0xff]
  %v99 = vld [vmem:[%s0 + $0x68] sm:$0xff]
  %v100 = vld [vmem:[%s0 + $0x70] sm:$0xff]
  %v101 = vld [vmem:[%s0 + $0x78] sm:$0xff]
  %v102 = vlaneseq
  %v103 = vshrl.u32 %v102, 7
  %v104 = vsub.s32 0, %v103
  %v105 = vrot.slane %v42, %v104
  %v106 = vsub.f32 %v86, %v105
  %v107 = vsub.f32 %v87, %v105
  %v108 = vsub.f32 %v88, %v105
  %v109 = vsub.f32 %v89, %v105
  %v110 = vsub.f32 %v90, %v105
  %v111 = vsub.f32 %v91, %v105
  %v112 = vsub.f32 %v92, %v105
  %v113 = vsub.f32 %v93, %v105
  %v114 = vsub.f32 %v94, %v105
  %v115 = vsub.f32 %v95, %v105
  %v116 = vsub.f32 %v96, %v105
  %v117 = vsub.f32 %v97, %v105
  %v118 = vsub.f32 %v98, %v105
  %v119 = vsub.f32 %v99, %v105
  %v120 = vsub.f32 %v100, %v105
  %v121 = vsub.f32 %v101, %v105
  %v122 = vlaneseq
  %v123 = vshrl.u32 %v122, 7
  %v124 = vsub.s32 1, %v123
  %v125 = vrot.slane %v59, %v124
  %v126 = vmul.f32 %v106, %v125
  %v127 = vmul.f32 %v107, %v125
  %v128 = vmul.f32 %v108, %v125
  %v129 = vmul.f32 %v109, %v125
  %v130 = vmul.f32 %v110, %v125
  %v131 = vmul.f32 %v111, %v125
  %v132 = vmul.f32 %v112, %v125
  %v133 = vmul.f32 %v113, %v125
  %v134 = vmul.f32 %v114, %v125
  %v135 = vmul.f32 %v115, %v125
  %v136 = vmul.f32 %v116, %v125
  %v137 = vmul.f32 %v117, %v125
  %v138 = vmul.f32 %v118, %v125
  %v139 = vmul.f32 %v119, %v125
  %v140 = vmul.f32 %v120, %v125
  %v141 = vmul.f32 %v121, %v125
  %v142 = vld [vmem:[%s1] sm:$0xff]
  %v143 = vld [vmem:[%s1 + $0x8] sm:$0xff]
  %v144 = vld [vmem:[%s1 + $0x10] sm:$0xff]
  %v145 = vld [vmem:[%s1 + $0x18] sm:$0xff]
  %v146 = vld [vmem:[%s1 + $0x20] sm:$0xff]
  %v147 = vld [vmem:[%s1 + $0x28] sm:$0xff]
  %v148 = vld [vmem:[%s1 + $0x30] sm:$0xff]
  %v149 = vld [vmem:[%s1 + $0x38] sm:$0xff]
  %v150 = vld [vmem:[%s1 + $0x40] sm:$0xff]
  %v151 = vld [vmem:[%s1 + $0x48] sm:$0xff]
  %v152 = vld [vmem:[%s1 + $0x50] sm:$0xff]
  %v153 = vld [vmem:[%s1 + $0x58] sm:$0xff]
  %v154 = vld [vmem:[%s1 + $0x60] sm:$0xff]
  %v155 = vld [vmem:[%s1 + $0x68] sm:$0xff]
  %v156 = vld [vmem:[%s1 + $0x70] sm:$0xff]
  %v157 = vld [vmem:[%s1 + $0x78] sm:$0xff]
  %v158 = vlaneseq
  %v159 = vshrl.u32 %v158, 7
  %v160 = vsub.s32 0, %v159
  %v161 = vrot.slane %v68, %v160
  %v162 = vsub.f32 %v142, %v161
  %v163 = vsub.f32 %v143, %v161
  %v164 = vsub.f32 %v144, %v161
  %v165 = vsub.f32 %v145, %v161
  %v166 = vsub.f32 %v146, %v161
  %v167 = vsub.f32 %v147, %v161
  %v168 = vsub.f32 %v148, %v161
  %v169 = vsub.f32 %v149, %v161
  %v170 = vsub.f32 %v150, %v161
  %v171 = vsub.f32 %v151, %v161
  %v172 = vsub.f32 %v152, %v161
  %v173 = vsub.f32 %v153, %v161
  %v174 = vsub.f32 %v154, %v161
  %v175 = vsub.f32 %v155, %v161
  %v176 = vsub.f32 %v156, %v161
  %v177 = vsub.f32 %v157, %v161
  %v178 = vlaneseq
  %v179 = vshrl.u32 %v178, 7
  %v180 = vsub.s32 1, %v179
  %v181 = vrot.slane %v85, %v180
  %v182 = vmul.f32 %v162, %v181
  %v183 = vmul.f32 %v163, %v181
  %v184 = vmul.f32 %v164, %v181
  %v185 = vmul.f32 %v165, %v181
  %v186 = vmul.f32 %v166, %v181
  %v187 = vmul.f32 %v167, %v181
  %v188 = vmul.f32 %v168, %v181
  %v189 = vmul.f32 %v169, %v181
  %v190 = vmul.f32 %v170, %v181
  %v191 = vmul.f32 %v171, %v181
  %v192 = vmul.f32 %v172, %v181
  %v193 = vmul.f32 %v173, %v181
  %v194 = vmul.f32 %v174, %v181
  %v195 = vmul.f32 %v175, %v181
  %v196 = vmul.f32 %v176, %v181
  %v197 = vmul.f32 %v177, %v181
  %v198 = vpack.c.bf16 %v127, %v126
  %v199 = vpack.c.bf16 %v129, %v128
  %v200 = vpack.c.bf16 %v131, %v130
  %v201 = vpack.c.bf16 %v133, %v132
  %v202 = vpack.c.bf16 %v135, %v134
  %v203 = vpack.c.bf16 %v137, %v136
  %v204 = vpack.c.bf16 %v139, %v138
  %v205 = vpack.c.bf16 %v141, %v140
  %v206 = vld [vmem:[%s4] sm:$0xf]
  %v207 = vpack.c.bf16 %v183, %v182
  %v208 = vpack.c.bf16 %v185, %v184
  %v209 = vpack.c.bf16 %v187, %v186
  %v210 = vpack.c.bf16 %v189, %v188
  %v211 = vpack.c.bf16 %v191, %v190
  %v212 = vpack.c.bf16 %v193, %v192
  %v213 = vpack.c.bf16 %v195, %v194
  %v214 = vpack.c.bf16 %v197, %v196
  %v215 = vld [vmem:[%s5] sm:$0xf]
  %vm216 = vcmask 64512
  %v218 = vsel %vm216, %v207, 0
  %v221 = vsel %vm216, %v208, 0
  %v224 = vsel %vm216, %v209, 0
  %v227 = vsel %vm216, %v210, 0
  %v230 = vsel %vm216, %v211, 0
  %v233 = vsel %vm216, %v212, 0
  %v236 = vsel %vm216, %v213, 0
  %v239 = vsel %vm216, %v214, 0
  %vm241 = vcmask 1043456
  %v243 = vsel %vm241, %v215, 0
  %245 = vmatprep.subr.bf16.mxu0 0
  %246 = vmatpush1.bf16.msra.mxu0 %v243
  %247 = vmatprep.subr.bf16.mxu0 0
  %248 = vmatpush1.bf16.msra.mxu0 0
  %249 = vmatprep.subr.bf16.mxu0 0
  %250 = vmatpush1.bf16.msra.mxu0 0
  %251 = vmatprep.subr.bf16.mxu0 0
  %252 = vmatpush1.bf16.msra.mxu0 0
  %253 = vmatprep.subr.bf16.mxu0 0
  %254 = vmatpush1.bf16.msra.mxu0 0
  %255 = vmatprep.subr.bf16.mxu0 0
  %256 = vmatpush1.bf16.msra.mxu0 0
  %257 = vmatprep.subr.bf16.mxu0 0
  %258 = vmatpush1.bf16.msra.mxu0 0
  %259 = vmatprep.subr.bf16.mxu0 0
  %260 = vmatpush1.bf16.msra.mxu0 0
  %261 = vmatprep.subr.bf16.mxu0 0
  %262 = vmatpush1.bf16.msra.mxu0 0
  %263 = vmatprep.subr.bf16.mxu0 0
  %264 = vmatpush1.bf16.msra.mxu0 0
  %265 = vmatprep.subr.bf16.mxu0 0
  %266 = vmatpush1.bf16.msra.mxu0 0
  %267 = vmatprep.subr.bf16.mxu0 0
  %268 = vmatpush1.bf16.msra.mxu0 0
  %269 = vmatprep.subr.bf16.mxu0 0
  %270 = vmatpush1.bf16.msra.mxu0 0
  %271 = vmatprep.subr.bf16.mxu0 0
  %272 = vmatpush1.bf16.msra.mxu0 0
  %273 = vmatprep.subr.bf16.mxu0 0
  %274 = vmatpush1.bf16.msra.mxu0 0
  %275 = vmatprep.subr.bf16.mxu0 0
  %276 = vmatpush1.bf16.msra.mxu0 0
  %277 = vmatprep.mubr.bf16.mxu0 0
  %278 = vmatmul.mubr.bf16.gmra.mrb[0].mxu0 %v218
  %v279 = vpop.f32.mrb[0].mxu0
  %v280 = vadd.f32 0.0, %v279
  %v281 = vpop.f32.mrb[0].mxu0
  %v282 = vpop.f32.mrb[0].mxu0
  %v283 = vadd.f32 0.0, %v282
  %v284 = vpop.f32.mrb[0].mxu0
  %285 = vmatprep.mubr.bf16.mxu0 0
  %286 = vmatmul.mubr.bf16.gmra.mrb[0].mxu0 %v221
  %v287 = vpop.f32.mrb[0].mxu0
  %v288 = vadd.f32 0.0, %v287
  %v289 = vpop.f32.mrb[0].mxu0
  %v290 = vpop.f32.mrb[0].mxu0
  %v291 = vadd.f32 0.0, %v290
  %v292 = vpop.f32.mrb[0].mxu0
  %293 = vmatprep.mubr.bf16.mxu0 0
  %294 = vmatmul.mubr.bf16.gmra.mrb[0].mxu0 %v224
  %v295 = vpop.f32.mrb[0].mxu0
  %v296 = vadd.f32 0.0, %v295
  %v297 = vpop.f32.mrb[0].mxu0
  %v298 = vpop.f32.mrb[0].mxu0
  %v299 = vadd.f32 0.0, %v298
  %v300 = vpop.f32.mrb[0].mxu0
  %301 = vmatprep.mubr.bf16.mxu0 0
  %302 = vmatmul.mubr.bf16.gmra.mrb[0].mxu0 %v227
  %v303 = vpop.f32.mrb[0].mxu0
  %v304 = vadd.f32 0.0, %v303
  %v305 = vpop.f32.mrb[0].mxu0
  %v306 = vpop.f32.mrb[0].mxu0
  %v307 = vadd.f32 0.0, %v306
  %v308 = vpop.f32.mrb[0].mxu0
  %309 = vmatprep.mubr.bf16.mxu0 0
  %310 = vmatmul.mubr.bf16.gmra.mrb[0].mxu0 %v230
  %v311 = vpop.f32.mrb[0].mxu0
  %v312 = vadd.f32 0.0, %v311
  %v313 = vpop.f32.mrb[0].mxu0
  %v314 = vpop.f32.mrb[0].mxu0
  %v315 = vadd.f32 0.0, %v314
  %v316 = vpop.f32.mrb[0].mxu0
  %317 = vmatprep.mubr.bf16.mxu0 0
  %318 = vmatmul.mubr.bf16.gmra.mrb[0].mxu0 %v233
  %v319 = vpop.f32.mrb[0].mxu0
  %v320 = vadd.f32 0.0, %v319
  %v321 = vpop.f32.mrb[0].mxu0
  %v322 = vpop.f32.mrb[0].mxu0
  %v323 = vadd.f32 0.0, %v322
  %v324 = vpop.f32.mrb[0].mxu0
  %325 = vmatprep.mubr.bf16.mxu0 0
  %326 = vmatmul.mubr.bf16.gmra.mrb[0].mxu0 %v236
  %v327 = vpop.f32.mrb[0].mxu0
  %v328 = vadd.f32 0.0, %v327
  %v329 = vpop.f32.mrb[0].mxu0
  %v330 = vpop.f32.mrb[0].mxu0
  %v331 = vadd.f32 0.0, %v330
  %v332 = vpop.f32.mrb[0].mxu0
  %333 = vmatprep.mubr.bf16.mxu0 0
  %334 = vmatmul.mubr.bf16.gmra.mrb[0].mxu0 %v239
  %v335 = vpop.f32.mrb[0].mxu0
  %v336 = vadd.f32 0.0, %v335
  %v337 = vpop.f32.mrb[0].mxu0
  %v338 = vpop.f32.mrb[0].mxu0
  %v339 = vadd.f32 0.0, %v338
  %v340 = vpop.f32.mrb[0].mxu0
  %341 = vdwg.mxu0
  %v343 = vsel %vm216, %v198, 0
  %v346 = vsel %vm216, %v199, 0
  %v349 = vsel %vm216, %v200, 0
  %v352 = vsel %vm216, %v201, 0
  %v355 = vsel %vm216, %v202, 0
  %v358 = vsel %vm216, %v203, 0
  %v361 = vsel %vm216, %v204, 0
  %v364 = vsel %vm216, %v205, 0
  %v367 = vsel %vm241, %v206, 0
  %369 = vmatprep.subr.bf16.mxu0 0
  %370 = vmatpush1.bf16.msra.mxu0 %v367
  %371 = vmatprep.subr.bf16.mxu0 0
  %372 = vmatpush1.bf16.msra.mxu0 0
  %373 = vmatprep.subr.bf16.mxu0 0
  %374 = vmatpush1.bf16.msra.mxu0 0
  %375 = vmatprep.subr.bf16.mxu0 0
  %376 = vmatpush1.bf16.msra.mxu0 0
  %377 = vmatprep.subr.bf16.mxu0 0
  %378 = vmatpush1.bf16.msra.mxu0 0
  %379 = vmatprep.subr.bf16.mxu0 0
  %380 = vmatpush1.bf16.msra.mxu0 0
  %381 = vmatprep.subr.bf16.mxu0 0
  %382 = vmatpush1.bf16.msra.mxu0 0
  %383 = vmatprep.subr.bf16.mxu0 0
  %384 = vmatpush1.bf16.msra.mxu0 0
  %385 = vmatprep.subr.bf16.mxu0 0
  %386 = vmatpush1.bf16.msra.mxu0 0
  %387 = vmatprep.subr.bf16.mxu0 0
  %388 = vmatpush1.bf16.msra.mxu0 0
  %389 = vmatprep.subr.bf16.mxu0 0
  %390 = vmatpush1.bf16.msra.mxu0 0
  %391 = vmatprep.subr.bf16.mxu0 0
  %392 = vmatpush1.bf16.msra.mxu0 0
  %393 = vmatprep.subr.bf16.mxu0 0
  %394 = vmatpush1.bf16.msra.mxu0 0
  %395 = vmatprep.subr.bf16.mxu0 0
  %396 = vmatpush1.bf16.msra.mxu0 0
  %397 = vmatprep.subr.bf16.mxu0 0
  %398 = vmatpush1.bf16.msra.mxu0 0
  %399 = vmatprep.subr.bf16.mxu0 0
  %400 = vmatpush1.bf16.msra.mxu0 0
  %401 = vmatprep.mubr.bf16.mxu0 0
  %402 = vmatmul.mubr.bf16.gmra.mrb[0].mxu0 %v343
  %v403 = vpop.f32.mrb[0].mxu0
  %v404 = vadd.f32 %v280, %v403
  %v405 = vpop.f32.mrb[0].mxu0
  %v406 = vpop.f32.mrb[0].mxu0
  %v407 = vadd.f32 %v283, %v406
  %v408 = vpop.f32.mrb[0].mxu0
  %409 = vmatprep.mubr.bf16.mxu0 0
  %410 = vmatmul.mubr.bf16.gmra.mrb[0].mxu0 %v346
  %v411 = vpop.f32.mrb[0].mxu0
  %v412 = vadd.f32 %v288, %v411
  %v413 = vpop.f32.mrb[0].mxu0
  %v414 = vpop.f32.mrb[0].mxu0
  %v415 = vadd.f32 %v291, %v414
  %v416 = vpop.f32.mrb[0].mxu0
  %417 = vmatprep.mubr.bf16.mxu0 0
  %418 = vmatmul.mubr.bf16.gmra.mrb[0].mxu0 %v349
  %v419 = vpop.f32.mrb[0].mxu0
  %v420 = vadd.f32 %v296, %v419
  %v421 = vpop.f32.mrb[0].mxu0
  %v422 = vpop.f32.mrb[0].mxu0
  %v423 = vadd.f32 %v299, %v422
  %v424 = vpop.f32.mrb[0].mxu0
  %425 = vmatprep.mubr.bf16.mxu0 0
  %426 = vmatmul.mubr.bf16.gmra.mrb[0].mxu0 %v352
  %v427 = vpop.f32.mrb[0].mxu0
  %v428 = vadd.f32 %v304, %v427
  %v429 = vpop.f32.mrb[0].mxu0
  %v430 = vpop.f32.mrb[0].mxu0
  %v431 = vadd.f32 %v307, %v430
  %v432 = vpop.f32.mrb[0].mxu0
  %433 = vmatprep.mubr.bf16.mxu0 0
  %434 = vmatmul.mubr.bf16.gmra.mrb[0].mxu0 %v355
  %v435 = vpop.f32.mrb[0].mxu0
  %v436 = vadd.f32 %v312, %v435
  %v437 = vpop.f32.mrb[0].mxu0
  %v438 = vpop.f32.mrb[0].mxu0
  %v439 = vadd.f32 %v315, %v438
  %v440 = vpop.f32.mrb[0].mxu0
  %441 = vmatprep.mubr.bf16.mxu0 0
  %442 = vmatmul.mubr.bf16.gmra.mrb[0].mxu0 %v358
  %v443 = vpop.f32.mrb[0].mxu0
  %v444 = vadd.f32 %v320, %v443
  %v445 = vpop.f32.mrb[0].mxu0
  %v446 = vpop.f32.mrb[0].mxu0
  %v447 = vadd.f32 %v323, %v446
  %v448 = vpop.f32.mrb[0].mxu0
  %449 = vmatprep.mubr.bf16.mxu0 0
  %450 = vmatmul.mubr.bf16.gmra.mrb[0].mxu0 %v361
  %v451 = vpop.f32.mrb[0].mxu0
  %v452 = vadd.f32 %v328, %v451
  %v453 = vpop.f32.mrb[0].mxu0
  %v454 = vpop.f32.mrb[0].mxu0
  %v455 = vadd.f32 %v331, %v454
  %v456 = vpop.f32.mrb[0].mxu0
  %457 = vmatprep.mubr.bf16.mxu0 0
  %458 = vmatmul.mubr.bf16.gmra.mrb[0].mxu0 %v364
  %v459 = vpop.f32.mrb[0].mxu0
  %v460 = vadd.f32 %v336, %v459
  %v461 = vpop.f32.mrb[0].mxu0
  %v462 = vpop.f32.mrb[0].mxu0
  %v463 = vadd.f32 %v339, %v462
  %v464 = vpop.f32.mrb[0].mxu0
  %465 = vdwg.mxu0
  %466 = vst.msk [vmem:[%s7] sm:$0xff] %vm216, %v404
  %467 = vst.msk [vmem:[%s7 + $0x8] sm:$0xff] %vm216, %v407
  %468 = vst.msk [vmem:[%s7 + $0x10] sm:$0xff] %vm216, %v412
  %469 = vst.msk [vmem:[%s7 + $0x18] sm:$0xff] %vm216, %v415
  %470 = vst.msk [vmem:[%s7 + $0x20] sm:$0xff] %vm216, %v420
  %471 = vst.msk [vmem:[%s7 + $0x28] sm:$0xff] %vm216, %v423
  %472 = vst.msk [vmem:[%s7 + $0x30] sm:$0xff] %vm216, %v428
  %473 = vst.msk [vmem:[%s7 + $0x38] sm:$0xff] %vm216, %v431
  %474 = vst.msk [vmem:[%s7 + $0x40] sm:$0xff] %vm216, %v436
  %475 = vst.msk [vmem:[%s7 + $0x48] sm:$0xff] %vm216, %v439
  %476 = vst.msk [vmem:[%s7 + $0x50] sm:$0xff] %vm216, %v444
  %477 = vst.msk [vmem:[%s7 + $0x58] sm:$0xff] %vm216, %v447
  %478 = vst.msk [vmem:[%s7 + $0x60] sm:$0xff] %vm216, %v452
  %479 = vst.msk [vmem:[%s7 + $0x68] sm:$0xff] %vm216, %v455
  %480 = vst.msk [vmem:[%s7 + $0x70] sm:$0xff] %vm216, %v460
  %481 = vst.msk [vmem:[%s7 + $0x78] sm:$0xff] %vm216, %v463
  %498 = vrot.lane.b32.xlu0 %v404, 120
  %v499 = vpop.permute.xlu0 %498
  %500 = vrot.lane.b32.xlu0 %v407, 120
  %v501 = vpop.permute.xlu0 %500
  %502 = vrot.lane.b32.xlu0 %v412, 120
  %v503 = vpop.permute.xlu0 %502
  %504 = vrot.lane.b32.xlu0 %v415, 120
  %v505 = vpop.permute.xlu0 %504
  %506 = vrot.lane.b32.xlu0 %v420, 120
  %v507 = vpop.permute.xlu0 %506
  %508 = vrot.lane.b32.xlu0 %v423, 120
  %v509 = vpop.permute.xlu0 %508
  %510 = vrot.lane.b32.xlu0 %v428, 120
  %v511 = vpop.permute.xlu0 %510
  %512 = vrot.lane.b32.xlu0 %v431, 120
  %v513 = vpop.permute.xlu0 %512
  %514 = vrot.lane.b32.xlu0 %v436, 120
  %v515 = vpop.permute.xlu0 %514
  %516 = vrot.lane.b32.xlu0 %v439, 120
  %v517 = vpop.permute.xlu0 %516
  %518 = vrot.lane.b32.xlu0 %v444, 120
  %v519 = vpop.permute.xlu0 %518
  %520 = vrot.lane.b32.xlu0 %v447, 120
  %v521 = vpop.permute.xlu0 %520
  %522 = vrot.lane.b32.xlu0 %v452, 120
  %v523 = vpop.permute.xlu0 %522
  %524 = vrot.lane.b32.xlu0 %v455, 120
  %v525 = vpop.permute.xlu0 %524
  %526 = vrot.lane.b32.xlu0 %v460, 120
  %v527 = vpop.permute.xlu0 %526
  %528 = vrot.lane.b32.xlu0 %v463, 120
  %v529 = vpop.permute.xlu0 %528
  %546 = vst.msk [vmem:[%s8] sm:$0xff] %vm216, %v499
  %547 = vst.msk [vmem:[%s8 + $0x8] sm:$0xff] %vm216, %v501
  %548 = vst.msk [vmem:[%s8 + $0x10] sm:$0xff] %vm216, %v503
  %549 = vst.msk [vmem:[%s8 + $0x18] sm:$0xff] %vm216, %v505
  %550 = vst.msk [vmem:[%s8 + $0x20] sm:$0xff] %vm216, %v507
  %551 = vst.msk [vmem:[%s8 + $0x28] sm:$0xff] %vm216, %v509
  %552 = vst.msk [vmem:[%s8 + $0x30] sm:$0xff] %vm216, %v511
  %553 = vst.msk [vmem:[%s8 + $0x38] sm:$0xff] %vm216, %v513
  %554 = vst.msk [vmem:[%s8 + $0x40] sm:$0xff] %vm216, %v515
  %555 = vst.msk [vmem:[%s8 + $0x48] sm:$0xff] %vm216, %v517
  %556 = vst.msk [vmem:[%s8 + $0x50] sm:$0xff] %vm216, %v519
  %557 = vst.msk [vmem:[%s8 + $0x58] sm:$0xff] %vm216, %v521
  %558 = vst.msk [vmem:[%s8 + $0x60] sm:$0xff] %vm216, %v523
  %559 = vst.msk [vmem:[%s8 + $0x68] sm:$0xff] %vm216, %v525
  %560 = vst.msk [vmem:[%s8 + $0x70] sm:$0xff] %vm216, %v527
  %561 = vst.msk [vmem:[%s8 + $0x78] sm:$0xff] %vm216, %v529
  %vm562 = vcmask 130112
  %v563 = vsel %vm562, %v404, 0.0
  %v564 = vsel %vm562, %v407, 0.0
  %v565 = vadd.f32 %v563, %v564
  %v566 = vsel %vm562, %v412, 0.0
  %v567 = vadd.f32 %v565, %v566
  %v568 = vsel %vm562, %v415, 0.0
  %v569 = vadd.f32 %v567, %v568
  %v570 = vsel %vm562, %v420, 0.0
  %v571 = vadd.f32 %v569, %v570
  %v572 = vsel %vm562, %v423, 0.0
  %v573 = vadd.f32 %v571, %v572
  %v574 = vsel %vm562, %v428, 0.0
  %v575 = vadd.f32 %v573, %v574
  %v576 = vsel %vm562, %v431, 0.0
  %v577 = vadd.f32 %v575, %v576
  %v578 = vsel %vm562, %v436, 0.0
  %v579 = vadd.f32 %v577, %v578
  %v580 = vsel %vm562, %v439, 0.0
  %v581 = vadd.f32 %v579, %v580
  %v582 = vsel %vm562, %v444, 0.0
  %v583 = vadd.f32 %v581, %v582
  %v584 = vsel %vm562, %v447, 0.0
  %v585 = vadd.f32 %v583, %v584
  %v586 = vsel %vm562, %v452, 0.0
  %v587 = vadd.f32 %v585, %v586
  %v588 = vsel %vm562, %v455, 0.0
  %v589 = vadd.f32 %v587, %v588
  %v590 = vsel %vm562, %v460, 0.0
  %v591 = vadd.f32 %v589, %v590
  %v592 = vsel %vm562, %v463, 0.0
  %v593 = vadd.f32 %v591, %v592
  %v594 = vrot.slane %v593, 4
  %v595 = vadd.f32 %v593, %v594
  %v596 = vrot.slane %v595, 2
  %v597 = vadd.f32 %v595, %v596
  %v598 = vrot.slane %v597, 1
  %v599 = vadd.f32 %v597, %v598
  %v600 = vmul.f32 %v404, %v404
  %v601 = vmul.f32 %v407, %v407
  %v602 = vmul.f32 %v412, %v412
  %v603 = vmul.f32 %v415, %v415
  %v604 = vmul.f32 %v420, %v420
  %v605 = vmul.f32 %v423, %v423
  %v606 = vmul.f32 %v428, %v428
  %v607 = vmul.f32 %v431, %v431
  %v608 = vmul.f32 %v436, %v436
  %v609 = vmul.f32 %v439, %v439
  %v610 = vmul.f32 %v444, %v444
  %v611 = vmul.f32 %v447, %v447
  %v612 = vmul.f32 %v452, %v452
  %v613 = vmul.f32 %v455, %v455
  %v614 = vmul.f32 %v460, %v460
  %v615 = vmul.f32 %v463, %v463
  %v616 = vsel %vm562, %v600, 0.0
  %v617 = vsel %vm562, %v601, 0.0
  %v618 = vadd.f32 %v616, %v617
  %v619 = vsel %vm562, %v602, 0.0
  %v620 = vadd.f32 %v618, %v619
  %v621 = vsel %vm562, %v603, 0.0
  %v622 = vadd.f32 %v620, %v621
  %v623 = vsel %vm562, %v604, 0.0
  %v624 = vadd.f32 %v622, %v623
  %v625 = vsel %vm562, %v605, 0.0
  %v626 = vadd.f32 %v624, %v625
  %v627 = vsel %vm562, %v606, 0.0
  %v628 = vadd.f32 %v626, %v627
  %v629 = vsel %vm562, %v607, 0.0
  %v630 = vadd.f32 %v628, %v629
  %v631 = vsel %vm562, %v608, 0.0
  %v632 = vadd.f32 %v630, %v631
  %v633 = vsel %vm562, %v609, 0.0
  %v634 = vadd.f32 %v632, %v633
  %v635 = vsel %vm562, %v610, 0.0
  %v636 = vadd.f32 %v634, %v635
  %v637 = vsel %vm562, %v611, 0.0
  %v638 = vadd.f32 %v636, %v637
  %v639 = vsel %vm562, %v612, 0.0
  %v640 = vadd.f32 %v638, %v639
  %v641 = vsel %vm562, %v613, 0.0
  %v642 = vadd.f32 %v640, %v641
  %v643 = vsel %vm562, %v614, 0.0
  %v644 = vadd.f32 %v642, %v643
  %v645 = vsel %vm562, %v615, 0.0
  %v646 = vadd.f32 %v644, %v645
  %v647 = vrot.slane %v646, 4
  %v648 = vadd.f32 %v646, %v647
  %v649 = vrot.slane %v648, 2
  %v650 = vadd.f32 %v648, %v649
  %v651 = vrot.slane %v650, 1
  %v652 = vadd.f32 %v650, %v651
  %vm653 = vcmask 1040384
  %v654 = vsel %vm653, %v599, %v652
  %656 = vrot.lane.b32.xlu0 %v654, 120
  %v657 = vpop.permute.xlu0 %656
  %vm659 = vcmask 58368
  %660 = vst.msk [vmem:[%s11] sm:$0x3] %vm659, %v657
  %p661 = scmp.eq.s32.totalorder 0, 0
  // Predicated region
  $region30: #{_lambda_.8} parent=0 // pred_check
    %p662 = pneg %p661
  $region31: #{_lambda_.8} parent=0 // pred_check_branch
    %664 = sbr.rel (%p662) target = $region33
  $region32: #{_lambda_.8} parent=0 // pred_region
    %vm665 = vcmask 584704
    %666 = vst.msk [vmem:[#allocation2] sm:$0xf] %vm665, 0
    %667 = vst.msk [vmem:[#allocation2 + $0x4] sm:$0xf] %vm665, 0
    %668 = vst.msk [vmem:[#allocation2 + $0x8] sm:$0xf] %vm665, 0
    %669 = vst.msk [vmem:[#allocation2 + $0xc] sm:$0xf] %vm665, 0
    %670 = vst.msk [vmem:[#allocation2 + $0x10] sm:$0xf] %vm665, 0
    %671 = vst.msk [vmem:[#allocation2 + $0x14] sm:$0xf] %vm665, 0
    %672 = vst.msk [vmem:[#allocation2 + $0x18] sm:$0xf] %vm665, 0
    %673 = vst.msk [vmem:[#allocation2 + $0x1c] sm:$0xf] %vm665, 0
    %674 = vst.msk [vmem:[#allocation2 + $0x20] sm:$0xf] %vm665, 0
    %675 = vst.msk [vmem:[#allocation2 + $0x24] sm:$0xf] %vm665, 0
    %676 = vst.msk [vmem:[#allocation2 + $0x28] sm:$0xf] %vm665, 0
    %677 = vst.msk [vmem:[#allocation2 + $0x2c] sm:$0xf] %vm665, 0
    %678 = vst.msk [vmem:[#allocation2 + $0x30] sm:$0xf] %vm665, 0
    %679 = vst.msk [vmem:[#allocation2 + $0x34] sm:$0xf] %vm665, 0
    %680 = vst.msk [vmem:[#allocation2 + $0x38] sm:$0xf] %vm665, 0
    %681 = vst.msk [vmem:[#allocation2 + $0x3c] sm:$0xf] %vm665, 0
  $region33: #{_lambda_.8} parent=0 // pred_fallthru
    _
  %v682 = vpack.c.bf16 %v407, %v404
  %v683 = vpack.c.bf16 %v415, %v412
  %v684 = vpack.c.bf16 %v423, %v420
  %v685 = vpack.c.bf16 %v431, %v428
  %v686 = vpack.c.bf16 %v439, %v436
  %v687 = vpack.c.bf16 %v447, %v444
  %v688 = vpack.c.bf16 %v455, %v452
  %v689 = vpack.c.bf16 %v463, %v460
  %v698 = vunpack.c.l.b16 %v682
  %v699 = vunpack.c.h.b16 %v682
  %v700 = vunpack.c.l.b16 %v683
  %v701 = vunpack.c.h.b16 %v683
  %v702 = vunpack.c.l.b16 %v684
  %v703 = vunpack.c.h.b16 %v684
  %v704 = vunpack.c.l.b16 %v685
  %v705 = vunpack.c.h.b16 %v685
  %v706 = vunpack.c.l.b16 %v686
  %v707 = vunpack.c.h.b16 %v686
  %v708 = vunpack.c.l.b16 %v687
  %v709 = vunpack.c.h.b16 %v687
  %v710 = vunpack.c.l.b16 %v688
  %v711 = vunpack.c.h.b16 %v688
  %v712 = vunpack.c.l.b16 %v689
  %v713 = vunpack.c.h.b16 %v689
  %v714 = vpack.c.b16 %v698, %v698
  %v715 = vpack.c.b16 %v699, %v699
  %v716 = vpack.c.b16 %v700, %v700
  %v717 = vpack.c.b16 %v701, %v701
  %v718 = vpack.c.b16 %v702, %v702
  %v719 = vpack.c.b16 %v703, %v703
  %v720 = vpack.c.b16 %v704, %v704
  %v721 = vpack.c.b16 %v705, %v705
  %v722 = vpack.c.b16 %v706, %v706
  %v723 = vpack.c.b16 %v707, %v707
  %v724 = vpack.c.b16 %v708, %v708
  %v725 = vpack.c.b16 %v709, %v709
  %v726 = vpack.c.b16 %v710, %v710
  %v727 = vpack.c.b16 %v711, %v711
  %v728 = vpack.c.b16 %v712, %v712
  %v729 = vpack.c.b16 %v713, %v713
  %v745 = vshrl.u32 %v714, 16
  %v747 = vrot.slane %v745, 7
  %v748 = vshll.u32 %v714, 16
  %v750 = vor.u32 %v747, %v748
  %v752 = vshrl.u32 %v715, 16
  %v754 = vrot.slane %v752, 7
  %v755 = vshll.u32 %v715, 16
  %v757 = vor.u32 %v754, %v755
  %v759 = vshrl.u32 %v716, 16
  %v761 = vrot.slane %v759, 7
  %v762 = vshll.u32 %v716, 16
  %v764 = vor.u32 %v761, %v762
  %v766 = vshrl.u32 %v717, 16
  %v768 = vrot.slane %v766, 7
  %v769 = vshll.u32 %v717, 16
  %v771 = vor.u32 %v768, %v769
  %v773 = vshrl.u32 %v718, 16
  %v775 = vrot.slane %v773, 7
  %v776 = vshll.u32 %v718, 16
  %v778 = vor.u32 %v775, %v776
  %v780 = vshrl.u32 %v719, 16
  %v782 = vrot.slane %v780, 7
  %v783 = vshll.u32 %v719, 16
  %v785 = vor.u32 %v782, %v783
  %v787 = vshrl.u32 %v720, 16
  %v789 = vrot.slane %v787, 7
  %v790 = vshll.u32 %v720, 16
  %v792 = vor.u32 %v789, %v790
  %v794 = vshrl.u32 %v722, 16
  %v796 = vrot.slane %v794, 7
  %v797 = vshll.u32 %v722, 16
  %v799 = vor.u32 %v796, %v797
  %v801 = vshrl.u32 %v723, 16
  %v803 = vrot.slane %v801, 7
  %v804 = vshll.u32 %v723, 16
  %v806 = vor.u32 %v803, %v804
  %v808 = vshrl.u32 %v724, 16
  %v810 = vrot.slane %v808, 7
  %v811 = vshll.u32 %v724, 16
  %v813 = vor.u32 %v810, %v811
  %v815 = vshrl.u32 %v725, 16
  %v817 = vrot.slane %v815, 7
  %v818 = vshll.u32 %v725, 16
  %v820 = vor.u32 %v817, %v818
  %v822 = vshrl.u32 %v726, 16
  %v824 = vrot.slane %v822, 7
  %v825 = vshll.u32 %v726, 16
  %v827 = vor.u32 %v824, %v825
  %v829 = vshrl.u32 %v727, 16
  %v831 = vrot.slane %v829, 7
  %v832 = vshll.u32 %v727, 16
  %v834 = vor.u32 %v831, %v832
  %v836 = vshrl.u32 %v728, 16
  %v838 = vrot.slane %v836, 7
  %v839 = vshll.u32 %v728, 16
  %v841 = vor.u32 %v838, %v839
  %842 = vrot.lane.b32.xlu0 %v750, 120
  %v843 = vpop.permute.xlu0 %842
  %844 = vrot.lane.b32.xlu0 %v757, 120
  %v845 = vpop.permute.xlu0 %844
  %846 = vrot.lane.b32.xlu0 %v764, 120
  %v847 = vpop.permute.xlu0 %846
  %848 = vrot.lane.b32.xlu0 %v771, 120
  %v849 = vpop.permute.xlu0 %848
  %850 = vrot.lane.b32.xlu0 %v778, 120
  %v851 = vpop.permute.xlu0 %850
  %852 = vrot.lane.b32.xlu0 %v785, 120
  %v853 = vpop.permute.xlu0 %852
  %854 = vrot.lane.b32.xlu0 %v792, 120
  %v855 = vpop.permute.xlu0 %854
  %856 = vrot.lane.b32.xlu0 %v799, 120
  %v857 = vpop.permute.xlu0 %856
  %858 = vrot.lane.b32.xlu0 %v806, 120
  %v859 = vpop.permute.xlu0 %858
  %860 = vrot.lane.b32.xlu0 %v813, 120
  %v861 = vpop.permute.xlu0 %860
  %862 = vrot.lane.b32.xlu0 %v820, 120
  %v863 = vpop.permute.xlu0 %862
  %864 = vrot.lane.b32.xlu0 %v827, 120
  %v865 = vpop.permute.xlu0 %864
  %866 = vrot.lane.b32.xlu0 %v834, 120
  %v867 = vpop.permute.xlu0 %866
  %868 = vrot.lane.b32.xlu0 %v841, 120
  %v869 = vpop.permute.xlu0 %868
  %s884 = scalar_lea.vmem [#allocation2], 4
  %vm885 = vcmask 60416
  %vm886 = vsmask.f32 7938
  %vm887 = vmand %vm885, %vm886
  %v888 = vld [vmem:[%s884] sm:$0xf]
  %v889 = vsel %vm887, %v843, %v888
  %890 = vst [vmem:[%s884] sm:$0xf] %v889
  %v891 = vld [vmem:[%s884 + $0x4] sm:$0xf]
  %v892 = vsel %vm887, %v845, %v891
  %893 = vst [vmem:[%s884 + $0x4] sm:$0xf] %v892
  %v894 = vld [vmem:[%s884 + $0x8] sm:$0xf]
  %v895 = vsel %vm887, %v847, %v894
  %896 = vst [vmem:[%s884 + $0x8] sm:$0xf] %v895
  %v897 = vld [vmem:[%s884 + $0xc] sm:$0xf]
  %v898 = vsel %vm887, %v849, %v897
  %899 = vst [vmem:[%s884 + $0xc] sm:$0xf] %v898
  %v900 = vld [vmem:[%s884 + $0x10] sm:$0xf]
  %v901 = vsel %vm887, %v851, %v900
  %902 = vst [vmem:[%s884 + $0x10] sm:$0xf] %v901
  %v903 = vld [vmem:[%s884 + $0x14] sm:$0xf]
  %v904 = vsel %vm887, %v853, %v903
  %905 = vst [vmem:[%s884 + $0x14] sm:$0xf] %v904
  %v906 = vld [vmem:[%s884 + $0x18] sm:$0xf]
  %v907 = vsel %vm887, %v855, %v906
  %908 = vst [vmem:[%s884 + $0x18] sm:$0xf] %v907
  %v909 = vld [vmem:[%s884 + $0x20] sm:$0xf]
  %v910 = vsel %vm887, %v857, %v909
  %911 = vst [vmem:[%s884 + $0x20] sm:$0xf] %v910
  %v912 = vld [vmem:[%s884 + $0x24] sm:$0xf]
  %v913 = vsel %vm887, %v859, %v912
  %914 = vst [vmem:[%s884 + $0x24] sm:$0xf] %v913
  %v915 = vld [vmem:[%s884 + $0x28] sm:$0xf]
  %v916 = vsel %vm887, %v861, %v915
  %917 = vst [vmem:[%s884 + $0x28] sm:$0xf] %v916
  %v918 = vld [vmem:[%s884 + $0x2c] sm:$0xf]
  %v919 = vsel %vm887, %v863, %v918
  %920 = vst [vmem:[%s884 + $0x2c] sm:$0xf] %v919
  %v921 = vld [vmem:[%s884 + $0x30] sm:$0xf]
  %v922 = vsel %vm887, %v865, %v921
  %923 = vst [vmem:[%s884 + $0x30] sm:$0xf] %v922
  %v924 = vld [vmem:[%s884 + $0x34] sm:$0xf]
  %v925 = vsel %vm887, %v867, %v924
  %926 = vst [vmem:[%s884 + $0x34] sm:$0xf] %v925
  %v927 = vld [vmem:[%s884 + $0x38] sm:$0xf]
  %v928 = vsel %vm887, %v869, %v927
  %929 = vst [vmem:[%s884 + $0x38] sm:$0xf] %v928
  %vm930 = vcmask 126016
  %931 = vst.msk [vmem:[%s884] sm:$0xf] %vm930, %v714
  %932 = vst.msk [vmem:[%s884 + $0x4] sm:$0xf] %vm930, %v715
  %933 = vst.msk [vmem:[%s884 + $0x8] sm:$0xf] %vm930, %v716
  %934 = vst.msk [vmem:[%s884 + $0xc] sm:$0xf] %vm930, %v717
  %935 = vst.msk [vmem:[%s884 + $0x10] sm:$0xf] %vm930, %v718
  %936 = vst.msk [vmem:[%s884 + $0x14] sm:$0xf] %vm930, %v719
  %937 = vst.msk [vmem:[%s884 + $0x18] sm:$0xf] %vm930, %v720
  %938 = vst.msk [vmem:[%s884 + $0x20] sm:$0xf] %vm930, %v722
  %939 = vst.msk [vmem:[%s884 + $0x24] sm:$0xf] %vm930, %v723
  %940 = vst.msk [vmem:[%s884 + $0x28] sm:$0xf] %vm930, %v724
  %941 = vst.msk [vmem:[%s884 + $0x2c] sm:$0xf] %vm930, %v725
  %942 = vst.msk [vmem:[%s884 + $0x30] sm:$0xf] %vm930, %v726
  %943 = vst.msk [vmem:[%s884 + $0x34] sm:$0xf] %vm930, %v727
  %944 = vst.msk [vmem:[%s884 + $0x38] sm:$0xf] %vm930, %v728
  %v945 = vrot.slane %v745, 4
  %v946 = vrot.slane %v748, 5
  %v947 = vor.u32 %v945, %v946
  %v948 = vrot.slane %v947, 4
  %v949 = vrot.slane %v752, 4
  %v950 = vrot.slane %v755, 5
  %v951 = vor.u32 %v949, %v950
  %v952 = vrot.slane %v951, 4
  %v953 = vrot.slane %v759, 4
  %v954 = vrot.slane %v762, 5
  %v955 = vor.u32 %v953, %v954
  %v956 = vrot.slane %v955, 4
  %v957 = vrot.slane %v766, 4
  %v958 = vrot.slane %v769, 5
  %v959 = vor.u32 %v957, %v958
  %v960 = vrot.slane %v959, 4
  %v961 = vrot.slane %v773, 4
  %v962 = vrot.slane %v776, 5
  %v963 = vor.u32 %v961, %v962
  %v964 = vrot.slane %v963, 4
  %v965 = vrot.slane %v780, 4
  %v966 = vrot.slane %v783, 5
  %v967 = vor.u32 %v965, %v966
  %v968 = vrot.slane %v967, 4
  %v969 = vrot.slane %v787, 4
  %v970 = vrot.slane %v790, 5
  %v971 = vor.u32 %v969, %v970
  %v972 = vrot.slane %v971, 4
  %v973 = vrot.slane %v794, 4
  %v974 = vrot.slane %v797, 5
  %v975 = vor.u32 %v973, %v974
  %v976 = vrot.slane %v975, 4
  %v977 = vrot.slane %v801, 4
  %v978 = vrot.slane %v804, 5
  %v979 = vor.u32 %v977, %v978
  %v980 = vrot.slane %v979, 4
  %v981 = vrot.slane %v808, 4
  %v982 = vrot.slane %v811, 5
  %v983 = vor.u32 %v981, %v982
  %v984 = vrot.slane %v983, 4
  %v985 = vrot.slane %v815, 4
  %v986 = vrot.slane %v818, 5
  %v987 = vor.u32 %v985, %v986
  %v988 = vrot.slane %v987, 4
  %v989 = vrot.slane %v822, 4
  %v990 = vrot.slane %v825, 5
  %v991 = vor.u32 %v989, %v990
  %v992 = vrot.slane %v991, 4
  %v993 = vrot.slane %v829, 4
  %v994 = vrot.slane %v832, 5
  %v995 = vor.u32 %v993, %v994
  %v996 = vrot.slane %v995, 4
  %v997 = vrot.slane %v836, 4
  %v998 = vrot.slane %v839, 5
  %v999 = vor.u32 %v997, %v998
  %v1000 = vrot.slane %v999, 4
  %1001 = vrot.lane.b32.xlu0 %v948, 8
  %v1002 = vpop.permute.xlu0 %1001
  %1003 = vrot.lane.b32.xlu0 %v952, 8
  %v1004 = vpop.permute.xlu0 %1003
  %1005 = vrot.lane.b32.xlu0 %v956, 8
  %v1006 = vpop.permute.xlu0 %1005
  %1007 = vrot.lane.b32.xlu0 %v960, 8
  %v1008 = vpop.permute.xlu0 %1007
  %1009 = vrot.lane.b32.xlu0 %v964, 8
  %v1010 = vpop.permute.xlu0 %1009
  %1011 = vrot.lane.b32.xlu0 %v968, 8
  %v1012 = vpop.permute.xlu0 %1011
  %1013 = vrot.lane.b32.xlu0 %v972, 8
  %v1014 = vpop.permute.xlu0 %1013
  %1015 = vrot.lane.b32.xlu0 %v976, 8
  %v1016 = vpop.permute.xlu0 %1015
  %1017 = vrot.lane.b32.xlu0 %v980, 8
  %v1018 = vpop.permute.xlu0 %1017
  %1019 = vrot.lane.b32.xlu0 %v984, 8
  %v1020 = vpop.permute.xlu0 %1019
  %1021 = vrot.lane.b32.xlu0 %v988, 8
  %v1022 = vpop.permute.xlu0 %1021
  %1023 = vrot.lane.b32.xlu0 %v992, 8
  %v1024 = vpop.permute.xlu0 %1023
  %1025 = vrot.lane.b32.xlu0 %v996, 8
  %v1026 = vpop.permute.xlu0 %1025
  %1027 = vrot.lane.b32.xlu0 %v1000, 8
  %v1028 = vpop.permute.xlu0 %1027
  %vm1043 = vcmask 191616
  %vm1044 = vsmask.f32 3328
  %vm1045 = vmand %vm1043, %vm1044
  %v1046 = vld [vmem:[%s884] sm:$0xf]
  %v1047 = vsel %vm1045, %v1002, %v1046
  %1048 = vst [vmem:[%s884] sm:$0xf] %v1047
  %v1049 = vld [vmem:[%s884 + $0x4] sm:$0xf]
  %v1050 = vsel %vm1045, %v1004, %v1049
  %1051 = vst [vmem:[%s884 + $0x4] sm:$0xf] %v1050
  %v1052 = vld [vmem:[%s884 + $0x8] sm:$0xf]
  %v1053 = vsel %vm1045, %v1006, %v1052
  %1054 = vst [vmem:[%s884 + $0x8] sm:$0xf] %v1053
  %v1055 = vld [vmem:[%s884 + $0xc] sm:$0xf]
  %v1056 = vsel %vm1045, %v1008, %v1055
  %1057 = vst [vmem:[%s884 + $0xc] sm:$0xf] %v1056
  %v1058 = vld [vmem:[%s884 + $0x10] sm:$0xf]
  %v1059 = vsel %vm1045, %v1010, %v1058
  %1060 = vst [vmem:[%s884 + $0x10] sm:$0xf] %v1059
  %v1061 = vld [vmem:[%s884 + $0x14] sm:$0xf]
  %v1062 = vsel %vm1045, %v1012, %v1061
  %1063 = vst [vmem:[%s884 + $0x14] sm:$0xf] %v1062
  %v1064 = vld [vmem:[%s884 + $0x18] sm:$0xf]
  %v1065 = vsel %vm1045, %v1014, %v1064
  %1066 = vst [vmem:[%s884 + $0x18] sm:$0xf] %v1065
  %v1067 = vld [vmem:[%s884 + $0x20] sm:$0xf]
  %v1068 = vsel %vm1045, %v1016, %v1067
  %1069 = vst [vmem:[%s884 + $0x20] sm:$0xf] %v1068
  %v1070 = vld [vmem:[%s884 + $0x24] sm:$0xf]
  %v1071 = vsel %vm1045, %v1018, %v1070
  %1072 = vst [vmem:[%s884 + $0x24] sm:$0xf] %v1071
  %v1073 = vld [vmem:[%s884 + $0x28] sm:$0xf]
  %v1074 = vsel %vm1045, %v1020, %v1073
  %1075 = vst [vmem:[%s884 + $0x28] sm:$0xf] %v1074
  %v1076 = vld [vmem:[%s884 + $0x2c] sm:$0xf]
  %v1077 = vsel %vm1045, %v1022, %v1076
  %1078 = vst [vmem:[%s884 + $0x2c] sm:$0xf] %v1077
  %v1079 = vld [vmem:[%s884 + $0x30] sm:$0xf]
  %v1080 = vsel %vm1045, %v1024, %v1079
  %1081 = vst [vmem:[%s884 + $0x30] sm:$0xf] %v1080
  %v1082 = vld [vmem:[%s884 + $0x34] sm:$0xf]
  %v1083 = vsel %vm1045, %v1026, %v1082
  %1084 = vst [vmem:[%s884 + $0x34] sm:$0xf] %v1083
  %v1085 = vld [vmem:[%s884 + $0x38] sm:$0xf]
  %v1086 = vsel %vm1045, %v1028, %v1085
  %1087 = vst [vmem:[%s884 + $0x38] sm:$0xf] %v1086
  %v1089 = vshrl.u32 %v721, 16
  %v1091 = vrot.slane %v1089, 7
  %v1092 = vshll.u32 %v721, 16
  %v1094 = vor.u32 %v1091, %v1092
  %v1096 = vshrl.u32 %v729, 16
  %v1098 = vrot.slane %v1096, 7
  %v1099 = vshll.u32 %v729, 16
  %v1101 = vor.u32 %v1098, %v1099
  %1102 = vrot.lane.b32.xlu0 %v750, 16
  %v1103 = vpop.permute.xlu0 %1102
  %1104 = vrot.lane.b32.xlu0 %v757, 16
  %v1105 = vpop.permute.xlu0 %1104
  %1106 = vrot.lane.b32.xlu0 %v764, 16
  %v1107 = vpop.permute.xlu0 %1106
  %1108 = vrot.lane.b32.xlu0 %v771, 16
  %v1109 = vpop.permute.xlu0 %1108
  %1110 = vrot.lane.b32.xlu0 %v778, 16
  %v1111 = vpop.permute.xlu0 %1110
  %1112 = vrot.lane.b32.xlu0 %v785, 16
  %v1113 = vpop.permute.xlu0 %1112
  %1114 = vrot.lane.b32.xlu0 %v792, 16
  %v1115 = vpop.permute.xlu0 %1114
  %1116 = vrot.lane.b32.xlu0 %v1094, 16
  %v1117 = vpop.permute.xlu0 %1116
  %1118 = vrot.lane.b32.xlu0 %v799, 16
  %v1119 = vpop.permute.xlu0 %1118
  %1120 = vrot.lane.b32.xlu0 %v806, 16
  %v1121 = vpop.permute.xlu0 %1120
  %1122 = vrot.lane.b32.xlu0 %v813, 16
  %v1123 = vpop.permute.xlu0 %1122
  %1124 = vrot.lane.b32.xlu0 %v820, 16
  %v1125 = vpop.permute.xlu0 %1124
  %1126 = vrot.lane.b32.xlu0 %v827, 16
  %v1127 = vpop.permute.xlu0 %1126
  %1128 = vrot.lane.b32.xlu0 %v834, 16
  %v1129 = vpop.permute.xlu0 %1128
  %1130 = vrot.lane.b32.xlu0 %v841, 16
  %v1131 = vpop.permute.xlu0 %1130
  %1132 = vrot.lane.b32.xlu0 %v1101, 16
  %v1133 = vpop.permute.xlu0 %1132
  %vm1150 = vcmask 257216
  %vm1151 = vmand %vm1150, %vm886
  %v1152 = vld [vmem:[#allocation2] sm:$0xf]
  %v1153 = vsel %vm1151, %v1103, %v1152
  %1154 = vst [vmem:[#allocation2] sm:$0xf] %v1153
  %v1155 = vld [vmem:[#allocation2 + $0x4] sm:$0xf]
  %v1156 = vsel %vm1151, %v1105, %v1155
  %1157 = vst [vmem:[#allocation2 + $0x4] sm:$0xf] %v1156
  %v1158 = vld [vmem:[#allocation2 + $0x8] sm:$0xf]
  %v1159 = vsel %vm1151, %v1107, %v1158
  %1160 = vst [vmem:[#allocation2 + $0x8] sm:$0xf] %v1159
  %v1161 = vld [vmem:[#allocation2 + $0xc] sm:$0xf]
  %v1162 = vsel %vm1151, %v1109, %v1161
  %1163 = vst [vmem:[#allocation2 + $0xc] sm:$0xf] %v1162
  %v1164 = vld [vmem:[#allocation2 + $0x10] sm:$0xf]
  %v1165 = vsel %vm1151, %v1111, %v1164
  %1166 = vst [vmem:[#allocation2 + $0x10] sm:$0xf] %v1165
  %v1167 = vld [vmem:[#allocation2 + $0x14] sm:$0xf]
  %v1168 = vsel %vm1151, %v1113, %v1167
  %1169 = vst [vmem:[#allocation2 + $0x14] sm:$0xf] %v1168
  %v1170 = vld [vmem:[#allocation2 + $0x18] sm:$0xf]
  %v1171 = vsel %vm1151, %v1115, %v1170
  %1172 = vst [vmem:[#allocation2 + $0x18] sm:$0xf] %v1171
  %v1173 = vld [vmem:[#allocation2 + $0x1c] sm:$0xf]
  %v1174 = vsel %vm1151, %v1117, %v1173
  %1175 = vst [vmem:[#allocation2 + $0x1c] sm:$0xf] %v1174
  %v1176 = vld [vmem:[#allocation2 + $0x20] sm:$0xf]
  %v1177 = vsel %vm1151, %v1119, %v1176
  %1178 = vst [vmem:[#allocation2 + $0x20] sm:$0xf] %v1177
  %v1179 = vld [vmem:[#allocation2 + $0x24] sm:$0xf]
  %v1180 = vsel %vm1151, %v1121, %v1179
  %1181 = vst [vmem:[#allocation2 + $0x24] sm:$0xf] %v1180
  %v1182 = vld [vmem:[#allocation2 + $0x28] sm:$0xf]
  %v1183 = vsel %vm1151, %v1123, %v1182
  %1184 = vst [vmem:[#allocation2 + $0x28] sm:$0xf] %v1183
  %v1185 = vld [vmem:[#allocation2 + $0x2c] sm:$0xf]
  %v1186 = vsel %vm1151, %v1125, %v1185
  %1187 = vst [vmem:[#allocation2 + $0x2c] sm:$0xf] %v1186
  %v1188 = vld [vmem:[#allocation2 + $0x30] sm:$0xf]
  %v1189 = vsel %vm1151, %v1127, %v1188
  %1190 = vst [vmem:[#allocation2 + $0x30] sm:$0xf] %v1189
  %v1191 = vld [vmem:[#allocation2 + $0x34] sm:$0xf]
  %v1192 = vsel %vm1151, %v1129, %v1191
  %1193 = vst [vmem:[#allocation2 + $0x34] sm:$0xf] %v1192
  %v1194 = vld [vmem:[#allocation2 + $0x38] sm:$0xf]
  %v1195 = vsel %vm1151, %v1131, %v1194
  %1196 = vst [vmem:[#allocation2 + $0x38] sm:$0xf] %v1195
  %v1197 = vld [vmem:[#allocation2 + $0x3c] sm:$0xf]
  %v1198 = vsel %vm1151, %v1133, %v1197
  %1199 = vst [vmem:[#allocation2 + $0x3c] sm:$0xf] %v1198
  %1200 = vrot.lane.b32.xlu0 %v714, 24
  %v1201 = vpop.permute.xlu0 %1200
  %1202 = vrot.lane.b32.xlu0 %v715, 24
  %v1203 = vpop.permute.xlu0 %1202
  %1204 = vrot.lane.b32.xlu0 %v716, 24
  %v1205 = vpop.permute.xlu0 %1204
  %1206 = vrot.lane.b32.xlu0 %v717, 24
  %v1207 = vpop.permute.xlu0 %1206
  %1208 = vrot.lane.b32.xlu0 %v718, 24
  %v1209 = vpop.permute.xlu0 %1208
  %1210 = vrot.lane.b32.xlu0 %v719, 24
  %v1211 = vpop.permute.xlu0 %1210
  %1212 = vrot.lane.b32.xlu0 %v720, 24
  %v1213 = vpop.permute.xlu0 %1212
  %1214 = vrot.lane.b32.xlu0 %v721, 24
  %v1215 = vpop.permute.xlu0 %1214
  %1216 = vrot.lane.b32.xlu0 %v722, 24
  %v1217 = vpop.permute.xlu0 %1216
  %1218 = vrot.lane.b32.xlu0 %v723, 24
  %v1219 = vpop.permute.xlu0 %1218
  %1220 = vrot.lane.b32.xlu0 %v724, 24
  %v1221 = vpop.permute.xlu0 %1220
  %1222 = vrot.lane.b32.xlu0 %v725, 24
  %v1223 = vpop.permute.xlu0 %1222
  %1224 = vrot.lane.b32.xlu0 %v726, 24
  %v1225 = vpop.permute.xlu0 %1224
  %1226 = vrot.lane.b32.xlu0 %v727, 24
  %v1227 = vpop.permute.xlu0 %1226
  %1228 = vrot.lane.b32.xlu0 %v728, 24
  %v1229 = vpop.permute.xlu0 %1228
  %1230 = vrot.lane.b32.xlu0 %v729, 24
  %v1231 = vpop.permute.xlu0 %1230
  %vm1248 = vcmask 322816
  %1249 = vst.msk [vmem:[#allocation2] sm:$0xf] %vm1248, %v1201
  %1250 = vst.msk [vmem:[#allocation2 + $0x4] sm:$0xf] %vm1248, %v1203
  %1251 = vst.msk [vmem:[#allocation2 + $0x8] sm:$0xf] %vm1248, %v1205
  %1252 = vst.msk [vmem:[#allocation2 + $0xc] sm:$0xf] %vm1248, %v1207
  %1253 = vst.msk [vmem:[#allocation2 + $0x10] sm:$0xf] %vm1248, %v1209
  %1254 = vst.msk [vmem:[#allocation2 + $0x14] sm:$0xf] %vm1248, %v1211
  %1255 = vst.msk [vmem:[#allocation2 + $0x18] sm:$0xf] %vm1248, %v1213
  %1256 = vst.msk [vmem:[#allocation2 + $0x1c] sm:$0xf] %vm1248, %v1215
  %1257 = vst.msk [vmem:[#allocation2 + $0x20] sm:$0xf] %vm1248, %v1217
  %1258 = vst.msk [vmem:[#allocation2 + $0x24] sm:$0xf] %vm1248, %v1219
  %1259 = vst.msk [vmem:[#allocation2 + $0x28] sm:$0xf] %vm1248, %v1221
  %1260 = vst.msk [vmem:[#allocation2 + $0x2c] sm:$0xf] %vm1248, %v1223
  %1261 = vst.msk [vmem:[#allocation2 + $0x30] sm:$0xf] %vm1248, %v1225
  %1262 = vst.msk [vmem:[#allocation2 + $0x34] sm:$0xf] %vm1248, %v1227
  %1263 = vst.msk [vmem:[#allocation2 + $0x38] sm:$0xf] %vm1248, %v1229
  %1264 = vst.msk [vmem:[#allocation2 + $0x3c] sm:$0xf] %vm1248, %v1231
  %v1265 = vrot.slane %v1089, 4
  %v1266 = vrot.slane %v1092, 5
  %v1267 = vor.u32 %v1265, %v1266
  %v1268 = vrot.slane %v1267, 4
  %v1269 = vrot.slane %v1096, 4
  %v1270 = vrot.slane %v1099, 5
  %v1271 = vor.u32 %v1269, %v1270
  %v1272 = vrot.slane %v1271, 4
  %1273 = vrot.lane.b32.xlu0 %v948, 32
  %v1274 = vpop.permute.xlu0 %1273
  %1275 = vrot.lane.b32.xlu0 %v952, 32
  %v1276 = vpop.permute.xlu0 %1275
  %1277 = vrot.lane.b32.xlu0 %v956, 32
  %v1278 = vpop.permute.xlu0 %1277
  %1279 = vrot.lane.b32.xlu0 %v960, 32
  %v1280 = vpop.permute.xlu0 %1279
  %1281 = vrot.lane.b32.xlu0 %v964, 32
  %v1282 = vpop.permute.xlu0 %1281
  %1283 = vrot.lane.b32.xlu0 %v968, 32
  %v1284 = vpop.permute.xlu0 %1283
  %1285 = vrot.lane.b32.xlu0 %v972, 32
  %v1286 = vpop.permute.xlu0 %1285
  %1287 = vrot.lane.b32.xlu0 %v1268, 32
  %v1288 = vpop.permute.xlu0 %1287
  %1289 = vrot.lane.b32.xlu0 %v976, 32
  %v1290 = vpop.permute.xlu0 %1289
  %1291 = vrot.lane.b32.xlu0 %v980, 32
  %v1292 = vpop.permute.xlu0 %1291
  %1293 = vrot.lane.b32.xlu0 %v984, 32
  %v1294 = vpop.permute.xlu0 %1293
  %1295 = vrot.lane.b32.xlu0 %v988, 32
  %v1296 = vpop.permute.xlu0 %1295
  %1297 = vrot.lane.b32.xlu0 %v992, 32
  %v1298 = vpop.permute.xlu0 %1297
  %1299 = vrot.lane.b32.xlu0 %v996, 32
  %v1300 = vpop.permute.xlu0 %1299
  %1301 = vrot.lane.b32.xlu0 %v1000, 32
  %v1302 = vpop.permute.xlu0 %1301
  %1303 = vrot.lane.b32.xlu0 %v1272, 32
  %v1304 = vpop.permute.xlu0 %1303
  %vm1321 = vcmask 388416
  %vm1322 = vmand %vm1321, %vm1044
  %v1323 = vld [vmem:[#allocation2] sm:$0xf]
  %v1324 = vsel %vm1322, %v1274, %v1323
  %1325 = vst [vmem:[#allocation2] sm:$0xf] %v1324
  %v1326 = vld [vmem:[#allocation2 + $0x4] sm:$0xf]
  %v1327 = vsel %vm1322, %v1276, %v1326
  %1328 = vst [vmem:[#allocation2 + $0x4] sm:$0xf] %v1327
  %v1329 = vld [vmem:[#allocation2 + $0x8] sm:$0xf]
  %v1330 = vsel %vm1322, %v1278, %v1329
  %1331 = vst [vmem:[#allocation2 + $0x8] sm:$0xf] %v1330
  %v1332 = vld [vmem:[#allocation2 + $0xc] sm:$0xf]
  %v1333 = vsel %vm1322, %v1280, %v1332
  %1334 = vst [vmem:[#allocation2 + $0xc] sm:$0xf] %v1333
  %v1335 = vld [vmem:[#allocation2 + $0x10] sm:$0xf]
  %v1336 = vsel %vm1322, %v1282, %v1335
  %1337 = vst [vmem:[#allocation2 + $0x10] sm:$0xf] %v1336
  %v1338 = vld [vmem:[#allocation2 + $0x14] sm:$0xf]
  %v1339 = vsel %vm1322, %v1284, %v1338
  %1340 = vst [vmem:[#allocation2 + $0x14] sm:$0xf] %v1339
  %v1341 = vld [vmem:[#allocation2 + $0x18] sm:$0xf]
  %v1342 = vsel %vm1322, %v1286, %v1341
  %1343 = vst [vmem:[#allocation2 + $0x18] sm:$0xf] %v1342
  %v1344 = vld [vmem:[#allocation2 + $0x1c] sm:$0xf]
  %v1345 = vsel %vm1322, %v1288, %v1344
  %1346 = vst [vmem:[#allocation2 + $0x1c] sm:$0xf] %v1345
  %v1347 = vld [vmem:[#allocation2 + $0x20] sm:$0xf]
  %v1348 = vsel %vm1322, %v1290, %v1347
  %1349 = vst [vmem:[#allocation2 + $0x20] sm:$0xf] %v1348
  %v1350 = vld [vmem:[#allocation2 + $0x24] sm:$0xf]
  %v1351 = vsel %vm1322, %v1292, %v1350
  %1352 = vst [vmem:[#allocation2 + $0x24] sm:$0xf] %v1351
  %v1353 = vld [vmem:[#allocation2 + $0x28] sm:$0xf]
  %v1354 = vsel %vm1322, %v1294, %v1353
  %1355 = vst [vmem:[#allocation2 + $0x28] sm:$0xf] %v1354
  %v1356 = vld [vmem:[#allocation2 + $0x2c] sm:$0xf]
  %v1357 = vsel %vm1322, %v1296, %v1356
  %1358 = vst [vmem:[#allocation2 + $0x2c] sm:$0xf] %v1357
  %v1359 = vld [vmem:[#allocation2 + $0x30] sm:$0xf]
  %v1360 = vsel %vm1322, %v1298, %v1359
  %1361 = vst [vmem:[#allocation2 + $0x30] sm:$0xf] %v1360
  %v1362 = vld [vmem:[#allocation2 + $0x34] sm:$0xf]
  %v1363 = vsel %vm1322, %v1300, %v1362
  %1364 = vst [vmem:[#allocation2 + $0x34] sm:$0xf] %v1363
  %v1365 = vld [vmem:[#allocation2 + $0x38] sm:$0xf]
  %v1366 = vsel %vm1322, %v1302, %v1365
  %1367 = vst [vmem:[#allocation2 + $0x38] sm:$0xf] %v1366
  %v1368 = vld [vmem:[#allocation2 + $0x3c] sm:$0xf]
  %v1369 = vsel %vm1322, %v1304, %v1368
  %1370 = vst [vmem:[#allocation2 + $0x3c] sm:$0xf] %v1369
  %1371 = vrot.lane.b32.xlu0 %v757, 40
  %v1372 = vpop.permute.xlu0 %1371
  %1373 = vrot.lane.b32.xlu0 %v764, 40
  %v1374 = vpop.permute.xlu0 %1373
  %1375 = vrot.lane.b32.xlu0 %v771, 40
  %v1376 = vpop.permute.xlu0 %1375
  %1377 = vrot.lane.b32.xlu0 %v778, 40
  %v1378 = vpop.permute.xlu0 %1377
  %1379 = vrot.lane.b32.xlu0 %v785, 40
  %v1380 = vpop.permute.xlu0 %1379
  %1381 = vrot.lane.b32.xlu0 %v792, 40
  %v1382 = vpop.permute.xlu0 %1381
  %1383 = vrot.lane.b32.xlu0 %v1094, 40
  %v1384 = vpop.permute.xlu0 %1383
  %1385 = vrot.lane.b32.xlu0 %v806, 40
  %v1386 = vpop.permute.xlu0 %1385
  %1387 = vrot.lane.b32.xlu0 %v813, 40
  %v1388 = vpop.permute.xlu0 %1387
  %1389 = vrot.lane.b32.xlu0 %v820, 40
  %v1390 = vpop.permute.xlu0 %1389
  %1391 = vrot.lane.b32.xlu0 %v827, 40
  %v1392 = vpop.permute.xlu0 %1391
  %1393 = vrot.lane.b32.xlu0 %v834, 40
  %v1394 = vpop.permute.xlu0 %1393
  %1395 = vrot.lane.b32.xlu0 %v841, 40
  %v1396 = vpop.permute.xlu0 %1395
  %1397 = vrot.lane.b32.xlu0 %v1101, 40
  %v1398 = vpop.permute.xlu0 %1397
  %vm1413 = vcmask 454016
  %vm1414 = vmand %vm1413, %vm886
  %v1415 = vld [vmem:[#allocation2] sm:$0xf]
  %v1416 = vsel %vm1414, %v1372, %v1415
  %1417 = vst [vmem:[#allocation2] sm:$0xf] %v1416
  %v1418 = vld [vmem:[#allocation2 + $0x4] sm:$0xf]
  %v1419 = vsel %vm1414, %v1374, %v1418
  %1420 = vst [vmem:[#allocation2 + $0x4] sm:$0xf] %v1419
  %v1421 = vld [vmem:[#allocation2 + $0x8] sm:$0xf]
  %v1422 = vsel %vm1414, %v1376, %v1421
  %1423 = vst [vmem:[#allocation2 + $0x8] sm:$0xf] %v1422
  %v1424 = vld [vmem:[#allocation2 + $0xc] sm:$0xf]
  %v1425 = vsel %vm1414, %v1378, %v1424
  %1426 = vst [vmem:[#allocation2 + $0xc] sm:$0xf] %v1425
  %v1427 = vld [vmem:[#allocation2 + $0x10] sm:$0xf]
  %v1428 = vsel %vm1414, %v1380, %v1427
  %1429 = vst [vmem:[#allocation2 + $0x10] sm:$0xf] %v1428
  %v1430 = vld [vmem:[#allocation2 + $0x14] sm:$0xf]
  %v1431 = vsel %vm1414, %v1382, %v1430
  %1432 = vst [vmem:[#allocation2 + $0x14] sm:$0xf] %v1431
  %v1433 = vld [vmem:[#allocation2 + $0x18] sm:$0xf]
  %v1434 = vsel %vm1414, %v1384, %v1433
  %1435 = vst [vmem:[#allocation2 + $0x18] sm:$0xf] %v1434
  %v1436 = vld [vmem:[#allocation2 + $0x20] sm:$0xf]
  %v1437 = vsel %vm1414, %v1386, %v1436
  %1438 = vst [vmem:[#allocation2 + $0x20] sm:$0xf] %v1437
  %v1439 = vld [vmem:[#allocation2 + $0x24] sm:$0xf]
  %v1440 = vsel %vm1414, %v1388, %v1439
  %1441 = vst [vmem:[#allocation2 + $0x24] sm:$0xf] %v1440
  %v1442 = vld [vmem:[#allocation2 + $0x28] sm:$0xf]
  %v1443 = vsel %vm1414, %v1390, %v1442
  %1444 = vst [vmem:[#allocation2 + $0x28] sm:$0xf] %v1443
  %v1445 = vld [vmem:[#allocation2 + $0x2c] sm:$0xf]
  %v1446 = vsel %vm1414, %v1392, %v1445
  %1447 = vst [vmem:[#allocation2 + $0x2c] sm:$0xf] %v1446
  %v1448 = vld [vmem:[#allocation2 + $0x30] sm:$0xf]
  %v1449 = vsel %vm1414, %v1394, %v1448
  %1450 = vst [vmem:[#allocation2 + $0x30] sm:$0xf] %v1449
  %v1451 = vld [vmem:[#allocation2 + $0x34] sm:$0xf]
  %v1452 = vsel %vm1414, %v1396, %v1451
  %1453 = vst [vmem:[#allocation2 + $0x34] sm:$0xf] %v1452
  %v1454 = vld [vmem:[#allocation2 + $0x38] sm:$0xf]
  %v1455 = vsel %vm1414, %v1398, %v1454
  %1456 = vst [vmem:[#allocation2 + $0x38] sm:$0xf] %v1455
  %1457 = vrot.lane.b32.xlu0 %v715, 48
  %v1458 = vpop.permute.xlu0 %1457
  %1459 = vrot.lane.b32.xlu0 %v716, 48
  %v1460 = vpop.permute.xlu0 %1459
  %1461 = vrot.lane.b32.xlu0 %v717, 48
  %v1462 = vpop.permute.xlu0 %1461
  %1463 = vrot.lane.b32.xlu0 %v718, 48
  %v1464 = vpop.permute.xlu0 %1463
  %1465 = vrot.lane.b32.xlu0 %v719, 48
  %v1466 = vpop.permute.xlu0 %1465
  %1467 = vrot.lane.b32.xlu0 %v720, 48
  %v1468 = vpop.permute.xlu0 %1467
  %1469 = vrot.lane.b32.xlu0 %v721, 48
  %v1470 = vpop.permute.xlu0 %1469
  %1471 = vrot.lane.b32.xlu0 %v723, 48
  %v1472 = vpop.permute.xlu0 %1471
  %1473 = vrot.lane.b32.xlu0 %v724, 48
  %v1474 = vpop.permute.xlu0 %1473
  %1475 = vrot.lane.b32.xlu0 %v725, 48
  %v1476 = vpop.permute.xlu0 %1475
  %1477 = vrot.lane.b32.xlu0 %v726, 48
  %v1478 = vpop.permute.xlu0 %1477
  %1479 = vrot.lane.b32.xlu0 %v727, 48
  %v1480 = vpop.permute.xlu0 %1479
  %1481 = vrot.lane.b32.xlu0 %v728, 48
  %v1482 = vpop.permute.xlu0 %1481
  %1483 = vrot.lane.b32.xlu0 %v729, 48
  %v1484 = vpop.permute.xlu0 %1483
  %vm1499 = vcmask 519616
  %1500 = vst.msk [vmem:[#allocation2] sm:$0xf] %vm1499, %v1458
  %1501 = vst.msk [vmem:[#allocation2 + $0x4] sm:$0xf] %vm1499, %v1460
  %1502 = vst.msk [vmem:[#allocation2 + $0x8] sm:$0xf] %vm1499, %v1462
  %1503 = vst.msk [vmem:[#allocation2 + $0xc] sm:$0xf] %vm1499, %v1464
  %1504 = vst.msk [vmem:[#allocation2 + $0x10] sm:$0xf] %vm1499, %v1466
  %1505 = vst.msk [vmem:[#allocation2 + $0x14] sm:$0xf] %vm1499, %v1468
  %1506 = vst.msk [vmem:[#allocation2 + $0x18] sm:$0xf] %vm1499, %v1470
  %1507 = vst.msk [vmem:[#allocation2 + $0x20] sm:$0xf] %vm1499, %v1472
  %1508 = vst.msk [vmem:[#allocation2 + $0x24] sm:$0xf] %vm1499, %v1474
  %1509 = vst.msk [vmem:[#allocation2 + $0x28] sm:$0xf] %vm1499, %v1476
  %1510 = vst.msk [vmem:[#allocation2 + $0x2c] sm:$0xf] %vm1499, %v1478
  %1511 = vst.msk [vmem:[#allocation2 + $0x30] sm:$0xf] %vm1499, %v1480
  %1512 = vst.msk [vmem:[#allocation2 + $0x34] sm:$0xf] %vm1499, %v1482
  %1513 = vst.msk [vmem:[#allocation2 + $0x38] sm:$0xf] %vm1499, %v1484
  %1514 = vrot.lane.b32.xlu0 %v952, 56
  %v1515 = vpop.permute.xlu0 %1514
  %1516 = vrot.lane.b32.xlu0 %v956, 56
  %v1517 = vpop.permute.xlu0 %1516
  %1518 = vrot.lane.b32.xlu0 %v960, 56
  %v1519 = vpop.permute.xlu0 %1518
  %1520 = vrot.lane.b32.xlu0 %v964, 56
  %v1521 = vpop.permute.xlu0 %1520
  %1522 = vrot.lane.b32.xlu0 %v968, 56
  %v1523 = vpop.permute.xlu0 %1522
  %1524 = vrot.lane.b32.xlu0 %v972, 56
  %v1525 = vpop.permute.xlu0 %1524
  %1526 = vrot.lane.b32.xlu0 %v1268, 56
  %v1527 = vpop.permute.xlu0 %1526
  %1528 = vrot.lane.b32.xlu0 %v980, 56
  %v1529 = vpop.permute.xlu0 %1528
  %1530 = vrot.lane.b32.xlu0 %v984, 56
  %v1531 = vpop.permute.xlu0 %1530
  %1532 = vrot.lane.b32.xlu0 %v988, 56
  %v1533 = vpop.permute.xlu0 %1532
  %1534 = vrot.lane.b32.xlu0 %v992, 56
  %v1535 = vpop.permute.xlu0 %1534
  %1536 = vrot.lane.b32.xlu0 %v996, 56
  %v1537 = vpop.permute.xlu0 %1536
  %1538 = vrot.lane.b32.xlu0 %v1000, 56
  %v1539 = vpop.permute.xlu0 %1538
  %1540 = vrot.lane.b32.xlu0 %v1272, 56
  %v1541 = vpop.permute.xlu0 %1540
  %vm1556 = vcmask 585216
  %vm1557 = vmand %vm1556, %vm1044
  %v1558 = vld [vmem:[#allocation2] sm:$0xf]
  %v1559 = vsel %vm1557, %v1515, %v1558
  %1560 = vst [vmem:[#allocation2] sm:$0xf] %v1559
  %v1561 = vld [vmem:[#allocation2 + $0x4] sm:$0xf]
  %v1562 = vsel %vm1557, %v1517, %v1561
  %1563 = vst [vmem:[#allocation2 + $0x4] sm:$0xf] %v1562
  %v1564 = vld [vmem:[#allocation2 + $0x8] sm:$0xf]
  %v1565 = vsel %vm1557, %v1519, %v1564
  %1566 = vst [vmem:[#allocation2 + $0x8] sm:$0xf] %v1565
  %v1567 = vld [vmem:[#allocation2 + $0xc] sm:$0xf]
  %v1568 = vsel %vm1557, %v1521, %v1567
  %1569 = vst [vmem:[#allocation2 + $0xc] sm:$0xf] %v1568
  %v1570 = vld [vmem:[#allocation2 + $0x10] sm:$0xf]
  %v1571 = vsel %vm1557, %v1523, %v1570
  %1572 = vst [vmem:[#allocation2 + $0x10] sm:$0xf] %v1571
  %v1573 = vld [vmem:[#allocation2 + $0x14] sm:$0xf]
  %v1574 = vsel %vm1557, %v1525, %v1573
  %1575 = vst [vmem:[#allocation2 + $0x14] sm:$0xf] %v1574
  %v1576 = vld [vmem:[#allocation2 + $0x18] sm:$0xf]
  %v1577 = vsel %vm1557, %v1527, %v1576
  %1578 = vst [vmem:[#allocation2 + $0x18] sm:$0xf] %v1577
  %v1579 = vld [vmem:[#allocation2 + $0x20] sm:$0xf]
  %v1580 = vsel %vm1557, %v1529, %v1579
  %1581 = vst [vmem:[#allocation2 + $0x20] sm:$0xf] %v1580
  %v1582 = vld [vmem:[#allocation2 + $0x24] sm:$0xf]
  %v1583 = vsel %vm1557, %v1531, %v1582
  %1584 = vst [vmem:[#allocation2 + $0x24] sm:$0xf] %v1583
  %v1585 = vld [vmem:[#allocation2 + $0x28] sm:$0xf]
  %v1586 = vsel %vm1557, %v1533, %v1585
  %1587 = vst [vmem:[#allocation2 + $0x28] sm:$0xf] %v1586
  %v1588 = vld [vmem:[#allocation2 + $0x2c] sm:$0xf]
  %v1589 = vsel %vm1557, %v1535, %v1588
  %1590 = vst [vmem:[#allocation2 + $0x2c] sm:$0xf] %v1589
  %v1591 = vld [vmem:[#allocation2 + $0x30] sm:$0xf]
  %v1592 = vsel %vm1557, %v1537, %v1591
  %1593 = vst [vmem:[#allocation2 + $0x30] sm:$0xf] %v1592
  %v1594 = vld [vmem:[#allocation2 + $0x34] sm:$0xf]
  %v1595 = vsel %vm1557, %v1539, %v1594
  %1596 = vst [vmem:[#allocation2 + $0x34] sm:$0xf] %v1595
  %v1597 = vld [vmem:[#allocation2 + $0x38] sm:$0xf]
  %v1598 = vsel %vm1557, %v1541, %v1597
  %1599 = vst [vmem:[#allocation2 + $0x38] sm:$0xf] %v1598
  %v1600 = vld [vmem:[#allocation2] sm:$0xf]
  %v1601 = vld [vmem:[#allocation2 + $0x4] sm:$0xf]
  %v1602 = vld [vmem:[#allocation2 + $0x8] sm:$0xf]
  %v1603 = vld [vmem:[#allocation2 + $0xc] sm:$0xf]
  %v1604 = vld [vmem:[#allocation2 + $0x10] sm:$0xf]
  %v1605 = vld [vmem:[#allocation2 + $0x14] sm:$0xf]
  %v1606 = vld [vmem:[#allocation2 + $0x18] sm:$0xf]
  %v1607 = vld [vmem:[#allocation2 + $0x1c] sm:$0xf]
  %v1608 = vld [vmem:[#allocation2 + $0x20] sm:$0xf]
  %v1609 = vld [vmem:[#allocation2 + $0x24] sm:$0xf]
  %v1610 = vld [vmem:[#allocation2 + $0x28] sm:$0xf]
  %v1611 = vld [vmem:[#allocation2 + $0x2c] sm:$0xf]
  %v1612 = vld [vmem:[#allocation2 + $0x30] sm:$0xf]
  %v1613 = vld [vmem:[#allocation2 + $0x34] sm:$0xf]
  %v1614 = vld [vmem:[#allocation2 + $0x38] sm:$0xf]
  %v1615 = vld [vmem:[#allocation2 + $0x3c] sm:$0xf]
  %v1616 = vld [vmem:[%s6] sm:$0xf]
  %v1617 = vld [vmem:[%s6 + $0x4] sm:$0xf]
  %v1618 = vld [vmem:[%s6 + $0x8] sm:$0xf]
  %v1619 = vld [vmem:[%s6 + $0xc] sm:$0xf]
  %v1620 = vld [vmem:[%s6 + $0x10] sm:$0xf]
  %v1621 = vld [vmem:[%s6 + $0x14] sm:$0xf]
  %v1622 = vld [vmem:[%s6 + $0x18] sm:$0xf]
  %v1623 = vld [vmem:[%s6 + $0x1c] sm:$0xf]
  %v1624 = vld [vmem:[%s6 + $0x20] sm:$0xf]
  %v1641 = vunpack.c.l.b16 %v1600
  %v1642 = vunpack.c.l.b16 %v1601
  %v1643 = vunpack.c.l.b16 %v1602
  %v1644 = vunpack.c.l.b16 %v1603
  %v1645 = vunpack.c.l.b16 %v1604
  %v1646 = vunpack.c.l.b16 %v1605
  %v1647 = vunpack.c.l.b16 %v1606
  %v1648 = vunpack.c.l.b16 %v1607
  %v1649 = vunpack.c.l.b16 %v1608
  %v1650 = vunpack.c.l.b16 %v1609
  %v1651 = vunpack.c.l.b16 %v1610
  %v1652 = vunpack.c.l.b16 %v1611
  %v1653 = vunpack.c.l.b16 %v1612
  %v1654 = vunpack.c.l.b16 %v1613
  %v1655 = vunpack.c.l.b16 %v1614
  %v1656 = vunpack.c.l.b16 %v1615
  %v1657 = vpack.c.b16 %v1642, %v1641
  %v1658 = vpack.c.b16 %v1644, %v1643
  %v1659 = vpack.c.b16 %v1646, %v1645
  %v1660 = vpack.c.b16 %v1648, %v1647
  %v1661 = vpack.c.b16 %v1650, %v1649
  %v1662 = vpack.c.b16 %v1652, %v1651
  %v1663 = vpack.c.b16 %v1654, %v1653
  %v1664 = vpack.c.b16 %v1656, %v1655
  %v1674 = vunpack.c.l.b16 %v1616
  %v1675 = vunpack.c.l.b16 %v1617
  %v1676 = vunpack.c.l.b16 %v1618
  %v1677 = vunpack.c.l.b16 %v1619
  %v1678 = vunpack.c.l.b16 %v1620
  %v1679 = vunpack.c.l.b16 %v1621
  %v1680 = vunpack.c.l.b16 %v1622
  %v1681 = vunpack.c.l.b16 %v1623
  %v1682 = vunpack.c.l.b16 %v1624
  %v1683 = vpack.c.b16 %v1675, %v1674
  %v1684 = vpack.c.b16 %v1677, %v1676
  %v1685 = vpack.c.b16 %v1679, %v1678
  %v1686 = vpack.c.b16 %v1681, %v1680
  %v1687 = vpack.c.b16 %v1682, %v1682
  %vm1692 = vcmask 588800
  %v1694 = vsel %vm1692, %v1657, 0
  %v1697 = vsel %vm1692, %v1658, 0
  %v1700 = vsel %vm1692, %v1659, 0
  %v1703 = vsel %vm1692, %v1660, 0
  %v1706 = vsel %vm1692, %v1661, 0
  %v1709 = vsel %vm1692, %v1662, 0
  %v1712 = vsel %vm1692, %v1663, 0
  %v1715 = vsel %vm1692, %v1664, 0
  %v1718 = vsel %vm241, %v1687, 0
  %1720 = vmatprep.subr.bf16.mxu0 0
  %1721 = vmatpush1.bf16.msra.mxu0 %v1683
  %1722 = vmatprep.subr.bf16.mxu0 0
  %1723 = vmatpush1.bf16.msra.mxu0 %v1684
  %1724 = vmatprep.subr.bf16.mxu0 0
  %1725 = vmatpush1.bf16.msra.mxu0 %v1685
  %1726 = vmatprep.subr.bf16.mxu0 0
  %1727 = vmatpush1.bf16.msra.mxu0 %v1686
  %1728 = vmatprep.subr.bf16.mxu0 0
  %1729 = vmatpush1.bf16.msra.mxu0 %v1718
  %1730 = vmatprep.subr.bf16.mxu0 0
  %1731 = vmatpush1.bf16.msra.mxu0 0
  %1732 = vmatprep.subr.bf16.mxu0 0
  %1733 = vmatpush1.bf16.msra.mxu0 0
  %1734 = vmatprep.subr.bf16.mxu0 0
  %1735 = vmatpush1.bf16.msra.mxu0 0
  %1736 = vmatprep.subr.bf16.mxu0 0
  %1737 = vmatpush1.bf16.msra.mxu0 0
  %1738 = vmatprep.subr.bf16.mxu0 0
  %1739 = vmatpush1.bf16.msra.mxu0 0
  %1740 = vmatprep.subr.bf16.mxu0 0
  %1741 = vmatpush1.bf16.msra.mxu0 0
  %1742 = vmatprep.subr.bf16.mxu0 0
  %1743 = vmatpush1.bf16.msra.mxu0 0
  %1744 = vmatprep.subr.bf16.mxu0 0
  %1745 = vmatpush1.bf16.msra.mxu0 0
  %1746 = vmatprep.subr.bf16.mxu0 0
  %1747 = vmatpush1.bf16.msra.mxu0 0
  %1748 = vmatprep.subr.bf16.mxu0 0
  %1749 = vmatpush1.bf16.msra.mxu0 0
  %1750 = vmatprep.subr.bf16.mxu0 0
  %1751 = vmatpush1.bf16.msra.mxu0 0
  %1752 = vmatprep.mubr.bf16.mxu0 0
  %1753 = vmatmul.mubr.bf16.gmra.mrb[0].mxu0 %v1694
  %v1754 = vpop.f32.mrb[0].mxu0
  %v1755 = vadd.f32 0.0, %v1754
  %v1756 = vpop.f32.mrb[0].mxu0
  %v1757 = vpop.f32.mrb[0].mxu0
  %v1758 = vadd.f32 0.0, %v1757
  %v1759 = vpop.f32.mrb[0].mxu0
  %1760 = vmatprep.mubr.bf16.mxu0 0
  %1761 = vmatmul.mubr.bf16.gmra.mrb[0].mxu0 %v1697
  %v1762 = vpop.f32.mrb[0].mxu0
  %v1763 = vadd.f32 0.0, %v1762
  %v1764 = vpop.f32.mrb[0].mxu0
  %v1765 = vpop.f32.mrb[0].mxu0
  %v1766 = vadd.f32 0.0, %v1765
  %v1767 = vpop.f32.mrb[0].mxu0
  %1768 = vmatprep.mubr.bf16.mxu0 0
  %1769 = vmatmul.mubr.bf16.gmra.mrb[0].mxu0 %v1700
  %v1770 = vpop.f32.mrb[0].mxu0
  %v1771 = vadd.f32 0.0, %v1770
  %v1772 = vpop.f32.mrb[0].mxu0
  %v1773 = vpop.f32.mrb[0].mxu0
  %v1774 = vadd.f32 0.0, %v1773
  %v1775 = vpop.f32.mrb[0].mxu0
  %1776 = vmatprep.mubr.bf16.mxu0 0
  %1777 = vmatmul.mubr.bf16.gmra.mrb[0].mxu0 %v1703
  %v1778 = vpop.f32.mrb[0].mxu0
  %v1779 = vadd.f32 0.0, %v1778
  %v1780 = vpop.f32.mrb[0].mxu0
  %v1781 = vpop.f32.mrb[0].mxu0
  %v1782 = vadd.f32 0.0, %v1781
  %v1783 = vpop.f32.mrb[0].mxu0
  %1784 = vmatprep.mubr.bf16.mxu0 0
  %1785 = vmatmul.mubr.bf16.gmra.mrb[0].mxu0 %v1706
  %v1786 = vpop.f32.mrb[0].mxu0
  %v1787 = vadd.f32 0.0, %v1786
  %v1788 = vpop.f32.mrb[0].mxu0
  %v1789 = vpop.f32.mrb[0].mxu0
  %v1790 = vadd.f32 0.0, %v1789
  %v1791 = vpop.f32.mrb[0].mxu0
  %1792 = vmatprep.mubr.bf16.mxu0 0
  %1793 = vmatmul.mubr.bf16.gmra.mrb[0].mxu0 %v1709
  %v1794 = vpop.f32.mrb[0].mxu0
  %v1795 = vadd.f32 0.0, %v1794
  %v1796 = vpop.f32.mrb[0].mxu0
  %v1797 = vpop.f32.mrb[0].mxu0
  %v1798 = vadd.f32 0.0, %v1797
  %v1799 = vpop.f32.mrb[0].mxu0
  %1800 = vmatprep.mubr.bf16.mxu0 0
  %1801 = vmatmul.mubr.bf16.gmra.mrb[0].mxu0 %v1712
  %v1802 = vpop.f32.mrb[0].mxu0
  %v1803 = vadd.f32 0.0, %v1802
  %v1804 = vpop.f32.mrb[0].mxu0
  %v1805 = vpop.f32.mrb[0].mxu0
  %v1806 = vadd.f32 0.0, %v1805
  %v1807 = vpop.f32.mrb[0].mxu0
  %1808 = vmatprep.mubr.bf16.mxu0 0
  %1809 = vmatmul.mubr.bf16.gmra.mrb[0].mxu0 %v1715
  %v1810 = vpop.f32.mrb[0].mxu0
  %v1811 = vadd.f32 0.0, %v1810
  %v1812 = vpop.f32.mrb[0].mxu0
  %v1813 = vpop.f32.mrb[0].mxu0
  %v1814 = vadd.f32 0.0, %v1813
  %v1815 = vpop.f32.mrb[0].mxu0
  %1816 = vdwg.mxu0
  %v1817 = vpack.c.bf16 %v1758, %v1755
  %v1818 = vpack.c.bf16 %v1766, %v1763
  %v1819 = vpack.c.bf16 %v1774, %v1771
  %v1820 = vpack.c.bf16 %v1782, %v1779
  %v1821 = vpack.c.bf16 %v1790, %v1787
  %v1822 = vpack.c.bf16 %v1798, %v1795
  %v1823 = vpack.c.bf16 %v1806, %v1803
  %v1824 = vpack.c.bf16 %v1814, %v1811
  %v1833 = vunpack.c.l.b16 %v1817
  %v1834 = vunpack.c.h.b16 %v1817
  %v1835 = vunpack.c.l.b16 %v1818
  %v1836 = vunpack.c.h.b16 %v1818
  %v1837 = vunpack.c.l.b16 %v1819
  %v1838 = vunpack.c.h.b16 %v1819
  %v1839 = vunpack.c.l.b16 %v1820
  %v1840 = vunpack.c.h.b16 %v1820
  %v1841 = vunpack.c.l.b16 %v1821
  %v1842 = vunpack.c.h.b16 %v1821
  %v1843 = vunpack.c.l.b16 %v1822
  %v1844 = vunpack.c.h.b16 %v1822
  %v1845 = vunpack.c.l.b16 %v1823
  %v1846 = vunpack.c.h.b16 %v1823
  %v1847 = vunpack.c.l.b16 %v1824
  %v1848 = vunpack.c.h.b16 %v1824
  %v1849 = vpack.c.b16 %v1833, %v1833
  %v1850 = vpack.c.b16 %v1834, %v1834
  %v1851 = vpack.c.b16 %v1835, %v1835
  %v1852 = vpack.c.b16 %v1836, %v1836
  %v1853 = vpack.c.b16 %v1837, %v1837
  %v1854 = vpack.c.b16 %v1838, %v1838
  %v1855 = vpack.c.b16 %v1839, %v1839
  %v1856 = vpack.c.b16 %v1840, %v1840
  %v1857 = vpack.c.b16 %v1841, %v1841
  %v1858 = vpack.c.b16 %v1842, %v1842
  %v1859 = vpack.c.b16 %v1843, %v1843
  %v1860 = vpack.c.b16 %v1844, %v1844
  %v1861 = vpack.c.b16 %v1845, %v1845
  %v1862 = vpack.c.b16 %v1846, %v1846
  %v1863 = vpack.c.b16 %v1847, %v1847
  %v1864 = vpack.c.b16 %v1848, %v1848
  %vm1881 = vcmask 257024
  %1882 = vst.msk [vmem:[%s9] sm:$0xf] %vm1881, %v1849
  %1883 = vst.msk [vmem:[%s9 + $0x4] sm:$0xf] %vm1881, %v1850
  %1884 = vst.msk [vmem:[%s9 + $0x8] sm:$0xf] %vm1881, %v1851
  %1885 = vst.msk [vmem:[%s9 + $0xc] sm:$0xf] %vm1881, %v1852
  %1886 = vst.msk [vmem:[%s9 + $0x10] sm:$0xf] %vm1881, %v1853
  %1887 = vst.msk [vmem:[%s9 + $0x14] sm:$0xf] %vm1881, %v1854
  %1888 = vst.msk [vmem:[%s9 + $0x18] sm:$0xf] %vm1881, %v1855
  %1889 = vst.msk [vmem:[%s9 + $0x1c] sm:$0xf] %vm1881, %v1856
  %1890 = vst.msk [vmem:[%s9 + $0x20] sm:$0xf] %vm1881, %v1857
  %1891 = vst.msk [vmem:[%s9 + $0x24] sm:$0xf] %vm1881, %v1858
  %1892 = vst.msk [vmem:[%s9 + $0x28] sm:$0xf] %vm1881, %v1859
  %1893 = vst.msk [vmem:[%s9 + $0x2c] sm:$0xf] %vm1881, %v1860
  %1894 = vst.msk [vmem:[%s9 + $0x30] sm:$0xf] %vm1881, %v1861
  %1895 = vst.msk [vmem:[%s9 + $0x34] sm:$0xf] %vm1881, %v1862
  %1896 = vst.msk [vmem:[%s9 + $0x38] sm:$0xf] %vm1881, %v1863
  %1897 = vst.msk [vmem:[%s9 + $0x3c] sm:$0xf] %vm1881, %v1864
  %vm1898 = vcmask 261120
  %v1899 = vsel %vm1898, %v1755, 0.0
  %v1900 = vsel %vm1898, %v1758, 0.0
  %v1901 = vadd.f32 %v1899, %v1900
  %v1902 = vsel %vm1898, %v1763, 0.0
  %v1903 = vadd.f32 %v1901, %v1902
  %v1904 = vsel %vm1898, %v1766, 0.0
  %v1905 = vadd.f32 %v1903, %v1904
  %v1906 = vsel %vm1898, %v1771, 0.0
  %v1907 = vadd.f32 %v1905, %v1906
  %v1908 = vsel %vm1898, %v1774, 0.0
  %v1909 = vadd.f32 %v1907, %v1908
  %v1910 = vsel %vm1898, %v1779, 0.0
  %v1911 = vadd.f32 %v1909, %v1910
  %v1912 = vsel %vm1898, %v1782, 0.0
  %v1913 = vadd.f32 %v1911, %v1912
  %v1914 = vsel %vm1898, %v1787, 0.0
  %v1915 = vadd.f32 %v1913, %v1914
  %v1916 = vsel %vm1898, %v1790, 0.0
  %v1917 = vadd.f32 %v1915, %v1916
  %v1918 = vsel %vm1898, %v1795, 0.0
  %v1919 = vadd.f32 %v1917, %v1918
  %v1920 = vsel %vm1898, %v1798, 0.0
  %v1921 = vadd.f32 %v1919, %v1920
  %v1922 = vsel %vm1898, %v1803, 0.0
  %v1923 = vadd.f32 %v1921, %v1922
  %v1924 = vsel %vm1898, %v1806, 0.0
  %v1925 = vadd.f32 %v1923, %v1924
  %v1926 = vsel %vm1898, %v1811, 0.0
  %v1927 = vadd.f32 %v1925, %v1926
  %v1928 = vsel %vm1898, %v1814, 0.0
  %v1929 = vadd.f32 %v1927, %v1928
  %v1930 = vrot.slane %v1929, 4
  %v1931 = vadd.f32 %v1929, %v1930
  %v1932 = vrot.slane %v1931, 2
  %v1933 = vadd.f32 %v1931, %v1932
  %v1934 = vrot.slane %v1933, 1
  %v1935 = vadd.f32 %v1933, %v1934
  %v1936 = vmul.f32 %v1755, %v1755
  %v1937 = vmul.f32 %v1758, %v1758
  %v1938 = vmul.f32 %v1763, %v1763
  %v1939 = vmul.f32 %v1766, %v1766
  %v1940 = vmul.f32 %v1771, %v1771
  %v1941 = vmul.f32 %v1774, %v1774
  %v1942 = vmul.f32 %v1779, %v1779
  %v1943 = vmul.f32 %v1782, %v1782
  %v1944 = vmul.f32 %v1787, %v1787
  %v1945 = vmul.f32 %v1790, %v1790
  %v1946 = vmul.f32 %v1795, %v1795
  %v1947 = vmul.f32 %v1798, %v1798
  %v1948 = vmul.f32 %v1803, %v1803
  %v1949 = vmul.f32 %v1806, %v1806
  %v1950 = vmul.f32 %v1811, %v1811
  %v1951 = vmul.f32 %v1814, %v1814
  %v1952 = vsel %vm1898, %v1936, 0.0
  %v1953 = vsel %vm1898, %v1937, 0.0
  %v1954 = vadd.f32 %v1952, %v1953
  %v1955 = vsel %vm1898, %v1938, 0.0
  %v1956 = vadd.f32 %v1954, %v1955
  %v1957 = vsel %vm1898, %v1939, 0.0
  %v1958 = vadd.f32 %v1956, %v1957
  %v1959 = vsel %vm1898, %v1940, 0.0
  %v1960 = vadd.f32 %v1958, %v1959
  %v1961 = vsel %vm1898, %v1941, 0.0
  %v1962 = vadd.f32 %v1960, %v1961
  %v1963 = vsel %vm1898, %v1942, 0.0
  %v1964 = vadd.f32 %v1962, %v1963
  %v1965 = vsel %vm1898, %v1943, 0.0
  %v1966 = vadd.f32 %v1964, %v1965
  %v1967 = vsel %vm1898, %v1944, 0.0
  %v1968 = vadd.f32 %v1966, %v1967
  %v1969 = vsel %vm1898, %v1945, 0.0
  %v1970 = vadd.f32 %v1968, %v1969
  %v1971 = vsel %vm1898, %v1946, 0.0
  %v1972 = vadd.f32 %v1970, %v1971
  %v1973 = vsel %vm1898, %v1947, 0.0
  %v1974 = vadd.f32 %v1972, %v1973
  %v1975 = vsel %vm1898, %v1948, 0.0
  %v1976 = vadd.f32 %v1974, %v1975
  %v1977 = vsel %vm1898, %v1949, 0.0
  %v1978 = vadd.f32 %v1976, %v1977
  %v1979 = vsel %vm1898, %v1950, 0.0
  %v1980 = vadd.f32 %v1978, %v1979
  %v1981 = vsel %vm1898, %v1951, 0.0
  %v1982 = vadd.f32 %v1980, %v1981
  %v1983 = vrot.slane %v1982, 4
  %v1984 = vadd.f32 %v1982, %v1983
  %v1985 = vrot.slane %v1984, 2
  %v1986 = vadd.f32 %v1984, %v1985
  %v1987 = vrot.slane %v1986, 1
  %v1988 = vadd.f32 %v1986, %v1987
  %v1989 = vsel %vm653, %v1935, %v1988
  %vm1990 = vcmask 254976
  %1991 = vst.msk [vmem:[%s10] sm:$0x3] %vm1990, %v1989
  // Predicated region
  $region34: #{_lambda_.8} parent=0 // pred_check
    _
  $region35: #{_lambda_.8} parent=0 // pred_check_branch
    %1993 = sbr.rel (0) target = $region37
  $region36: #{_lambda_.8} parent=0 // pred_region
    _
  $region37: #{_lambda_.8} parent=0 // pred_fallthru
    _
  // Predicated region
  $region38: #{_lambda_.8} parent=0 // pred_check
    _
  $region39: #{_lambda_.8} parent=0 // pred_check_branch
    %1995 = sbr.rel (0) target = $region41
  $region40: #{_lambda_.8} parent=0 // pred_region
    _
  $region41: #{_lambda_.8} parent=0 // pred_fallthru
    _
  // Predicated region
  $region42: #{_lambda_.8} parent=0 // pred_check
    _
  $region43: #{_lambda_.8} parent=0 // pred_check_branch
    %1997 = sbr.rel (0) target = $region45
  $region44: #{_lambda_.8} parent=0 // pred_region
    _
  $region45: #{_lambda_.8} parent=0 // pred_fallthru
    _
  // Predicated region
  $region46: #{_lambda_.8} parent=0 // pred_check
    _
  $region47: #{_lambda_.8} parent=0 // pred_check_branch
    %1999 = sbr.rel (0) target = $region49
  $region48: #{_lambda_.8} parent=0 // pred_region
    _
  $region49: #{_lambda_.8} parent=0 // pred_fallthru
    _
  // Predicated region
  $region50: #{_lambda_.8} parent=0 // pred_check
    _
  $region51: #{_lambda_.8} parent=0 // pred_check_branch
    %2001 = sbr.rel (0) target = $region53
  $region52: #{_lambda_.8} parent=0 // pred_region
    _
  $region53: #{_lambda_.8} parent=0 // pred_fallthru
    _
  // Predicated region
  $region54: #{_lambda_.8} parent=0 // pred_check
    _
  $region55: #{_lambda_.8} parent=0 // pred_check_branch
    %2003 = sbr.rel (0) target = $region57
  $region56: #{_lambda_.8} parent=0 // pred_region
    _
  $region57: #{_lambda_.8} parent=0 // pred_fallthru
    _
  // Predicated region
  $region58: #{_lambda_.8} parent=0 // pred_check
    _
  $region59: #{_lambda_.8} parent=0 // pred_check_branch
    %2005 = sbr.rel (0) target = $region61
  $region60: #{_lambda_.8} parent=0 // pred_region
    _
  $region61: #{_lambda_.8} parent=0 // pred_fallthru
    _
  // Predicated region
  $region62: #{_lambda_.8} parent=0 // pred_check
    _
  $region63: #{_lambda_.8} parent=0 // pred_check_branch
    %2007 = sbr.rel (0) target = $region65
  $region64: #{_lambda_.8} parent=0 // pred_region
    _
  $region65: #{_lambda_.8} parent=0 // pred_fallthru
    _
  // Predicated region
  $region66: #{_lambda_.8} parent=0 // pred_check
    _
  $region67: #{_lambda_.8} parent=0 // pred_check_branch
    %2009 = sbr.rel (0) target = $region69
  $region68: #{_lambda_.8} parent=0 // pred_region
    _
  $region69: #{_lambda_.8} parent=0 // pred_fallthru
    _
  // Predicated region
  $region70: #{_lambda_.8} parent=0 // pred_check
    _
  $region71: #{_lambda_.8} parent=0 // pred_check_branch
    %2011 = sbr.rel (0) target = $region73
  $region72: #{_lambda_.8} parent=0 // pred_region
    _
  $region73: #{_lambda_.8} parent=0 // pred_fallthru
    _

// kernel: _lambda_.10
$region0: #{_lambda_.10}
  #allocation0 [shape = 'u32[]', space=smem, size = 0x4, offset = 0x4, fixed_abs, tag = 'smem constant byte address 0x4 - core index']
  #allocation1 [shape = 'u32[144,128]{1,0:T(1,128)}', space=vmem, size = 0x12000, scoped, tag = 'internal scratch']
  #allocation2 [shape = 'bf16[2,8,8,288]{3,2,1,0:T(8,128)(2,1)}', space=vmem, size = 0x18000, scoped, tag = 'scratch operand']
  %s0 = inlined_call_operand.vmem [shape: bf16[128,32], index: 0, kind: input, shape index: {}]
  %s1 = inlined_call_operand.vmem [shape: f32[128,8], index: 1, kind: input, shape index: {}]
  %s2 = inlined_call_operand.vmem [shape: f32[2,2,32], index: 2, kind: input, shape index: {}]
  %s3 = inlined_call_operand.vmem [shape: bf16[288,16], index: 3, kind: input, shape index: {}]
  %s4 = inlined_call_operand.vmem [shape: f32[1,16], index: 4, kind: input, shape index: {}]
  %s5 = inlined_call_operand.vmem [shape: f32[128,8], index: 5, kind: output, shape index: {0}]
  %s6 = inlined_call_operand.vmem [shape: f32[1,2,8], index: 6, kind: output, shape index: {1}]
  %7 = xla_tuple %s5, %s6
  %s8 = sld [smem:[#allocation0]]
  $region42: #{_lambda_.10} parent=0
    _
  %s10 = ssub.s32 1, %s8
  %s11 = scalar_select 0, %s10, %s8
  // Predicated region
  $region2: #{_lambda_.10} parent=0 // pred_check
    _
  $region3: #{_lambda_.10} parent=0 // pred_check_branch
    %13 = sbr.rel (0) target = $region5
  $region4: #{_lambda_.10} parent=0 // pred_region
    _
  $region5: #{_lambda_.10} parent=0 // pred_fallthru
    _
  // Predicated region
  $region6: #{_lambda_.10} parent=0 // pred_check
    _
  $region7: #{_lambda_.10} parent=0 // pred_check_branch
    %15 = sbr.rel (0) target = $region9
  $region8: #{_lambda_.10} parent=0 // pred_region
    _
  $region9: #{_lambda_.10} parent=0 // pred_fallthru
    _
  // Predicated region
  $region10: #{_lambda_.10} parent=0 // pred_check
    _
  $region11: #{_lambda_.10} parent=0 // pred_check_branch
    %17 = sbr.rel (0) target = $region13
  $region12: #{_lambda_.10} parent=0 // pred_region
    _
  $region13: #{_lambda_.10} parent=0 // pred_fallthru
    _
  // Predicated region
  $region14: #{_lambda_.10} parent=0 // pred_check
    _
  $region15: #{_lambda_.10} parent=0 // pred_check_branch
    %19 = sbr.rel (0) target = $region17
  $region16: #{_lambda_.10} parent=0 // pred_region
    _
  $region17: #{_lambda_.10} parent=0 // pred_fallthru
    _
  // Predicated region
  $region18: #{_lambda_.10} parent=0 // pred_check
    _
  $region19: #{_lambda_.10} parent=0 // pred_check_branch
    %21 = sbr.rel (0) target = $region21
  $region20: #{_lambda_.10} parent=0 // pred_region
    _
  $region21: #{_lambda_.10} parent=0 // pred_fallthru
    _
  %v23 = vld [vmem:[%s2] sm:$0x3]
  %v24 = vld [vmem:[%s2 + $0x2] sm:$0x3]
  %vm25 = vcmask 253952
  %v26 = vsel %vm25, %v23, 0.0
  %v27 = vsel %vm25, %v24, 0.0
  %v28 = vadd.f32 %v26, %v27
  %vm29 = vcmask 254977
  %v30 = vsel %vm29, %v23, 0.0
  %v31 = vsel %vm29, %v24, 0.0
  %v32 = vadd.f32 %v30, %v31
  %v33 = vmul.f32 %v28, 0.005
  %v34 = vmul.f32 %v32, 0.005
  %v35 = vmul.f32 %v33, %v33
  %v37 = vrot.slane %v35, 7
  %v39 = vsub.f32 %v34, %v37
  %v40 = vmax.f32 %v39, 0.0
  %v41 = vrsqrt.pop %v40
  %v42 = vmul.f32 %v40, %v41
  %vm43 = vcmp.eq.f32.partialorder %v40, inf
  %v44 = vsel %vm43, %v40, %v42
  %vm45 = vcmp.eq.f32.partialorder %v40, 0.0
  %v46 = vand.u32 %v40, 2147483648
  %v47 = vsel %vm45, %v46, %v44
  %v48 = vadd.f32 %v47, 1e-06
  %v49 = vrcp.pop %v48
  %v50 = vmul.f32 1.0, %v49
  %v51 = vsub.f32 0.0, %v33
  %v53 = vrot.slane %v50, 1
  %v55 = vmul.f32 %v51, %v53
  %v56 = vmax.f32 %v55, 0.0
  %v57 = vpack.c.bf16 %v56, %v56
  %v58 = vld [vmem:[%s0] sm:$0xf]
  %v59 = vld [vmem:[%s0 + $0x4] sm:$0xf]
  %v60 = vld [vmem:[%s0 + $0x8] sm:$0xf]
  %v61 = vld [vmem:[%s0 + $0xc] sm:$0xf]
  %v62 = vld [vmem:[%s0 + $0x10] sm:$0xf]
  %v63 = vld [vmem:[%s0 + $0x14] sm:$0xf]
  %v64 = vld [vmem:[%s0 + $0x18] sm:$0xf]
  %v65 = vld [vmem:[%s0 + $0x1c] sm:$0xf]
  %v66 = vld [vmem:[%s0 + $0x20] sm:$0xf]
  %v67 = vld [vmem:[%s0 + $0x24] sm:$0xf]
  %v68 = vld [vmem:[%s0 + $0x28] sm:$0xf]
  %v69 = vld [vmem:[%s0 + $0x2c] sm:$0xf]
  %v70 = vld [vmem:[%s0 + $0x30] sm:$0xf]
  %v71 = vld [vmem:[%s0 + $0x34] sm:$0xf]
  %v72 = vld [vmem:[%s0 + $0x38] sm:$0xf]
  %v73 = vld [vmem:[%s0 + $0x3c] sm:$0xf]
  %v74 = vunpack.c.l.bf16 %v58
  %v75 = vunpack.c.l.bf16 %v59
  %v76 = vunpack.c.l.bf16 %v60
  %v77 = vunpack.c.l.bf16 %v61
  %v78 = vunpack.c.l.bf16 %v62
  %v79 = vunpack.c.l.bf16 %v63
  %v80 = vunpack.c.l.bf16 %v64
  %v81 = vunpack.c.l.bf16 %v65
  %v82 = vunpack.c.l.bf16 %v66
  %v83 = vunpack.c.l.bf16 %v67
  %v84 = vunpack.c.l.bf16 %v68
  %v85 = vunpack.c.l.bf16 %v69
  %v86 = vunpack.c.l.bf16 %v70
  %v87 = vunpack.c.l.bf16 %v71
  %v88 = vunpack.c.l.bf16 %v72
  %v89 = vunpack.c.l.bf16 %v73
  %v90 = vlaneseq
  %v91 = vshrl.u32 %v90, 7
  %v92 = vsub.s32 0, %v91
  %v93 = vrot.slane %v33, %v92
  %v94 = vsub.f32 %v74, %v93
  %v95 = vsub.f32 %v75, %v93
  %v96 = vsub.f32 %v76, %v93
  %v97 = vsub.f32 %v77, %v93
  %v98 = vsub.f32 %v78, %v93
  %v99 = vsub.f32 %v79, %v93
  %v100 = vsub.f32 %v80, %v93
  %v101 = vsub.f32 %v81, %v93
  %v102 = vsub.f32 %v82, %v93
  %v103 = vsub.f32 %v83, %v93
  %v104 = vsub.f32 %v84, %v93
  %v105 = vsub.f32 %v85, %v93
  %v106 = vsub.f32 %v86, %v93
  %v107 = vsub.f32 %v87, %v93
  %v108 = vsub.f32 %v88, %v93
  %v109 = vsub.f32 %v89, %v93
  %v110 = vlaneseq
  %v111 = vshrl.u32 %v110, 7
  %v112 = vsub.s32 1, %v111
  %v113 = vrot.slane %v50, %v112
  %v114 = vmul.f32 %v94, %v113
  %v115 = vmul.f32 %v95, %v113
  %v116 = vmul.f32 %v96, %v113
  %v117 = vmul.f32 %v97, %v113
  %v118 = vmul.f32 %v98, %v113
  %v119 = vmul.f32 %v99, %v113
  %v120 = vmul.f32 %v100, %v113
  %v121 = vmul.f32 %v101, %v113
  %v122 = vmul.f32 %v102, %v113
  %v123 = vmul.f32 %v103, %v113
  %v124 = vmul.f32 %v104, %v113
  %v125 = vmul.f32 %v105, %v113
  %v126 = vmul.f32 %v106, %v113
  %v127 = vmul.f32 %v107, %v113
  %v128 = vmul.f32 %v108, %v113
  %v129 = vmul.f32 %v109, %v113
  %v130 = vmax.f32 %v114, 0.0
  %v131 = vmax.f32 %v115, 0.0
  %v132 = vmax.f32 %v116, 0.0
  %v133 = vmax.f32 %v117, 0.0
  %v134 = vmax.f32 %v118, 0.0
  %v135 = vmax.f32 %v119, 0.0
  %v136 = vmax.f32 %v120, 0.0
  %v137 = vmax.f32 %v121, 0.0
  %v138 = vmax.f32 %v122, 0.0
  %v139 = vmax.f32 %v123, 0.0
  %v140 = vmax.f32 %v124, 0.0
  %v141 = vmax.f32 %v125, 0.0
  %v142 = vmax.f32 %v126, 0.0
  %v143 = vmax.f32 %v127, 0.0
  %v144 = vmax.f32 %v128, 0.0
  %v145 = vmax.f32 %v129, 0.0
  %p146 = scmp.eq.s32.totalorder 0, 0
  // Predicated region
  $region22: #{_lambda_.10} parent=0 // pred_check
    %p147 = pneg %p146
  $region23: #{_lambda_.10} parent=0 // pred_check_branch
    %149 = sbr.rel (%p147) target = $region25
  $region24: #{_lambda_.10} parent=0 // pred_region
    %v151 = vpack.i.b16 %v57, %v57
    %v153 = vlaneseq
    %v154 = vshrl.u32 %v153, 7
    %v155 = vsub.s32 0, %v154
    %v156 = vrot.slane %v151, %v155
    %vm157 = vcmask 257024
    %158 = vst.msk [vmem:[#allocation2] sm:$0xf] %vm157, %v156
    %159 = vst.msk [vmem:[#allocation2 + $0xc] sm:$0xf] %vm157, %v156
    %160 = vst.msk [vmem:[#allocation2 + $0x18] sm:$0xf] %vm157, %v156
    %161 = vst.msk [vmem:[#allocation2 + $0x24] sm:$0xf] %vm157, %v156
    %162 = vst.msk [vmem:[#allocation2 + $0x30] sm:$0xf] %vm157, %v156
    %163 = vst.msk [vmem:[#allocation2 + $0x3c] sm:$0xf] %vm157, %v156
    %164 = vst.msk [vmem:[#allocation2 + $0x48] sm:$0xf] %vm157, %v156
    %165 = vst.msk [vmem:[#allocation2 + $0x54] sm:$0xf] %vm157, %v156
    %166 = vst.msk [vmem:[#allocation2 + $0x60] sm:$0xf] %vm157, %v156
    %167 = vst.msk [vmem:[#allocation2 + $0x6c] sm:$0xf] %vm157, %v156
    %168 = vst.msk [vmem:[#allocation2 + $0x78] sm:$0xf] %vm157, %v156
    %169 = vst.msk [vmem:[#allocation2 + $0x84] sm:$0xf] %vm157, %v156
    %170 = vst.msk [vmem:[#allocation2 + $0x90] sm:$0xf] %vm157, %v156
    %171 = vst.msk [vmem:[#allocation2 + $0x9c] sm:$0xf] %vm157, %v156
    %172 = vst.msk [vmem:[#allocation2 + $0xa8] sm:$0xf] %vm157, %v156
    %173 = vst.msk [vmem:[#allocation2 + $0xb4] sm:$0xf] %vm157, %v156
    %v175 = vunpack.c.l.b16 %v156
    %v176 = vpack.c.b16 %v175, %v175
    %177 = vrot.lane.b32.xlu0 %v176, 32
    %v178 = vpop.permute.xlu0 %177
    %vm180 = vcmask 519424
    %181 = vst.msk [vmem:[#allocation2] sm:$0xf] %vm180, %v178
    %182 = vst.msk [vmem:[#allocation2 + $0xc] sm:$0xf] %vm180, %v178
    %183 = vst.msk [vmem:[#allocation2 + $0x18] sm:$0xf] %vm180, %v178
    %184 = vst.msk [vmem:[#allocation2 + $0x24] sm:$0xf] %vm180, %v178
    %185 = vst.msk [vmem:[#allocation2 + $0x30] sm:$0xf] %vm180, %v178
    %186 = vst.msk [vmem:[#allocation2 + $0x3c] sm:$0xf] %vm180, %v178
    %187 = vst.msk [vmem:[#allocation2 + $0x48] sm:$0xf] %vm180, %v178
    %188 = vst.msk [vmem:[#allocation2 + $0x54] sm:$0xf] %vm180, %v178
    %189 = vst.msk [vmem:[#allocation2 + $0x60] sm:$0xf] %vm180, %v178
    %190 = vst.msk [vmem:[#allocation2 + $0x6c] sm:$0xf] %vm180, %v178
    %191 = vst.msk [vmem:[#allocation2 + $0x78] sm:$0xf] %vm180, %v178
    %192 = vst.msk [vmem:[#allocation2 + $0x84] sm:$0xf] %vm180, %v178
    %193 = vst.msk [vmem:[#allocation2 + $0x90] sm:$0xf] %vm180, %v178
    %194 = vst.msk [vmem:[#allocation2 + $0x9c] sm:$0xf] %vm180, %v178
    %195 = vst.msk [vmem:[#allocation2 + $0xa8] sm:$0xf] %vm180, %v178
    %196 = vst.msk [vmem:[#allocation2 + $0xb4] sm:$0xf] %vm180, %v178
    %197 = vrot.lane.b32.xlu0 %v176, 64
    %v198 = vpop.permute.xlu0 %197
    %vm200 = vcmask 781824
    %201 = vst.msk [vmem:[#allocation2] sm:$0xf] %vm200, %v198
    %202 = vst.msk [vmem:[#allocation2 + $0xc] sm:$0xf] %vm200, %v198
    %203 = vst.msk [vmem:[#allocation2 + $0x18] sm:$0xf] %vm200, %v198
    %204 = vst.msk [vmem:[#allocation2 + $0x24] sm:$0xf] %vm200, %v198
    %205 = vst.msk [vmem:[#allocation2 + $0x30] sm:$0xf] %vm200, %v198
    %206 = vst.msk [vmem:[#allocation2 + $0x3c] sm:$0xf] %vm200, %v198
    %207 = vst.msk [vmem:[#allocation2 + $0x48] sm:$0xf] %vm200, %v198
    %208 = vst.msk [vmem:[#allocation2 + $0x54] sm:$0xf] %vm200, %v198
    %209 = vst.msk [vmem:[#allocation2 + $0x60] sm:$0xf] %vm200, %v198
    %210 = vst.msk [vmem:[#allocation2 + $0x6c] sm:$0xf] %vm200, %v198
    %211 = vst.msk [vmem:[#allocation2 + $0x78] sm:$0xf] %vm200, %v198
    %212 = vst.msk [vmem:[#allocation2 + $0x84] sm:$0xf] %vm200, %v198
    %213 = vst.msk [vmem:[#allocation2 + $0x90] sm:$0xf] %vm200, %v198
    %214 = vst.msk [vmem:[#allocation2 + $0x9c] sm:$0xf] %vm200, %v198
    %215 = vst.msk [vmem:[#allocation2 + $0xa8] sm:$0xf] %vm200, %v198
    %216 = vst.msk [vmem:[#allocation2 + $0xb4] sm:$0xf] %vm200, %v198
    %217 = vrot.lane.b32.xlu0 %v176, 96
    %v218 = vpop.permute.xlu0 %217
    %vm220 = vcmask 1044224
    %221 = vst.msk [vmem:[#allocation2] sm:$0xf] %vm220, %v218
    %222 = vst.msk [vmem:[#allocation2 + $0xc] sm:$0xf] %vm220, %v218
    %223 = vst.msk [vmem:[#allocation2 + $0x18] sm:$0xf] %vm220, %v218
    %224 = vst.msk [vmem:[#allocation2 + $0x24] sm:$0xf] %vm220, %v218
    %225 = vst.msk [vmem:[#allocation2 + $0x30] sm:$0xf] %vm220, %v218
    %226 = vst.msk [vmem:[#allocation2 + $0x3c] sm:$0xf] %vm220, %v218
    %227 = vst.msk [vmem:[#allocation2 + $0x48] sm:$0xf] %vm220, %v218
    %228 = vst.msk [vmem:[#allocation2 + $0x54] sm:$0xf] %vm220, %v218
    %229 = vst.msk [vmem:[#allocation2 + $0x60] sm:$0xf] %vm220, %v218
    %230 = vst.msk [vmem:[#allocation2 + $0x6c] sm:$0xf] %vm220, %v218
    %231 = vst.msk [vmem:[#allocation2 + $0x78] sm:$0xf] %vm220, %v218
    %232 = vst.msk [vmem:[#allocation2 + $0x84] sm:$0xf] %vm220, %v218
    %233 = vst.msk [vmem:[#allocation2 + $0x90] sm:$0xf] %vm220, %v218
    %234 = vst.msk [vmem:[#allocation2 + $0x9c] sm:$0xf] %vm220, %v218
    %235 = vst.msk [vmem:[#allocation2 + $0xa8] sm:$0xf] %vm220, %v218
    %236 = vst.msk [vmem:[#allocation2 + $0xb4] sm:$0xf] %vm220, %v218
    %237 = vst.msk [vmem:[#allocation2 + $0x4] sm:$0xf] %vm157, %v156
    %238 = vst.msk [vmem:[#allocation2 + $0x10] sm:$0xf] %vm157, %v156
    %239 = vst.msk [vmem:[#allocation2 + $0x1c] sm:$0xf] %vm157, %v156
    %240 = vst.msk [vmem:[#allocation2 + $0x28] sm:$0xf] %vm157, %v156
    %241 = vst.msk [vmem:[#allocation2 + $0x34] sm:$0xf] %vm157, %v156
    %242 = vst.msk [vmem:[#allocation2 + $0x40] sm:$0xf] %vm157, %v156
    %243 = vst.msk [vmem:[#allocation2 + $0x4c] sm:$0xf] %vm157, %v156
    %244 = vst.msk [vmem:[#allocation2 + $0x58] sm:$0xf] %vm157, %v156
    %245 = vst.msk [vmem:[#allocation2 + $0x64] sm:$0xf] %vm157, %v156
    %246 = vst.msk [vmem:[#allocation2 + $0x70] sm:$0xf] %vm157, %v156
    %247 = vst.msk [vmem:[#allocation2 + $0x7c] sm:$0xf] %vm157, %v156
    %248 = vst.msk [vmem:[#allocation2 + $0x88] sm:$0xf] %vm157, %v156
    %249 = vst.msk [vmem:[#allocation2 + $0x94] sm:$0xf] %vm157, %v156
    %250 = vst.msk [vmem:[#allocation2 + $0xa0] sm:$0xf] %vm157, %v156
    %251 = vst.msk [vmem:[#allocation2 + $0xac] sm:$0xf] %vm157, %v156
    %252 = vst.msk [vmem:[#allocation2 + $0xb8] sm:$0xf] %vm157, %v156
    %253 = vst.msk [vmem:[#allocation2 + $0x4] sm:$0xf] %vm180, %v178
    %254 = vst.msk [vmem:[#allocation2 + $0x10] sm:$0xf] %vm180, %v178
    %255 = vst.msk [vmem:[#allocation2 + $0x1c] sm:$0xf] %vm180, %v178
    %256 = vst.msk [vmem:[#allocation2 + $0x28] sm:$0xf] %vm180, %v178
    %257 = vst.msk [vmem:[#allocation2 + $0x34] sm:$0xf] %vm180, %v178
    %258 = vst.msk [vmem:[#allocation2 + $0x40] sm:$0xf] %vm180, %v178
    %259 = vst.msk [vmem:[#allocation2 + $0x4c] sm:$0xf] %vm180, %v178
    %260 = vst.msk [vmem:[#allocation2 + $0x58] sm:$0xf] %vm180, %v178
    %261 = vst.msk [vmem:[#allocation2 + $0x64] sm:$0xf] %vm180, %v178
    %262 = vst.msk [vmem:[#allocation2 + $0x70] sm:$0xf] %vm180, %v178
    %263 = vst.msk [vmem:[#allocation2 + $0x7c] sm:$0xf] %vm180, %v178
    %264 = vst.msk [vmem:[#allocation2 + $0x88] sm:$0xf] %vm180, %v178
    %265 = vst.msk [vmem:[#allocation2 + $0x94] sm:$0xf] %vm180, %v178
    %266 = vst.msk [vmem:[#allocation2 + $0xa0] sm:$0xf] %vm180, %v178
    %267 = vst.msk [vmem:[#allocation2 + $0xac] sm:$0xf] %vm180, %v178
    %268 = vst.msk [vmem:[#allocation2 + $0xb8] sm:$0xf] %vm180, %v178
    %269 = vst.msk [vmem:[#allocation2 + $0x4] sm:$0xf] %vm200, %v198
    %270 = vst.msk [vmem:[#allocation2 + $0x10] sm:$0xf] %vm200, %v198
    %271 = vst.msk [vmem:[#allocation2 + $0x1c] sm:$0xf] %vm200, %v198
    %272 = vst.msk [vmem:[#allocation2 + $0x28] sm:$0xf] %vm200, %v198
    %273 = vst.msk [vmem:[#allocation2 + $0x34] sm:$0xf] %vm200, %v198
    %274 = vst.msk [vmem:[#allocation2 + $0x40] sm:$0xf] %vm200, %v198
    %275 = vst.msk [vmem:[#allocation2 + $0x4c] sm:$0xf] %vm200, %v198
    %276 = vst.msk [vmem:[#allocation2 + $0x58] sm:$0xf] %vm200, %v198
    %277 = vst.msk [vmem:[#allocation2 + $0x64] sm:$0xf] %vm200, %v198
    %278 = vst.msk [vmem:[#allocation2 + $0x70] sm:$0xf] %vm200, %v198
    %279 = vst.msk [vmem:[#allocation2 + $0x7c] sm:$0xf] %vm200, %v198
    %280 = vst.msk [vmem:[#allocation2 + $0x88] sm:$0xf] %vm200, %v198
    %281 = vst.msk [vmem:[#allocation2 + $0x94] sm:$0xf] %vm200, %v198
    %282 = vst.msk [vmem:[#allocation2 + $0xa0] sm:$0xf] %vm200, %v198
    %283 = vst.msk [vmem:[#allocation2 + $0xac] sm:$0xf] %vm200, %v198
    %284 = vst.msk [vmem:[#allocation2 + $0xb8] sm:$0xf] %vm200, %v198
    %285 = vst.msk [vmem:[#allocation2 + $0x4] sm:$0xf] %vm220, %v218
    %286 = vst.msk [vmem:[#allocation2 + $0x10] sm:$0xf] %vm220, %v218
    %287 = vst.msk [vmem:[#allocation2 + $0x1c] sm:$0xf] %vm220, %v218
    %288 = vst.msk [vmem:[#allocation2 + $0x28] sm:$0xf] %vm220, %v218
    %289 = vst.msk [vmem:[#allocation2 + $0x34] sm:$0xf] %vm220, %v218
    %290 = vst.msk [vmem:[#allocation2 + $0x40] sm:$0xf] %vm220, %v218
    %291 = vst.msk [vmem:[#allocation2 + $0x4c] sm:$0xf] %vm220, %v218
    %292 = vst.msk [vmem:[#allocation2 + $0x58] sm:$0xf] %vm220, %v218
    %293 = vst.msk [vmem:[#allocation2 + $0x64] sm:$0xf] %vm220, %v218
    %294 = vst.msk [vmem:[#allocation2 + $0x70] sm:$0xf] %vm220, %v218
    %295 = vst.msk [vmem:[#allocation2 + $0x7c] sm:$0xf] %vm220, %v218
    %296 = vst.msk [vmem:[#allocation2 + $0x88] sm:$0xf] %vm220, %v218
    %297 = vst.msk [vmem:[#allocation2 + $0x94] sm:$0xf] %vm220, %v218
    %298 = vst.msk [vmem:[#allocation2 + $0xa0] sm:$0xf] %vm220, %v218
    %299 = vst.msk [vmem:[#allocation2 + $0xac] sm:$0xf] %vm220, %v218
    %300 = vst.msk [vmem:[#allocation2 + $0xb8] sm:$0xf] %vm220, %v218
    %301 = vst.msk [vmem:[#allocation2 + $0x8] sm:$0xf] %vm157, %v156
    %302 = vst.msk [vmem:[#allocation2 + $0x14] sm:$0xf] %vm157, %v156
    %303 = vst.msk [vmem:[#allocation2 + $0x20] sm:$0xf] %vm157, %v156
    %304 = vst.msk [vmem:[#allocation2 + $0x2c] sm:$0xf] %vm157, %v156
    %305 = vst.msk [vmem:[#allocation2 + $0x38] sm:$0xf] %vm157, %v156
    %306 = vst.msk [vmem:[#allocation2 + $0x44] sm:$0xf] %vm157, %v156
    %307 = vst.msk [vmem:[#allocation2 + $0x50] sm:$0xf] %vm157, %v156
    %308 = vst.msk [vmem:[#allocation2 + $0x5c] sm:$0xf] %vm157, %v156
    %309 = vst.msk [vmem:[#allocation2 + $0x68] sm:$0xf] %vm157, %v156
    %310 = vst.msk [vmem:[#allocation2 + $0x74] sm:$0xf] %vm157, %v156
    %311 = vst.msk [vmem:[#allocation2 + $0x80] sm:$0xf] %vm157, %v156
    %312 = vst.msk [vmem:[#allocation2 + $0x8c] sm:$0xf] %vm157, %v156
    %313 = vst.msk [vmem:[#allocation2 + $0x98] sm:$0xf] %vm157, %v156
    %314 = vst.msk [vmem:[#allocation2 + $0xa4] sm:$0xf] %vm157, %v156
    %315 = vst.msk [vmem:[#allocation2 + $0xb0] sm:$0xf] %vm157, %v156
    %316 = vst.msk [vmem:[#allocation2 + $0xbc] sm:$0xf] %vm157, %v156
  $region25: #{_lambda_.10} parent=0 // pred_fallthru
    _
  %v317 = vpack.c.bf16 %v131, %v130
  %v318 = vpack.c.bf16 %v133, %v132
  %v319 = vpack.c.bf16 %v135, %v134
  %v320 = vpack.c.bf16 %v137, %v136
  %v321 = vpack.c.bf16 %v139, %v138
  %v322 = vpack.c.bf16 %v141, %v140
  %v323 = vpack.c.bf16 %v143, %v142
  %v324 = vpack.c.bf16 %v145, %v144
  %v333 = vunpack.c.l.b16 %v317
  %v334 = vunpack.c.h.b16 %v317
  %v335 = vunpack.c.l.b16 %v318
  %v336 = vunpack.c.h.b16 %v318
  %v337 = vunpack.c.l.b16 %v319
  %v338 = vunpack.c.h.b16 %v319
  %v339 = vunpack.c.l.b16 %v320
  %v340 = vunpack.c.h.b16 %v320
  %v341 = vunpack.c.l.b16 %v321
  %v342 = vunpack.c.h.b16 %v321
  %v343 = vunpack.c.l.b16 %v322
  %v344 = vunpack.c.h.b16 %v322
  %v345 = vunpack.c.l.b16 %v323
  %v346 = vunpack.c.h.b16 %v323
  %v347 = vunpack.c.l.b16 %v324
  %v348 = vunpack.c.h.b16 %v324
  %v349 = vpack.c.b16 %v333, %v333
  %v350 = vpack.c.b16 %v334, %v334
  %v351 = vpack.c.b16 %v335, %v335
  %v352 = vpack.c.b16 %v336, %v336
  %v353 = vpack.c.b16 %v337, %v337
  %v354 = vpack.c.b16 %v338, %v338
  %v355 = vpack.c.b16 %v339, %v339
  %v356 = vpack.c.b16 %v340, %v340
  %v357 = vpack.c.b16 %v341, %v341
  %v358 = vpack.c.b16 %v342, %v342
  %v359 = vpack.c.b16 %v343, %v343
  %v360 = vpack.c.b16 %v344, %v344
  %v361 = vpack.c.b16 %v345, %v345
  %v362 = vpack.c.b16 %v346, %v346
  %v363 = vpack.c.b16 %v347, %v347
  %v364 = vpack.c.b16 %v348, %v348
  %v382 = vshrl.u32 %v349, 16
  %v384 = vrot.slane %v382, 7
  %v385 = vshll.u32 %v349, 16
  %v387 = vor.u32 %v384, %v385
  %v389 = vshrl.u32 %v350, 16
  %v391 = vrot.slane %v389, 7
  %v392 = vshll.u32 %v350, 16
  %v394 = vor.u32 %v391, %v392
  %v396 = vshrl.u32 %v351, 16
  %v398 = vrot.slane %v396, 7
  %v399 = vshll.u32 %v351, 16
  %v401 = vor.u32 %v398, %v399
  %v403 = vshrl.u32 %v352, 16
  %v405 = vrot.slane %v403, 7
  %v406 = vshll.u32 %v352, 16
  %v408 = vor.u32 %v405, %v406
  %v410 = vshrl.u32 %v353, 16
  %v412 = vrot.slane %v410, 7
  %v413 = vshll.u32 %v353, 16
  %v415 = vor.u32 %v412, %v413
  %v417 = vshrl.u32 %v354, 16
  %v419 = vrot.slane %v417, 7
  %v420 = vshll.u32 %v354, 16
  %v422 = vor.u32 %v419, %v420
  %v424 = vshrl.u32 %v355, 16
  %v426 = vrot.slane %v424, 7
  %v427 = vshll.u32 %v355, 16
  %v429 = vor.u32 %v426, %v427
  %v431 = vshrl.u32 %v357, 16
  %v433 = vrot.slane %v431, 7
  %v434 = vshll.u32 %v357, 16
  %v436 = vor.u32 %v433, %v434
  %v438 = vshrl.u32 %v358, 16
  %v440 = vrot.slane %v438, 7
  %v441 = vshll.u32 %v358, 16
  %v443 = vor.u32 %v440, %v441
  %v445 = vshrl.u32 %v359, 16
  %v447 = vrot.slane %v445, 7
  %v448 = vshll.u32 %v359, 16
  %v450 = vor.u32 %v447, %v448
  %v452 = vshrl.u32 %v360, 16
  %v454 = vrot.slane %v452, 7
  %v455 = vshll.u32 %v360, 16
  %v457 = vor.u32 %v454, %v455
  %v459 = vshrl.u32 %v361, 16
  %v461 = vrot.slane %v459, 7
  %v462 = vshll.u32 %v361, 16
  %v464 = vor.u32 %v461, %v462
  %v466 = vshrl.u32 %v362, 16
  %v468 = vrot.slane %v466, 7
  %v469 = vshll.u32 %v362, 16
  %v471 = vor.u32 %v468, %v469
  %v473 = vshrl.u32 %v363, 16
  %v475 = vrot.slane %v473, 7
  %v476 = vshll.u32 %v363, 16
  %v478 = vor.u32 %v475, %v476
  %s493 = scalar_lea.vmem [#allocation2], 12
  %vm494 = vcmask 257024
  %vm495 = vsmask.f32 7938
  %vm496 = vmand %vm494, %vm495
  %v497 = vld [vmem:[%s493] sm:$0xf]
  %v498 = vsel %vm496, %v387, %v497
  %499 = vst [vmem:[%s493] sm:$0xf] %v498
  %v500 = vld [vmem:[%s493 + $0xc] sm:$0xf]
  %v501 = vsel %vm496, %v394, %v500
  %502 = vst [vmem:[%s493 + $0xc] sm:$0xf] %v501
  %v503 = vld [vmem:[%s493 + $0x18] sm:$0xf]
  %v504 = vsel %vm496, %v401, %v503
  %505 = vst [vmem:[%s493 + $0x18] sm:$0xf] %v504
  %v506 = vld [vmem:[%s493 + $0x24] sm:$0xf]
  %v507 = vsel %vm496, %v408, %v506
  %508 = vst [vmem:[%s493 + $0x24] sm:$0xf] %v507
  %v509 = vld [vmem:[%s493 + $0x30] sm:$0xf]
  %v510 = vsel %vm496, %v415, %v509
  %511 = vst [vmem:[%s493 + $0x30] sm:$0xf] %v510
  %v512 = vld [vmem:[%s493 + $0x3c] sm:$0xf]
  %v513 = vsel %vm496, %v422, %v512
  %514 = vst [vmem:[%s493 + $0x3c] sm:$0xf] %v513
  %v515 = vld [vmem:[%s493 + $0x48] sm:$0xf]
  %v516 = vsel %vm496, %v429, %v515
  %517 = vst [vmem:[%s493 + $0x48] sm:$0xf] %v516
  %v518 = vld [vmem:[%s493 + $0x60] sm:$0xf]
  %v519 = vsel %vm496, %v436, %v518
  %520 = vst [vmem:[%s493 + $0x60] sm:$0xf] %v519
  %v521 = vld [vmem:[%s493 + $0x6c] sm:$0xf]
  %v522 = vsel %vm496, %v443, %v521
  %523 = vst [vmem:[%s493 + $0x6c] sm:$0xf] %v522
  %v524 = vld [vmem:[%s493 + $0x78] sm:$0xf]
  %v525 = vsel %vm496, %v450, %v524
  %526 = vst [vmem:[%s493 + $0x78] sm:$0xf] %v525
  %v527 = vld [vmem:[%s493 + $0x84] sm:$0xf]
  %v528 = vsel %vm496, %v457, %v527
  %529 = vst [vmem:[%s493 + $0x84] sm:$0xf] %v528
  %v530 = vld [vmem:[%s493 + $0x90] sm:$0xf]
  %v531 = vsel %vm496, %v464, %v530
  %532 = vst [vmem:[%s493 + $0x90] sm:$0xf] %v531
  %v533 = vld [vmem:[%s493 + $0x9c] sm:$0xf]
  %v534 = vsel %vm496, %v471, %v533
  %535 = vst [vmem:[%s493 + $0x9c] sm:$0xf] %v534
  %v536 = vld [vmem:[%s493 + $0xa8] sm:$0xf]
  %v537 = vsel %vm496, %v478, %v536
  %538 = vst [vmem:[%s493 + $0xa8] sm:$0xf] %v537
  %539 = vrot.lane.b32.xlu0 %v349, 32
  %v540 = vpop.permute.xlu0 %539
  %541 = vrot.lane.b32.xlu0 %v350, 32
  %v542 = vpop.permute.xlu0 %541
  %543 = vrot.lane.b32.xlu0 %v351, 32
  %v544 = vpop.permute.xlu0 %543
  %545 = vrot.lane.b32.xlu0 %v352, 32
  %v546 = vpop.permute.xlu0 %545
  %547 = vrot.lane.b32.xlu0 %v353, 32
  %v548 = vpop.permute.xlu0 %547
  %549 = vrot.lane.b32.xlu0 %v354, 32
  %v550 = vpop.permute.xlu0 %549
  %551 = vrot.lane.b32.xlu0 %v355, 32
  %v552 = vpop.permute.xlu0 %551
  %553 = vrot.lane.b32.xlu0 %v357, 32
  %v554 = vpop.permute.xlu0 %553
  %555 = vrot.lane.b32.xlu0 %v358, 32
  %v556 = vpop.permute.xlu0 %555
  %557 = vrot.lane.b32.xlu0 %v359, 32
  %v558 = vpop.permute.xlu0 %557
  %559 = vrot.lane.b32.xlu0 %v360, 32
  %v560 = vpop.permute.xlu0 %559
  %561 = vrot.lane.b32.xlu0 %v361, 32
  %v562 = vpop.permute.xlu0 %561
  %563 = vrot.lane.b32.xlu0 %v362, 32
  %v564 = vpop.permute.xlu0 %563
  %565 = vrot.lane.b32.xlu0 %v363, 32
  %v566 = vpop.permute.xlu0 %565
  %vm581 = vcmask 519424
  %582 = vst.msk [vmem:[%s493] sm:$0xf] %vm581, %v540
  %583 = vst.msk [vmem:[%s493 + $0xc] sm:$0xf] %vm581, %v542
  %584 = vst.msk [vmem:[%s493 + $0x18] sm:$0xf] %vm581, %v544
  %585 = vst.msk [vmem:[%s493 + $0x24] sm:$0xf] %vm581, %v546
  %586 = vst.msk [vmem:[%s493 + $0x30] sm:$0xf] %vm581, %v548
  %587 = vst.msk [vmem:[%s493 + $0x3c] sm:$0xf] %vm581, %v550
  %588 = vst.msk [vmem:[%s493 + $0x48] sm:$0xf] %vm581, %v552
  %589 = vst.msk [vmem:[%s493 + $0x60] sm:$0xf] %vm581, %v554
  %590 = vst.msk [vmem:[%s493 + $0x6c] sm:$0xf] %vm581, %v556
  %591 = vst.msk [vmem:[%s493 + $0x78] sm:$0xf] %vm581, %v558
  %592 = vst.msk [vmem:[%s493 + $0x84] sm:$0xf] %vm581, %v560
  %593 = vst.msk [vmem:[%s493 + $0x90] sm:$0xf] %vm581, %v562
  %594 = vst.msk [vmem:[%s493 + $0x9c] sm:$0xf] %vm581, %v564
  %595 = vst.msk [vmem:[%s493 + $0xa8] sm:$0xf] %vm581, %v566
  %v596 = vrot.slane %v382, 4
  %v597 = vrot.slane %v385, 5
  %v598 = vor.u32 %v596, %v597
  %v599 = vrot.slane %v598, 4
  %v600 = vrot.slane %v389, 4
  %v601 = vrot.slane %v392, 5
  %v602 = vor.u32 %v600, %v601
  %v603 = vrot.slane %v602, 4
  %v604 = vrot.slane %v396, 4
  %v605 = vrot.slane %v399, 5
  %v606 = vor.u32 %v604, %v605
  %v607 = vrot.slane %v606, 4
  %v608 = vrot.slane %v403, 4
  %v609 = vrot.slane %v406, 5
  %v610 = vor.u32 %v608, %v609
  %v611 = vrot.slane %v610, 4
  %v612 = vrot.slane %v410, 4
  %v613 = vrot.slane %v413, 5
  %v614 = vor.u32 %v612, %v613
  %v615 = vrot.slane %v614, 4
  %v616 = vrot.slane %v417, 4
  %v617 = vrot.slane %v420, 5
  %v618 = vor.u32 %v616, %v617
  %v619 = vrot.slane %v618, 4
  %v620 = vrot.slane %v424, 4
  %v621 = vrot.slane %v427, 5
  %v622 = vor.u32 %v620, %v621
  %v623 = vrot.slane %v622, 4
  %v624 = vrot.slane %v431, 4
  %v625 = vrot.slane %v434, 5
  %v626 = vor.u32 %v624, %v625
  %v627 = vrot.slane %v626, 4
  %v628 = vrot.slane %v438, 4
  %v629 = vrot.slane %v441, 5
  %v630 = vor.u32 %v628, %v629
  %v631 = vrot.slane %v630, 4
  %v632 = vrot.slane %v445, 4
  %v633 = vrot.slane %v448, 5
  %v634 = vor.u32 %v632, %v633
  %v635 = vrot.slane %v634, 4
  %v636 = vrot.slane %v452, 4
  %v637 = vrot.slane %v455, 5
  %v638 = vor.u32 %v636, %v637
  %v639 = vrot.slane %v638, 4
  %v640 = vrot.slane %v459, 4
  %v641 = vrot.slane %v462, 5
  %v642 = vor.u32 %v640, %v641
  %v643 = vrot.slane %v642, 4
  %v644 = vrot.slane %v466, 4
  %v645 = vrot.slane %v469, 5
  %v646 = vor.u32 %v644, %v645
  %v647 = vrot.slane %v646, 4
  %v648 = vrot.slane %v473, 4
  %v649 = vrot.slane %v476, 5
  %v650 = vor.u32 %v648, %v649
  %v651 = vrot.slane %v650, 4
  %652 = vrot.lane.b32.xlu0 %v599, 64
  %v653 = vpop.permute.xlu0 %652
  %654 = vrot.lane.b32.xlu0 %v603, 64
  %v655 = vpop.permute.xlu0 %654
  %656 = vrot.lane.b32.xlu0 %v607, 64
  %v657 = vpop.permute.xlu0 %656
  %658 = vrot.lane.b32.xlu0 %v611, 64
  %v659 = vpop.permute.xlu0 %658
  %660 = vrot.lane.b32.xlu0 %v615, 64
  %v661 = vpop.permute.xlu0 %660
  %662 = vrot.lane.b32.xlu0 %v619, 64
  %v663 = vpop.permute.xlu0 %662
  %664 = vrot.lane.b32.xlu0 %v623, 64
  %v665 = vpop.permute.xlu0 %664
  %666 = vrot.lane.b32.xlu0 %v627, 64
  %v667 = vpop.permute.xlu0 %666
  %668 = vrot.lane.b32.xlu0 %v631, 64
  %v669 = vpop.permute.xlu0 %668
  %670 = vrot.lane.b32.xlu0 %v635, 64
  %v671 = vpop.permute.xlu0 %670
  %672 = vrot.lane.b32.xlu0 %v639, 64
  %v673 = vpop.permute.xlu0 %672
  %674 = vrot.lane.b32.xlu0 %v643, 64
  %v675 = vpop.permute.xlu0 %674
  %676 = vrot.lane.b32.xlu0 %v647, 64
  %v677 = vpop.permute.xlu0 %676
  %678 = vrot.lane.b32.xlu0 %v651, 64
  %v679 = vpop.permute.xlu0 %678
  %vm694 = vcmask 781824
  %vm695 = vsmask.f32 3328
  %vm696 = vmand %vm694, %vm695
  %v697 = vld [vmem:[%s493] sm:$0xf]
  %v698 = vsel %vm696, %v653, %v697
  %699 = vst [vmem:[%s493] sm:$0xf] %v698
  %v700 = vld [vmem:[%s493 + $0xc] sm:$0xf]
  %v701 = vsel %vm696, %v655, %v700
  %702 = vst [vmem:[%s493 + $0xc] sm:$0xf] %v701
  %v703 = vld [vmem:[%s493 + $0x18] sm:$0xf]
  %v704 = vsel %vm696, %v657, %v703
  %705 = vst [vmem:[%s493 + $0x18] sm:$0xf] %v704
  %v706 = vld [vmem:[%s493 + $0x24] sm:$0xf]
  %v707 = vsel %vm696, %v659, %v706
  %708 = vst [vmem:[%s493 + $0x24] sm:$0xf] %v707
  %v709 = vld [vmem:[%s493 + $0x30] sm:$0xf]
  %v710 = vsel %vm696, %v661, %v709
  %711 = vst [vmem:[%s493 + $0x30] sm:$0xf] %v710
  %v712 = vld [vmem:[%s493 + $0x3c] sm:$0xf]
  %v713 = vsel %vm696, %v663, %v712
  %714 = vst [vmem:[%s493 + $0x3c] sm:$0xf] %v713
  %v715 = vld [vmem:[%s493 + $0x48] sm:$0xf]
  %v716 = vsel %vm696, %v665, %v715
  %717 = vst [vmem:[%s493 + $0x48] sm:$0xf] %v716
  %v718 = vld [vmem:[%s493 + $0x60] sm:$0xf]
  %v719 = vsel %vm696, %v667, %v718
  %720 = vst [vmem:[%s493 + $0x60] sm:$0xf] %v719
  %v721 = vld [vmem:[%s493 + $0x6c] sm:$0xf]
  %v722 = vsel %vm696, %v669, %v721
  %723 = vst [vmem:[%s493 + $0x6c] sm:$0xf] %v722
  %v724 = vld [vmem:[%s493 + $0x78] sm:$0xf]
  %v725 = vsel %vm696, %v671, %v724
  %726 = vst [vmem:[%s493 + $0x78] sm:$0xf] %v725
  %v727 = vld [vmem:[%s493 + $0x84] sm:$0xf]
  %v728 = vsel %vm696, %v673, %v727
  %729 = vst [vmem:[%s493 + $0x84] sm:$0xf] %v728
  %v730 = vld [vmem:[%s493 + $0x90] sm:$0xf]
  %v731 = vsel %vm696, %v675, %v730
  %732 = vst [vmem:[%s493 + $0x90] sm:$0xf] %v731
  %v733 = vld [vmem:[%s493 + $0x9c] sm:$0xf]
  %v734 = vsel %vm696, %v677, %v733
  %735 = vst [vmem:[%s493 + $0x9c] sm:$0xf] %v734
  %v736 = vld [vmem:[%s493 + $0xa8] sm:$0xf]
  %v737 = vsel %vm696, %v679, %v736
  %738 = vst [vmem:[%s493 + $0xa8] sm:$0xf] %v737
  %v740 = vshrl.u32 %v356, 16
  %v742 = vrot.slane %v740, 7
  %v743 = vshll.u32 %v356, 16
  %v745 = vor.u32 %v742, %v743
  %v747 = vshrl.u32 %v364, 16
  %v749 = vrot.slane %v747, 7
  %v750 = vshll.u32 %v364, 16
  %v752 = vor.u32 %v749, %v750
  %753 = vrot.lane.b32.xlu0 %v387, 96
  %v754 = vpop.permute.xlu0 %753
  %755 = vrot.lane.b32.xlu0 %v394, 96
  %v756 = vpop.permute.xlu0 %755
  %757 = vrot.lane.b32.xlu0 %v401, 96
  %v758 = vpop.permute.xlu0 %757
  %759 = vrot.lane.b32.xlu0 %v408, 96
  %v760 = vpop.permute.xlu0 %759
  %761 = vrot.lane.b32.xlu0 %v415, 96
  %v762 = vpop.permute.xlu0 %761
  %763 = vrot.lane.b32.xlu0 %v422, 96
  %v764 = vpop.permute.xlu0 %763
  %765 = vrot.lane.b32.xlu0 %v429, 96
  %v766 = vpop.permute.xlu0 %765
  %767 = vrot.lane.b32.xlu0 %v745, 96
  %v768 = vpop.permute.xlu0 %767
  %769 = vrot.lane.b32.xlu0 %v436, 96
  %v770 = vpop.permute.xlu0 %769
  %771 = vrot.lane.b32.xlu0 %v443, 96
  %v772 = vpop.permute.xlu0 %771
  %773 = vrot.lane.b32.xlu0 %v450, 96
  %v774 = vpop.permute.xlu0 %773
  %775 = vrot.lane.b32.xlu0 %v457, 96
  %v776 = vpop.permute.xlu0 %775
  %777 = vrot.lane.b32.xlu0 %v464, 96
  %v778 = vpop.permute.xlu0 %777
  %779 = vrot.lane.b32.xlu0 %v471, 96
  %v780 = vpop.permute.xlu0 %779
  %781 = vrot.lane.b32.xlu0 %v478, 96
  %v782 = vpop.permute.xlu0 %781
  %783 = vrot.lane.b32.xlu0 %v752, 96
  %v784 = vpop.permute.xlu0 %783
  %vm801 = vcmask 1044224
  %vm802 = vmand %vm801, %vm495
  %v803 = vld [vmem:[#allocation2] sm:$0xf]
  %v804 = vsel %vm802, %v754, %v803
  %805 = vst [vmem:[#allocation2] sm:$0xf] %v804
  %v806 = vld [vmem:[#allocation2 + $0xc] sm:$0xf]
  %v807 = vsel %vm802, %v756, %v806
  %808 = vst [vmem:[#allocation2 + $0xc] sm:$0xf] %v807
  %v809 = vld [vmem:[#allocation2 + $0x18] sm:$0xf]
  %v810 = vsel %vm802, %v758, %v809
  %811 = vst [vmem:[#allocation2 + $0x18] sm:$0xf] %v810
  %v812 = vld [vmem:[#allocation2 + $0x24] sm:$0xf]
  %v813 = vsel %vm802, %v760, %v812
  %814 = vst [vmem:[#allocation2 + $0x24] sm:$0xf] %v813
  %v815 = vld [vmem:[#allocation2 + $0x30] sm:$0xf]
  %v816 = vsel %vm802, %v762, %v815
  %817 = vst [vmem:[#allocation2 + $0x30] sm:$0xf] %v816
  %v818 = vld [vmem:[#allocation2 + $0x3c] sm:$0xf]
  %v819 = vsel %vm802, %v764, %v818
  %820 = vst [vmem:[#allocation2 + $0x3c] sm:$0xf] %v819
  %v821 = vld [vmem:[#allocation2 + $0x48] sm:$0xf]
  %v822 = vsel %vm802, %v766, %v821
  %823 = vst [vmem:[#allocation2 + $0x48] sm:$0xf] %v822
  %v824 = vld [vmem:[#allocation2 + $0x54] sm:$0xf]
  %v825 = vsel %vm802, %v768, %v824
  %826 = vst [vmem:[#allocation2 + $0x54] sm:$0xf] %v825
  %v827 = vld [vmem:[#allocation2 + $0x60] sm:$0xf]
  %v828 = vsel %vm802, %v770, %v827
  %829 = vst [vmem:[#allocation2 + $0x60] sm:$0xf] %v828
  %v830 = vld [vmem:[#allocation2 + $0x6c] sm:$0xf]
  %v831 = vsel %vm802, %v772, %v830
  %832 = vst [vmem:[#allocation2 + $0x6c] sm:$0xf] %v831
  %v833 = vld [vmem:[#allocation2 + $0x78] sm:$0xf]
  %v834 = vsel %vm802, %v774, %v833
  %835 = vst [vmem:[#allocation2 + $0x78] sm:$0xf] %v834
  %v836 = vld [vmem:[#allocation2 + $0x84] sm:$0xf]
  %v837 = vsel %vm802, %v776, %v836
  %838 = vst [vmem:[#allocation2 + $0x84] sm:$0xf] %v837
  %v839 = vld [vmem:[#allocation2 + $0x90] sm:$0xf]
  %v840 = vsel %vm802, %v778, %v839
  %841 = vst [vmem:[#allocation2 + $0x90] sm:$0xf] %v840
  %v842 = vld [vmem:[#allocation2 + $0x9c] sm:$0xf]
  %v843 = vsel %vm802, %v780, %v842
  %844 = vst [vmem:[#allocation2 + $0x9c] sm:$0xf] %v843
  %v845 = vld [vmem:[#allocation2 + $0xa8] sm:$0xf]
  %v846 = vsel %vm802, %v782, %v845
  %847 = vst [vmem:[#allocation2 + $0xa8] sm:$0xf] %v846
  %v848 = vld [vmem:[#allocation2 + $0xb4] sm:$0xf]
  %v849 = vsel %vm802, %v784, %v848
  %850 = vst [vmem:[#allocation2 + $0xb4] sm:$0xf] %v849
  %vm851 = vcmask 257024
  %852 = vst.msk [vmem:[#allocation2 + $0x4] sm:$0xf] %vm851, %v349
  %853 = vst.msk [vmem:[#allocation2 + $0x10] sm:$0xf] %vm851, %v350
  %854 = vst.msk [vmem:[#allocation2 + $0x1c] sm:$0xf] %vm851, %v351
  %855 = vst.msk [vmem:[#allocation2 + $0x28] sm:$0xf] %vm851, %v352
  %856 = vst.msk [vmem:[#allocation2 + $0x34] sm:$0xf] %vm851, %v353
  %857 = vst.msk [vmem:[#allocation2 + $0x40] sm:$0xf] %vm851, %v354
  %858 = vst.msk [vmem:[#allocation2 + $0x4c] sm:$0xf] %vm851, %v355
  %859 = vst.msk [vmem:[#allocation2 + $0x58] sm:$0xf] %vm851, %v356
  %860 = vst.msk [vmem:[#allocation2 + $0x64] sm:$0xf] %vm851, %v357
  %861 = vst.msk [vmem:[#allocation2 + $0x70] sm:$0xf] %vm851, %v358
  %862 = vst.msk [vmem:[#allocation2 + $0x7c] sm:$0xf] %vm851, %v359
  %863 = vst.msk [vmem:[#allocation2 + $0x88] sm:$0xf] %vm851, %v360
  %864 = vst.msk [vmem:[#allocation2 + $0x94] sm:$0xf] %vm851, %v361
  %865 = vst.msk [vmem:[#allocation2 + $0xa0] sm:$0xf] %vm851, %v362
  %866 = vst.msk [vmem:[#allocation2 + $0xac] sm:$0xf] %vm851, %v363
  %867 = vst.msk [vmem:[#allocation2 + $0xb8] sm:$0xf] %vm851, %v364
  %v868 = vrot.slane %v740, 4
  %v869 = vrot.slane %v743, 5
  %v870 = vor.u32 %v868, %v869
  %v871 = vrot.slane %v870, 4
  %v872 = vrot.slane %v747, 4
  %v873 = vrot.slane %v750, 5
  %v874 = vor.u32 %v872, %v873
  %v875 = vrot.slane %v874, 4
  %876 = vrot.lane.b32.xlu0 %v599, 32
  %v877 = vpop.permute.xlu0 %876
  %878 = vrot.lane.b32.xlu0 %v603, 32
  %v879 = vpop.permute.xlu0 %878
  %880 = vrot.lane.b32.xlu0 %v607, 32
  %v881 = vpop.permute.xlu0 %880
  %882 = vrot.lane.b32.xlu0 %v611, 32
  %v883 = vpop.permute.xlu0 %882
  %884 = vrot.lane.b32.xlu0 %v615, 32
  %v885 = vpop.permute.xlu0 %884
  %886 = vrot.lane.b32.xlu0 %v619, 32
  %v887 = vpop.permute.xlu0 %886
  %888 = vrot.lane.b32.xlu0 %v623, 32
  %v889 = vpop.permute.xlu0 %888
  %890 = vrot.lane.b32.xlu0 %v871, 32
  %v891 = vpop.permute.xlu0 %890
  %892 = vrot.lane.b32.xlu0 %v627, 32
  %v893 = vpop.permute.xlu0 %892
  %894 = vrot.lane.b32.xlu0 %v631, 32
  %v895 = vpop.permute.xlu0 %894
  %896 = vrot.lane.b32.xlu0 %v635, 32
  %v897 = vpop.permute.xlu0 %896
  %898 = vrot.lane.b32.xlu0 %v639, 32
  %v899 = vpop.permute.xlu0 %898
  %900 = vrot.lane.b32.xlu0 %v643, 32
  %v901 = vpop.permute.xlu0 %900
  %902 = vrot.lane.b32.xlu0 %v647, 32
  %v903 = vpop.permute.xlu0 %902
  %904 = vrot.lane.b32.xlu0 %v651, 32
  %v905 = vpop.permute.xlu0 %904
  %906 = vrot.lane.b32.xlu0 %v875, 32
  %v907 = vpop.permute.xlu0 %906
  %vm924 = vcmask 519424
  %vm925 = vmand %vm924, %vm695
  %v926 = vld [vmem:[#allocation2 + $0x4] sm:$0xf]
  %v927 = vsel %vm925, %v877, %v926
  %928 = vst [vmem:[#allocation2 + $0x4] sm:$0xf] %v927
  %v929 = vld [vmem:[#allocation2 + $0x10] sm:$0xf]
  %v930 = vsel %vm925, %v879, %v929
  %931 = vst [vmem:[#allocation2 + $0x10] sm:$0xf] %v930
  %v932 = vld [vmem:[#allocation2 + $0x1c] sm:$0xf]
  %v933 = vsel %vm925, %v881, %v932
  %934 = vst [vmem:[#allocation2 + $0x1c] sm:$0xf] %v933
  %v935 = vld [vmem:[#allocation2 + $0x28] sm:$0xf]
  %v936 = vsel %vm925, %v883, %v935
  %937 = vst [vmem:[#allocation2 + $0x28] sm:$0xf] %v936
  %v938 = vld [vmem:[#allocation2 + $0x34] sm:$0xf]
  %v939 = vsel %vm925, %v885, %v938
  %940 = vst [vmem:[#allocation2 + $0x34] sm:$0xf] %v939
  %v941 = vld [vmem:[#allocation2 + $0x40] sm:$0xf]
  %v942 = vsel %vm925, %v887, %v941
  %943 = vst [vmem:[#allocation2 + $0x40] sm:$0xf] %v942
  %v944 = vld [vmem:[#allocation2 + $0x4c] sm:$0xf]
  %v945 = vsel %vm925, %v889, %v944
  %946 = vst [vmem:[#allocation2 + $0x4c] sm:$0xf] %v945
  %v947 = vld [vmem:[#allocation2 + $0x58] sm:$0xf]
  %v948 = vsel %vm925, %v891, %v947
  %949 = vst [vmem:[#allocation2 + $0x58] sm:$0xf] %v948
  %v950 = vld [vmem:[#allocation2 + $0x64] sm:$0xf]
  %v951 = vsel %vm925, %v893, %v950
  %952 = vst [vmem:[#allocation2 + $0x64] sm:$0xf] %v951
  %v953 = vld [vmem:[#allocation2 + $0x70] sm:$0xf]
  %v954 = vsel %vm925, %v895, %v953
  %955 = vst [vmem:[#allocation2 + $0x70] sm:$0xf] %v954
  %v956 = vld [vmem:[#allocation2 + $0x7c] sm:$0xf]
  %v957 = vsel %vm925, %v897, %v956
  %958 = vst [vmem:[#allocation2 + $0x7c] sm:$0xf] %v957
  %v959 = vld [vmem:[#allocation2 + $0x88] sm:$0xf]
  %v960 = vsel %vm925, %v899, %v959
  %961 = vst [vmem:[#allocation2 + $0x88] sm:$0xf] %v960
  %v962 = vld [vmem:[#allocation2 + $0x94] sm:$0xf]
  %v963 = vsel %vm925, %v901, %v962
  %964 = vst [vmem:[#allocation2 + $0x94] sm:$0xf] %v963
  %v965 = vld [vmem:[#allocation2 + $0xa0] sm:$0xf]
  %v966 = vsel %vm925, %v903, %v965
  %967 = vst [vmem:[#allocation2 + $0xa0] sm:$0xf] %v966
  %v968 = vld [vmem:[#allocation2 + $0xac] sm:$0xf]
  %v969 = vsel %vm925, %v905, %v968
  %970 = vst [vmem:[#allocation2 + $0xac] sm:$0xf] %v969
  %v971 = vld [vmem:[#allocation2 + $0xb8] sm:$0xf]
  %v972 = vsel %vm925, %v907, %v971
  %973 = vst [vmem:[#allocation2 + $0xb8] sm:$0xf] %v972
  %974 = vrot.lane.b32.xlu0 %v394, 64
  %v975 = vpop.permute.xlu0 %974
  %976 = vrot.lane.b32.xlu0 %v401, 64
  %v977 = vpop.permute.xlu0 %976
  %978 = vrot.lane.b32.xlu0 %v408, 64
  %v979 = vpop.permute.xlu0 %978
  %980 = vrot.lane.b32.xlu0 %v415, 64
  %v981 = vpop.permute.xlu0 %980
  %982 = vrot.lane.b32.xlu0 %v422, 64
  %v983 = vpop.permute.xlu0 %982
  %984 = vrot.lane.b32.xlu0 %v429, 64
  %v985 = vpop.permute.xlu0 %984
  %986 = vrot.lane.b32.xlu0 %v745, 64
  %v987 = vpop.permute.xlu0 %986
  %988 = vrot.lane.b32.xlu0 %v443, 64
  %v989 = vpop.permute.xlu0 %988
  %990 = vrot.lane.b32.xlu0 %v450, 64
  %v991 = vpop.permute.xlu0 %990
  %992 = vrot.lane.b32.xlu0 %v457, 64
  %v993 = vpop.permute.xlu0 %992
  %994 = vrot.lane.b32.xlu0 %v464, 64
  %v995 = vpop.permute.xlu0 %994
  %996 = vrot.lane.b32.xlu0 %v471, 64
  %v997 = vpop.permute.xlu0 %996
  %998 = vrot.lane.b32.xlu0 %v478, 64
  %v999 = vpop.permute.xlu0 %998
  %1000 = vrot.lane.b32.xlu0 %v752, 64
  %v1001 = vpop.permute.xlu0 %1000
  %vm1016 = vmand %vm694, %vm495
  %v1017 = vld [vmem:[#allocation2 + $0x4] sm:$0xf]
  %v1018 = vsel %vm1016, %v975, %v1017
  %1019 = vst [vmem:[#allocation2 + $0x4] sm:$0xf] %v1018
  %v1020 = vld [vmem:[#allocation2 + $0x10] sm:$0xf]
  %v1021 = vsel %vm1016, %v977, %v1020
  %1022 = vst [vmem:[#allocation2 + $0x10] sm:$0xf] %v1021
  %v1023 = vld [vmem:[#allocation2 + $0x1c] sm:$0xf]
  %v1024 = vsel %vm1016, %v979, %v1023
  %1025 = vst [vmem:[#allocation2 + $0x1c] sm:$0xf] %v1024
  %v1026 = vld [vmem:[#allocation2 + $0x28] sm:$0xf]
  %v1027 = vsel %vm1016, %v981, %v1026
  %1028 = vst [vmem:[#allocation2 + $0x28] sm:$0xf] %v1027
  %v1029 = vld [vmem:[#allocation2 + $0x34] sm:$0xf]
  %v1030 = vsel %vm1016, %v983, %v1029
  %1031 = vst [vmem:[#allocation2 + $0x34] sm:$0xf] %v1030
  %v1032 = vld [vmem:[#allocation2 + $0x40] sm:$0xf]
  %v1033 = vsel %vm1016, %v985, %v1032
  %1034 = vst [vmem:[#allocation2 + $0x40] sm:$0xf] %v1033
  %v1035 = vld [vmem:[#allocation2 + $0x4c] sm:$0xf]
  %v1036 = vsel %vm1016, %v987, %v1035
  %1037 = vst [vmem:[#allocation2 + $0x4c] sm:$0xf] %v1036
  %v1038 = vld [vmem:[#allocation2 + $0x64] sm:$0xf]
  %v1039 = vsel %vm1016, %v989, %v1038
  %1040 = vst [vmem:[#allocation2 + $0x64] sm:$0xf] %v1039
  %v1041 = vld [vmem:[#allocation2 + $0x70] sm:$0xf]
  %v1042 = vsel %vm1016, %v991, %v1041
  %1043 = vst [vmem:[#allocation2 + $0x70] sm:$0xf] %v1042
  %v1044 = vld [vmem:[#allocation2 + $0x7c] sm:$0xf]
  %v1045 = vsel %vm1016, %v993, %v1044
  %1046 = vst [vmem:[#allocation2 + $0x7c] sm:$0xf] %v1045
  %v1047 = vld [vmem:[#allocation2 + $0x88] sm:$0xf]
  %v1048 = vsel %vm1016, %v995, %v1047
  %1049 = vst [vmem:[#allocation2 + $0x88] sm:$0xf] %v1048
  %v1050 = vld [vmem:[#allocation2 + $0x94] sm:$0xf]
  %v1051 = vsel %vm1016, %v997, %v1050
  %1052 = vst [vmem:[#allocation2 + $0x94] sm:$0xf] %v1051
  %v1053 = vld [vmem:[#allocation2 + $0xa0] sm:$0xf]
  %v1054 = vsel %vm1016, %v999, %v1053
  %1055 = vst [vmem:[#allocation2 + $0xa0] sm:$0xf] %v1054
  %v1056 = vld [vmem:[#allocation2 + $0xac] sm:$0xf]
  %v1057 = vsel %vm1016, %v1001, %v1056
  %1058 = vst [vmem:[#allocation2 + $0xac] sm:$0xf] %v1057
  %1059 = vrot.lane.b32.xlu0 %v350, 96
  %v1060 = vpop.permute.xlu0 %1059
  %1061 = vrot.lane.b32.xlu0 %v351, 96
  %v1062 = vpop.permute.xlu0 %1061
  %1063 = vrot.lane.b32.xlu0 %v352, 96
  %v1064 = vpop.permute.xlu0 %1063
  %1065 = vrot.lane.b32.xlu0 %v353, 96
  %v1066 = vpop.permute.xlu0 %1065
  %1067 = vrot.lane.b32.xlu0 %v354, 96
  %v1068 = vpop.permute.xlu0 %1067
  %1069 = vrot.lane.b32.xlu0 %v355, 96
  %v1070 = vpop.permute.xlu0 %1069
  %1071 = vrot.lane.b32.xlu0 %v356, 96
  %v1072 = vpop.permute.xlu0 %1071
  %1073 = vrot.lane.b32.xlu0 %v358, 96
  %v1074 = vpop.permute.xlu0 %1073
  %1075 = vrot.lane.b32.xlu0 %v359, 96
  %v1076 = vpop.permute.xlu0 %1075
  %1077 = vrot.lane.b32.xlu0 %v360, 96
  %v1078 = vpop.permute.xlu0 %1077
  %1079 = vrot.lane.b32.xlu0 %v361, 96
  %v1080 = vpop.permute.xlu0 %1079
  %1081 = vrot.lane.b32.xlu0 %v362, 96
  %v1082 = vpop.permute.xlu0 %1081
  %1083 = vrot.lane.b32.xlu0 %v363, 96
  %v1084 = vpop.permute.xlu0 %1083
  %1085 = vrot.lane.b32.xlu0 %v364, 96
  %v1086 = vpop.permute.xlu0 %1085
  %vm1101 = vcmask 1044224
  %1102 = vst.msk [vmem:[#allocation2 + $0x4] sm:$0xf] %vm1101, %v1060
  %1103 = vst.msk [vmem:[#allocation2 + $0x10] sm:$0xf] %vm1101, %v1062
  %1104 = vst.msk [vmem:[#allocation2 + $0x1c] sm:$0xf] %vm1101, %v1064
  %1105 = vst.msk [vmem:[#allocation2 + $0x28] sm:$0xf] %vm1101, %v1066
  %1106 = vst.msk [vmem:[#allocation2 + $0x34] sm:$0xf] %vm1101, %v1068
  %1107 = vst.msk [vmem:[#allocation2 + $0x40] sm:$0xf] %vm1101, %v1070
  %1108 = vst.msk [vmem:[#allocation2 + $0x4c] sm:$0xf] %vm1101, %v1072
  %1109 = vst.msk [vmem:[#allocation2 + $0x64] sm:$0xf] %vm1101, %v1074
  %1110 = vst.msk [vmem:[#allocation2 + $0x70] sm:$0xf] %vm1101, %v1076
  %1111 = vst.msk [vmem:[#allocation2 + $0x7c] sm:$0xf] %vm1101, %v1078
  %1112 = vst.msk [vmem:[#allocation2 + $0x88] sm:$0xf] %vm1101, %v1080
  %1113 = vst.msk [vmem:[#allocation2 + $0x94] sm:$0xf] %vm1101, %v1082
  %1114 = vst.msk [vmem:[#allocation2 + $0xa0] sm:$0xf] %vm1101, %v1084
  %1115 = vst.msk [vmem:[#allocation2 + $0xac] sm:$0xf] %vm1101, %v1086
  %vm1130 = vmand %vm494, %vm695
  %v1131 = vld [vmem:[#allocation2 + $0x8] sm:$0xf]
  %v1132 = vsel %vm1130, %v603, %v1131
  %1133 = vst [vmem:[#allocation2 + $0x8] sm:$0xf] %v1132
  %v1134 = vld [vmem:[#allocation2 + $0x14] sm:$0xf]
  %v1135 = vsel %vm1130, %v607, %v1134
  %1136 = vst [vmem:[#allocation2 + $0x14] sm:$0xf] %v1135
  %v1137 = vld [vmem:[#allocation2 + $0x20] sm:$0xf]
  %v1138 = vsel %vm1130, %v611, %v1137
  %1139 = vst [vmem:[#allocation2 + $0x20] sm:$0xf] %v1138
  %v1140 = vld [vmem:[#allocation2 + $0x2c] sm:$0xf]
  %v1141 = vsel %vm1130, %v615, %v1140
  %1142 = vst [vmem:[#allocation2 + $0x2c] sm:$0xf] %v1141
  %v1143 = vld [vmem:[#allocation2 + $0x38] sm:$0xf]
  %v1144 = vsel %vm1130, %v619, %v1143
  %1145 = vst [vmem:[#allocation2 + $0x38] sm:$0xf] %v1144
  %v1146 = vld [vmem:[#allocation2 + $0x44] sm:$0xf]
  %v1147 = vsel %vm1130, %v623, %v1146
  %1148 = vst [vmem:[#allocation2 + $0x44] sm:$0xf] %v1147
  %v1149 = vld [vmem:[#allocation2 + $0x50] sm:$0xf]
  %v1150 = vsel %vm1130, %v871, %v1149
  %1151 = vst [vmem:[#allocation2 + $0x50] sm:$0xf] %v1150
  %v1152 = vld [vmem:[#allocation2 + $0x68] sm:$0xf]
  %v1153 = vsel %vm1130, %v631, %v1152
  %1154 = vst [vmem:[#allocation2 + $0x68] sm:$0xf] %v1153
  %v1155 = vld [vmem:[#allocation2 + $0x74] sm:$0xf]
  %v1156 = vsel %vm1130, %v635, %v1155
  %1157 = vst [vmem:[#allocation2 + $0x74] sm:$0xf] %v1156
  %v1158 = vld [vmem:[#allocation2 + $0x80] sm:$0xf]
  %v1159 = vsel %vm1130, %v639, %v1158
  %1160 = vst [vmem:[#allocation2 + $0x80] sm:$0xf] %v1159
  %v1161 = vld [vmem:[#allocation2 + $0x8c] sm:$0xf]
  %v1162 = vsel %vm1130, %v643, %v1161
  %1163 = vst [vmem:[#allocation2 + $0x8c] sm:$0xf] %v1162
  %v1164 = vld [vmem:[#allocation2 + $0x98] sm:$0xf]
  %v1165 = vsel %vm1130, %v647, %v1164
  %1166 = vst [vmem:[#allocation2 + $0x98] sm:$0xf] %v1165
  %v1167 = vld [vmem:[#allocation2 + $0xa4] sm:$0xf]
  %v1168 = vsel %vm1130, %v651, %v1167
  %1169 = vst [vmem:[#allocation2 + $0xa4] sm:$0xf] %v1168
  %v1170 = vld [vmem:[#allocation2 + $0xb0] sm:$0xf]
  %v1171 = vsel %vm1130, %v875, %v1170
  %1172 = vst [vmem:[#allocation2 + $0xb0] sm:$0xf] %v1171
  %v1173 = vld [vmem:[#allocation2] sm:$0xff]
  %v1174 = vld [vmem:[#allocation2 + $0x8] sm:$0xf]
  %v1175 = vld [vmem:[#allocation2 + $0xc] sm:$0xff]
  %v1176 = vld [vmem:[#allocation2 + $0x14] sm:$0xf]
  %v1177 = vld [vmem:[#allocation2 + $0x18] sm:$0xff]
  %v1178 = vld [vmem:[#allocation2 + $0x20] sm:$0xf]
  %v1179 = vld [vmem:[#allocation2 + $0x24] sm:$0xff]
  %v1180 = vld [vmem:[#allocation2 + $0x2c] sm:$0xf]
  %v1181 = vld [vmem:[#allocation2 + $0x30] sm:$0xff]
  %v1182 = vld [vmem:[#allocation2 + $0x38] sm:$0xf]
  %v1183 = vld [vmem:[#allocation2 + $0x3c] sm:$0xff]
  %v1184 = vld [vmem:[#allocation2 + $0x44] sm:$0xf]
  %v1185 = vld [vmem:[#allocation2 + $0x48] sm:$0xff]
  %v1186 = vld [vmem:[#allocation2 + $0x50] sm:$0xf]
  %v1187 = vld [vmem:[#allocation2 + $0x54] sm:$0xff]
  %v1188 = vld [vmem:[#allocation2 + $0x5c] sm:$0xf]
  %v1189 = vld [vmem:[#allocation2 + $0x60] sm:$0xff]
  %v1190 = vld [vmem:[#allocation2 + $0x68] sm:$0xf]
  %v1191 = vld [vmem:[#allocation2 + $0x6c] sm:$0xff]
  %v1192 = vld [vmem:[#allocation2 + $0x74] sm:$0xf]
  %v1193 = vld [vmem:[#allocation2 + $0x78] sm:$0xff]
  %v1194 = vld [vmem:[#allocation2 + $0x80] sm:$0xf]
  %v1195 = vld [vmem:[#allocation2 + $0x84] sm:$0xff]
  %v1196 = vld [vmem:[#allocation2 + $0x8c] sm:$0xf]
  %v1197 = vld [vmem:[#allocation2 + $0x90] sm:$0xff]
  %v1198 = vld [vmem:[#allocation2 + $0x98] sm:$0xf]
  %v1199 = vld [vmem:[#allocation2 + $0x9c] sm:$0xff]
  %v1200 = vld [vmem:[#allocation2 + $0xa4] sm:$0xf]
  %v1201 = vld [vmem:[#allocation2 + $0xa8] sm:$0xff]
  %v1202 = vld [vmem:[#allocation2 + $0xb0] sm:$0xf]
  %v1203 = vld [vmem:[#allocation2 + $0xb4] sm:$0xff]
  %v1204 = vld [vmem:[#allocation2 + $0xbc] sm:$0xf]
  %v1205 = vld [vmem:[%s3] sm:$0xf]
  %v1206 = vld [vmem:[%s3 + $0x4] sm:$0xf]
  %v1207 = vld [vmem:[%s3 + $0x8] sm:$0xf]
  %v1208 = vld [vmem:[%s3 + $0xc] sm:$0xf]
  %v1209 = vld [vmem:[%s3 + $0x10] sm:$0xf]
  %v1210 = vld [vmem:[%s3 + $0x14] sm:$0xf]
  %v1211 = vld [vmem:[%s3 + $0x18] sm:$0xf]
  %v1212 = vld [vmem:[%s3 + $0x1c] sm:$0xf]
  %v1213 = vld [vmem:[%s3 + $0x20] sm:$0xf]
  %v1214 = vld [vmem:[%s3 + $0x24] sm:$0xf]
  %v1215 = vld [vmem:[%s3 + $0x28] sm:$0xf]
  %v1216 = vld [vmem:[%s3 + $0x2c] sm:$0xf]
  %v1217 = vld [vmem:[%s3 + $0x30] sm:$0xf]
  %v1218 = vld [vmem:[%s3 + $0x34] sm:$0xf]
  %v1219 = vld [vmem:[%s3 + $0x38] sm:$0xf]
  %v1220 = vld [vmem:[%s3 + $0x3c] sm:$0xf]
  %v1221 = vld [vmem:[%s3 + $0x40] sm:$0xf]
  %v1222 = vld [vmem:[%s3 + $0x44] sm:$0xf]
  %v1223 = vld [vmem:[%s3 + $0x48] sm:$0xf]
  %v1224 = vld [vmem:[%s3 + $0x4c] sm:$0xf]
  %v1225 = vld [vmem:[%s3 + $0x50] sm:$0xf]
  %v1226 = vld [vmem:[%s3 + $0x54] sm:$0xf]
  %v1227 = vld [vmem:[%s3 + $0x58] sm:$0xf]
  %v1228 = vld [vmem:[%s3 + $0x5c] sm:$0xf]
  %v1229 = vld [vmem:[%s3 + $0x60] sm:$0xf]
  %v1230 = vld [vmem:[%s3 + $0x64] sm:$0xf]
  %v1231 = vld [vmem:[%s3 + $0x68] sm:$0xf]
  %v1232 = vld [vmem:[%s3 + $0x6c] sm:$0xf]
  %v1233 = vld [vmem:[%s3 + $0x70] sm:$0xf]
  %v1234 = vld [vmem:[%s3 + $0x74] sm:$0xf]
  %v1235 = vld [vmem:[%s3 + $0x78] sm:$0xf]
  %v1236 = vld [vmem:[%s3 + $0x7c] sm:$0xf]
  %v1237 = vld [vmem:[%s3 + $0x80] sm:$0xf]
  %v1238 = vld [vmem:[%s3 + $0x84] sm:$0xf]
  %v1239 = vld [vmem:[%s3 + $0x88] sm:$0xf]
  %v1240 = vld [vmem:[%s3 + $0x8c] sm:$0xf]
  %v1241 = vld [vmem:[%s4] sm:$0x1]
  %v1243 = vlaneseq
  %v1244 = vshrl.u32 %v1243, 7
  %v1245 = vsub.s32 0, %v1244
  %v1246 = vrot.slane %v1241, %v1245
  %v1280 = vunpack.c.l.b16 %v1173
  %v1281 = vunpack.c.h.b16 %v1173
  %v1282 = vunpack.c.l.b16 %v1174
  %v1283 = vunpack.c.l.b16 %v1175
  %v1284 = vunpack.c.h.b16 %v1175
  %v1285 = vunpack.c.l.b16 %v1176
  %v1286 = vunpack.c.l.b16 %v1177
  %v1287 = vunpack.c.h.b16 %v1177
  %v1288 = vunpack.c.l.b16 %v1178
  %v1289 = vunpack.c.l.b16 %v1179
  %v1290 = vunpack.c.h.b16 %v1179
  %v1291 = vunpack.c.l.b16 %v1180
  %v1292 = vunpack.c.l.b16 %v1181
  %v1293 = vunpack.c.h.b16 %v1181
  %v1294 = vunpack.c.l.b16 %v1182
  %v1295 = vunpack.c.l.b16 %v1183
  %v1296 = vunpack.c.h.b16 %v1183
  %v1297 = vunpack.c.l.b16 %v1184
  %v1298 = vunpack.c.l.b16 %v1185
  %v1299 = vunpack.c.h.b16 %v1185
  %v1300 = vunpack.c.l.b16 %v1186
  %v1301 = vunpack.c.l.b16 %v1187
  %v1302 = vunpack.c.h.b16 %v1187
  %v1303 = vunpack.c.l.b16 %v1188
  %v1304 = vunpack.c.l.b16 %v1189
  %v1305 = vunpack.c.h.b16 %v1189
  %v1306 = vunpack.c.l.b16 %v1190
  %v1307 = vunpack.c.l.b16 %v1191
  %v1308 = vunpack.c.h.b16 %v1191
  %v1309 = vunpack.c.l.b16 %v1192
  %v1310 = vunpack.c.l.b16 %v1193
  %v1311 = vunpack.c.h.b16 %v1193
  %v1312 = vunpack.c.l.b16 %v1194
  %v1313 = vunpack.c.l.b16 %v1195
  %v1314 = vunpack.c.h.b16 %v1195
  %v1315 = vunpack.c.l.b16 %v1196
  %v1316 = vunpack.c.l.b16 %v1197
  %v1317 = vunpack.c.h.b16 %v1197
  %v1318 = vunpack.c.l.b16 %v1198
  %v1319 = vunpack.c.l.b16 %v1199
  %v1320 = vunpack.c.h.b16 %v1199
  %v1321 = vunpack.c.l.b16 %v1200
  %v1322 = vunpack.c.l.b16 %v1201
  %v1323 = vunpack.c.h.b16 %v1201
  %v1324 = vunpack.c.l.b16 %v1202
  %v1325 = vunpack.c.l.b16 %v1203
  %v1326 = vunpack.c.h.b16 %v1203
  %v1327 = vunpack.c.l.b16 %v1204
  %v1328 = vpack.c.b16 %v1283, %v1280
  %v1329 = vpack.c.b16 %v1284, %v1281
  %v1330 = vpack.c.b16 %v1285, %v1282
  %v1331 = vpack.c.b16 %v1289, %v1286
  %v1332 = vpack.c.b16 %v1290, %v1287
  %v1333 = vpack.c.b16 %v1291, %v1288
  %v1334 = vpack.c.b16 %v1295, %v1292
  %v1335 = vpack.c.b16 %v1296, %v1293
  %v1336 = vpack.c.b16 %v1297, %v1294
  %v1337 = vpack.c.b16 %v1301, %v1298
  %v1338 = vpack.c.b16 %v1302, %v1299
  %v1339 = vpack.c.b16 %v1303, %v1300
  %v1340 = vpack.c.b16 %v1307, %v1304
  %v1341 = vpack.c.b16 %v1308, %v1305
  %v1342 = vpack.c.b16 %v1309, %v1306
  %v1343 = vpack.c.b16 %v1313, %v1310
  %v1344 = vpack.c.b16 %v1314, %v1311
  %v1345 = vpack.c.b16 %v1315, %v1312
  %v1346 = vpack.c.b16 %v1319, %v1316
  %v1347 = vpack.c.b16 %v1320, %v1317
  %v1348 = vpack.c.b16 %v1321, %v1318
  %v1349 = vpack.c.b16 %v1325, %v1322
  %v1350 = vpack.c.b16 %v1326, %v1323
  %v1351 = vpack.c.b16 %v1327, %v1324
  %v1404 = vunpack.c.l.b16 %v1205
  %v1405 = vunpack.c.l.b16 %v1206
  %v1406 = vunpack.c.l.b16 %v1207
  %v1407 = vunpack.c.l.b16 %v1208
  %v1408 = vunpack.c.l.b16 %v1209
  %v1409 = vunpack.c.l.b16 %v1210
  %v1410 = vunpack.c.l.b16 %v1211
  %v1411 = vunpack.c.l.b16 %v1212
  %v1412 = vunpack.c.l.b16 %v1213
  %v1413 = vunpack.c.l.b16 %v1214
  %v1414 = vunpack.c.l.b16 %v1215
  %v1415 = vunpack.c.l.b16 %v1216
  %v1416 = vunpack.c.l.b16 %v1217
  %v1417 = vunpack.c.l.b16 %v1218
  %v1418 = vunpack.c.l.b16 %v1219
  %v1419 = vunpack.c.l.b16 %v1220
  %v1420 = vunpack.c.l.b16 %v1221
  %v1421 = vunpack.c.l.b16 %v1222
  %v1422 = vunpack.c.l.b16 %v1223
  %v1423 = vunpack.c.l.b16 %v1224
  %v1424 = vunpack.c.l.b16 %v1225
  %v1425 = vunpack.c.l.b16 %v1226
  %v1426 = vunpack.c.l.b16 %v1227
  %v1427 = vunpack.c.l.b16 %v1228
  %v1428 = vunpack.c.l.b16 %v1229
  %v1429 = vunpack.c.l.b16 %v1230
  %v1430 = vunpack.c.l.b16 %v1231
  %v1431 = vunpack.c.l.b16 %v1232
  %v1432 = vunpack.c.l.b16 %v1233
  %v1433 = vunpack.c.l.b16 %v1234
  %v1434 = vunpack.c.l.b16 %v1235
  %v1435 = vunpack.c.l.b16 %v1236
  %v1436 = vunpack.c.l.b16 %v1237
  %v1437 = vunpack.c.l.b16 %v1238
  %v1438 = vunpack.c.l.b16 %v1239
  %v1439 = vunpack.c.l.b16 %v1240
  %v1440 = vpack.c.b16 %v1405, %v1404
  %v1441 = vpack.c.b16 %v1407, %v1406
  %v1442 = vpack.c.b16 %v1409, %v1408
  %v1443 = vpack.c.b16 %v1411, %v1410
  %v1444 = vpack.c.b16 %v1413, %v1412
  %v1445 = vpack.c.b16 %v1415, %v1414
  %v1446 = vpack.c.b16 %v1417, %v1416
  %v1447 = vpack.c.b16 %v1419, %v1418
  %v1448 = vpack.c.b16 %v1421, %v1420
  %v1449 = vpack.c.b16 %v1423, %v1422
  %v1450 = vpack.c.b16 %v1425, %v1424
  %v1451 = vpack.c.b16 %v1427, %v1426
  %v1452 = vpack.c.b16 %v1429, %v1428
  %v1453 = vpack.c.b16 %v1431, %v1430
  %v1454 = vpack.c.b16 %v1433, %v1432
  %v1455 = vpack.c.b16 %v1435, %v1434
  %v1456 = vpack.c.b16 %v1437, %v1436
  %v1457 = vpack.c.b16 %v1439, %v1438
  %vm1476 = vcmask 261120
  %v1478 = vsel %vm1476, %v1330, 0
  %v1481 = vsel %vm1476, %v1333, 0
  %v1484 = vsel %vm1476, %v1336, 0
  %v1487 = vsel %vm1476, %v1339, 0
  %v1490 = vsel %vm1476, %v1342, 0
  %v1493 = vsel %vm1476, %v1345, 0
  %v1496 = vsel %vm1476, %v1348, 0
  %v1499 = vsel %vm1476, %v1351, 0
  %1501 = vmatprep.subr.bf16.mxu0 0
  %1502 = vmatpush1.bf16.msra.mxu0 %v1440
  %1503 = vmatprep.subr.bf16.mxu0 0
  %1504 = vmatpush1.bf16.msra.mxu0 %v1441
  %1505 = vmatprep.subr.bf16.mxu0 0
  %1506 = vmatpush1.bf16.msra.mxu0 %v1442
  %1507 = vmatprep.subr.bf16.mxu0 0
  %1508 = vmatpush1.bf16.msra.mxu0 %v1443
  %1509 = vmatprep.subr.bf16.mxu0 0
  %1510 = vmatpush1.bf16.msra.mxu0 %v1444
  %1511 = vmatprep.subr.bf16.mxu0 0
  %1512 = vmatpush1.bf16.msra.mxu0 %v1445
  %1513 = vmatprep.subr.bf16.mxu0 0
  %1514 = vmatpush1.bf16.msra.mxu0 %v1446
  %1515 = vmatprep.subr.bf16.mxu0 0
  %1516 = vmatpush1.bf16.msra.mxu0 %v1447
  %1517 = vmatprep.subr.bf16.mxu0 0
  %1518 = vmatpush1.bf16.msra.mxu0 %v1448
  %1519 = vmatprep.subr.bf16.mxu0 0
  %1520 = vmatpush1.bf16.msra.mxu0 %v1449
  %1521 = vmatprep.subr.bf16.mxu0 0
  %1522 = vmatpush1.bf16.msra.mxu0 %v1450
  %1523 = vmatprep.subr.bf16.mxu0 0
  %1524 = vmatpush1.bf16.msra.mxu0 %v1451
  %1525 = vmatprep.subr.bf16.mxu0 0
  %1526 = vmatpush1.bf16.msra.mxu0 %v1452
  %1527 = vmatprep.subr.bf16.mxu0 0
  %1528 = vmatpush1.bf16.msra.mxu0 %v1453
  %1529 = vmatprep.subr.bf16.mxu0 0
  %1530 = vmatpush1.bf16.msra.mxu0 %v1454
  %1531 = vmatprep.subr.bf16.mxu0 0
  %1532 = vmatpush1.bf16.msra.mxu0 %v1455
  %1533 = vmatprep.mubr.bf16.mxu0 %v1329
  %1534 = vmatmul.mubr.bf16.gmra.mrb[0].mxu0 %v1328
  %v1535 = vpop.f32.mrb[0].mxu0
  %v1536 = vadd.f32 %v1246, %v1535
  %v1537 = vpop.f32.mrb[0].mxu0
  %v1538 = vpop.f32.mrb[0].mxu0
  %v1539 = vadd.f32 %v1246, %v1538
  %v1540 = vpop.f32.mrb[0].mxu0
  %1541 = vmatprep.mubr.bf16.mxu0 %v1332
  %1542 = vmatmul.mubr.bf16.gmra.mrb[0].mxu0 %v1331
  %v1543 = vpop.f32.mrb[0].mxu0
  %v1544 = vadd.f32 %v1246, %v1543
  %v1545 = vpop.f32.mrb[0].mxu0
  %v1546 = vpop.f32.mrb[0].mxu0
  %v1547 = vadd.f32 %v1246, %v1546
  %v1548 = vpop.f32.mrb[0].mxu0
  %1549 = vmatprep.mubr.bf16.mxu0 %v1335
  %1550 = vmatmul.mubr.bf16.gmra.mrb[0].mxu0 %v1334
  %v1551 = vpop.f32.mrb[0].mxu0
  %v1552 = vadd.f32 %v1246, %v1551
  %v1553 = vpop.f32.mrb[0].mxu0
  %v1554 = vpop.f32.mrb[0].mxu0
  %v1555 = vadd.f32 %v1246, %v1554
  %v1556 = vpop.f32.mrb[0].mxu0
  %1557 = vmatprep.mubr.bf16.mxu0 %v1338
  %1558 = vmatmul.mubr.bf16.gmra.mrb[0].mxu0 %v1337
  %v1559 = vpop.f32.mrb[0].mxu0
  %v1560 = vadd.f32 %v1246, %v1559
  %v1561 = vpop.f32.mrb[0].mxu0
  %v1562 = vpop.f32.mrb[0].mxu0
  %v1563 = vadd.f32 %v1246, %v1562
  %v1564 = vpop.f32.mrb[0].mxu0
  %1565 = vmatprep.mubr.bf16.mxu0 %v1341
  %1566 = vmatmul.mubr.bf16.gmra.mrb[0].mxu0 %v1340
  %v1567 = vpop.f32.mrb[0].mxu0
  %v1568 = vadd.f32 %v1246, %v1567
  %v1569 = vpop.f32.mrb[0].mxu0
  %v1570 = vpop.f32.mrb[0].mxu0
  %v1571 = vadd.f32 %v1246, %v1570
  %v1572 = vpop.f32.mrb[0].mxu0
  %1573 = vmatprep.mubr.bf16.mxu0 %v1344
  %1574 = vmatmul.mubr.bf16.gmra.mrb[0].mxu0 %v1343
  %v1575 = vpop.f32.mrb[0].mxu0
  %v1576 = vadd.f32 %v1246, %v1575
  %v1577 = vpop.f32.mrb[0].mxu0
  %v1578 = vpop.f32.mrb[0].mxu0
  %v1579 = vadd.f32 %v1246, %v1578
  %v1580 = vpop.f32.mrb[0].mxu0
  %1581 = vmatprep.mubr.bf16.mxu0 %v1347
  %1582 = vmatmul.mubr.bf16.gmra.mrb[0].mxu0 %v1346
  %v1583 = vpop.f32.mrb[0].mxu0
  %v1584 = vadd.f32 %v1246, %v1583
  %v1585 = vpop.f32.mrb[0].mxu0
  %v1586 = vpop.f32.mrb[0].mxu0
  %v1587 = vadd.f32 %v1246, %v1586
  %v1588 = vpop.f32.mrb[0].mxu0
  %1589 = vmatprep.mubr.bf16.mxu0 %v1350
  %1590 = vmatmul.mubr.bf16.gmra.mrb[0].mxu0 %v1349
  %v1591 = vpop.f32.mrb[0].mxu0
  %v1592 = vadd.f32 %v1246, %v1591
  %v1593 = vpop.f32.mrb[0].mxu0
  %v1594 = vpop.f32.mrb[0].mxu0
  %v1595 = vadd.f32 %v1246, %v1594
  %v1596 = vpop.f32.mrb[0].mxu0
  %1597 = vdwg.mxu0
  %1598 = vmatprep.subr.bf16.mxu0 0
  %1599 = vmatpush1.bf16.msra.mxu0 %v1456
  %1600 = vmatprep.subr.bf16.mxu0 0
  %1601 = vmatpush1.bf16.msra.mxu0 %v1457
  %1602 = vmatprep.subr.bf16.mxu0 0
  %1603 = vmatpush1.bf16.msra.mxu0 0
  %1604 = vmatprep.subr.bf16.mxu0 0
  %1605 = vmatpush1.bf16.msra.mxu0 0
  %1606 = vmatprep.subr.bf16.mxu0 0
  %1607 = vmatpush1.bf16.msra.mxu0 0
  %1608 = vmatprep.subr.bf16.mxu0 0
  %1609 = vmatpush1.bf16.msra.mxu0 0
  %1610 = vmatprep.subr.bf16.mxu0 0
  %1611 = vmatpush1.bf16.msra.mxu0 0
  %1612 = vmatprep.subr.bf16.mxu0 0
  %1613 = vmatpush1.bf16.msra.mxu0 0
  %1614 = vmatprep.subr.bf16.mxu0 0
  %1615 = vmatpush1.bf16.msra.mxu0 0
  %1616 = vmatprep.subr.bf16.mxu0 0
  %1617 = vmatpush1.bf16.msra.mxu0 0
  %1618 = vmatprep.subr.bf16.mxu0 0
  %1619 = vmatpush1.bf16.msra.mxu0 0
  %1620 = vmatprep.subr.bf16.mxu0 0
  %1621 = vmatpush1.bf16.msra.mxu0 0
  %1622 = vmatprep.subr.bf16.mxu0 0
  %1623 = vmatpush1.bf16.msra.mxu0 0
  %1624 = vmatprep.subr.bf16.mxu0 0
  %1625 = vmatpush1.bf16.msra.mxu0 0
  %1626 = vmatprep.subr.bf16.mxu0 0
  %1627 = vmatpush1.bf16.msra.mxu0 0
  %1628 = vmatprep.subr.bf16.mxu0 0
  %1629 = vmatpush1.bf16.msra.mxu0 0
  %1630 = vmatprep.mubr.bf16.mxu0 0
  %1631 = vmatmul.mubr.bf16.gmra.mrb[0].mxu0 %v1478
  %v1632 = vpop.f32.mrb[0].mxu0
  %v1633 = vadd.f32 %v1536, %v1632
  %v1634 = vpop.f32.mrb[0].mxu0
  %v1635 = vpop.f32.mrb[0].mxu0
  %v1636 = vadd.f32 %v1539, %v1635
  %v1637 = vpop.f32.mrb[0].mxu0
  %1638 = vmatprep.mubr.bf16.mxu0 0
  %1639 = vmatmul.mubr.bf16.gmra.mrb[0].mxu0 %v1481
  %v1640 = vpop.f32.mrb[0].mxu0
  %v1641 = vadd.f32 %v1544, %v1640
  %v1642 = vpop.f32.mrb[0].mxu0
  %v1643 = vpop.f32.mrb[0].mxu0
  %v1644 = vadd.f32 %v1547, %v1643
  %v1645 = vpop.f32.mrb[0].mxu0
  %1646 = vmatprep.mubr.bf16.mxu0 0
  %1647 = vmatmul.mubr.bf16.gmra.mrb[0].mxu0 %v1484
  %v1648 = vpop.f32.mrb[0].mxu0
  %v1649 = vadd.f32 %v1552, %v1648
  %v1650 = vpop.f32.mrb[0].mxu0
  %v1651 = vpop.f32.mrb[0].mxu0
  %v1652 = vadd.f32 %v1555, %v1651
  %v1653 = vpop.f32.mrb[0].mxu0
  %1654 = vmatprep.mubr.bf16.mxu0 0
  %1655 = vmatmul.mubr.bf16.gmra.mrb[0].mxu0 %v1487
  %v1656 = vpop.f32.mrb[0].mxu0
  %v1657 = vadd.f32 %v1560, %v1656
  %v1658 = vpop.f32.mrb[0].mxu0
  %v1659 = vpop.f32.mrb[0].mxu0
  %v1660 = vadd.f32 %v1563, %v1659
  %v1661 = vpop.f32.mrb[0].mxu0
  %1662 = vmatprep.mubr.bf16.mxu0 0
  %1663 = vmatmul.mubr.bf16.gmra.mrb[0].mxu0 %v1490
  %v1664 = vpop.f32.mrb[0].mxu0
  %v1665 = vadd.f32 %v1568, %v1664
  %v1666 = vpop.f32.mrb[0].mxu0
  %v1667 = vpop.f32.mrb[0].mxu0
  %v1668 = vadd.f32 %v1571, %v1667
  %v1669 = vpop.f32.mrb[0].mxu0
  %1670 = vmatprep.mubr.bf16.mxu0 0
  %1671 = vmatmul.mubr.bf16.gmra.mrb[0].mxu0 %v1493
  %v1672 = vpop.f32.mrb[0].mxu0
  %v1673 = vadd.f32 %v1576, %v1672
  %v1674 = vpop.f32.mrb[0].mxu0
  %v1675 = vpop.f32.mrb[0].mxu0
  %v1676 = vadd.f32 %v1579, %v1675
  %v1677 = vpop.f32.mrb[0].mxu0
  %1678 = vmatprep.mubr.bf16.mxu0 0
  %1679 = vmatmul.mubr.bf16.gmra.mrb[0].mxu0 %v1496
  %v1680 = vpop.f32.mrb[0].mxu0
  %v1681 = vadd.f32 %v1584, %v1680
  %v1682 = vpop.f32.mrb[0].mxu0
  %v1683 = vpop.f32.mrb[0].mxu0
  %v1684 = vadd.f32 %v1587, %v1683
  %v1685 = vpop.f32.mrb[0].mxu0
  %1686 = vmatprep.mubr.bf16.mxu0 0
  %1687 = vmatmul.mubr.bf16.gmra.mrb[0].mxu0 %v1499
  %v1688 = vpop.f32.mrb[0].mxu0
  %v1689 = vadd.f32 %v1592, %v1688
  %v1690 = vpop.f32.mrb[0].mxu0
  %v1691 = vpop.f32.mrb[0].mxu0
  %v1692 = vadd.f32 %v1595, %v1691
  %v1693 = vpop.f32.mrb[0].mxu0
  %1694 = vdwg.mxu0
  %v1695 = vadd.f32 %v1633, 2.0
  %v1696 = vadd.f32 %v1636, 2.0
  %v1697 = vadd.f32 %v1641, 2.0
  %v1698 = vadd.f32 %v1644, 2.0
  %v1699 = vadd.f32 %v1649, 2.0
  %v1700 = vadd.f32 %v1652, 2.0
  %v1701 = vadd.f32 %v1657, 2.0
  %v1702 = vadd.f32 %v1660, 2.0
  %v1703 = vadd.f32 %v1665, 2.0
  %v1704 = vadd.f32 %v1668, 2.0
  %v1705 = vadd.f32 %v1673, 2.0
  %v1706 = vadd.f32 %v1676, 2.0
  %v1707 = vadd.f32 %v1681, 2.0
  %v1708 = vadd.f32 %v1684, 2.0
  %v1709 = vadd.f32 %v1689, 2.0
  %v1710 = vadd.f32 %v1692, 2.0
  %v1711 = vxor.u32 %v1695, 2147483648
  %v1712 = vxor.u32 %v1696, 2147483648
  %v1713 = vxor.u32 %v1697, 2147483648
  %v1714 = vxor.u32 %v1698, 2147483648
  %v1715 = vxor.u32 %v1699, 2147483648
  %v1716 = vxor.u32 %v1700, 2147483648
  %v1717 = vxor.u32 %v1701, 2147483648
  %v1718 = vxor.u32 %v1702, 2147483648
  %v1719 = vxor.u32 %v1703, 2147483648
  %v1720 = vxor.u32 %v1704, 2147483648
  %v1721 = vxor.u32 %v1705, 2147483648
  %v1722 = vxor.u32 %v1706, 2147483648
  %v1723 = vxor.u32 %v1707, 2147483648
  %v1724 = vxor.u32 %v1708, 2147483648
  %v1725 = vxor.u32 %v1709, 2147483648
  %v1726 = vxor.u32 %v1710, 2147483648
  %v1727 = vmul.f32 %v1711, 1.442695
  %v1728 = vpow.pop %v1727
  %v1729 = vmul.f32 %v1712, 1.442695
  %v1730 = vpow.pop %v1729
  %v1731 = vmul.f32 %v1713, 1.442695
  %v1732 = vpow.pop %v1731
  %v1733 = vmul.f32 %v1714, 1.442695
  %v1734 = vpow.pop %v1733
  %v1735 = vmul.f32 %v1715, 1.442695
  %v1736 = vpow.pop %v1735
  %v1737 = vmul.f32 %v1716, 1.442695
  %v1738 = vpow.pop %v1737
  %v1739 = vmul.f32 %v1717, 1.442695
  %v1740 = vpow.pop %v1739
  %v1741 = vmul.f32 %v1718, 1.442695
  %v1742 = vpow.pop %v1741
  %v1743 = vmul.f32 %v1719, 1.442695
  %v1744 = vpow.pop %v1743
  %v1745 = vmul.f32 %v1720, 1.442695
  %v1746 = vpow.pop %v1745
  %v1747 = vmul.f32 %v1721, 1.442695
  %v1748 = vpow.pop %v1747
  %v1749 = vmul.f32 %v1722, 1.442695
  %v1750 = vpow.pop %v1749
  %v1751 = vmul.f32 %v1723, 1.442695
  %v1752 = vpow.pop %v1751
  %v1753 = vmul.f32 %v1724, 1.442695
  %v1754 = vpow.pop %v1753
  %v1755 = vmul.f32 %v1725, 1.442695
  %v1756 = vpow.pop %v1755
  %v1757 = vmul.f32 %v1726, 1.442695
  %v1758 = vpow.pop %v1757
  %v1759 = vadd.f32 %v1728, 1.0
  %v1760 = vadd.f32 %v1730, 1.0
  %v1761 = vadd.f32 %v1732, 1.0
  %v1762 = vadd.f32 %v1734, 1.0
  %v1763 = vadd.f32 %v1736, 1.0
  %v1764 = vadd.f32 %v1738, 1.0
  %v1765 = vadd.f32 %v1740, 1.0
  %v1766 = vadd.f32 %v1742, 1.0
  %v1767 = vadd.f32 %v1744, 1.0
  %v1768 = vadd.f32 %v1746, 1.0
  %v1769 = vadd.f32 %v1748, 1.0
  %v1770 = vadd.f32 %v1750, 1.0
  %v1771 = vadd.f32 %v1752, 1.0
  %v1772 = vadd.f32 %v1754, 1.0
  %v1773 = vadd.f32 %v1756, 1.0
  %v1774 = vadd.f32 %v1758, 1.0
  %v1775 = vrcp.pop %v1759
  %v1776 = vmul.f32 1.0, %v1775
  %v1777 = vrcp.pop %v1760
  %v1778 = vmul.f32 1.0, %v1777
  %v1779 = vrcp.pop %v1761
  %v1780 = vmul.f32 1.0, %v1779
  %v1781 = vrcp.pop %v1762
  %v1782 = vmul.f32 1.0, %v1781
  %v1783 = vrcp.pop %v1763
  %v1784 = vmul.f32 1.0, %v1783
  %v1785 = vrcp.pop %v1764
  %v1786 = vmul.f32 1.0, %v1785
  %v1787 = vrcp.pop %v1765
  %v1788 = vmul.f32 1.0, %v1787
  %v1789 = vrcp.pop %v1766
  %v1790 = vmul.f32 1.0, %v1789
  %v1791 = vrcp.pop %v1767
  %v1792 = vmul.f32 1.0, %v1791
  %v1793 = vrcp.pop %v1768
  %v1794 = vmul.f32 1.0, %v1793
  %v1795 = vrcp.pop %v1769
  %v1796 = vmul.f32 1.0, %v1795
  %v1797 = vrcp.pop %v1770
  %v1798 = vmul.f32 1.0, %v1797
  %v1799 = vrcp.pop %v1771
  %v1800 = vmul.f32 1.0, %v1799
  %v1801 = vrcp.pop %v1772
  %v1802 = vmul.f32 1.0, %v1801
  %v1803 = vrcp.pop %v1773
  %v1804 = vmul.f32 1.0, %v1803
  %v1805 = vrcp.pop %v1774
  %v1806 = vmul.f32 1.0, %v1805
  %v1807 = vld [vmem:[%s1] sm:$0xff]
  %v1808 = vld [vmem:[%s1 + $0x8] sm:$0xff]
  %v1809 = vld [vmem:[%s1 + $0x10] sm:$0xff]
  %v1810 = vld [vmem:[%s1 + $0x18] sm:$0xff]
  %v1811 = vld [vmem:[%s1 + $0x20] sm:$0xff]
  %v1812 = vld [vmem:[%s1 + $0x28] sm:$0xff]
  %v1813 = vld [vmem:[%s1 + $0x30] sm:$0xff]
  %v1814 = vld [vmem:[%s1 + $0x38] sm:$0xff]
  %v1815 = vld [vmem:[%s1 + $0x40] sm:$0xff]
  %v1816 = vld [vmem:[%s1 + $0x48] sm:$0xff]
  %v1817 = vld [vmem:[%s1 + $0x50] sm:$0xff]
  %v1818 = vld [vmem:[%s1 + $0x58] sm:$0xff]
  %v1819 = vld [vmem:[%s1 + $0x60] sm:$0xff]
  %v1820 = vld [vmem:[%s1 + $0x68] sm:$0xff]
  %v1821 = vld [vmem:[%s1 + $0x70] sm:$0xff]
  %v1822 = vld [vmem:[%s1 + $0x78] sm:$0xff]
  %1839 = vrot.lane.b32.xlu0 %v1807, 8
  %v1840 = vpop.permute.xlu0 %1839
  %1841 = vrot.lane.b32.xlu0 %v1808, 8
  %v1842 = vpop.permute.xlu0 %1841
  %1843 = vrot.lane.b32.xlu0 %v1809, 8
  %v1844 = vpop.permute.xlu0 %1843
  %1845 = vrot.lane.b32.xlu0 %v1810, 8
  %v1846 = vpop.permute.xlu0 %1845
  %1847 = vrot.lane.b32.xlu0 %v1811, 8
  %v1848 = vpop.permute.xlu0 %1847
  %1849 = vrot.lane.b32.xlu0 %v1812, 8
  %v1850 = vpop.permute.xlu0 %1849
  %1851 = vrot.lane.b32.xlu0 %v1813, 8
  %v1852 = vpop.permute.xlu0 %1851
  %1853 = vrot.lane.b32.xlu0 %v1814, 8
  %v1854 = vpop.permute.xlu0 %1853
  %1855 = vrot.lane.b32.xlu0 %v1815, 8
  %v1856 = vpop.permute.xlu0 %1855
  %1857 = vrot.lane.b32.xlu0 %v1816, 8
  %v1858 = vpop.permute.xlu0 %1857
  %1859 = vrot.lane.b32.xlu0 %v1817, 8
  %v1860 = vpop.permute.xlu0 %1859
  %1861 = vrot.lane.b32.xlu0 %v1818, 8
  %v1862 = vpop.permute.xlu0 %1861
  %1863 = vrot.lane.b32.xlu0 %v1819, 8
  %v1864 = vpop.permute.xlu0 %1863
  %1865 = vrot.lane.b32.xlu0 %v1820, 8
  %v1866 = vpop.permute.xlu0 %1865
  %1867 = vrot.lane.b32.xlu0 %v1821, 8
  %v1868 = vpop.permute.xlu0 %1867
  %1869 = vrot.lane.b32.xlu0 %v1822, 8
  %v1870 = vpop.permute.xlu0 %1869
  %v1887 = vmul.f32 %v1776, %v1840
  %v1888 = vmul.f32 %v1778, %v1842
  %v1889 = vmul.f32 %v1780, %v1844
  %v1890 = vmul.f32 %v1782, %v1846
  %v1891 = vmul.f32 %v1784, %v1848
  %v1892 = vmul.f32 %v1786, %v1850
  %v1893 = vmul.f32 %v1788, %v1852
  %v1894 = vmul.f32 %v1790, %v1854
  %v1895 = vmul.f32 %v1792, %v1856
  %v1896 = vmul.f32 %v1794, %v1858
  %v1897 = vmul.f32 %v1796, %v1860
  %v1898 = vmul.f32 %v1798, %v1862
  %v1899 = vmul.f32 %v1800, %v1864
  %v1900 = vmul.f32 %v1802, %v1866
  %v1901 = vmul.f32 %v1804, %v1868
  %v1902 = vmul.f32 %v1806, %v1870
  %1919 = vrot.lane.b32.xlu0 %v1633, 8
  %v1920 = vpop.permute.xlu0 %1919
  %1921 = vrot.lane.b32.xlu0 %v1636, 8
  %v1922 = vpop.permute.xlu0 %1921
  %1923 = vrot.lane.b32.xlu0 %v1641, 8
  %v1924 = vpop.permute.xlu0 %1923
  %1925 = vrot.lane.b32.xlu0 %v1644, 8
  %v1926 = vpop.permute.xlu0 %1925
  %1927 = vrot.lane.b32.xlu0 %v1649, 8
  %v1928 = vpop.permute.xlu0 %1927
  %1929 = vrot.lane.b32.xlu0 %v1652, 8
  %v1930 = vpop.permute.xlu0 %1929
  %1931 = vrot.lane.b32.xlu0 %v1657, 8
  %v1932 = vpop.permute.xlu0 %1931
  %1933 = vrot.lane.b32.xlu0 %v1660, 8
  %v1934 = vpop.permute.xlu0 %1933
  %1935 = vrot.lane.b32.xlu0 %v1665, 8
  %v1936 = vpop.permute.xlu0 %1935
  %1937 = vrot.lane.b32.xlu0 %v1668, 8
  %v1938 = vpop.permute.xlu0 %1937
  %1939 = vrot.lane.b32.xlu0 %v1673, 8
  %v1940 = vpop.permute.xlu0 %1939
  %1941 = vrot.lane.b32.xlu0 %v1676, 8
  %v1942 = vpop.permute.xlu0 %1941
  %1943 = vrot.lane.b32.xlu0 %v1681, 8
  %v1944 = vpop.permute.xlu0 %1943
  %1945 = vrot.lane.b32.xlu0 %v1684, 8
  %v1946 = vpop.permute.xlu0 %1945
  %1947 = vrot.lane.b32.xlu0 %v1689, 8
  %v1948 = vpop.permute.xlu0 %1947
  %1949 = vrot.lane.b32.xlu0 %v1692, 8
  %v1950 = vpop.permute.xlu0 %1949
  %v1967 = vadd.f32 %v1887, %v1920
  %v1968 = vadd.f32 %v1888, %v1922
  %v1969 = vadd.f32 %v1889, %v1924
  %v1970 = vadd.f32 %v1890, %v1926
  %v1971 = vadd.f32 %v1891, %v1928
  %v1972 = vadd.f32 %v1892, %v1930
  %v1973 = vadd.f32 %v1893, %v1932
  %v1974 = vadd.f32 %v1894, %v1934
  %v1975 = vadd.f32 %v1895, %v1936
  %v1976 = vadd.f32 %v1896, %v1938
  %v1977 = vadd.f32 %v1897, %v1940
  %v1978 = vadd.f32 %v1898, %v1942
  %v1979 = vadd.f32 %v1899, %v1944
  %v1980 = vadd.f32 %v1900, %v1946
  %v1981 = vadd.f32 %v1901, %v1948
  %v1982 = vadd.f32 %v1902, %v1950
  %v1983 = vmax.f32 %v1967, -1e+09
  %v1984 = vmax.f32 %v1968, -1e+09
  %v1985 = vmax.f32 %v1969, -1e+09
  %v1986 = vmax.f32 %v1970, -1e+09
  %v1987 = vmax.f32 %v1971, -1e+09
  %v1988 = vmax.f32 %v1972, -1e+09
  %v1989 = vmax.f32 %v1973, -1e+09
  %v1990 = vmax.f32 %v1974, -1e+09
  %v1991 = vmax.f32 %v1975, -1e+09
  %v1992 = vmax.f32 %v1976, -1e+09
  %v1993 = vmax.f32 %v1977, -1e+09
  %v1994 = vmax.f32 %v1978, -1e+09
  %v1995 = vmax.f32 %v1979, -1e+09
  %v1996 = vmax.f32 %v1980, -1e+09
  %v1997 = vmax.f32 %v1981, -1e+09
  %v1998 = vmax.f32 %v1982, -1e+09
  %v1999 = vmin.f32 %v1983, 1e+09
  %v2000 = vmin.f32 %v1984, 1e+09
  %v2001 = vmin.f32 %v1985, 1e+09
  %v2002 = vmin.f32 %v1986, 1e+09
  %v2003 = vmin.f32 %v1987, 1e+09
  %v2004 = vmin.f32 %v1988, 1e+09
  %v2005 = vmin.f32 %v1989, 1e+09
  %v2006 = vmin.f32 %v1990, 1e+09
  %v2007 = vmin.f32 %v1991, 1e+09
  %v2008 = vmin.f32 %v1992, 1e+09
  %v2009 = vmin.f32 %v1993, 1e+09
  %v2010 = vmin.f32 %v1994, 1e+09
  %v2011 = vmin.f32 %v1995, 1e+09
  %v2012 = vmin.f32 %v1996, 1e+09
  %v2013 = vmin.f32 %v1997, 1e+09
  %v2014 = vmin.f32 %v1998, 1e+09
  %2031 = vrot.lane.b32.xlu0 %v1999, 120
  %v2032 = vpop.permute.xlu0 %2031
  %2033 = vrot.lane.b32.xlu0 %v2000, 120
  %v2034 = vpop.permute.xlu0 %2033
  %2035 = vrot.lane.b32.xlu0 %v2001, 120
  %v2036 = vpop.permute.xlu0 %2035
  %2037 = vrot.lane.b32.xlu0 %v2002, 120
  %v2038 = vpop.permute.xlu0 %2037
  %2039 = vrot.lane.b32.xlu0 %v2003, 120
  %v2040 = vpop.permute.xlu0 %2039
  %2041 = vrot.lane.b32.xlu0 %v2004, 120
  %v2042 = vpop.permute.xlu0 %2041
  %2043 = vrot.lane.b32.xlu0 %v2005, 120
  %v2044 = vpop.permute.xlu0 %2043
  %2045 = vrot.lane.b32.xlu0 %v2006, 120
  %v2046 = vpop.permute.xlu0 %2045
  %2047 = vrot.lane.b32.xlu0 %v2007, 120
  %v2048 = vpop.permute.xlu0 %2047
  %2049 = vrot.lane.b32.xlu0 %v2008, 120
  %v2050 = vpop.permute.xlu0 %2049
  %2051 = vrot.lane.b32.xlu0 %v2009, 120
  %v2052 = vpop.permute.xlu0 %2051
  %2053 = vrot.lane.b32.xlu0 %v2010, 120
  %v2054 = vpop.permute.xlu0 %2053
  %2055 = vrot.lane.b32.xlu0 %v2011, 120
  %v2056 = vpop.permute.xlu0 %2055
  %2057 = vrot.lane.b32.xlu0 %v2012, 120
  %v2058 = vpop.permute.xlu0 %2057
  %2059 = vrot.lane.b32.xlu0 %v2013, 120
  %v2060 = vpop.permute.xlu0 %2059
  %2061 = vrot.lane.b32.xlu0 %v2014, 120
  %v2062 = vpop.permute.xlu0 %2061
  %vm2079 = vcmask 64512
  %2080 = vst.msk [vmem:[%s5] sm:$0xff] %vm2079, %v2032
  %2081 = vst.msk [vmem:[%s5 + $0x8] sm:$0xff] %vm2079, %v2034
  %2082 = vst.msk [vmem:[%s5 + $0x10] sm:$0xff] %vm2079, %v2036
  %2083 = vst.msk [vmem:[%s5 + $0x18] sm:$0xff] %vm2079, %v2038
  %2084 = vst.msk [vmem:[%s5 + $0x20] sm:$0xff] %vm2079, %v2040
  %2085 = vst.msk [vmem:[%s5 + $0x28] sm:$0xff] %vm2079, %v2042
  %2086 = vst.msk [vmem:[%s5 + $0x30] sm:$0xff] %vm2079, %v2044
  %2087 = vst.msk [vmem:[%s5 + $0x38] sm:$0xff] %vm2079, %v2046
  %2088 = vst.msk [vmem:[%s5 + $0x40] sm:$0xff] %vm2079, %v2048
  %2089 = vst.msk [vmem:[%s5 + $0x48] sm:$0xff] %vm2079, %v2050
  %2090 = vst.msk [vmem:[%s5 + $0x50] sm:$0xff] %vm2079, %v2052
  %2091 = vst.msk [vmem:[%s5 + $0x58] sm:$0xff] %vm2079, %v2054
  %2092 = vst.msk [vmem:[%s5 + $0x60] sm:$0xff] %vm2079, %v2056
  %2093 = vst.msk [vmem:[%s5 + $0x68] sm:$0xff] %vm2079, %v2058
  %2094 = vst.msk [vmem:[%s5 + $0x70] sm:$0xff] %vm2079, %v2060
  %2095 = vst.msk [vmem:[%s5 + $0x78] sm:$0xff] %vm2079, %v2062
  %vm2096 = vcmask 130112
  %v2097 = vsel %vm2096, %v1999, 0.0
  %v2098 = vsel %vm2096, %v2000, 0.0
  %v2099 = vadd.f32 %v2097, %v2098
  %v2100 = vsel %vm2096, %v2001, 0.0
  %v2101 = vadd.f32 %v2099, %v2100
  %v2102 = vsel %vm2096, %v2002, 0.0
  %v2103 = vadd.f32 %v2101, %v2102
  %v2104 = vsel %vm2096, %v2003, 0.0
  %v2105 = vadd.f32 %v2103, %v2104
  %v2106 = vsel %vm2096, %v2004, 0.0
  %v2107 = vadd.f32 %v2105, %v2106
  %v2108 = vsel %vm2096, %v2005, 0.0
  %v2109 = vadd.f32 %v2107, %v2108
  %v2110 = vsel %vm2096, %v2006, 0.0
  %v2111 = vadd.f32 %v2109, %v2110
  %v2112 = vsel %vm2096, %v2007, 0.0
  %v2113 = vadd.f32 %v2111, %v2112
  %v2114 = vsel %vm2096, %v2008, 0.0
  %v2115 = vadd.f32 %v2113, %v2114
  %v2116 = vsel %vm2096, %v2009, 0.0
  %v2117 = vadd.f32 %v2115, %v2116
  %v2118 = vsel %vm2096, %v2010, 0.0
  %v2119 = vadd.f32 %v2117, %v2118
  %v2120 = vsel %vm2096, %v2011, 0.0
  %v2121 = vadd.f32 %v2119, %v2120
  %v2122 = vsel %vm2096, %v2012, 0.0
  %v2123 = vadd.f32 %v2121, %v2122
  %v2124 = vsel %vm2096, %v2013, 0.0
  %v2125 = vadd.f32 %v2123, %v2124
  %v2126 = vsel %vm2096, %v2014, 0.0
  %v2127 = vadd.f32 %v2125, %v2126
  %v2128 = vrot.slane %v2127, 4
  %v2129 = vadd.f32 %v2127, %v2128
  %v2130 = vrot.slane %v2129, 2
  %v2131 = vadd.f32 %v2129, %v2130
  %v2132 = vrot.slane %v2131, 1
  %v2133 = vadd.f32 %v2131, %v2132
  %v2134 = vmul.f32 %v1999, %v1999
  %v2135 = vmul.f32 %v2000, %v2000
  %v2136 = vmul.f32 %v2001, %v2001
  %v2137 = vmul.f32 %v2002, %v2002
  %v2138 = vmul.f32 %v2003, %v2003
  %v2139 = vmul.f32 %v2004, %v2004
  %v2140 = vmul.f32 %v2005, %v2005
  %v2141 = vmul.f32 %v2006, %v2006
  %v2142 = vmul.f32 %v2007, %v2007
  %v2143 = vmul.f32 %v2008, %v2008
  %v2144 = vmul.f32 %v2009, %v2009
  %v2145 = vmul.f32 %v2010, %v2010
  %v2146 = vmul.f32 %v2011, %v2011
  %v2147 = vmul.f32 %v2012, %v2012
  %v2148 = vmul.f32 %v2013, %v2013
  %v2149 = vmul.f32 %v2014, %v2014
  %v2150 = vsel %vm2096, %v2134, 0.0
  %v2151 = vsel %vm2096, %v2135, 0.0
  %v2152 = vadd.f32 %v2150, %v2151
  %v2153 = vsel %vm2096, %v2136, 0.0
  %v2154 = vadd.f32 %v2152, %v2153
  %v2155 = vsel %vm2096, %v2137, 0.0
  %v2156 = vadd.f32 %v2154, %v2155
  %v2157 = vsel %vm2096, %v2138, 0.0
  %v2158 = vadd.f32 %v2156, %v2157
  %v2159 = vsel %vm2096, %v2139, 0.0
  %v2160 = vadd.f32 %v2158, %v2159
  %v2161 = vsel %vm2096, %v2140, 0.0
  %v2162 = vadd.f32 %v2160, %v2161
  %v2163 = vsel %vm2096, %v2141, 0.0
  %v2164 = vadd.f32 %v2162, %v2163
  %v2165 = vsel %vm2096, %v2142, 0.0
  %v2166 = vadd.f32 %v2164, %v2165
  %v2167 = vsel %vm2096, %v2143, 0.0
  %v2168 = vadd.f32 %v2166, %v2167
  %v2169 = vsel %vm2096, %v2144, 0.0
  %v2170 = vadd.f32 %v2168, %v2169
  %v2171 = vsel %vm2096, %v2145, 0.0
  %v2172 = vadd.f32 %v2170, %v2171
  %v2173 = vsel %vm2096, %v2146, 0.0
  %v2174 = vadd.f32 %v2172, %v2173
  %v2175 = vsel %vm2096, %v2147, 0.0
  %v2176 = vadd.f32 %v2174, %v2175
  %v2177 = vsel %vm2096, %v2148, 0.0
  %v2178 = vadd.f32 %v2176, %v2177
  %v2179 = vsel %vm2096, %v2149, 0.0
  %v2180 = vadd.f32 %v2178, %v2179
  %v2181 = vrot.slane %v2180, 4
  %v2182 = vadd.f32 %v2180, %v2181
  %v2183 = vrot.slane %v2182, 2
  %v2184 = vadd.f32 %v2182, %v2183
  %v2185 = vrot.slane %v2184, 1
  %v2186 = vadd.f32 %v2184, %v2185
  %vm2187 = vcmask 1040384
  %v2188 = vsel %vm2187, %v2133, %v2186
  %2190 = vrot.lane.b32.xlu0 %v2188, 120
  %v2191 = vpop.permute.xlu0 %2190
  %vm2193 = vcmask 58368
  %2194 = vst.msk [vmem:[%s6] sm:$0x3] %vm2193, %v2191
  // Predicated region
  $region26: #{_lambda_.10} parent=0 // pred_check
    _
  $region27: #{_lambda_.10} parent=0 // pred_check_branch
    %2196 = sbr.rel (0) target = $region29
  $region28: #{_lambda_.10} parent=0 // pred_region
    _
  $region29: #{_lambda_.10} parent=0 // pred_fallthru
    _
  // Predicated region
  $region30: #{_lambda_.10} parent=0 // pred_check
    _
  $region31: #{_lambda_.10} parent=0 // pred_check_branch
    %2198 = sbr.rel (0) target = $region33
  $region32: #{_lambda_.10} parent=0 // pred_region
    _
  $region33: #{_lambda_.10} parent=0 // pred_fallthru
    _
  // Predicated region
  $region34: #{_lambda_.10} parent=0 // pred_check
    _
  $region35: #{_lambda_.10} parent=0 // pred_check_branch
    %2200 = sbr.rel (0) target = $region37
  $region36: #{_lambda_.10} parent=0 // pred_region
    _
  $region37: #{_lambda_.10} parent=0 // pred_fallthru
    _
  // Predicated region
  $region38: #{_lambda_.10} parent=0 // pred_check
    _
  $region39: #{_lambda_.10} parent=0 // pred_check_branch
    %2202 = sbr.rel (0) target = $region41
  $region40: #{_lambda_.10} parent=0 // pred_region
    _
  $region41: #{_lambda_.10} parent=0 // pred_fallthru
    _

// kernel: _lambda_.11
$region0: #{_lambda_.11}
  #allocation0 [shape = 'u32[]', space=smem, size = 0x4, offset = 0x4, fixed_abs, tag = 'smem constant byte address 0x4 - core index']
  #allocation1 [shape = 'u32[144,128]{1,0:T(1,128)}', space=vmem, size = 0x12000, scoped, tag = 'internal scratch']
  #allocation2 [shape = 'bf16[2,8,8,72]{3,2,1,0:T(8,128)(2,1)}', space=vmem, size = 0x8000, scoped, tag = 'scratch operand']
  %s0 = inlined_call_operand.vmem [shape: f32[128,8], index: 0, kind: input, shape index: {}]
  %s1 = inlined_call_operand.vmem [shape: f32[128,8], index: 1, kind: input, shape index: {}]
  %s2 = inlined_call_operand.vmem [shape: f32[1,2,8], index: 2, kind: input, shape index: {}]
  %s3 = inlined_call_operand.vmem [shape: f32[1,2,8], index: 3, kind: input, shape index: {}]
  %s4 = inlined_call_operand.vmem [shape: bf16[8,16], index: 4, kind: input, shape index: {}]
  %s5 = inlined_call_operand.vmem [shape: bf16[8,16], index: 5, kind: input, shape index: {}]
  %s6 = inlined_call_operand.vmem [shape: bf16[72,32], index: 6, kind: input, shape index: {}]
  %s7 = inlined_call_operand.vmem [shape: f32[128,8], index: 7, kind: output, shape index: {0}]
  %s8 = inlined_call_operand.vmem [shape: f32[128,8], index: 8, kind: output, shape index: {1}]
  %s9 = inlined_call_operand.vmem [shape: bf16[128,32], index: 9, kind: output, shape index: {2}]
  %s10 = inlined_call_operand.vmem [shape: f32[1,2,32], index: 10, kind: output, shape index: {3}]
  %s11 = inlined_call_operand.hbm [shape: f32[1,2,8], index: 11, kind: output, shape index: {4}]
  %12 = xla_tuple %s7, %s8, %s9, %s10, %s11
  %s13 = sld [smem:[#allocation0]]
  $region74: #{_lambda_.11} parent=0
    _
  %s15 = ssub.s32 1, %s13
  %s16 = scalar_select 0, %s15, %s13
  $region1: #{_lambda_.11} parent=0
    #allocation3 [shape = 'u8[1024]{0}', space=vmem, size = 0x400, scoped, tag = 'output window, operand 4, single buffered']
    #allocation4 [shape = 's32[1]{0}', space=sflag, size = 0x4, scoped, tag = 'scoped memory for _lambda_.11']
    %17 = vsyncpa [#allocation4], 0
    // Predicated region
    $region2: #{_lambda_.11} parent=1 // pred_check
      _
    $region3: #{_lambda_.11} parent=1 // pred_check_branch
      %19 = sbr.rel (0) target = $region5
    $region4: #{_lambda_.11} parent=1 // pred_region
      _
    $region5: #{_lambda_.11} parent=1 // pred_fallthru
      _
    // Predicated region
    $region6: #{_lambda_.11} parent=1 // pred_check
      _
    $region7: #{_lambda_.11} parent=1 // pred_check_branch
      %21 = sbr.rel (0) target = $region9
    $region8: #{_lambda_.11} parent=1 // pred_region
      _
    $region9: #{_lambda_.11} parent=1 // pred_fallthru
      _
    // Predicated region
    $region10: #{_lambda_.11} parent=1 // pred_check
      _
    $region11: #{_lambda_.11} parent=1 // pred_check_branch
      %23 = sbr.rel (0) target = $region13
    $region12: #{_lambda_.11} parent=1 // pred_region
      _
    $region13: #{_lambda_.11} parent=1 // pred_fallthru
      _
    // Predicated region
    $region14: #{_lambda_.11} parent=1 // pred_check
      _
    $region15: #{_lambda_.11} parent=1 // pred_check_branch
      %25 = sbr.rel (0) target = $region17
    $region16: #{_lambda_.11} parent=1 // pred_region
      _
    $region17: #{_lambda_.11} parent=1 // pred_fallthru
      _
    // Predicated region
    $region18: #{_lambda_.11} parent=1 // pred_check
      _
    $region19: #{_lambda_.11} parent=1 // pred_check_branch
      %27 = sbr.rel (0) target = $region21
    $region20: #{_lambda_.11} parent=1 // pred_region
      _
    $region21: #{_lambda_.11} parent=1 // pred_fallthru
      _
    // Predicated region
    $region22: #{_lambda_.11} parent=1 // pred_check
      _
    $region23: #{_lambda_.11} parent=1 // pred_check_branch
      %29 = sbr.rel (0) target = $region25
    $region24: #{_lambda_.11} parent=1 // pred_region
      _
    $region25: #{_lambda_.11} parent=1 // pred_fallthru
      _
    // Predicated region
    $region26: #{_lambda_.11} parent=1 // pred_check
      _
    $region27: #{_lambda_.11} parent=1 // pred_check_branch
      %31 = sbr.rel (0) target = $region29
    $region28: #{_lambda_.11} parent=1 // pred_region
      _
    $region29: #{_lambda_.11} parent=1 // pred_fallthru
      _
    %v33 = vld [vmem:[%s2] sm:$0x3]
    %v34 = vadd.f32 %v33, 0.0
    %v35 = vmul.f32 %v34, 0.0078125
    %v36 = vmul.f32 %v35, %v35
    %v38 = vrot.slane %v36, 7
    %v40 = vsub.f32 %v35, %v38
    %v41 = vmax.f32 %v40, 0.0
    %v42 = vrsqrt.pop %v41
    %v43 = vmul.f32 %v41, %v42
    %vm44 = vcmp.eq.f32.partialorder %v41, inf
    %v45 = vsel %vm44, %v41, %v43
    %vm46 = vcmp.eq.f32.partialorder %v41, 0.0
    %v47 = vand.u32 %v41, 2147483648
    %v48 = vsel %vm46, %v47, %v45
    %v49 = vadd.f32 %v48, 1e-06
    %v50 = vrcp.pop %v49
    %v51 = vmul.f32 1.0, %v50
    %v52 = vld [vmem:[%s3] sm:$0x3]
    %v53 = vadd.f32 %v52, 0.0
    %v54 = vmul.f32 %v53, 0.0078125
    %v55 = vmul.f32 %v54, %v54
    %v57 = vrot.slane %v55, 7
    %v59 = vsub.f32 %v54, %v57
    %v60 = vmax.f32 %v59, 0.0
    %v61 = vrsqrt.pop %v60
    %v62 = vmul.f32 %v60, %v61
    %vm63 = vcmp.eq.f32.partialorder %v60, inf
    %v64 = vsel %vm63, %v60, %v62
    %vm65 = vcmp.eq.f32.partialorder %v60, 0.0
    %v66 = vand.u32 %v60, 2147483648
    %v67 = vsel %vm65, %v66, %v64
    %v68 = vadd.f32 %v67, 1e-06
    %v69 = vrcp.pop %v68
    %v70 = vmul.f32 1.0, %v69
    %v71 = vld [vmem:[%s0] sm:$0xff]
    %v72 = vld [vmem:[%s0 + $0x8] sm:$0xff]
    %v73 = vld [vmem:[%s0 + $0x10] sm:$0xff]
    %v74 = vld [vmem:[%s0 + $0x18] sm:$0xff]
    %v75 = vld [vmem:[%s0 + $0x20] sm:$0xff]
    %v76 = vld [vmem:[%s0 + $0x28] sm:$0xff]
    %v77 = vld [vmem:[%s0 + $0x30] sm:$0xff]
    %v78 = vld [vmem:[%s0 + $0x38] sm:$0xff]
    %v79 = vld [vmem:[%s0 + $0x40] sm:$0xff]
    %v80 = vld [vmem:[%s0 + $0x48] sm:$0xff]
    %v81 = vld [vmem:[%s0 + $0x50] sm:$0xff]
    %v82 = vld [vmem:[%s0 + $0x58] sm:$0xff]
    %v83 = vld [vmem:[%s0 + $0x60] sm:$0xff]
    %v84 = vld [vmem:[%s0 + $0x68] sm:$0xff]
    %v85 = vld [vmem:[%s0 + $0x70] sm:$0xff]
    %v86 = vld [vmem:[%s0 + $0x78] sm:$0xff]
    %v87 = vlaneseq
    %v88 = vshrl.u32 %v87, 7
    %v89 = vsub.s32 0, %v88
    %v90 = vrot.slane %v35, %v89
    %v91 = vsub.f32 %v71, %v90
    %v92 = vsub.f32 %v72, %v90
    %v93 = vsub.f32 %v73, %v90
    %v94 = vsub.f32 %v74, %v90
    %v95 = vsub.f32 %v75, %v90
    %v96 = vsub.f32 %v76, %v90
    %v97 = vsub.f32 %v77, %v90
    %v98 = vsub.f32 %v78, %v90
    %v99 = vsub.f32 %v79, %v90
    %v100 = vsub.f32 %v80, %v90
    %v101 = vsub.f32 %v81, %v90
    %v102 = vsub.f32 %v82, %v90
    %v103 = vsub.f32 %v83, %v90
    %v104 = vsub.f32 %v84, %v90
    %v105 = vsub.f32 %v85, %v90
    %v106 = vsub.f32 %v86, %v90
    %v107 = vlaneseq
    %v108 = vshrl.u32 %v107, 7
    %v109 = vsub.s32 1, %v108
    %v110 = vrot.slane %v51, %v109
    %v111 = vmul.f32 %v91, %v110
    %v112 = vmul.f32 %v92, %v110
    %v113 = vmul.f32 %v93, %v110
    %v114 = vmul.f32 %v94, %v110
    %v115 = vmul.f32 %v95, %v110
    %v116 = vmul.f32 %v96, %v110
    %v117 = vmul.f32 %v97, %v110
    %v118 = vmul.f32 %v98, %v110
    %v119 = vmul.f32 %v99, %v110
    %v120 = vmul.f32 %v100, %v110
    %v121 = vmul.f32 %v101, %v110
    %v122 = vmul.f32 %v102, %v110
    %v123 = vmul.f32 %v103, %v110
    %v124 = vmul.f32 %v104, %v110
    %v125 = vmul.f32 %v105, %v110
    %v126 = vmul.f32 %v106, %v110
    %v127 = vld [vmem:[%s1] sm:$0xff]
    %v128 = vld [vmem:[%s1 + $0x8] sm:$0xff]
    %v129 = vld [vmem:[%s1 + $0x10] sm:$0xff]
    %v130 = vld [vmem:[%s1 + $0x18] sm:$0xff]
    %v131 = vld [vmem:[%s1 + $0x20] sm:$0xff]
    %v132 = vld [vmem:[%s1 + $0x28] sm:$0xff]
    %v133 = vld [vmem:[%s1 + $0x30] sm:$0xff]
    %v134 = vld [vmem:[%s1 + $0x38] sm:$0xff]
    %v135 = vld [vmem:[%s1 + $0x40] sm:$0xff]
    %v136 = vld [vmem:[%s1 + $0x48] sm:$0xff]
    %v137 = vld [vmem:[%s1 + $0x50] sm:$0xff]
    %v138 = vld [vmem:[%s1 + $0x58] sm:$0xff]
    %v139 = vld [vmem:[%s1 + $0x60] sm:$0xff]
    %v140 = vld [vmem:[%s1 + $0x68] sm:$0xff]
    %v141 = vld [vmem:[%s1 + $0x70] sm:$0xff]
    %v142 = vld [vmem:[%s1 + $0x78] sm:$0xff]
    %v143 = vlaneseq
    %v144 = vshrl.u32 %v143, 7
    %v145 = vsub.s32 0, %v144
    %v146 = vrot.slane %v54, %v145
    %v147 = vsub.f32 %v127, %v146
    %v148 = vsub.f32 %v128, %v146
    %v149 = vsub.f32 %v129, %v146
    %v150 = vsub.f32 %v130, %v146
    %v151 = vsub.f32 %v131, %v146
    %v152 = vsub.f32 %v132, %v146
    %v153 = vsub.f32 %v133, %v146
    %v154 = vsub.f32 %v134, %v146
    %v155 = vsub.f32 %v135, %v146
    %v156 = vsub.f32 %v136, %v146
    %v157 = vsub.f32 %v137, %v146
    %v158 = vsub.f32 %v138, %v146
    %v159 = vsub.f32 %v139, %v146
    %v160 = vsub.f32 %v140, %v146
    %v161 = vsub.f32 %v141, %v146
    %v162 = vsub.f32 %v142, %v146
    %v163 = vlaneseq
    %v164 = vshrl.u32 %v163, 7
    %v165 = vsub.s32 1, %v164
    %v166 = vrot.slane %v70, %v165
    %v167 = vmul.f32 %v147, %v166
    %v168 = vmul.f32 %v148, %v166
    %v169 = vmul.f32 %v149, %v166
    %v170 = vmul.f32 %v150, %v166
    %v171 = vmul.f32 %v151, %v166
    %v172 = vmul.f32 %v152, %v166
    %v173 = vmul.f32 %v153, %v166
    %v174 = vmul.f32 %v154, %v166
    %v175 = vmul.f32 %v155, %v166
    %v176 = vmul.f32 %v156, %v166
    %v177 = vmul.f32 %v157, %v166
    %v178 = vmul.f32 %v158, %v166
    %v179 = vmul.f32 %v159, %v166
    %v180 = vmul.f32 %v160, %v166
    %v181 = vmul.f32 %v161, %v166
    %v182 = vmul.f32 %v162, %v166
    %v183 = vpack.c.bf16 %v112, %v111
    %v184 = vpack.c.bf16 %v114, %v113
    %v185 = vpack.c.bf16 %v116, %v115
    %v186 = vpack.c.bf16 %v118, %v117
    %v187 = vpack.c.bf16 %v120, %v119
    %v188 = vpack.c.bf16 %v122, %v121
    %v189 = vpack.c.bf16 %v124, %v123
    %v190 = vpack.c.bf16 %v126, %v125
    %v191 = vld [vmem:[%s4] sm:$0xf]
    %v192 = vpack.c.bf16 %v168, %v167
    %v193 = vpack.c.bf16 %v170, %v169
    %v194 = vpack.c.bf16 %v172, %v171
    %v195 = vpack.c.bf16 %v174, %v173
    %v196 = vpack.c.bf16 %v176, %v175
    %v197 = vpack.c.bf16 %v178, %v177
    %v198 = vpack.c.bf16 %v180, %v179
    %v199 = vpack.c.bf16 %v182, %v181
    %v200 = vld [vmem:[%s5] sm:$0xf]
    %vm201 = vcmask 64512
    %v203 = vsel %vm201, %v192, 0
    %v206 = vsel %vm201, %v193, 0
    %v209 = vsel %vm201, %v194, 0
    %v212 = vsel %vm201, %v195, 0
    %v215 = vsel %vm201, %v196, 0
    %v218 = vsel %vm201, %v197, 0
    %v221 = vsel %vm201, %v198, 0
    %v224 = vsel %vm201, %v199, 0
    %vm226 = vcmask 1043456
    %v228 = vsel %vm226, %v200, 0
    %230 = vmatprep.subr.bf16.mxu0 0
    %231 = vmatpush1.bf16.msra.mxu0 %v228
    %232 = vmatprep.subr.bf16.mxu0 0
    %233 = vmatpush1.bf16.msra.mxu0 0
    %234 = vmatprep.subr.bf16.mxu0 0
    %235 = vmatpush1.bf16.msra.mxu0 0
    %236 = vmatprep.subr.bf16.mxu0 0
    %237 = vmatpush1.bf16.msra.mxu0 0
    %238 = vmatprep.subr.bf16.mxu0 0
    %239 = vmatpush1.bf16.msra.mxu0 0
    %240 = vmatprep.subr.bf16.mxu0 0
    %241 = vmatpush1.bf16.msra.mxu0 0
    %242 = vmatprep.subr.bf16.mxu0 0
    %243 = vmatpush1.bf16.msra.mxu0 0
    %244 = vmatprep.subr.bf16.mxu0 0
    %245 = vmatpush1.bf16.msra.mxu0 0
    %246 = vmatprep.subr.bf16.mxu0 0
    %247 = vmatpush1.bf16.msra.mxu0 0
    %248 = vmatprep.subr.bf16.mxu0 0
    %249 = vmatpush1.bf16.msra.mxu0 0
    %250 = vmatprep.subr.bf16.mxu0 0
    %251 = vmatpush1.bf16.msra.mxu0 0
    %252 = vmatprep.subr.bf16.mxu0 0
    %253 = vmatpush1.bf16.msra.mxu0 0
    %254 = vmatprep.subr.bf16.mxu0 0
    %255 = vmatpush1.bf16.msra.mxu0 0
    %256 = vmatprep.subr.bf16.mxu0 0
    %257 = vmatpush1.bf16.msra.mxu0 0
    %258 = vmatprep.subr.bf16.mxu0 0
    %259 = vmatpush1.bf16.msra.mxu0 0
    %260 = vmatprep.subr.bf16.mxu0 0
    %261 = vmatpush1.bf16.msra.mxu0 0
    %262 = vmatprep.mubr.bf16.mxu0 0
    %263 = vmatmul.mubr.bf16.gmra.mrb[0].mxu0 %v203
    %v264 = vpop.f32.mrb[0].mxu0
    %v265 = vadd.f32 0.0, %v264
    %v266 = vpop.f32.mrb[0].mxu0
    %v267 = vpop.f32.mrb[0].mxu0
    %v268 = vadd.f32 0.0, %v267
    %v269 = vpop.f32.mrb[0].mxu0
    %270 = vmatprep.mubr.bf16.mxu0 0
    %271 = vmatmul.mubr.bf16.gmra.mrb[0].mxu0 %v206
    %v272 = vpop.f32.mrb[0].mxu0
    %v273 = vadd.f32 0.0, %v272
    %v274 = vpop.f32.mrb[0].mxu0
    %v275 = vpop.f32.mrb[0].mxu0
    %v276 = vadd.f32 0.0, %v275
    %v277 = vpop.f32.mrb[0].mxu0
    %278 = vmatprep.mubr.bf16.mxu0 0
    %279 = vmatmul.mubr.bf16.gmra.mrb[0].mxu0 %v209
    %v280 = vpop.f32.mrb[0].mxu0
    %v281 = vadd.f32 0.0, %v280
    %v282 = vpop.f32.mrb[0].mxu0
    %v283 = vpop.f32.mrb[0].mxu0
    %v284 = vadd.f32 0.0, %v283
    %v285 = vpop.f32.mrb[0].mxu0
    %286 = vmatprep.mubr.bf16.mxu0 0
    %287 = vmatmul.mubr.bf16.gmra.mrb[0].mxu0 %v212
    %v288 = vpop.f32.mrb[0].mxu0
    %v289 = vadd.f32 0.0, %v288
    %v290 = vpop.f32.mrb[0].mxu0
    %v291 = vpop.f32.mrb[0].mxu0
    %v292 = vadd.f32 0.0, %v291
    %v293 = vpop.f32.mrb[0].mxu0
    %294 = vmatprep.mubr.bf16.mxu0 0
    %295 = vmatmul.mubr.bf16.gmra.mrb[0].mxu0 %v215
    %v296 = vpop.f32.mrb[0].mxu0
    %v297 = vadd.f32 0.0, %v296
    %v298 = vpop.f32.mrb[0].mxu0
    %v299 = vpop.f32.mrb[0].mxu0
    %v300 = vadd.f32 0.0, %v299
    %v301 = vpop.f32.mrb[0].mxu0
    %302 = vmatprep.mubr.bf16.mxu0 0
    %303 = vmatmul.mubr.bf16.gmra.mrb[0].mxu0 %v218
    %v304 = vpop.f32.mrb[0].mxu0
    %v305 = vadd.f32 0.0, %v304
    %v306 = vpop.f32.mrb[0].mxu0
    %v307 = vpop.f32.mrb[0].mxu0
    %v308 = vadd.f32 0.0, %v307
    %v309 = vpop.f32.mrb[0].mxu0
    %310 = vmatprep.mubr.bf16.mxu0 0
    %311 = vmatmul.mubr.bf16.gmra.mrb[0].mxu0 %v221
    %v312 = vpop.f32.mrb[0].mxu0
    %v313 = vadd.f32 0.0, %v312
    %v314 = vpop.f32.mrb[0].mxu0
    %v315 = vpop.f32.mrb[0].mxu0
    %v316 = vadd.f32 0.0, %v315
    %v317 = vpop.f32.mrb[0].mxu0
    %318 = vmatprep.mubr.bf16.mxu0 0
    %319 = vmatmul.mubr.bf16.gmra.mrb[0].mxu0 %v224
    %v320 = vpop.f32.mrb[0].mxu0
    %v321 = vadd.f32 0.0, %v320
    %v322 = vpop.f32.mrb[0].mxu0
    %v323 = vpop.f32.mrb[0].mxu0
    %v324 = vadd.f32 0.0, %v323
    %v325 = vpop.f32.mrb[0].mxu0
    %326 = vdwg.mxu0
    %v328 = vsel %vm201, %v183, 0
    %v331 = vsel %vm201, %v184, 0
    %v334 = vsel %vm201, %v185, 0
    %v337 = vsel %vm201, %v186, 0
    %v340 = vsel %vm201, %v187, 0
    %v343 = vsel %vm201, %v188, 0
    %v346 = vsel %vm201, %v189, 0
    %v349 = vsel %vm201, %v190, 0
    %v352 = vsel %vm226, %v191, 0
    %354 = vmatprep.subr.bf16.mxu0 0
    %355 = vmatpush1.bf16.msra.mxu0 %v352
    %356 = vmatprep.subr.bf16.mxu0 0
    %357 = vmatpush1.bf16.msra.mxu0 0
    %358 = vmatprep.subr.bf16.mxu0 0
    %359 = vmatpush1.bf16.msra.mxu0 0
    %360 = vmatprep.subr.bf16.mxu0 0
    %361 = vmatpush1.bf16.msra.mxu0 0
    %362 = vmatprep.subr.bf16.mxu0 0
    %363 = vmatpush1.bf16.msra.mxu0 0
    %364 = vmatprep.subr.bf16.mxu0 0
    %365 = vmatpush1.bf16.msra.mxu0 0
    %366 = vmatprep.subr.bf16.mxu0 0
    %367 = vmatpush1.bf16.msra.mxu0 0
    %368 = vmatprep.subr.bf16.mxu0 0
    %369 = vmatpush1.bf16.msra.mxu0 0
    %370 = vmatprep.subr.bf16.mxu0 0
    %371 = vmatpush1.bf16.msra.mxu0 0
    %372 = vmatprep.subr.bf16.mxu0 0
    %373 = vmatpush1.bf16.msra.mxu0 0
    %374 = vmatprep.subr.bf16.mxu0 0
    %375 = vmatpush1.bf16.msra.mxu0 0
    %376 = vmatprep.subr.bf16.mxu0 0
    %377 = vmatpush1.bf16.msra.mxu0 0
    %378 = vmatprep.subr.bf16.mxu0 0
    %379 = vmatpush1.bf16.msra.mxu0 0
    %380 = vmatprep.subr.bf16.mxu0 0
    %381 = vmatpush1.bf16.msra.mxu0 0
    %382 = vmatprep.subr.bf16.mxu0 0
    %383 = vmatpush1.bf16.msra.mxu0 0
    %384 = vmatprep.subr.bf16.mxu0 0
    %385 = vmatpush1.bf16.msra.mxu0 0
    %386 = vmatprep.mubr.bf16.mxu0 0
    %387 = vmatmul.mubr.bf16.gmra.mrb[0].mxu0 %v328
    %v388 = vpop.f32.mrb[0].mxu0
    %v389 = vadd.f32 %v265, %v388
    %v390 = vpop.f32.mrb[0].mxu0
    %v391 = vpop.f32.mrb[0].mxu0
    %v392 = vadd.f32 %v268, %v391
    %v393 = vpop.f32.mrb[0].mxu0
    %394 = vmatprep.mubr.bf16.mxu0 0
    %395 = vmatmul.mubr.bf16.gmra.mrb[0].mxu0 %v331
    %v396 = vpop.f32.mrb[0].mxu0
    %v397 = vadd.f32 %v273, %v396
    %v398 = vpop.f32.mrb[0].mxu0
    %v399 = vpop.f32.mrb[0].mxu0
    %v400 = vadd.f32 %v276, %v399
    %v401 = vpop.f32.mrb[0].mxu0
    %402 = vmatprep.mubr.bf16.mxu0 0
    %403 = vmatmul.mubr.bf16.gmra.mrb[0].mxu0 %v334
    %v404 = vpop.f32.mrb[0].mxu0
    %v405 = vadd.f32 %v281, %v404
    %v406 = vpop.f32.mrb[0].mxu0
    %v407 = vpop.f32.mrb[0].mxu0
    %v408 = vadd.f32 %v284, %v407
    %v409 = vpop.f32.mrb[0].mxu0
    %410 = vmatprep.mubr.bf16.mxu0 0
    %411 = vmatmul.mubr.bf16.gmra.mrb[0].mxu0 %v337
    %v412 = vpop.f32.mrb[0].mxu0
    %v413 = vadd.f32 %v289, %v412
    %v414 = vpop.f32.mrb[0].mxu0
    %v415 = vpop.f32.mrb[0].mxu0
    %v416 = vadd.f32 %v292, %v415
    %v417 = vpop.f32.mrb[0].mxu0
    %418 = vmatprep.mubr.bf16.mxu0 0
    %419 = vmatmul.mubr.bf16.gmra.mrb[0].mxu0 %v340
    %v420 = vpop.f32.mrb[0].mxu0
    %v421 = vadd.f32 %v297, %v420
    %v422 = vpop.f32.mrb[0].mxu0
    %v423 = vpop.f32.mrb[0].mxu0
    %v424 = vadd.f32 %v300, %v423
    %v425 = vpop.f32.mrb[0].mxu0
    %426 = vmatprep.mubr.bf16.mxu0 0
    %427 = vmatmul.mubr.bf16.gmra.mrb[0].mxu0 %v343
    %v428 = vpop.f32.mrb[0].mxu0
    %v429 = vadd.f32 %v305, %v428
    %v430 = vpop.f32.mrb[0].mxu0
    %v431 = vpop.f32.mrb[0].mxu0
    %v432 = vadd.f32 %v308, %v431
    %v433 = vpop.f32.mrb[0].mxu0
    %434 = vmatprep.mubr.bf16.mxu0 0
    %435 = vmatmul.mubr.bf16.gmra.mrb[0].mxu0 %v346
    %v436 = vpop.f32.mrb[0].mxu0
    %v437 = vadd.f32 %v313, %v436
    %v438 = vpop.f32.mrb[0].mxu0
    %v439 = vpop.f32.mrb[0].mxu0
    %v440 = vadd.f32 %v316, %v439
    %v441 = vpop.f32.mrb[0].mxu0
    %442 = vmatprep.mubr.bf16.mxu0 0
    %443 = vmatmul.mubr.bf16.gmra.mrb[0].mxu0 %v349
    %v444 = vpop.f32.mrb[0].mxu0
    %v445 = vadd.f32 %v321, %v444
    %v446 = vpop.f32.mrb[0].mxu0
    %v447 = vpop.f32.mrb[0].mxu0
    %v448 = vadd.f32 %v324, %v447
    %v449 = vpop.f32.mrb[0].mxu0
    %450 = vdwg.mxu0
    %451 = vst.msk [vmem:[%s7] sm:$0xff] %vm201, %v389
    %452 = vst.msk [vmem:[%s7 + $0x8] sm:$0xff] %vm201, %v392
    %453 = vst.msk [vmem:[%s7 + $0x10] sm:$0xff] %vm201, %v397
    %454 = vst.msk [vmem:[%s7 + $0x18] sm:$0xff] %vm201, %v400
    %455 = vst.msk [vmem:[%s7 + $0x20] sm:$0xff] %vm201, %v405
    %456 = vst.msk [vmem:[%s7 + $0x28] sm:$0xff] %vm201, %v408
    %457 = vst.msk [vmem:[%s7 + $0x30] sm:$0xff] %vm201, %v413
    %458 = vst.msk [vmem:[%s7 + $0x38] sm:$0xff] %vm201, %v416
    %459 = vst.msk [vmem:[%s7 + $0x40] sm:$0xff] %vm201, %v421
    %460 = vst.msk [vmem:[%s7 + $0x48] sm:$0xff] %vm201, %v424
    %461 = vst.msk [vmem:[%s7 + $0x50] sm:$0xff] %vm201, %v429
    %462 = vst.msk [vmem:[%s7 + $0x58] sm:$0xff] %vm201, %v432
    %463 = vst.msk [vmem:[%s7 + $0x60] sm:$0xff] %vm201, %v437
    %464 = vst.msk [vmem:[%s7 + $0x68] sm:$0xff] %vm201, %v440
    %465 = vst.msk [vmem:[%s7 + $0x70] sm:$0xff] %vm201, %v445
    %466 = vst.msk [vmem:[%s7 + $0x78] sm:$0xff] %vm201, %v448
    %483 = vrot.lane.b32.xlu0 %v389, 120
    %v484 = vpop.permute.xlu0 %483
    %485 = vrot.lane.b32.xlu0 %v392, 120
    %v486 = vpop.permute.xlu0 %485
    %487 = vrot.lane.b32.xlu0 %v397, 120
    %v488 = vpop.permute.xlu0 %487
    %489 = vrot.lane.b32.xlu0 %v400, 120
    %v490 = vpop.permute.xlu0 %489
    %491 = vrot.lane.b32.xlu0 %v405, 120
    %v492 = vpop.permute.xlu0 %491
    %493 = vrot.lane.b32.xlu0 %v408, 120
    %v494 = vpop.permute.xlu0 %493
    %495 = vrot.lane.b32.xlu0 %v413, 120
    %v496 = vpop.permute.xlu0 %495
    %497 = vrot.lane.b32.xlu0 %v416, 120
    %v498 = vpop.permute.xlu0 %497
    %499 = vrot.lane.b32.xlu0 %v421, 120
    %v500 = vpop.permute.xlu0 %499
    %501 = vrot.lane.b32.xlu0 %v424, 120
    %v502 = vpop.permute.xlu0 %501
    %503 = vrot.lane.b32.xlu0 %v429, 120
    %v504 = vpop.permute.xlu0 %503
    %505 = vrot.lane.b32.xlu0 %v432, 120
    %v506 = vpop.permute.xlu0 %505
    %507 = vrot.lane.b32.xlu0 %v437, 120
    %v508 = vpop.permute.xlu0 %507
    %509 = vrot.lane.b32.xlu0 %v440, 120
    %v510 = vpop.permute.xlu0 %509
    %511 = vrot.lane.b32.xlu0 %v445, 120
    %v512 = vpop.permute.xlu0 %511
    %513 = vrot.lane.b32.xlu0 %v448, 120
    %v514 = vpop.permute.xlu0 %513
    %531 = vst.msk [vmem:[%s8] sm:$0xff] %vm201, %v484
    %532 = vst.msk [vmem:[%s8 + $0x8] sm:$0xff] %vm201, %v486
    %533 = vst.msk [vmem:[%s8 + $0x10] sm:$0xff] %vm201, %v488
    %534 = vst.msk [vmem:[%s8 + $0x18] sm:$0xff] %vm201, %v490
    %535 = vst.msk [vmem:[%s8 + $0x20] sm:$0xff] %vm201, %v492
    %536 = vst.msk [vmem:[%s8 + $0x28] sm:$0xff] %vm201, %v494
    %537 = vst.msk [vmem:[%s8 + $0x30] sm:$0xff] %vm201, %v496
    %538 = vst.msk [vmem:[%s8 + $0x38] sm:$0xff] %vm201, %v498
    %539 = vst.msk [vmem:[%s8 + $0x40] sm:$0xff] %vm201, %v500
    %540 = vst.msk [vmem:[%s8 + $0x48] sm:$0xff] %vm201, %v502
    %541 = vst.msk [vmem:[%s8 + $0x50] sm:$0xff] %vm201, %v504
    %542 = vst.msk [vmem:[%s8 + $0x58] sm:$0xff] %vm201, %v506
    %543 = vst.msk [vmem:[%s8 + $0x60] sm:$0xff] %vm201, %v508
    %544 = vst.msk [vmem:[%s8 + $0x68] sm:$0xff] %vm201, %v510
    %545 = vst.msk [vmem:[%s8 + $0x70] sm:$0xff] %vm201, %v512
    %546 = vst.msk [vmem:[%s8 + $0x78] sm:$0xff] %vm201, %v514
    %vm547 = vcmask 130112
    %v548 = vsel %vm547, %v389, 0.0
    %v549 = vsel %vm547, %v392, 0.0
    %v550 = vadd.f32 %v548, %v549
    %v551 = vsel %vm547, %v397, 0.0
    %v552 = vadd.f32 %v550, %v551
    %v553 = vsel %vm547, %v400, 0.0
    %v554 = vadd.f32 %v552, %v553
    %v555 = vsel %vm547, %v405, 0.0
    %v556 = vadd.f32 %v554, %v555
    %v557 = vsel %vm547, %v408, 0.0
    %v558 = vadd.f32 %v556, %v557
    %v559 = vsel %vm547, %v413, 0.0
    %v560 = vadd.f32 %v558, %v559
    %v561 = vsel %vm547, %v416, 0.0
    %v562 = vadd.f32 %v560, %v561
    %v563 = vsel %vm547, %v421, 0.0
    %v564 = vadd.f32 %v562, %v563
    %v565 = vsel %vm547, %v424, 0.0
    %v566 = vadd.f32 %v564, %v565
    %v567 = vsel %vm547, %v429, 0.0
    %v568 = vadd.f32 %v566, %v567
    %v569 = vsel %vm547, %v432, 0.0
    %v570 = vadd.f32 %v568, %v569
    %v571 = vsel %vm547, %v437, 0.0
    %v572 = vadd.f32 %v570, %v571
    %v573 = vsel %vm547, %v440, 0.0
    %v574 = vadd.f32 %v572, %v573
    %v575 = vsel %vm547, %v445, 0.0
    %v576 = vadd.f32 %v574, %v575
    %v577 = vsel %vm547, %v448, 0.0
    %v578 = vadd.f32 %v576, %v577
    %v579 = vrot.slane %v578, 4
    %v580 = vadd.f32 %v578, %v579
    %v581 = vrot.slane %v580, 2
    %v582 = vadd.f32 %v580, %v581
    %v583 = vrot.slane %v582, 1
    %v584 = vadd.f32 %v582, %v583
    %v585 = vmul.f32 %v389, %v389
    %v586 = vmul.f32 %v392, %v392
    %v587 = vmul.f32 %v397, %v397
    %v588 = vmul.f32 %v400, %v400
    %v589 = vmul.f32 %v405, %v405
    %v590 = vmul.f32 %v408, %v408
    %v591 = vmul.f32 %v413, %v413
    %v592 = vmul.f32 %v416, %v416
    %v593 = vmul.f32 %v421, %v421
    %v594 = vmul.f32 %v424, %v424
    %v595 = vmul.f32 %v429, %v429
    %v596 = vmul.f32 %v432, %v432
    %v597 = vmul.f32 %v437, %v437
    %v598 = vmul.f32 %v440, %v440
    %v599 = vmul.f32 %v445, %v445
    %v600 = vmul.f32 %v448, %v448
    %v601 = vsel %vm547, %v585, 0.0
    %v602 = vsel %vm547, %v586, 0.0
    %v603 = vadd.f32 %v601, %v602
    %v604 = vsel %vm547, %v587, 0.0
    %v605 = vadd.f32 %v603, %v604
    %v606 = vsel %vm547, %v588, 0.0
    %v607 = vadd.f32 %v605, %v606
    %v608 = vsel %vm547, %v589, 0.0
    %v609 = vadd.f32 %v607, %v608
    %v610 = vsel %vm547, %v590, 0.0
    %v611 = vadd.f32 %v609, %v610
    %v612 = vsel %vm547, %v591, 0.0
    %v613 = vadd.f32 %v611, %v612
    %v614 = vsel %vm547, %v592, 0.0
    %v615 = vadd.f32 %v613, %v614
    %v616 = vsel %vm547, %v593, 0.0
    %v617 = vadd.f32 %v615, %v616
    %v618 = vsel %vm547, %v594, 0.0
    %v619 = vadd.f32 %v617, %v618
    %v620 = vsel %vm547, %v595, 0.0
    %v621 = vadd.f32 %v619, %v620
    %v622 = vsel %vm547, %v596, 0.0
    %v623 = vadd.f32 %v621, %v622
    %v624 = vsel %vm547, %v597, 0.0
    %v625 = vadd.f32 %v623, %v624
    %v626 = vsel %vm547, %v598, 0.0
    %v627 = vadd.f32 %v625, %v626
    %v628 = vsel %vm547, %v599, 0.0
    %v629 = vadd.f32 %v627, %v628
    %v630 = vsel %vm547, %v600, 0.0
    %v631 = vadd.f32 %v629, %v630
    %v632 = vrot.slane %v631, 4
    %v633 = vadd.f32 %v631, %v632
    %v634 = vrot.slane %v633, 2
    %v635 = vadd.f32 %v633, %v634
    %v636 = vrot.slane %v635, 1
    %v637 = vadd.f32 %v635, %v636
    %vm638 = vcmask 1040384
    %v639 = vsel %vm638, %v584, %v637
    %641 = vrot.lane.b32.xlu0 %v639, 120
    %v642 = vpop.permute.xlu0 %641
    %vm644 = vcmask 58368
    %645 = vst.msk [vmem:[#allocation3] sm:$0x3] %vm644, %v642
    %p646 = scmp.eq.s32.totalorder 0, 0
    // Predicated region
    $region30: #{_lambda_.11} parent=1 // pred_check
      %p647 = pneg %p646
    $region31: #{_lambda_.11} parent=1 // pred_check_branch
      %649 = sbr.rel (%p647) target = $region33
    $region32: #{_lambda_.11} parent=1 // pred_region
      %vm650 = vcmask 584704
      %651 = vst.msk [vmem:[#allocation2] sm:$0xf] %vm650, 0
      %652 = vst.msk [vmem:[#allocation2 + $0x4] sm:$0xf] %vm650, 0
      %653 = vst.msk [vmem:[#allocation2 + $0x8] sm:$0xf] %vm650, 0
      %654 = vst.msk [vmem:[#allocation2 + $0xc] sm:$0xf] %vm650, 0
      %655 = vst.msk [vmem:[#allocation2 + $0x10] sm:$0xf] %vm650, 0
      %656 = vst.msk [vmem:[#allocation2 + $0x14] sm:$0xf] %vm650, 0
      %657 = vst.msk [vmem:[#allocation2 + $0x18] sm:$0xf] %vm650, 0
      %658 = vst.msk [vmem:[#allocation2 + $0x1c] sm:$0xf] %vm650, 0
      %659 = vst.msk [vmem:[#allocation2 + $0x20] sm:$0xf] %vm650, 0
      %660 = vst.msk [vmem:[#allocation2 + $0x24] sm:$0xf] %vm650, 0
      %661 = vst.msk [vmem:[#allocation2 + $0x28] sm:$0xf] %vm650, 0
      %662 = vst.msk [vmem:[#allocation2 + $0x2c] sm:$0xf] %vm650, 0
      %663 = vst.msk [vmem:[#allocation2 + $0x30] sm:$0xf] %vm650, 0
      %664 = vst.msk [vmem:[#allocation2 + $0x34] sm:$0xf] %vm650, 0
      %665 = vst.msk [vmem:[#allocation2 + $0x38] sm:$0xf] %vm650, 0
      %666 = vst.msk [vmem:[#allocation2 + $0x3c] sm:$0xf] %vm650, 0
    $region33: #{_lambda_.11} parent=1 // pred_fallthru
      _
    %v667 = vpack.c.bf16 %v392, %v389
    %v668 = vpack.c.bf16 %v400, %v397
    %v669 = vpack.c.bf16 %v408, %v405
    %v670 = vpack.c.bf16 %v416, %v413
    %v671 = vpack.c.bf16 %v424, %v421
    %v672 = vpack.c.bf16 %v432, %v429
    %v673 = vpack.c.bf16 %v440, %v437
    %v674 = vpack.c.bf16 %v448, %v445
    %v683 = vunpack.c.l.b16 %v667
    %v684 = vunpack.c.h.b16 %v667
    %v685 = vunpack.c.l.b16 %v668
    %v686 = vunpack.c.h.b16 %v668
    %v687 = vunpack.c.l.b16 %v669
    %v688 = vunpack.c.h.b16 %v669
    %v689 = vunpack.c.l.b16 %v670
    %v690 = vunpack.c.h.b16 %v670
    %v691 = vunpack.c.l.b16 %v671
    %v692 = vunpack.c.h.b16 %v671
    %v693 = vunpack.c.l.b16 %v672
    %v694 = vunpack.c.h.b16 %v672
    %v695 = vunpack.c.l.b16 %v673
    %v696 = vunpack.c.h.b16 %v673
    %v697 = vunpack.c.l.b16 %v674
    %v698 = vunpack.c.h.b16 %v674
    %v699 = vpack.c.b16 %v683, %v683
    %v700 = vpack.c.b16 %v684, %v684
    %v701 = vpack.c.b16 %v685, %v685
    %v702 = vpack.c.b16 %v686, %v686
    %v703 = vpack.c.b16 %v687, %v687
    %v704 = vpack.c.b16 %v688, %v688
    %v705 = vpack.c.b16 %v689, %v689
    %v706 = vpack.c.b16 %v690, %v690
    %v707 = vpack.c.b16 %v691, %v691
    %v708 = vpack.c.b16 %v692, %v692
    %v709 = vpack.c.b16 %v693, %v693
    %v710 = vpack.c.b16 %v694, %v694
    %v711 = vpack.c.b16 %v695, %v695
    %v712 = vpack.c.b16 %v696, %v696
    %v713 = vpack.c.b16 %v697, %v697
    %v714 = vpack.c.b16 %v698, %v698
    %v730 = vshrl.u32 %v699, 16
    %v732 = vrot.slane %v730, 7
    %v733 = vshll.u32 %v699, 16
    %v735 = vor.u32 %v732, %v733
    %v737 = vshrl.u32 %v700, 16
    %v739 = vrot.slane %v737, 7
    %v740 = vshll.u32 %v700, 16
    %v742 = vor.u32 %v739, %v740
    %v744 = vshrl.u32 %v701, 16
    %v746 = vrot.slane %v744, 7
    %v747 = vshll.u32 %v701, 16
    %v749 = vor.u32 %v746, %v747
    %v751 = vshrl.u32 %v702, 16
    %v753 = vrot.slane %v751, 7
    %v754 = vshll.u32 %v702, 16
    %v756 = vor.u32 %v753, %v754
    %v758 = vshrl.u32 %v703, 16
    %v760 = vrot.slane %v758, 7
    %v761 = vshll.u32 %v703, 16
    %v763 = vor.u32 %v760, %v761
    %v765 = vshrl.u32 %v704, 16
    %v767 = vrot.slane %v765, 7
    %v768 = vshll.u32 %v704, 16
    %v770 = vor.u32 %v767, %v768
    %v772 = vshrl.u32 %v705, 16
    %v774 = vrot.slane %v772, 7
    %v775 = vshll.u32 %v705, 16
    %v777 = vor.u32 %v774, %v775
    %v779 = vshrl.u32 %v707, 16
    %v781 = vrot.slane %v779, 7
    %v782 = vshll.u32 %v707, 16
    %v784 = vor.u32 %v781, %v782
    %v786 = vshrl.u32 %v708, 16
    %v788 = vrot.slane %v786, 7
    %v789 = vshll.u32 %v708, 16
    %v791 = vor.u32 %v788, %v789
    %v793 = vshrl.u32 %v709, 16
    %v795 = vrot.slane %v793, 7
    %v796 = vshll.u32 %v709, 16
    %v798 = vor.u32 %v795, %v796
    %v800 = vshrl.u32 %v710, 16
    %v802 = vrot.slane %v800, 7
    %v803 = vshll.u32 %v710, 16
    %v805 = vor.u32 %v802, %v803
    %v807 = vshrl.u32 %v711, 16
    %v809 = vrot.slane %v807, 7
    %v810 = vshll.u32 %v711, 16
    %v812 = vor.u32 %v809, %v810
    %v814 = vshrl.u32 %v712, 16
    %v816 = vrot.slane %v814, 7
    %v817 = vshll.u32 %v712, 16
    %v819 = vor.u32 %v816, %v817
    %v821 = vshrl.u32 %v713, 16
    %v823 = vrot.slane %v821, 7
    %v824 = vshll.u32 %v713, 16
    %v826 = vor.u32 %v823, %v824
    %827 = vrot.lane.b32.xlu0 %v735, 120
    %v828 = vpop.permute.xlu0 %827
    %829 = vrot.lane.b32.xlu0 %v742, 120
    %v830 = vpop.permute.xlu0 %829
    %831 = vrot.lane.b32.xlu0 %v749, 120
    %v832 = vpop.permute.xlu0 %831
    %833 = vrot.lane.b32.xlu0 %v756, 120
    %v834 = vpop.permute.xlu0 %833
    %835 = vrot.lane.b32.xlu0 %v763, 120
    %v836 = vpop.permute.xlu0 %835
    %837 = vrot.lane.b32.xlu0 %v770, 120
    %v838 = vpop.permute.xlu0 %837
    %839 = vrot.lane.b32.xlu0 %v777, 120
    %v840 = vpop.permute.xlu0 %839
    %841 = vrot.lane.b32.xlu0 %v784, 120
    %v842 = vpop.permute.xlu0 %841
    %843 = vrot.lane.b32.xlu0 %v791, 120
    %v844 = vpop.permute.xlu0 %843
    %845 = vrot.lane.b32.xlu0 %v798, 120
    %v846 = vpop.permute.xlu0 %845
    %847 = vrot.lane.b32.xlu0 %v805, 120
    %v848 = vpop.permute.xlu0 %847
    %849 = vrot.lane.b32.xlu0 %v812, 120
    %v850 = vpop.permute.xlu0 %849
    %851 = vrot.lane.b32.xlu0 %v819, 120
    %v852 = vpop.permute.xlu0 %851
    %853 = vrot.lane.b32.xlu0 %v826, 120
    %v854 = vpop.permute.xlu0 %853
    %s869 = scalar_lea.vmem [#allocation2], 4
    %vm870 = vcmask 60416
    %vm871 = vsmask.f32 7938
    %vm872 = vmand %vm870, %vm871
    %v873 = vld [vmem:[%s869] sm:$0xf]
    %v874 = vsel %vm872, %v828, %v873
    %875 = vst [vmem:[%s869] sm:$0xf] %v874
    %v876 = vld [vmem:[%s869 + $0x4] sm:$0xf]
    %v877 = vsel %vm872, %v830, %v876
    %878 = vst [vmem:[%s869 + $0x4] sm:$0xf] %v877
    %v879 = vld [vmem:[%s869 + $0x8] sm:$0xf]
    %v880 = vsel %vm872, %v832, %v879
    %881 = vst [vmem:[%s869 + $0x8] sm:$0xf] %v880
    %v882 = vld [vmem:[%s869 + $0xc] sm:$0xf]
    %v883 = vsel %vm872, %v834, %v882
    %884 = vst [vmem:[%s869 + $0xc] sm:$0xf] %v883
    %v885 = vld [vmem:[%s869 + $0x10] sm:$0xf]
    %v886 = vsel %vm872, %v836, %v885
    %887 = vst [vmem:[%s869 + $0x10] sm:$0xf] %v886
    %v888 = vld [vmem:[%s869 + $0x14] sm:$0xf]
    %v889 = vsel %vm872, %v838, %v888
    %890 = vst [vmem:[%s869 + $0x14] sm:$0xf] %v889
    %v891 = vld [vmem:[%s869 + $0x18] sm:$0xf]
    %v892 = vsel %vm872, %v840, %v891
    %893 = vst [vmem:[%s869 + $0x18] sm:$0xf] %v892
    %v894 = vld [vmem:[%s869 + $0x20] sm:$0xf]
    %v895 = vsel %vm872, %v842, %v894
    %896 = vst [vmem:[%s869 + $0x20] sm:$0xf] %v895
    %v897 = vld [vmem:[%s869 + $0x24] sm:$0xf]
    %v898 = vsel %vm872, %v844, %v897
    %899 = vst [vmem:[%s869 + $0x24] sm:$0xf] %v898
    %v900 = vld [vmem:[%s869 + $0x28] sm:$0xf]
    %v901 = vsel %vm872, %v846, %v900
    %902 = vst [vmem:[%s869 + $0x28] sm:$0xf] %v901
    %v903 = vld [vmem:[%s869 + $0x2c] sm:$0xf]
    %v904 = vsel %vm872, %v848, %v903
    %905 = vst [vmem:[%s869 + $0x2c] sm:$0xf] %v904
    %v906 = vld [vmem:[%s869 + $0x30] sm:$0xf]
    %v907 = vsel %vm872, %v850, %v906
    %908 = vst [vmem:[%s869 + $0x30] sm:$0xf] %v907
    %v909 = vld [vmem:[%s869 + $0x34] sm:$0xf]
    %v910 = vsel %vm872, %v852, %v909
    %911 = vst [vmem:[%s869 + $0x34] sm:$0xf] %v910
    %v912 = vld [vmem:[%s869 + $0x38] sm:$0xf]
    %v913 = vsel %vm872, %v854, %v912
    %914 = vst [vmem:[%s869 + $0x38] sm:$0xf] %v913
    %vm915 = vcmask 126016
    %916 = vst.msk [vmem:[%s869] sm:$0xf] %vm915, %v699
    %917 = vst.msk [vmem:[%s869 + $0x4] sm:$0xf] %vm915, %v700
    %918 = vst.msk [vmem:[%s869 + $0x8] sm:$0xf] %vm915, %v701
    %919 = vst.msk [vmem:[%s869 + $0xc] sm:$0xf] %vm915, %v702
    %920 = vst.msk [vmem:[%s869 + $0x10] sm:$0xf] %vm915, %v703
    %921 = vst.msk [vmem:[%s869 + $0x14] sm:$0xf] %vm915, %v704
    %922 = vst.msk [vmem:[%s869 + $0x18] sm:$0xf] %vm915, %v705
    %923 = vst.msk [vmem:[%s869 + $0x20] sm:$0xf] %vm915, %v707
    %924 = vst.msk [vmem:[%s869 + $0x24] sm:$0xf] %vm915, %v708
    %925 = vst.msk [vmem:[%s869 + $0x28] sm:$0xf] %vm915, %v709
    %926 = vst.msk [vmem:[%s869 + $0x2c] sm:$0xf] %vm915, %v710
    %927 = vst.msk [vmem:[%s869 + $0x30] sm:$0xf] %vm915, %v711
    %928 = vst.msk [vmem:[%s869 + $0x34] sm:$0xf] %vm915, %v712
    %929 = vst.msk [vmem:[%s869 + $0x38] sm:$0xf] %vm915, %v713
    %v930 = vrot.slane %v730, 4
    %v931 = vrot.slane %v733, 5
    %v932 = vor.u32 %v930, %v931
    %v933 = vrot.slane %v932, 4
    %v934 = vrot.slane %v737, 4
    %v935 = vrot.slane %v740, 5
    %v936 = vor.u32 %v934, %v935
    %v937 = vrot.slane %v936, 4
    %v938 = vrot.slane %v744, 4
    %v939 = vrot.slane %v747, 5
    %v940 = vor.u32 %v938, %v939
    %v941 = vrot.slane %v940, 4
    %v942 = vrot.slane %v751, 4
    %v943 = vrot.slane %v754, 5
    %v944 = vor.u32 %v942, %v943
    %v945 = vrot.slane %v944, 4
    %v946 = vrot.slane %v758, 4
    %v947 = vrot.slane %v761, 5
    %v948 = vor.u32 %v946, %v947
    %v949 = vrot.slane %v948, 4
    %v950 = vrot.slane %v765, 4
    %v951 = vrot.slane %v768, 5
    %v952 = vor.u32 %v950, %v951
    %v953 = vrot.slane %v952, 4
    %v954 = vrot.slane %v772, 4
    %v955 = vrot.slane %v775, 5
    %v956 = vor.u32 %v954, %v955
    %v957 = vrot.slane %v956, 4
    %v958 = vrot.slane %v779, 4
    %v959 = vrot.slane %v782, 5
    %v960 = vor.u32 %v958, %v959
    %v961 = vrot.slane %v960, 4
    %v962 = vrot.slane %v786, 4
    %v963 = vrot.slane %v789, 5
    %v964 = vor.u32 %v962, %v963
    %v965 = vrot.slane %v964, 4
    %v966 = vrot.slane %v793, 4
    %v967 = vrot.slane %v796, 5
    %v968 = vor.u32 %v966, %v967
    %v969 = vrot.slane %v968, 4
    %v970 = vrot.slane %v800, 4
    %v971 = vrot.slane %v803, 5
    %v972 = vor.u32 %v970, %v971
    %v973 = vrot.slane %v972, 4
    %v974 = vrot.slane %v807, 4
    %v975 = vrot.slane %v810, 5
    %v976 = vor.u32 %v974, %v975
    %v977 = vrot.slane %v976, 4
    %v978 = vrot.slane %v814, 4
    %v979 = vrot.slane %v817, 5
    %v980 = vor.u32 %v978, %v979
    %v981 = vrot.slane %v980, 4
    %v982 = vrot.slane %v821, 4
    %v983 = vrot.slane %v824, 5
    %v984 = vor.u32 %v982, %v983
    %v985 = vrot.slane %v984, 4
    %986 = vrot.lane.b32.xlu0 %v933, 8
    %v987 = vpop.permute.xlu0 %986
    %988 = vrot.lane.b32.xlu0 %v937, 8
    %v989 = vpop.permute.xlu0 %988
    %990 = vrot.lane.b32.xlu0 %v941, 8
    %v991 = vpop.permute.xlu0 %990
    %992 = vrot.lane.b32.xlu0 %v945, 8
    %v993 = vpop.permute.xlu0 %992
    %994 = vrot.lane.b32.xlu0 %v949, 8
    %v995 = vpop.permute.xlu0 %994
    %996 = vrot.lane.b32.xlu0 %v953, 8
    %v997 = vpop.permute.xlu0 %996
    %998 = vrot.lane.b32.xlu0 %v957, 8
    %v999 = vpop.permute.xlu0 %998
    %1000 = vrot.lane.b32.xlu0 %v961, 8
    %v1001 = vpop.permute.xlu0 %1000
    %1002 = vrot.lane.b32.xlu0 %v965, 8
    %v1003 = vpop.permute.xlu0 %1002
    %1004 = vrot.lane.b32.xlu0 %v969, 8
    %v1005 = vpop.permute.xlu0 %1004
    %1006 = vrot.lane.b32.xlu0 %v973, 8
    %v1007 = vpop.permute.xlu0 %1006
    %1008 = vrot.lane.b32.xlu0 %v977, 8
    %v1009 = vpop.permute.xlu0 %1008
    %1010 = vrot.lane.b32.xlu0 %v981, 8
    %v1011 = vpop.permute.xlu0 %1010
    %1012 = vrot.lane.b32.xlu0 %v985, 8
    %v1013 = vpop.permute.xlu0 %1012
    %vm1028 = vcmask 191616
    %vm1029 = vsmask.f32 3328
    %vm1030 = vmand %vm1028, %vm1029
    %v1031 = vld [vmem:[%s869] sm:$0xf]
    %v1032 = vsel %vm1030, %v987, %v1031
    %1033 = vst [vmem:[%s869] sm:$0xf] %v1032
    %v1034 = vld [vmem:[%s869 + $0x4] sm:$0xf]
    %v1035 = vsel %vm1030, %v989, %v1034
    %1036 = vst [vmem:[%s869 + $0x4] sm:$0xf] %v1035
    %v1037 = vld [vmem:[%s869 + $0x8] sm:$0xf]
    %v1038 = vsel %vm1030, %v991, %v1037
    %1039 = vst [vmem:[%s869 + $0x8] sm:$0xf] %v1038
    %v1040 = vld [vmem:[%s869 + $0xc] sm:$0xf]
    %v1041 = vsel %vm1030, %v993, %v1040
    %1042 = vst [vmem:[%s869 + $0xc] sm:$0xf] %v1041
    %v1043 = vld [vmem:[%s869 + $0x10] sm:$0xf]
    %v1044 = vsel %vm1030, %v995, %v1043
    %1045 = vst [vmem:[%s869 + $0x10] sm:$0xf] %v1044
    %v1046 = vld [vmem:[%s869 + $0x14] sm:$0xf]
    %v1047 = vsel %vm1030, %v997, %v1046
    %1048 = vst [vmem:[%s869 + $0x14] sm:$0xf] %v1047
    %v1049 = vld [vmem:[%s869 + $0x18] sm:$0xf]
    %v1050 = vsel %vm1030, %v999, %v1049
    %1051 = vst [vmem:[%s869 + $0x18] sm:$0xf] %v1050
    %v1052 = vld [vmem:[%s869 + $0x20] sm:$0xf]
    %v1053 = vsel %vm1030, %v1001, %v1052
    %1054 = vst [vmem:[%s869 + $0x20] sm:$0xf] %v1053
    %v1055 = vld [vmem:[%s869 + $0x24] sm:$0xf]
    %v1056 = vsel %vm1030, %v1003, %v1055
    %1057 = vst [vmem:[%s869 + $0x24] sm:$0xf] %v1056
    %v1058 = vld [vmem:[%s869 + $0x28] sm:$0xf]
    %v1059 = vsel %vm1030, %v1005, %v1058
    %1060 = vst [vmem:[%s869 + $0x28] sm:$0xf] %v1059
    %v1061 = vld [vmem:[%s869 + $0x2c] sm:$0xf]
    %v1062 = vsel %vm1030, %v1007, %v1061
    %1063 = vst [vmem:[%s869 + $0x2c] sm:$0xf] %v1062
    %v1064 = vld [vmem:[%s869 + $0x30] sm:$0xf]
    %v1065 = vsel %vm1030, %v1009, %v1064
    %1066 = vst [vmem:[%s869 + $0x30] sm:$0xf] %v1065
    %v1067 = vld [vmem:[%s869 + $0x34] sm:$0xf]
    %v1068 = vsel %vm1030, %v1011, %v1067
    %1069 = vst [vmem:[%s869 + $0x34] sm:$0xf] %v1068
    %v1070 = vld [vmem:[%s869 + $0x38] sm:$0xf]
    %v1071 = vsel %vm1030, %v1013, %v1070
    %1072 = vst [vmem:[%s869 + $0x38] sm:$0xf] %v1071
    %v1074 = vshrl.u32 %v706, 16
    %v1076 = vrot.slane %v1074, 7
    %v1077 = vshll.u32 %v706, 16
    %v1079 = vor.u32 %v1076, %v1077
    %v1081 = vshrl.u32 %v714, 16
    %v1083 = vrot.slane %v1081, 7
    %v1084 = vshll.u32 %v714, 16
    %v1086 = vor.u32 %v1083, %v1084
    %1087 = vrot.lane.b32.xlu0 %v735, 16
    %v1088 = vpop.permute.xlu0 %1087
    %1089 = vrot.lane.b32.xlu0 %v742, 16
    %v1090 = vpop.permute.xlu0 %1089
    %1091 = vrot.lane.b32.xlu0 %v749, 16
    %v1092 = vpop.permute.xlu0 %1091
    %1093 = vrot.lane.b32.xlu0 %v756, 16
    %v1094 = vpop.permute.xlu0 %1093
    %1095 = vrot.lane.b32.xlu0 %v763, 16
    %v1096 = vpop.permute.xlu0 %1095
    %1097 = vrot.lane.b32.xlu0 %v770, 16
    %v1098 = vpop.permute.xlu0 %1097
    %1099 = vrot.lane.b32.xlu0 %v777, 16
    %v1100 = vpop.permute.xlu0 %1099
    %1101 = vrot.lane.b32.xlu0 %v1079, 16
    %v1102 = vpop.permute.xlu0 %1101
    %1103 = vrot.lane.b32.xlu0 %v784, 16
    %v1104 = vpop.permute.xlu0 %1103
    %1105 = vrot.lane.b32.xlu0 %v791, 16
    %v1106 = vpop.permute.xlu0 %1105
    %1107 = vrot.lane.b32.xlu0 %v798, 16
    %v1108 = vpop.permute.xlu0 %1107
    %1109 = vrot.lane.b32.xlu0 %v805, 16
    %v1110 = vpop.permute.xlu0 %1109
    %1111 = vrot.lane.b32.xlu0 %v812, 16
    %v1112 = vpop.permute.xlu0 %1111
    %1113 = vrot.lane.b32.xlu0 %v819, 16
    %v1114 = vpop.permute.xlu0 %1113
    %1115 = vrot.lane.b32.xlu0 %v826, 16
    %v1116 = vpop.permute.xlu0 %1115
    %1117 = vrot.lane.b32.xlu0 %v1086, 16
    %v1118 = vpop.permute.xlu0 %1117
    %vm1135 = vcmask 257216
    %vm1136 = vmand %vm1135, %vm871
    %v1137 = vld [vmem:[#allocation2] sm:$0xf]
    %v1138 = vsel %vm1136, %v1088, %v1137
    %1139 = vst [vmem:[#allocation2] sm:$0xf] %v1138
    %v1140 = vld [vmem:[#allocation2 + $0x4] sm:$0xf]
    %v1141 = vsel %vm1136, %v1090, %v1140
    %1142 = vst [vmem:[#allocation2 + $0x4] sm:$0xf] %v1141
    %v1143 = vld [vmem:[#allocation2 + $0x8] sm:$0xf]
    %v1144 = vsel %vm1136, %v1092, %v1143
    %1145 = vst [vmem:[#allocation2 + $0x8] sm:$0xf] %v1144
    %v1146 = vld [vmem:[#allocation2 + $0xc] sm:$0xf]
    %v1147 = vsel %vm1136, %v1094, %v1146
    %1148 = vst [vmem:[#allocation2 + $0xc] sm:$0xf] %v1147
    %v1149 = vld [vmem:[#allocation2 + $0x10] sm:$0xf]
    %v1150 = vsel %vm1136, %v1096, %v1149
    %1151 = vst [vmem:[#allocation2 + $0x10] sm:$0xf] %v1150
    %v1152 = vld [vmem:[#allocation2 + $0x14] sm:$0xf]
    %v1153 = vsel %vm1136, %v1098, %v1152
    %1154 = vst [vmem:[#allocation2 + $0x14] sm:$0xf] %v1153
    %v1155 = vld [vmem:[#allocation2 + $0x18] sm:$0xf]
    %v1156 = vsel %vm1136, %v1100, %v1155
    %1157 = vst [vmem:[#allocation2 + $0x18] sm:$0xf] %v1156
    %v1158 = vld [vmem:[#allocation2 + $0x1c] sm:$0xf]
    %v1159 = vsel %vm1136, %v1102, %v1158
    %1160 = vst [vmem:[#allocation2 + $0x1c] sm:$0xf] %v1159
    %v1161 = vld [vmem:[#allocation2 + $0x20] sm:$0xf]
    %v1162 = vsel %vm1136, %v1104, %v1161
    %1163 = vst [vmem:[#allocation2 + $0x20] sm:$0xf] %v1162
    %v1164 = vld [vmem:[#allocation2 + $0x24] sm:$0xf]
    %v1165 = vsel %vm1136, %v1106, %v1164
    %1166 = vst [vmem:[#allocation2 + $0x24] sm:$0xf] %v1165
    %v1167 = vld [vmem:[#allocation2 + $0x28] sm:$0xf]
    %v1168 = vsel %vm1136, %v1108, %v1167
    %1169 = vst [vmem:[#allocation2 + $0x28] sm:$0xf] %v1168
    %v1170 = vld [vmem:[#allocation2 + $0x2c] sm:$0xf]
    %v1171 = vsel %vm1136, %v1110, %v1170
    %1172 = vst [vmem:[#allocation2 + $0x2c] sm:$0xf] %v1171
    %v1173 = vld [vmem:[#allocation2 + $0x30] sm:$0xf]
    %v1174 = vsel %vm1136, %v1112, %v1173
    %1175 = vst [vmem:[#allocation2 + $0x30] sm:$0xf] %v1174
    %v1176 = vld [vmem:[#allocation2 + $0x34] sm:$0xf]
    %v1177 = vsel %vm1136, %v1114, %v1176
    %1178 = vst [vmem:[#allocation2 + $0x34] sm:$0xf] %v1177
    %v1179 = vld [vmem:[#allocation2 + $0x38] sm:$0xf]
    %v1180 = vsel %vm1136, %v1116, %v1179
    %1181 = vst [vmem:[#allocation2 + $0x38] sm:$0xf] %v1180
    %v1182 = vld [vmem:[#allocation2 + $0x3c] sm:$0xf]
    %v1183 = vsel %vm1136, %v1118, %v1182
    %1184 = vst [vmem:[#allocation2 + $0x3c] sm:$0xf] %v1183
    %1185 = vrot.lane.b32.xlu0 %v699, 24
    %v1186 = vpop.permute.xlu0 %1185
    %1187 = vrot.lane.b32.xlu0 %v700, 24
    %v1188 = vpop.permute.xlu0 %1187
    %1189 = vrot.lane.b32.xlu0 %v701, 24
    %v1190 = vpop.permute.xlu0 %1189
    %1191 = vrot.lane.b32.xlu0 %v702, 24
    %v1192 = vpop.permute.xlu0 %1191
    %1193 = vrot.lane.b32.xlu0 %v703, 24
    %v1194 = vpop.permute.xlu0 %1193
    %1195 = vrot.lane.b32.xlu0 %v704, 24
    %v1196 = vpop.permute.xlu0 %1195
    %1197 = vrot.lane.b32.xlu0 %v705, 24
    %v1198 = vpop.permute.xlu0 %1197
    %1199 = vrot.lane.b32.xlu0 %v706, 24
    %v1200 = vpop.permute.xlu0 %1199
    %1201 = vrot.lane.b32.xlu0 %v707, 24
    %v1202 = vpop.permute.xlu0 %1201
    %1203 = vrot.lane.b32.xlu0 %v708, 24
    %v1204 = vpop.permute.xlu0 %1203
    %1205 = vrot.lane.b32.xlu0 %v709, 24
    %v1206 = vpop.permute.xlu0 %1205
    %1207 = vrot.lane.b32.xlu0 %v710, 24
    %v1208 = vpop.permute.xlu0 %1207
    %1209 = vrot.lane.b32.xlu0 %v711, 24
    %v1210 = vpop.permute.xlu0 %1209
    %1211 = vrot.lane.b32.xlu0 %v712, 24
    %v1212 = vpop.permute.xlu0 %1211
    %1213 = vrot.lane.b32.xlu0 %v713, 24
    %v1214 = vpop.permute.xlu0 %1213
    %1215 = vrot.lane.b32.xlu0 %v714, 24
    %v1216 = vpop.permute.xlu0 %1215
    %vm1233 = vcmask 322816
    %1234 = vst.msk [vmem:[#allocation2] sm:$0xf] %vm1233, %v1186
    %1235 = vst.msk [vmem:[#allocation2 + $0x4] sm:$0xf] %vm1233, %v1188
    %1236 = vst.msk [vmem:[#allocation2 + $0x8] sm:$0xf] %vm1233, %v1190
    %1237 = vst.msk [vmem:[#allocation2 + $0xc] sm:$0xf] %vm1233, %v1192
    %1238 = vst.msk [vmem:[#allocation2 + $0x10] sm:$0xf] %vm1233, %v1194
    %1239 = vst.msk [vmem:[#allocation2 + $0x14] sm:$0xf] %vm1233, %v1196
    %1240 = vst.msk [vmem:[#allocation2 + $0x18] sm:$0xf] %vm1233, %v1198
    %1241 = vst.msk [vmem:[#allocation2 + $0x1c] sm:$0xf] %vm1233, %v1200
    %1242 = vst.msk [vmem:[#allocation2 + $0x20] sm:$0xf] %vm1233, %v1202
    %1243 = vst.msk [vmem:[#allocation2 + $0x24] sm:$0xf] %vm1233, %v1204
    %1244 = vst.msk [vmem:[#allocation2 + $0x28] sm:$0xf] %vm1233, %v1206
    %1245 = vst.msk [vmem:[#allocation2 + $0x2c] sm:$0xf] %vm1233, %v1208
    %1246 = vst.msk [vmem:[#allocation2 + $0x30] sm:$0xf] %vm1233, %v1210
    %1247 = vst.msk [vmem:[#allocation2 + $0x34] sm:$0xf] %vm1233, %v1212
    %1248 = vst.msk [vmem:[#allocation2 + $0x38] sm:$0xf] %vm1233, %v1214
    %1249 = vst.msk [vmem:[#allocation2 + $0x3c] sm:$0xf] %vm1233, %v1216
    %v1250 = vrot.slane %v1074, 4
    %v1251 = vrot.slane %v1077, 5
    %v1252 = vor.u32 %v1250, %v1251
    %v1253 = vrot.slane %v1252, 4
    %v1254 = vrot.slane %v1081, 4
    %v1255 = vrot.slane %v1084, 5
    %v1256 = vor.u32 %v1254, %v1255
    %v1257 = vrot.slane %v1256, 4
    %1258 = vrot.lane.b32.xlu0 %v933, 32
    %v1259 = vpop.permute.xlu0 %1258
    %1260 = vrot.lane.b32.xlu0 %v937, 32
    %v1261 = vpop.permute.xlu0 %1260
    %1262 = vrot.lane.b32.xlu0 %v941, 32
    %v1263 = vpop.permute.xlu0 %1262
    %1264 = vrot.lane.b32.xlu0 %v945, 32
    %v1265 = vpop.permute.xlu0 %1264
    %1266 = vrot.lane.b32.xlu0 %v949, 32
    %v1267 = vpop.permute.xlu0 %1266
    %1268 = vrot.lane.b32.xlu0 %v953, 32
    %v1269 = vpop.permute.xlu0 %1268
    %1270 = vrot.lane.b32.xlu0 %v957, 32
    %v1271 = vpop.permute.xlu0 %1270
    %1272 = vrot.lane.b32.xlu0 %v1253, 32
    %v1273 = vpop.permute.xlu0 %1272
    %1274 = vrot.lane.b32.xlu0 %v961, 32
    %v1275 = vpop.permute.xlu0 %1274
    %1276 = vrot.lane.b32.xlu0 %v965, 32
    %v1277 = vpop.permute.xlu0 %1276
    %1278 = vrot.lane.b32.xlu0 %v969, 32
    %v1279 = vpop.permute.xlu0 %1278
    %1280 = vrot.lane.b32.xlu0 %v973, 32
    %v1281 = vpop.permute.xlu0 %1280
    %1282 = vrot.lane.b32.xlu0 %v977, 32
    %v1283 = vpop.permute.xlu0 %1282
    %1284 = vrot.lane.b32.xlu0 %v981, 32
    %v1285 = vpop.permute.xlu0 %1284
    %1286 = vrot.lane.b32.xlu0 %v985, 32
    %v1287 = vpop.permute.xlu0 %1286
    %1288 = vrot.lane.b32.xlu0 %v1257, 32
    %v1289 = vpop.permute.xlu0 %1288
    %vm1306 = vcmask 388416
    %vm1307 = vmand %vm1306, %vm1029
    %v1308 = vld [vmem:[#allocation2] sm:$0xf]
    %v1309 = vsel %vm1307, %v1259, %v1308
    %1310 = vst [vmem:[#allocation2] sm:$0xf] %v1309
    %v1311 = vld [vmem:[#allocation2 + $0x4] sm:$0xf]
    %v1312 = vsel %vm1307, %v1261, %v1311
    %1313 = vst [vmem:[#allocation2 + $0x4] sm:$0xf] %v1312
    %v1314 = vld [vmem:[#allocation2 + $0x8] sm:$0xf]
    %v1315 = vsel %vm1307, %v1263, %v1314
    %1316 = vst [vmem:[#allocation2 + $0x8] sm:$0xf] %v1315
    %v1317 = vld [vmem:[#allocation2 + $0xc] sm:$0xf]
    %v1318 = vsel %vm1307, %v1265, %v1317
    %1319 = vst [vmem:[#allocation2 + $0xc] sm:$0xf] %v1318
    %v1320 = vld [vmem:[#allocation2 + $0x10] sm:$0xf]
    %v1321 = vsel %vm1307, %v1267, %v1320
    %1322 = vst [vmem:[#allocation2 + $0x10] sm:$0xf] %v1321
    %v1323 = vld [vmem:[#allocation2 + $0x14] sm:$0xf]
    %v1324 = vsel %vm1307, %v1269, %v1323
    %1325 = vst [vmem:[#allocation2 + $0x14] sm:$0xf] %v1324
    %v1326 = vld [vmem:[#allocation2 + $0x18] sm:$0xf]
    %v1327 = vsel %vm1307, %v1271, %v1326
    %1328 = vst [vmem:[#allocation2 + $0x18] sm:$0xf] %v1327
    %v1329 = vld [vmem:[#allocation2 + $0x1c] sm:$0xf]
    %v1330 = vsel %vm1307, %v1273, %v1329
    %1331 = vst [vmem:[#allocation2 + $0x1c] sm:$0xf] %v1330
    %v1332 = vld [vmem:[#allocation2 + $0x20] sm:$0xf]
    %v1333 = vsel %vm1307, %v1275, %v1332
    %1334 = vst [vmem:[#allocation2 + $0x20] sm:$0xf] %v1333
    %v1335 = vld [vmem:[#allocation2 + $0x24] sm:$0xf]
    %v1336 = vsel %vm1307, %v1277, %v1335
    %1337 = vst [vmem:[#allocation2 + $0x24] sm:$0xf] %v1336
    %v1338 = vld [vmem:[#allocation2 + $0x28] sm:$0xf]
    %v1339 = vsel %vm1307, %v1279, %v1338
    %1340 = vst [vmem:[#allocation2 + $0x28] sm:$0xf] %v1339
    %v1341 = vld [vmem:[#allocation2 + $0x2c] sm:$0xf]
    %v1342 = vsel %vm1307, %v1281, %v1341
    %1343 = vst [vmem:[#allocation2 + $0x2c] sm:$0xf] %v1342
    %v1344 = vld [vmem:[#allocation2 + $0x30] sm:$0xf]
    %v1345 = vsel %vm1307, %v1283, %v1344
    %1346 = vst [vmem:[#allocation2 + $0x30] sm:$0xf] %v1345
    %v1347 = vld [vmem:[#allocation2 + $0x34] sm:$0xf]
    %v1348 = vsel %vm1307, %v1285, %v1347
    %1349 = vst [vmem:[#allocation2 + $0x34] sm:$0xf] %v1348
    %v1350 = vld [vmem:[#allocation2 + $0x38] sm:$0xf]
    %v1351 = vsel %vm1307, %v1287, %v1350
    %1352 = vst [vmem:[#allocation2 + $0x38] sm:$0xf] %v1351
    %v1353 = vld [vmem:[#allocation2 + $0x3c] sm:$0xf]
    %v1354 = vsel %vm1307, %v1289, %v1353
    %1355 = vst [vmem:[#allocation2 + $0x3c] sm:$0xf] %v1354
    %1356 = vrot.lane.b32.xlu0 %v742, 40
    %v1357 = vpop.permute.xlu0 %1356
    %1358 = vrot.lane.b32.xlu0 %v749, 40
    %v1359 = vpop.permute.xlu0 %1358
    %1360 = vrot.lane.b32.xlu0 %v756, 40
    %v1361 = vpop.permute.xlu0 %1360
    %1362 = vrot.lane.b32.xlu0 %v763, 40
    %v1363 = vpop.permute.xlu0 %1362
    %1364 = vrot.lane.b32.xlu0 %v770, 40
    %v1365 = vpop.permute.xlu0 %1364
    %1366 = vrot.lane.b32.xlu0 %v777, 40
    %v1367 = vpop.permute.xlu0 %1366
    %1368 = vrot.lane.b32.xlu0 %v1079, 40
    %v1369 = vpop.permute.xlu0 %1368
    %1370 = vrot.lane.b32.xlu0 %v791, 40
    %v1371 = vpop.permute.xlu0 %1370
    %1372 = vrot.lane.b32.xlu0 %v798, 40
    %v1373 = vpop.permute.xlu0 %1372
    %1374 = vrot.lane.b32.xlu0 %v805, 40
    %v1375 = vpop.permute.xlu0 %1374
    %1376 = vrot.lane.b32.xlu0 %v812, 40
    %v1377 = vpop.permute.xlu0 %1376
    %1378 = vrot.lane.b32.xlu0 %v819, 40
    %v1379 = vpop.permute.xlu0 %1378
    %1380 = vrot.lane.b32.xlu0 %v826, 40
    %v1381 = vpop.permute.xlu0 %1380
    %1382 = vrot.lane.b32.xlu0 %v1086, 40
    %v1383 = vpop.permute.xlu0 %1382
    %vm1398 = vcmask 454016
    %vm1399 = vmand %vm1398, %vm871
    %v1400 = vld [vmem:[#allocation2] sm:$0xf]
    %v1401 = vsel %vm1399, %v1357, %v1400
    %1402 = vst [vmem:[#allocation2] sm:$0xf] %v1401
    %v1403 = vld [vmem:[#allocation2 + $0x4] sm:$0xf]
    %v1404 = vsel %vm1399, %v1359, %v1403
    %1405 = vst [vmem:[#allocation2 + $0x4] sm:$0xf] %v1404
    %v1406 = vld [vmem:[#allocation2 + $0x8] sm:$0xf]
    %v1407 = vsel %vm1399, %v1361, %v1406
    %1408 = vst [vmem:[#allocation2 + $0x8] sm:$0xf] %v1407
    %v1409 = vld [vmem:[#allocation2 + $0xc] sm:$0xf]
    %v1410 = vsel %vm1399, %v1363, %v1409
    %1411 = vst [vmem:[#allocation2 + $0xc] sm:$0xf] %v1410
    %v1412 = vld [vmem:[#allocation2 + $0x10] sm:$0xf]
    %v1413 = vsel %vm1399, %v1365, %v1412
    %1414 = vst [vmem:[#allocation2 + $0x10] sm:$0xf] %v1413
    %v1415 = vld [vmem:[#allocation2 + $0x14] sm:$0xf]
    %v1416 = vsel %vm1399, %v1367, %v1415
    %1417 = vst [vmem:[#allocation2 + $0x14] sm:$0xf] %v1416
    %v1418 = vld [vmem:[#allocation2 + $0x18] sm:$0xf]
    %v1419 = vsel %vm1399, %v1369, %v1418
    %1420 = vst [vmem:[#allocation2 + $0x18] sm:$0xf] %v1419
    %v1421 = vld [vmem:[#allocation2 + $0x20] sm:$0xf]
    %v1422 = vsel %vm1399, %v1371, %v1421
    %1423 = vst [vmem:[#allocation2 + $0x20] sm:$0xf] %v1422
    %v1424 = vld [vmem:[#allocation2 + $0x24] sm:$0xf]
    %v1425 = vsel %vm1399, %v1373, %v1424
    %1426 = vst [vmem:[#allocation2 + $0x24] sm:$0xf] %v1425
    %v1427 = vld [vmem:[#allocation2 + $0x28] sm:$0xf]
    %v1428 = vsel %vm1399, %v1375, %v1427
    %1429 = vst [vmem:[#allocation2 + $0x28] sm:$0xf] %v1428
    %v1430 = vld [vmem:[#allocation2 + $0x2c] sm:$0xf]
    %v1431 = vsel %vm1399, %v1377, %v1430
    %1432 = vst [vmem:[#allocation2 + $0x2c] sm:$0xf] %v1431
    %v1433 = vld [vmem:[#allocation2 + $0x30] sm:$0xf]
    %v1434 = vsel %vm1399, %v1379, %v1433
    %1435 = vst [vmem:[#allocation2 + $0x30] sm:$0xf] %v1434
    %v1436 = vld [vmem:[#allocation2 + $0x34] sm:$0xf]
    %v1437 = vsel %vm1399, %v1381, %v1436
    %1438 = vst [vmem:[#allocation2 + $0x34] sm:$0xf] %v1437
    %v1439 = vld [vmem:[#allocation2 + $0x38] sm:$0xf]
    %v1440 = vsel %vm1399, %v1383, %v1439
    %1441 = vst [vmem:[#allocation2 + $0x38] sm:$0xf] %v1440
    %1442 = vrot.lane.b32.xlu0 %v700, 48
    %v1443 = vpop.permute.xlu0 %1442
    %1444 = vrot.lane.b32.xlu0 %v701, 48
    %v1445 = vpop.permute.xlu0 %1444
    %1446 = vrot.lane.b32.xlu0 %v702, 48
    %v1447 = vpop.permute.xlu0 %1446
    %1448 = vrot.lane.b32.xlu0 %v703, 48
    %v1449 = vpop.permute.xlu0 %1448
    %1450 = vrot.lane.b32.xlu0 %v704, 48
    %v1451 = vpop.permute.xlu0 %1450
    %1452 = vrot.lane.b32.xlu0 %v705, 48
    %v1453 = vpop.permute.xlu0 %1452
    %1454 = vrot.lane.b32.xlu0 %v706, 48
    %v1455 = vpop.permute.xlu0 %1454
    %1456 = vrot.lane.b32.xlu0 %v708, 48
    %v1457 = vpop.permute.xlu0 %1456
    %1458 = vrot.lane.b32.xlu0 %v709, 48
    %v1459 = vpop.permute.xlu0 %1458
    %1460 = vrot.lane.b32.xlu0 %v710, 48
    %v1461 = vpop.permute.xlu0 %1460
    %1462 = vrot.lane.b32.xlu0 %v711, 48
    %v1463 = vpop.permute.xlu0 %1462
    %1464 = vrot.lane.b32.xlu0 %v712, 48
    %v1465 = vpop.permute.xlu0 %1464
    %1466 = vrot.lane.b32.xlu0 %v713, 48
    %v1467 = vpop.permute.xlu0 %1466
    %1468 = vrot.lane.b32.xlu0 %v714, 48
    %v1469 = vpop.permute.xlu0 %1468
    %vm1484 = vcmask 519616
    %1485 = vst.msk [vmem:[#allocation2] sm:$0xf] %vm1484, %v1443
    %1486 = vst.msk [vmem:[#allocation2 + $0x4] sm:$0xf] %vm1484, %v1445
    %1487 = vst.msk [vmem:[#allocation2 + $0x8] sm:$0xf] %vm1484, %v1447
    %1488 = vst.msk [vmem:[#allocation2 + $0xc] sm:$0xf] %vm1484, %v1449
    %1489 = vst.msk [vmem:[#allocation2 + $0x10] sm:$0xf] %vm1484, %v1451
    %1490 = vst.msk [vmem:[#allocation2 + $0x14] sm:$0xf] %vm1484, %v1453
    %1491 = vst.msk [vmem:[#allocation2 + $0x18] sm:$0xf] %vm1484, %v1455
    %1492 = vst.msk [vmem:[#allocation2 + $0x20] sm:$0xf] %vm1484, %v1457
    %1493 = vst.msk [vmem:[#allocation2 + $0x24] sm:$0xf] %vm1484, %v1459
    %1494 = vst.msk [vmem:[#allocation2 + $0x28] sm:$0xf] %vm1484, %v1461
    %1495 = vst.msk [vmem:[#allocation2 + $0x2c] sm:$0xf] %vm1484, %v1463
    %1496 = vst.msk [vmem:[#allocation2 + $0x30] sm:$0xf] %vm1484, %v1465
    %1497 = vst.msk [vmem:[#allocation2 + $0x34] sm:$0xf] %vm1484, %v1467
    %1498 = vst.msk [vmem:[#allocation2 + $0x38] sm:$0xf] %vm1484, %v1469
    %1499 = vrot.lane.b32.xlu0 %v937, 56
    %v1500 = vpop.permute.xlu0 %1499
    %1501 = vrot.lane.b32.xlu0 %v941, 56
    %v1502 = vpop.permute.xlu0 %1501
    %1503 = vrot.lane.b32.xlu0 %v945, 56
    %v1504 = vpop.permute.xlu0 %1503
    %1505 = vrot.lane.b32.xlu0 %v949, 56
    %v1506 = vpop.permute.xlu0 %1505
    %1507 = vrot.lane.b32.xlu0 %v953, 56
    %v1508 = vpop.permute.xlu0 %1507
    %1509 = vrot.lane.b32.xlu0 %v957, 56
    %v1510 = vpop.permute.xlu0 %1509
    %1511 = vrot.lane.b32.xlu0 %v1253, 56
    %v1512 = vpop.permute.xlu0 %1511
    %1513 = vrot.lane.b32.xlu0 %v965, 56
    %v1514 = vpop.permute.xlu0 %1513
    %1515 = vrot.lane.b32.xlu0 %v969, 56
    %v1516 = vpop.permute.xlu0 %1515
    %1517 = vrot.lane.b32.xlu0 %v973, 56
    %v1518 = vpop.permute.xlu0 %1517
    %1519 = vrot.lane.b32.xlu0 %v977, 56
    %v1520 = vpop.permute.xlu0 %1519
    %1521 = vrot.lane.b32.xlu0 %v981, 56
    %v1522 = vpop.permute.xlu0 %1521
    %1523 = vrot.lane.b32.xlu0 %v985, 56
    %v1524 = vpop.permute.xlu0 %1523
    %1525 = vrot.lane.b32.xlu0 %v1257, 56
    %v1526 = vpop.permute.xlu0 %1525
    %vm1541 = vcmask 585216
    %vm1542 = vmand %vm1541, %vm1029
    %v1543 = vld [vmem:[#allocation2] sm:$0xf]
    %v1544 = vsel %vm1542, %v1500, %v1543
    %1545 = vst [vmem:[#allocation2] sm:$0xf] %v1544
    %v1546 = vld [vmem:[#allocation2 + $0x4] sm:$0xf]
    %v1547 = vsel %vm1542, %v1502, %v1546
    %1548 = vst [vmem:[#allocation2 + $0x4] sm:$0xf] %v1547
    %v1549 = vld [vmem:[#allocation2 + $0x8] sm:$0xf]
    %v1550 = vsel %vm1542, %v1504, %v1549
    %1551 = vst [vmem:[#allocation2 + $0x8] sm:$0xf] %v1550
    %v1552 = vld [vmem:[#allocation2 + $0xc] sm:$0xf]
    %v1553 = vsel %vm1542, %v1506, %v1552
    %1554 = vst [vmem:[#allocation2 + $0xc] sm:$0xf] %v1553
    %v1555 = vld [vmem:[#allocation2 + $0x10] sm:$0xf]
    %v1556 = vsel %vm1542, %v1508, %v1555
    %1557 = vst [vmem:[#allocation2 + $0x10] sm:$0xf] %v1556
    %v1558 = vld [vmem:[#allocation2 + $0x14] sm:$0xf]
    %v1559 = vsel %vm1542, %v1510, %v1558
    %1560 = vst [vmem:[#allocation2 + $0x14] sm:$0xf] %v1559
    %v1561 = vld [vmem:[#allocation2 + $0x18] sm:$0xf]
    %v1562 = vsel %vm1542, %v1512, %v1561
    %1563 = vst [vmem:[#allocation2 + $0x18] sm:$0xf] %v1562
    %v1564 = vld [vmem:[#allocation2 + $0x20] sm:$0xf]
    %v1565 = vsel %vm1542, %v1514, %v1564
    %1566 = vst [vmem:[#allocation2 + $0x20] sm:$0xf] %v1565
    %v1567 = vld [vmem:[#allocation2 + $0x24] sm:$0xf]
    %v1568 = vsel %vm1542, %v1516, %v1567
    %1569 = vst [vmem:[#allocation2 + $0x24] sm:$0xf] %v1568
    %v1570 = vld [vmem:[#allocation2 + $0x28] sm:$0xf]
    %v1571 = vsel %vm1542, %v1518, %v1570
    %1572 = vst [vmem:[#allocation2 + $0x28] sm:$0xf] %v1571
    %v1573 = vld [vmem:[#allocation2 + $0x2c] sm:$0xf]
    %v1574 = vsel %vm1542, %v1520, %v1573
    %1575 = vst [vmem:[#allocation2 + $0x2c] sm:$0xf] %v1574
    %v1576 = vld [vmem:[#allocation2 + $0x30] sm:$0xf]
    %v1577 = vsel %vm1542, %v1522, %v1576
    %1578 = vst [vmem:[#allocation2 + $0x30] sm:$0xf] %v1577
    %v1579 = vld [vmem:[#allocation2 + $0x34] sm:$0xf]
    %v1580 = vsel %vm1542, %v1524, %v1579
    %1581 = vst [vmem:[#allocation2 + $0x34] sm:$0xf] %v1580
    %v1582 = vld [vmem:[#allocation2 + $0x38] sm:$0xf]
    %v1583 = vsel %vm1542, %v1526, %v1582
    %1584 = vst [vmem:[#allocation2 + $0x38] sm:$0xf] %v1583
    %v1585 = vld [vmem:[#allocation2] sm:$0xf]
    %v1586 = vld [vmem:[#allocation2 + $0x4] sm:$0xf]
    %v1587 = vld [vmem:[#allocation2 + $0x8] sm:$0xf]
    %v1588 = vld [vmem:[#allocation2 + $0xc] sm:$0xf]
    %v1589 = vld [vmem:[#allocation2 + $0x10] sm:$0xf]
    %v1590 = vld [vmem:[#allocation2 + $0x14] sm:$0xf]
    %v1591 = vld [vmem:[#allocation2 + $0x18] sm:$0xf]
    %v1592 = vld [vmem:[#allocation2 + $0x1c] sm:$0xf]
    %v1593 = vld [vmem:[#allocation2 + $0x20] sm:$0xf]
    %v1594 = vld [vmem:[#allocation2 + $0x24] sm:$0xf]
    %v1595 = vld [vmem:[#allocation2 + $0x28] sm:$0xf]
    %v1596 = vld [vmem:[#allocation2 + $0x2c] sm:$0xf]
    %v1597 = vld [vmem:[#allocation2 + $0x30] sm:$0xf]
    %v1598 = vld [vmem:[#allocation2 + $0x34] sm:$0xf]
    %v1599 = vld [vmem:[#allocation2 + $0x38] sm:$0xf]
    %v1600 = vld [vmem:[#allocation2 + $0x3c] sm:$0xf]
    %v1601 = vld [vmem:[%s6] sm:$0xf]
    %v1602 = vld [vmem:[%s6 + $0x4] sm:$0xf]
    %v1603 = vld [vmem:[%s6 + $0x8] sm:$0xf]
    %v1604 = vld [vmem:[%s6 + $0xc] sm:$0xf]
    %v1605 = vld [vmem:[%s6 + $0x10] sm:$0xf]
    %v1606 = vld [vmem:[%s6 + $0x14] sm:$0xf]
    %v1607 = vld [vmem:[%s6 + $0x18] sm:$0xf]
    %v1608 = vld [vmem:[%s6 + $0x1c] sm:$0xf]
    %v1609 = vld [vmem:[%s6 + $0x20] sm:$0xf]
    %v1626 = vunpack.c.l.b16 %v1585
    %v1627 = vunpack.c.l.b16 %v1586
    %v1628 = vunpack.c.l.b16 %v1587
    %v1629 = vunpack.c.l.b16 %v1588
    %v1630 = vunpack.c.l.b16 %v1589
    %v1631 = vunpack.c.l.b16 %v1590
    %v1632 = vunpack.c.l.b16 %v1591
    %v1633 = vunpack.c.l.b16 %v1592
    %v1634 = vunpack.c.l.b16 %v1593
    %v1635 = vunpack.c.l.b16 %v1594
    %v1636 = vunpack.c.l.b16 %v1595
    %v1637 = vunpack.c.l.b16 %v1596
    %v1638 = vunpack.c.l.b16 %v1597
    %v1639 = vunpack.c.l.b16 %v1598
    %v1640 = vunpack.c.l.b16 %v1599
    %v1641 = vunpack.c.l.b16 %v1600
    %v1642 = vpack.c.b16 %v1627, %v1626
    %v1643 = vpack.c.b16 %v1629, %v1628
    %v1644 = vpack.c.b16 %v1631, %v1630
    %v1645 = vpack.c.b16 %v1633, %v1632
    %v1646 = vpack.c.b16 %v1635, %v1634
    %v1647 = vpack.c.b16 %v1637, %v1636
    %v1648 = vpack.c.b16 %v1639, %v1638
    %v1649 = vpack.c.b16 %v1641, %v1640
    %v1659 = vunpack.c.l.b16 %v1601
    %v1660 = vunpack.c.l.b16 %v1602
    %v1661 = vunpack.c.l.b16 %v1603
    %v1662 = vunpack.c.l.b16 %v1604
    %v1663 = vunpack.c.l.b16 %v1605
    %v1664 = vunpack.c.l.b16 %v1606
    %v1665 = vunpack.c.l.b16 %v1607
    %v1666 = vunpack.c.l.b16 %v1608
    %v1667 = vunpack.c.l.b16 %v1609
    %v1668 = vpack.c.b16 %v1660, %v1659
    %v1669 = vpack.c.b16 %v1662, %v1661
    %v1670 = vpack.c.b16 %v1664, %v1663
    %v1671 = vpack.c.b16 %v1666, %v1665
    %v1672 = vpack.c.b16 %v1667, %v1667
    %vm1677 = vcmask 588800
    %v1679 = vsel %vm1677, %v1642, 0
    %v1682 = vsel %vm1677, %v1643, 0
    %v1685 = vsel %vm1677, %v1644, 0
    %v1688 = vsel %vm1677, %v1645, 0
    %v1691 = vsel %vm1677, %v1646, 0
    %v1694 = vsel %vm1677, %v1647, 0
    %v1697 = vsel %vm1677, %v1648, 0
    %v1700 = vsel %vm1677, %v1649, 0
    %v1703 = vsel %vm226, %v1672, 0
    %1705 = vmatprep.subr.bf16.mxu0 0
    %1706 = vmatpush1.bf16.msra.mxu0 %v1668
    %1707 = vmatprep.subr.bf16.mxu0 0
    %1708 = vmatpush1.bf16.msra.mxu0 %v1669
    %1709 = vmatprep.subr.bf16.mxu0 0
    %1710 = vmatpush1.bf16.msra.mxu0 %v1670
    %1711 = vmatprep.subr.bf16.mxu0 0
    %1712 = vmatpush1.bf16.msra.mxu0 %v1671
    %1713 = vmatprep.subr.bf16.mxu0 0
    %1714 = vmatpush1.bf16.msra.mxu0 %v1703
    %1715 = vmatprep.subr.bf16.mxu0 0
    %1716 = vmatpush1.bf16.msra.mxu0 0
    %1717 = vmatprep.subr.bf16.mxu0 0
    %1718 = vmatpush1.bf16.msra.mxu0 0
    %1719 = vmatprep.subr.bf16.mxu0 0
    %1720 = vmatpush1.bf16.msra.mxu0 0
    %1721 = vmatprep.subr.bf16.mxu0 0
    %1722 = vmatpush1.bf16.msra.mxu0 0
    %1723 = vmatprep.subr.bf16.mxu0 0
    %1724 = vmatpush1.bf16.msra.mxu0 0
    %1725 = vmatprep.subr.bf16.mxu0 0
    %1726 = vmatpush1.bf16.msra.mxu0 0
    %1727 = vmatprep.subr.bf16.mxu0 0
    %1728 = vmatpush1.bf16.msra.mxu0 0
    %1729 = vmatprep.subr.bf16.mxu0 0
    %1730 = vmatpush1.bf16.msra.mxu0 0
    %1731 = vmatprep.subr.bf16.mxu0 0
    %1732 = vmatpush1.bf16.msra.mxu0 0
    %1733 = vmatprep.subr.bf16.mxu0 0
    %1734 = vmatpush1.bf16.msra.mxu0 0
    %1735 = vmatprep.subr.bf16.mxu0 0
    %1736 = vmatpush1.bf16.msra.mxu0 0
    %1737 = vmatprep.mubr.bf16.mxu0 0
    %1738 = vmatmul.mubr.bf16.gmra.mrb[0].mxu0 %v1679
    %v1739 = vpop.f32.mrb[0].mxu0
    %v1740 = vadd.f32 0.0, %v1739
    %v1741 = vpop.f32.mrb[0].mxu0
    %v1742 = vpop.f32.mrb[0].mxu0
    %v1743 = vadd.f32 0.0, %v1742
    %v1744 = vpop.f32.mrb[0].mxu0
    %1745 = vmatprep.mubr.bf16.mxu0 0
    %1746 = vmatmul.mubr.bf16.gmra.mrb[0].mxu0 %v1682
    %v1747 = vpop.f32.mrb[0].mxu0
    %v1748 = vadd.f32 0.0, %v1747
    %v1749 = vpop.f32.mrb[0].mxu0
    %v1750 = vpop.f32.mrb[0].mxu0
    %v1751 = vadd.f32 0.0, %v1750
    %v1752 = vpop.f32.mrb[0].mxu0
    %1753 = vmatprep.mubr.bf16.mxu0 0
    %1754 = vmatmul.mubr.bf16.gmra.mrb[0].mxu0 %v1685
    %v1755 = vpop.f32.mrb[0].mxu0
    %v1756 = vadd.f32 0.0, %v1755
    %v1757 = vpop.f32.mrb[0].mxu0
    %v1758 = vpop.f32.mrb[0].mxu0
    %v1759 = vadd.f32 0.0, %v1758
    %v1760 = vpop.f32.mrb[0].mxu0
    %1761 = vmatprep.mubr.bf16.mxu0 0
    %1762 = vmatmul.mubr.bf16.gmra.mrb[0].mxu0 %v1688
    %v1763 = vpop.f32.mrb[0].mxu0
    %v1764 = vadd.f32 0.0, %v1763
    %v1765 = vpop.f32.mrb[0].mxu0
    %v1766 = vpop.f32.mrb[0].mxu0
    %v1767 = vadd.f32 0.0, %v1766
    %v1768 = vpop.f32.mrb[0].mxu0
    %1769 = vmatprep.mubr.bf16.mxu0 0
    %1770 = vmatmul.mubr.bf16.gmra.mrb[0].mxu0 %v1691
    %v1771 = vpop.f32.mrb[0].mxu0
    %v1772 = vadd.f32 0.0, %v1771
    %v1773 = vpop.f32.mrb[0].mxu0
    %v1774 = vpop.f32.mrb[0].mxu0
    %v1775 = vadd.f32 0.0, %v1774
    %v1776 = vpop.f32.mrb[0].mxu0
    %1777 = vmatprep.mubr.bf16.mxu0 0
    %1778 = vmatmul.mubr.bf16.gmra.mrb[0].mxu0 %v1694
    %v1779 = vpop.f32.mrb[0].mxu0
    %v1780 = vadd.f32 0.0, %v1779
    %v1781 = vpop.f32.mrb[0].mxu0
    %v1782 = vpop.f32.mrb[0].mxu0
    %v1783 = vadd.f32 0.0, %v1782
    %v1784 = vpop.f32.mrb[0].mxu0
    %1785 = vmatprep.mubr.bf16.mxu0 0
    %1786 = vmatmul.mubr.bf16.gmra.mrb[0].mxu0 %v1697
    %v1787 = vpop.f32.mrb[0].mxu0
    %v1788 = vadd.f32 0.0, %v1787
    %v1789 = vpop.f32.mrb[0].mxu0
    %v1790 = vpop.f32.mrb[0].mxu0
    %v1791 = vadd.f32 0.0, %v1790
    %v1792 = vpop.f32.mrb[0].mxu0
    %1793 = vmatprep.mubr.bf16.mxu0 0
    %1794 = vmatmul.mubr.bf16.gmra.mrb[0].mxu0 %v1700
    %v1795 = vpop.f32.mrb[0].mxu0
    %v1796 = vadd.f32 0.0, %v1795
    %v1797 = vpop.f32.mrb[0].mxu0
    %v1798 = vpop.f32.mrb[0].mxu0
    %v1799 = vadd.f32 0.0, %v1798
    %v1800 = vpop.f32.mrb[0].mxu0
    %1801 = vdwg.mxu0
    %v1802 = vpack.c.bf16 %v1743, %v1740
    %v1803 = vpack.c.bf16 %v1751, %v1748
    %v1804 = vpack.c.bf16 %v1759, %v1756
    %v1805 = vpack.c.bf16 %v1767, %v1764
    %v1806 = vpack.c.bf16 %v1775, %v1772
    %v1807 = vpack.c.bf16 %v1783, %v1780
    %v1808 = vpack.c.bf16 %v1791, %v1788
    %v1809 = vpack.c.bf16 %v1799, %v1796
    %v1818 = vunpack.c.l.b16 %v1802
    %v1819 = vunpack.c.h.b16 %v1802
    %v1820 = vunpack.c.l.b16 %v1803
    %v1821 = vunpack.c.h.b16 %v1803
    %v1822 = vunpack.c.l.b16 %v1804
    %v1823 = vunpack.c.h.b16 %v1804
    %v1824 = vunpack.c.l.b16 %v1805
    %v1825 = vunpack.c.h.b16 %v1805
    %v1826 = vunpack.c.l.b16 %v1806
    %v1827 = vunpack.c.h.b16 %v1806
    %v1828 = vunpack.c.l.b16 %v1807
    %v1829 = vunpack.c.h.b16 %v1807
    %v1830 = vunpack.c.l.b16 %v1808
    %v1831 = vunpack.c.h.b16 %v1808
    %v1832 = vunpack.c.l.b16 %v1809
    %v1833 = vunpack.c.h.b16 %v1809
    %v1834 = vpack.c.b16 %v1818, %v1818
    %v1835 = vpack.c.b16 %v1819, %v1819
    %v1836 = vpack.c.b16 %v1820, %v1820
    %v1837 = vpack.c.b16 %v1821, %v1821
    %v1838 = vpack.c.b16 %v1822, %v1822
    %v1839 = vpack.c.b16 %v1823, %v1823
    %v1840 = vpack.c.b16 %v1824, %v1824
    %v1841 = vpack.c.b16 %v1825, %v1825
    %v1842 = vpack.c.b16 %v1826, %v1826
    %v1843 = vpack.c.b16 %v1827, %v1827
    %v1844 = vpack.c.b16 %v1828, %v1828
    %v1845 = vpack.c.b16 %v1829, %v1829
    %v1846 = vpack.c.b16 %v1830, %v1830
    %v1847 = vpack.c.b16 %v1831, %v1831
    %v1848 = vpack.c.b16 %v1832, %v1832
    %v1849 = vpack.c.b16 %v1833, %v1833
    %vm1866 = vcmask 257024
    %1867 = vst.msk [vmem:[%s9] sm:$0xf] %vm1866, %v1834
    %1868 = vst.msk [vmem:[%s9 + $0x4] sm:$0xf] %vm1866, %v1835
    %1869 = vst.msk [vmem:[%s9 + $0x8] sm:$0xf] %vm1866, %v1836
    %1870 = vst.msk [vmem:[%s9 + $0xc] sm:$0xf] %vm1866, %v1837
    %1871 = vst.msk [vmem:[%s9 + $0x10] sm:$0xf] %vm1866, %v1838
    %1872 = vst.msk [vmem:[%s9 + $0x14] sm:$0xf] %vm1866, %v1839
    %1873 = vst.msk [vmem:[%s9 + $0x18] sm:$0xf] %vm1866, %v1840
    %1874 = vst.msk [vmem:[%s9 + $0x1c] sm:$0xf] %vm1866, %v1841
    %1875 = vst.msk [vmem:[%s9 + $0x20] sm:$0xf] %vm1866, %v1842
    %1876 = vst.msk [vmem:[%s9 + $0x24] sm:$0xf] %vm1866, %v1843
    %1877 = vst.msk [vmem:[%s9 + $0x28] sm:$0xf] %vm1866, %v1844
    %1878 = vst.msk [vmem:[%s9 + $0x2c] sm:$0xf] %vm1866, %v1845
    %1879 = vst.msk [vmem:[%s9 + $0x30] sm:$0xf] %vm1866, %v1846
    %1880 = vst.msk [vmem:[%s9 + $0x34] sm:$0xf] %vm1866, %v1847
    %1881 = vst.msk [vmem:[%s9 + $0x38] sm:$0xf] %vm1866, %v1848
    %1882 = vst.msk [vmem:[%s9 + $0x3c] sm:$0xf] %vm1866, %v1849
    %vm1883 = vcmask 261120
    %v1884 = vsel %vm1883, %v1740, 0.0
    %v1885 = vsel %vm1883, %v1743, 0.0
    %v1886 = vadd.f32 %v1884, %v1885
    %v1887 = vsel %vm1883, %v1748, 0.0
    %v1888 = vadd.f32 %v1886, %v1887
    %v1889 = vsel %vm1883, %v1751, 0.0
    %v1890 = vadd.f32 %v1888, %v1889
    %v1891 = vsel %vm1883, %v1756, 0.0
    %v1892 = vadd.f32 %v1890, %v1891
    %v1893 = vsel %vm1883, %v1759, 0.0
    %v1894 = vadd.f32 %v1892, %v1893
    %v1895 = vsel %vm1883, %v1764, 0.0
    %v1896 = vadd.f32 %v1894, %v1895
    %v1897 = vsel %vm1883, %v1767, 0.0
    %v1898 = vadd.f32 %v1896, %v1897
    %v1899 = vsel %vm1883, %v1772, 0.0
    %v1900 = vadd.f32 %v1898, %v1899
    %v1901 = vsel %vm1883, %v1775, 0.0
    %v1902 = vadd.f32 %v1900, %v1901
    %v1903 = vsel %vm1883, %v1780, 0.0
    %v1904 = vadd.f32 %v1902, %v1903
    %v1905 = vsel %vm1883, %v1783, 0.0
    %v1906 = vadd.f32 %v1904, %v1905
    %v1907 = vsel %vm1883, %v1788, 0.0
    %v1908 = vadd.f32 %v1906, %v1907
    %v1909 = vsel %vm1883, %v1791, 0.0
    %v1910 = vadd.f32 %v1908, %v1909
    %v1911 = vsel %vm1883, %v1796, 0.0
    %v1912 = vadd.f32 %v1910, %v1911
    %v1913 = vsel %vm1883, %v1799, 0.0
    %v1914 = vadd.f32 %v1912, %v1913
    %v1915 = vrot.slane %v1914, 4
    %v1916 = vadd.f32 %v1914, %v1915
    %v1917 = vrot.slane %v1916, 2
    %v1918 = vadd.f32 %v1916, %v1917
    %v1919 = vrot.slane %v1918, 1
    %v1920 = vadd.f32 %v1918, %v1919
    %v1921 = vmul.f32 %v1740, %v1740
    %v1922 = vmul.f32 %v1743, %v1743
    %v1923 = vmul.f32 %v1748, %v1748
    %v1924 = vmul.f32 %v1751, %v1751
    %v1925 = vmul.f32 %v1756, %v1756
    %v1926 = vmul.f32 %v1759, %v1759
    %v1927 = vmul.f32 %v1764, %v1764
    %v1928 = vmul.f32 %v1767, %v1767
    %v1929 = vmul.f32 %v1772, %v1772
    %v1930 = vmul.f32 %v1775, %v1775
    %v1931 = vmul.f32 %v1780, %v1780
    %v1932 = vmul.f32 %v1783, %v1783
    %v1933 = vmul.f32 %v1788, %v1788
    %v1934 = vmul.f32 %v1791, %v1791
    %v1935 = vmul.f32 %v1796, %v1796
    %v1936 = vmul.f32 %v1799, %v1799
    %v1937 = vsel %vm1883, %v1921, 0.0
    %v1938 = vsel %vm1883, %v1922, 0.0
    %v1939 = vadd.f32 %v1937, %v1938
    %v1940 = vsel %vm1883, %v1923, 0.0
    %v1941 = vadd.f32 %v1939, %v1940
    %v1942 = vsel %vm1883, %v1924, 0.0
    %v1943 = vadd.f32 %v1941, %v1942
    %v1944 = vsel %vm1883, %v1925, 0.0
    %v1945 = vadd.f32 %v1943, %v1944
    %v1946 = vsel %vm1883, %v1926, 0.0
    %v1947 = vadd.f32 %v1945, %v1946
    %v1948 = vsel %vm1883, %v1927, 0.0
    %v1949 = vadd.f32 %v1947, %v1948
    %v1950 = vsel %vm1883, %v1928, 0.0
    %v1951 = vadd.f32 %v1949, %v1950
    %v1952 = vsel %vm1883, %v1929, 0.0
    %v1953 = vadd.f32 %v1951, %v1952
    %v1954 = vsel %vm1883, %v1930, 0.0
    %v1955 = vadd.f32 %v1953, %v1954
    %v1956 = vsel %vm1883, %v1931, 0.0
    %v1957 = vadd.f32 %v1955, %v1956
    %v1958 = vsel %vm1883, %v1932, 0.0
    %v1959 = vadd.f32 %v1957, %v1958
    %v1960 = vsel %vm1883, %v1933, 0.0
    %v1961 = vadd.f32 %v1959, %v1960
    %v1962 = vsel %vm1883, %v1934, 0.0
    %v1963 = vadd.f32 %v1961, %v1962
    %v1964 = vsel %vm1883, %v1935, 0.0
    %v1965 = vadd.f32 %v1963, %v1964
    %v1966 = vsel %vm1883, %v1936, 0.0
    %v1967 = vadd.f32 %v1965, %v1966
    %v1968 = vrot.slane %v1967, 4
    %v1969 = vadd.f32 %v1967, %v1968
    %v1970 = vrot.slane %v1969, 2
    %v1971 = vadd.f32 %v1969, %v1970
    %v1972 = vrot.slane %v1971, 1
    %v1973 = vadd.f32 %v1971, %v1972
    %v1974 = vsel %vm638, %v1920, %v1973
    %vm1975 = vcmask 254976
    %1976 = vst.msk [vmem:[%s10] sm:$0x3] %vm1975, %v1974
    // Predicated region
    $region34: #{_lambda_.11} parent=1 // pred_check
      _
    $region35: #{_lambda_.11} parent=1 // pred_check_branch
      %1978 = sbr.rel (0) target = $region37
    $region36: #{_lambda_.11} parent=1 // pred_region
      _
    $region37: #{_lambda_.11} parent=1 // pred_fallthru
      _
    // Predicated region
    $region38: #{_lambda_.11} parent=1 // pred_check
      _
    $region39: #{_lambda_.11} parent=1 // pred_check_branch
      %1980 = sbr.rel (0) target = $region41
    $region40: #{_lambda_.11} parent=1 // pred_region
      _
    $region41: #{_lambda_.11} parent=1 // pred_fallthru
      _
    // Predicated region
    $region42: #{_lambda_.11} parent=1 // pred_check
      _
    $region43: #{_lambda_.11} parent=1 // pred_check_branch
      %1982 = sbr.rel (0) target = $region45
    $region44: #{_lambda_.11} parent=1 // pred_region
      _
    $region45: #{_lambda_.11} parent=1 // pred_fallthru
      _
    // Predicated region
    $region46: #{_lambda_.11} parent=1 // pred_check
      _
    $region47: #{_lambda_.11} parent=1 // pred_check_branch
      %1984 = sbr.rel (0) target = $region49
    $region48: #{_lambda_.11} parent=1 // pred_region
      _
    $region49: #{_lambda_.11} parent=1 // pred_fallthru
      _
    // Predicated region
    $region50: #{_lambda_.11} parent=1 // pred_check
      _
    $region51: #{_lambda_.11} parent=1 // pred_check_branch
      %1986 = sbr.rel (0) target = $region53
    $region52: #{_lambda_.11} parent=1 // pred_region
      %s1988 = ssub.s32 32, 32
      %1989 = vsyncadd [#allocation4], %s1988
      %s1991 = sshll.u32 [#allocation3], 4
      %s1992 = int_to_ptr.vmem [resolvable:$true] %s1991
      %1994 = dma.vmem_to_hbm [thread:$0]  %s1992, 32, %s11, [#allocation4]
    $region53: #{_lambda_.11} parent=1 // pred_fallthru
      _
    // Predicated region
    $region54: #{_lambda_.11} parent=1 // pred_check
      _
    $region55: #{_lambda_.11} parent=1 // pred_check_branch
      %1996 = sbr.rel (0) target = $region57
    $region56: #{_lambda_.11} parent=1 // pred_region
      _
    $region57: #{_lambda_.11} parent=1 // pred_fallthru
      _
    // Predicated region
    $region58: #{_lambda_.11} parent=1 // pred_check
      _
    $region59: #{_lambda_.11} parent=1 // pred_check_branch
      %1998 = sbr.rel (0) target = $region61
    $region60: #{_lambda_.11} parent=1 // pred_region
      _
    $region61: #{_lambda_.11} parent=1 // pred_fallthru
      _
    // Predicated region
    $region62: #{_lambda_.11} parent=1 // pred_check
      _
    $region63: #{_lambda_.11} parent=1 // pred_check_branch
      %2000 = sbr.rel (0) target = $region65
    $region64: #{_lambda_.11} parent=1 // pred_region
      _
    $region65: #{_lambda_.11} parent=1 // pred_fallthru
      _
    // Predicated region
    $region66: #{_lambda_.11} parent=1 // pred_check
      _
    $region67: #{_lambda_.11} parent=1 // pred_check_branch
      %2002 = sbr.rel (0) target = $region69
    $region68: #{_lambda_.11} parent=1 // pred_region
      _
    $region69: #{_lambda_.11} parent=1 // pred_fallthru
      _
    // Predicated region
    $region70: #{_lambda_.11} parent=1 // pred_check
      _
    $region71: #{_lambda_.11} parent=1 // pred_check_branch
      %2004 = sbr.rel (0) target = $region73
    $region72: #{_lambda_.11} parent=1 // pred_region
      %2005 = dma.done [#allocation4], 32
    $region73: #{_lambda_.11} parent=1 // pred_fallthru
      _
    %2006 = vsyncpa [#allocation4], 1

// kernel: _lambda_.13
$region0: #{_lambda_.13}
  #allocation0 [shape = 'u32[]', space=smem, size = 0x4, offset = 0x4, fixed_abs, tag = 'smem constant byte address 0x4 - core index']
  #allocation1 [shape = 'u32[144,128]{1,0:T(1,128)}', space=vmem, size = 0x12000, scoped, tag = 'internal scratch']
  #allocation2 [shape = 'bf16[2,8,8,288]{3,2,1,0:T(8,128)(2,1)}', space=vmem, size = 0x18000, scoped, tag = 'scratch operand']
  %s0 = inlined_call_operand.vmem [shape: bf16[128,32], index: 0, kind: input, shape index: {}]
  %s1 = inlined_call_operand.vmem [shape: f32[128,8], index: 1, kind: input, shape index: {}]
  %s2 = inlined_call_operand.vmem [shape: f32[2,2,32], index: 2, kind: input, shape index: {}]
  %s3 = inlined_call_operand.vmem [shape: bf16[288,16], index: 3, kind: input, shape index: {}]
  %s4 = inlined_call_operand.vmem [shape: f32[1,16], index: 4, kind: input, shape index: {}]
  %s5 = inlined_call_operand.vmem [shape: f32[128,8], index: 5, kind: output, shape index: {0}]
  %s6 = inlined_call_operand.hbm [shape: f32[1,2,8], index: 6, kind: output, shape index: {1}]
  %7 = xla_tuple %s5, %s6
  %s8 = sld [smem:[#allocation0]]
  $region42: #{_lambda_.13} parent=0
    _
  %s10 = ssub.s32 1, %s8
  %s11 = scalar_select 0, %s10, %s8
  $region1: #{_lambda_.13} parent=0
    #allocation3 [shape = 'u8[1024]{0}', space=vmem, size = 0x400, scoped, tag = 'output window, operand 1, single buffered']
    #allocation4 [shape = 's32[1]{0}', space=sflag, size = 0x4, scoped, tag = 'scoped memory for _lambda_.13']
    %12 = vsyncpa [#allocation4], 0
    // Predicated region
    $region2: #{_lambda_.13} parent=1 // pred_check
      _
    $region3: #{_lambda_.13} parent=1 // pred_check_branch
      %14 = sbr.rel (0) target = $region5
    $region4: #{_lambda_.13} parent=1 // pred_region
      _
    $region5: #{_lambda_.13} parent=1 // pred_fallthru
      _
    // Predicated region
    $region6: #{_lambda_.13} parent=1 // pred_check
      _
    $region7: #{_lambda_.13} parent=1 // pred_check_branch
      %16 = sbr.rel (0) target = $region9
    $region8: #{_lambda_.13} parent=1 // pred_region
      _
    $region9: #{_lambda_.13} parent=1 // pred_fallthru
      _
    // Predicated region
    $region10: #{_lambda_.13} parent=1 // pred_check
      _
    $region11: #{_lambda_.13} parent=1 // pred_check_branch
      %18 = sbr.rel (0) target = $region13
    $region12: #{_lambda_.13} parent=1 // pred_region
      _
    $region13: #{_lambda_.13} parent=1 // pred_fallthru
      _
    // Predicated region
    $region14: #{_lambda_.13} parent=1 // pred_check
      _
    $region15: #{_lambda_.13} parent=1 // pred_check_branch
      %20 = sbr.rel (0) target = $region17
    $region16: #{_lambda_.13} parent=1 // pred_region
      _
    $region17: #{_lambda_.13} parent=1 // pred_fallthru
      _
    // Predicated region
    $region18: #{_lambda_.13} parent=1 // pred_check
      _
    $region19: #{_lambda_.13} parent=1 // pred_check_branch
      %22 = sbr.rel (0) target = $region21
    $region20: #{_lambda_.13} parent=1 // pred_region
      _
    $region21: #{_lambda_.13} parent=1 // pred_fallthru
      _
    %v24 = vld [vmem:[%s2] sm:$0x3]
    %v25 = vld [vmem:[%s2 + $0x2] sm:$0x3]
    %vm26 = vcmask 253952
    %v27 = vsel %vm26, %v24, 0.0
    %v28 = vsel %vm26, %v25, 0.0
    %v29 = vadd.f32 %v27, %v28
    %vm30 = vcmask 254977
    %v31 = vsel %vm30, %v24, 0.0
    %v32 = vsel %vm30, %v25, 0.0
    %v33 = vadd.f32 %v31, %v32
    %v34 = vmul.f32 %v29, 0.005
    %v35 = vmul.f32 %v33, 0.005
    %v36 = vmul.f32 %v34, %v34
    %v38 = vrot.slane %v36, 7
    %v40 = vsub.f32 %v35, %v38
    %v41 = vmax.f32 %v40, 0.0
    %v42 = vrsqrt.pop %v41
    %v43 = vmul.f32 %v41, %v42
    %vm44 = vcmp.eq.f32.partialorder %v41, inf
    %v45 = vsel %vm44, %v41, %v43
    %vm46 = vcmp.eq.f32.partialorder %v41, 0.0
    %v47 = vand.u32 %v41, 2147483648
    %v48 = vsel %vm46, %v47, %v45
    %v49 = vadd.f32 %v48, 1e-06
    %v50 = vrcp.pop %v49
    %v51 = vmul.f32 1.0, %v50
    %v52 = vsub.f32 0.0, %v34
    %v54 = vrot.slane %v51, 1
    %v56 = vmul.f32 %v52, %v54
    %v57 = vmax.f32 %v56, 0.0
    %v58 = vpack.c.bf16 %v57, %v57
    %v59 = vld [vmem:[%s0] sm:$0xf]
    %v60 = vld [vmem:[%s0 + $0x4] sm:$0xf]
    %v61 = vld [vmem:[%s0 + $0x8] sm:$0xf]
    %v62 = vld [vmem:[%s0 + $0xc] sm:$0xf]
    %v63 = vld [vmem:[%s0 + $0x10] sm:$0xf]
    %v64 = vld [vmem:[%s0 + $0x14] sm:$0xf]
    %v65 = vld [vmem:[%s0 + $0x18] sm:$0xf]
    %v66 = vld [vmem:[%s0 + $0x1c] sm:$0xf]
    %v67 = vld [vmem:[%s0 + $0x20] sm:$0xf]
    %v68 = vld [vmem:[%s0 + $0x24] sm:$0xf]
    %v69 = vld [vmem:[%s0 + $0x28] sm:$0xf]
    %v70 = vld [vmem:[%s0 + $0x2c] sm:$0xf]
    %v71 = vld [vmem:[%s0 + $0x30] sm:$0xf]
    %v72 = vld [vmem:[%s0 + $0x34] sm:$0xf]
    %v73 = vld [vmem:[%s0 + $0x38] sm:$0xf]
    %v74 = vld [vmem:[%s0 + $0x3c] sm:$0xf]
    %v75 = vunpack.c.l.bf16 %v59
    %v76 = vunpack.c.l.bf16 %v60
    %v77 = vunpack.c.l.bf16 %v61
    %v78 = vunpack.c.l.bf16 %v62
    %v79 = vunpack.c.l.bf16 %v63
    %v80 = vunpack.c.l.bf16 %v64
    %v81 = vunpack.c.l.bf16 %v65
    %v82 = vunpack.c.l.bf16 %v66
    %v83 = vunpack.c.l.bf16 %v67
    %v84 = vunpack.c.l.bf16 %v68
    %v85 = vunpack.c.l.bf16 %v69
    %v86 = vunpack.c.l.bf16 %v70
    %v87 = vunpack.c.l.bf16 %v71
    %v88 = vunpack.c.l.bf16 %v72
    %v89 = vunpack.c.l.bf16 %v73
    %v90 = vunpack.c.l.bf16 %v74
    %v91 = vlaneseq
    %v92 = vshrl.u32 %v91, 7
    %v93 = vsub.s32 0, %v92
    %v94 = vrot.slane %v34, %v93
    %v95 = vsub.f32 %v75, %v94
    %v96 = vsub.f32 %v76, %v94
    %v97 = vsub.f32 %v77, %v94
    %v98 = vsub.f32 %v78, %v94
    %v99 = vsub.f32 %v79, %v94
    %v100 = vsub.f32 %v80, %v94
    %v101 = vsub.f32 %v81, %v94
    %v102 = vsub.f32 %v82, %v94
    %v103 = vsub.f32 %v83, %v94
    %v104 = vsub.f32 %v84, %v94
    %v105 = vsub.f32 %v85, %v94
    %v106 = vsub.f32 %v86, %v94
    %v107 = vsub.f32 %v87, %v94
    %v108 = vsub.f32 %v88, %v94
    %v109 = vsub.f32 %v89, %v94
    %v110 = vsub.f32 %v90, %v94
    %v111 = vlaneseq
    %v112 = vshrl.u32 %v111, 7
    %v113 = vsub.s32 1, %v112
    %v114 = vrot.slane %v51, %v113
    %v115 = vmul.f32 %v95, %v114
    %v116 = vmul.f32 %v96, %v114
    %v117 = vmul.f32 %v97, %v114
    %v118 = vmul.f32 %v98, %v114
    %v119 = vmul.f32 %v99, %v114
    %v120 = vmul.f32 %v100, %v114
    %v121 = vmul.f32 %v101, %v114
    %v122 = vmul.f32 %v102, %v114
    %v123 = vmul.f32 %v103, %v114
    %v124 = vmul.f32 %v104, %v114
    %v125 = vmul.f32 %v105, %v114
    %v126 = vmul.f32 %v106, %v114
    %v127 = vmul.f32 %v107, %v114
    %v128 = vmul.f32 %v108, %v114
    %v129 = vmul.f32 %v109, %v114
    %v130 = vmul.f32 %v110, %v114
    %v131 = vmax.f32 %v115, 0.0
    %v132 = vmax.f32 %v116, 0.0
    %v133 = vmax.f32 %v117, 0.0
    %v134 = vmax.f32 %v118, 0.0
    %v135 = vmax.f32 %v119, 0.0
    %v136 = vmax.f32 %v120, 0.0
    %v137 = vmax.f32 %v121, 0.0
    %v138 = vmax.f32 %v122, 0.0
    %v139 = vmax.f32 %v123, 0.0
    %v140 = vmax.f32 %v124, 0.0
    %v141 = vmax.f32 %v125, 0.0
    %v142 = vmax.f32 %v126, 0.0
    %v143 = vmax.f32 %v127, 0.0
    %v144 = vmax.f32 %v128, 0.0
    %v145 = vmax.f32 %v129, 0.0
    %v146 = vmax.f32 %v130, 0.0
    %p147 = scmp.eq.s32.totalorder 0, 0
    // Predicated region
    $region22: #{_lambda_.13} parent=1 // pred_check
      %p148 = pneg %p147
    $region23: #{_lambda_.13} parent=1 // pred_check_branch
      %150 = sbr.rel (%p148) target = $region25
    $region24: #{_lambda_.13} parent=1 // pred_region
      %v152 = vpack.i.b16 %v58, %v58
      %v154 = vlaneseq
      %v155 = vshrl.u32 %v154, 7
      %v156 = vsub.s32 0, %v155
      %v157 = vrot.slane %v152, %v156
      %vm158 = vcmask 257024
      %159 = vst.msk [vmem:[#allocation2] sm:$0xf] %vm158, %v157
      %160 = vst.msk [vmem:[#allocation2 + $0xc] sm:$0xf] %vm158, %v157
      %161 = vst.msk [vmem:[#allocation2 + $0x18] sm:$0xf] %vm158, %v157
      %162 = vst.msk [vmem:[#allocation2 + $0x24] sm:$0xf] %vm158, %v157
      %163 = vst.msk [vmem:[#allocation2 + $0x30] sm:$0xf] %vm158, %v157
      %164 = vst.msk [vmem:[#allocation2 + $0x3c] sm:$0xf] %vm158, %v157
      %165 = vst.msk [vmem:[#allocation2 + $0x48] sm:$0xf] %vm158, %v157
      %166 = vst.msk [vmem:[#allocation2 + $0x54] sm:$0xf] %vm158, %v157
      %167 = vst.msk [vmem:[#allocation2 + $0x60] sm:$0xf] %vm158, %v157
      %168 = vst.msk [vmem:[#allocation2 + $0x6c] sm:$0xf] %vm158, %v157
      %169 = vst.msk [vmem:[#allocation2 + $0x78] sm:$0xf] %vm158, %v157
      %170 = vst.msk [vmem:[#allocation2 + $0x84] sm:$0xf] %vm158, %v157
      %171 = vst.msk [vmem:[#allocation2 + $0x90] sm:$0xf] %vm158, %v157
      %172 = vst.msk [vmem:[#allocation2 + $0x9c] sm:$0xf] %vm158, %v157
      %173 = vst.msk [vmem:[#allocation2 + $0xa8] sm:$0xf] %vm158, %v157
      %174 = vst.msk [vmem:[#allocation2 + $0xb4] sm:$0xf] %vm158, %v157
      %v176 = vunpack.c.l.b16 %v157
      %v177 = vpack.c.b16 %v176, %v176
      %178 = vrot.lane.b32.xlu0 %v177, 32
      %v179 = vpop.permute.xlu0 %178
      %vm181 = vcmask 519424
      %182 = vst.msk [vmem:[#allocation2] sm:$0xf] %vm181, %v179
      %183 = vst.msk [vmem:[#allocation2 + $0xc] sm:$0xf] %vm181, %v179
      %184 = vst.msk [vmem:[#allocation2 + $0x18] sm:$0xf] %vm181, %v179
      %185 = vst.msk [vmem:[#allocation2 + $0x24] sm:$0xf] %vm181, %v179
      %186 = vst.msk [vmem:[#allocation2 + $0x30] sm:$0xf] %vm181, %v179
      %187 = vst.msk [vmem:[#allocation2 + $0x3c] sm:$0xf] %vm181, %v179
      %188 = vst.msk [vmem:[#allocation2 + $0x48] sm:$0xf] %vm181, %v179
      %189 = vst.msk [vmem:[#allocation2 + $0x54] sm:$0xf] %vm181, %v179
      %190 = vst.msk [vmem:[#allocation2 + $0x60] sm:$0xf] %vm181, %v179
      %191 = vst.msk [vmem:[#allocation2 + $0x6c] sm:$0xf] %vm181, %v179
      %192 = vst.msk [vmem:[#allocation2 + $0x78] sm:$0xf] %vm181, %v179
      %193 = vst.msk [vmem:[#allocation2 + $0x84] sm:$0xf] %vm181, %v179
      %194 = vst.msk [vmem:[#allocation2 + $0x90] sm:$0xf] %vm181, %v179
      %195 = vst.msk [vmem:[#allocation2 + $0x9c] sm:$0xf] %vm181, %v179
      %196 = vst.msk [vmem:[#allocation2 + $0xa8] sm:$0xf] %vm181, %v179
      %197 = vst.msk [vmem:[#allocation2 + $0xb4] sm:$0xf] %vm181, %v179
      %198 = vrot.lane.b32.xlu0 %v177, 64
      %v199 = vpop.permute.xlu0 %198
      %vm201 = vcmask 781824
      %202 = vst.msk [vmem:[#allocation2] sm:$0xf] %vm201, %v199
      %203 = vst.msk [vmem:[#allocation2 + $0xc] sm:$0xf] %vm201, %v199
      %204 = vst.msk [vmem:[#allocation2 + $0x18] sm:$0xf] %vm201, %v199
      %205 = vst.msk [vmem:[#allocation2 + $0x24] sm:$0xf] %vm201, %v199
      %206 = vst.msk [vmem:[#allocation2 + $0x30] sm:$0xf] %vm201, %v199
      %207 = vst.msk [vmem:[#allocation2 + $0x3c] sm:$0xf] %vm201, %v199
      %208 = vst.msk [vmem:[#allocation2 + $0x48] sm:$0xf] %vm201, %v199
      %209 = vst.msk [vmem:[#allocation2 + $0x54] sm:$0xf] %vm201, %v199
      %210 = vst.msk [vmem:[#allocation2 + $0x60] sm:$0xf] %vm201, %v199
      %211 = vst.msk [vmem:[#allocation2 + $0x6c] sm:$0xf] %vm201, %v199
      %212 = vst.msk [vmem:[#allocation2 + $0x78] sm:$0xf] %vm201, %v199
      %213 = vst.msk [vmem:[#allocation2 + $0x84] sm:$0xf] %vm201, %v199
      %214 = vst.msk [vmem:[#allocation2 + $0x90] sm:$0xf] %vm201, %v199
      %215 = vst.msk [vmem:[#allocation2 + $0x9c] sm:$0xf] %vm201, %v199
      %216 = vst.msk [vmem:[#allocation2 + $0xa8] sm:$0xf] %vm201, %v199
      %217 = vst.msk [vmem:[#allocation2 + $0xb4] sm:$0xf] %vm201, %v199
      %218 = vrot.lane.b32.xlu0 %v177, 96
      %v219 = vpop.permute.xlu0 %218
      %vm221 = vcmask 1044224
      %222 = vst.msk [vmem:[#allocation2] sm:$0xf] %vm221, %v219
      %223 = vst.msk [vmem:[#allocation2 + $0xc] sm:$0xf] %vm221, %v219
      %224 = vst.msk [vmem:[#allocation2 + $0x18] sm:$0xf] %vm221, %v219
      %225 = vst.msk [vmem:[#allocation2 + $0x24] sm:$0xf] %vm221, %v219
      %226 = vst.msk [vmem:[#allocation2 + $0x30] sm:$0xf] %vm221, %v219
      %227 = vst.msk [vmem:[#allocation2 + $0x3c] sm:$0xf] %vm221, %v219
      %228 = vst.msk [vmem:[#allocation2 + $0x48] sm:$0xf] %vm221, %v219
      %229 = vst.msk [vmem:[#allocation2 + $0x54] sm:$0xf] %vm221, %v219
      %230 = vst.msk [vmem:[#allocation2 + $0x60] sm:$0xf] %vm221, %v219
      %231 = vst.msk [vmem:[#allocation2 + $0x6c] sm:$0xf] %vm221, %v219
      %232 = vst.msk [vmem:[#allocation2 + $0x78] sm:$0xf] %vm221, %v219
      %233 = vst.msk [vmem:[#allocation2 + $0x84] sm:$0xf] %vm221, %v219
      %234 = vst.msk [vmem:[#allocation2 + $0x90] sm:$0xf] %vm221, %v219
      %235 = vst.msk [vmem:[#allocation2 + $0x9c] sm:$0xf] %vm221, %v219
      %236 = vst.msk [vmem:[#allocation2 + $0xa8] sm:$0xf] %vm221, %v219
      %237 = vst.msk [vmem:[#allocation2 + $0xb4] sm:$0xf] %vm221, %v219
      %238 = vst.msk [vmem:[#allocation2 + $0x4] sm:$0xf] %vm158, %v157
      %239 = vst.msk [vmem:[#allocation2 + $0x10] sm:$0xf] %vm158, %v157
      %240 = vst.msk [vmem:[#allocation2 + $0x1c] sm:$0xf] %vm158, %v157
      %241 = vst.msk [vmem:[#allocation2 + $0x28] sm:$0xf] %vm158, %v157
      %242 = vst.msk [vmem:[#allocation2 + $0x34] sm:$0xf] %vm158, %v157
      %243 = vst.msk [vmem:[#allocation2 + $0x40] sm:$0xf] %vm158, %v157
      %244 = vst.msk [vmem:[#allocation2 + $0x4c] sm:$0xf] %vm158, %v157
      %245 = vst.msk [vmem:[#allocation2 + $0x58] sm:$0xf] %vm158, %v157
      %246 = vst.msk [vmem:[#allocation2 + $0x64] sm:$0xf] %vm158, %v157
      %247 = vst.msk [vmem:[#allocation2 + $0x70] sm:$0xf] %vm158, %v157
      %248 = vst.msk [vmem:[#allocation2 + $0x7c] sm:$0xf] %vm158, %v157
      %249 = vst.msk [vmem:[#allocation2 + $0x88] sm:$0xf] %vm158, %v157
      %250 = vst.msk [vmem:[#allocation2 + $0x94] sm:$0xf] %vm158, %v157
      %251 = vst.msk [vmem:[#allocation2 + $0xa0] sm:$0xf] %vm158, %v157
      %252 = vst.msk [vmem:[#allocation2 + $0xac] sm:$0xf] %vm158, %v157
      %253 = vst.msk [vmem:[#allocation2 + $0xb8] sm:$0xf] %vm158, %v157
      %254 = vst.msk [vmem:[#allocation2 + $0x4] sm:$0xf] %vm181, %v179
      %255 = vst.msk [vmem:[#allocation2 + $0x10] sm:$0xf] %vm181, %v179
      %256 = vst.msk [vmem:[#allocation2 + $0x1c] sm:$0xf] %vm181, %v179
      %257 = vst.msk [vmem:[#allocation2 + $0x28] sm:$0xf] %vm181, %v179
      %258 = vst.msk [vmem:[#allocation2 + $0x34] sm:$0xf] %vm181, %v179
      %259 = vst.msk [vmem:[#allocation2 + $0x40] sm:$0xf] %vm181, %v179
      %260 = vst.msk [vmem:[#allocation2 + $0x4c] sm:$0xf] %vm181, %v179
      %261 = vst.msk [vmem:[#allocation2 + $0x58] sm:$0xf] %vm181, %v179
      %262 = vst.msk [vmem:[#allocation2 + $0x64] sm:$0xf] %vm181, %v179
      %263 = vst.msk [vmem:[#allocation2 + $0x70] sm:$0xf] %vm181, %v179
      %264 = vst.msk [vmem:[#allocation2 + $0x7c] sm:$0xf] %vm181, %v179
      %265 = vst.msk [vmem:[#allocation2 + $0x88] sm:$0xf] %vm181, %v179
      %266 = vst.msk [vmem:[#allocation2 + $0x94] sm:$0xf] %vm181, %v179
      %267 = vst.msk [vmem:[#allocation2 + $0xa0] sm:$0xf] %vm181, %v179
      %268 = vst.msk [vmem:[#allocation2 + $0xac] sm:$0xf] %vm181, %v179
      %269 = vst.msk [vmem:[#allocation2 + $0xb8] sm:$0xf] %vm181, %v179
      %270 = vst.msk [vmem:[#allocation2 + $0x4] sm:$0xf] %vm201, %v199
      %271 = vst.msk [vmem:[#allocation2 + $0x10] sm:$0xf] %vm201, %v199
      %272 = vst.msk [vmem:[#allocation2 + $0x1c] sm:$0xf] %vm201, %v199
      %273 = vst.msk [vmem:[#allocation2 + $0x28] sm:$0xf] %vm201, %v199
      %274 = vst.msk [vmem:[#allocation2 + $0x34] sm:$0xf] %vm201, %v199
      %275 = vst.msk [vmem:[#allocation2 + $0x40] sm:$0xf] %vm201, %v199
      %276 = vst.msk [vmem:[#allocation2 + $0x4c] sm:$0xf] %vm201, %v199
      %277 = vst.msk [vmem:[#allocation2 + $0x58] sm:$0xf] %vm201, %v199
      %278 = vst.msk [vmem:[#allocation2 + $0x64] sm:$0xf] %vm201, %v199
      %279 = vst.msk [vmem:[#allocation2 + $0x70] sm:$0xf] %vm201, %v199
      %280 = vst.msk [vmem:[#allocation2 + $0x7c] sm:$0xf] %vm201, %v199
      %281 = vst.msk [vmem:[#allocation2 + $0x88] sm:$0xf] %vm201, %v199
      %282 = vst.msk [vmem:[#allocation2 + $0x94] sm:$0xf] %vm201, %v199
      %283 = vst.msk [vmem:[#allocation2 + $0xa0] sm:$0xf] %vm201, %v199
      %284 = vst.msk [vmem:[#allocation2 + $0xac] sm:$0xf] %vm201, %v199
      %285 = vst.msk [vmem:[#allocation2 + $0xb8] sm:$0xf] %vm201, %v199
      %286 = vst.msk [vmem:[#allocation2 + $0x4] sm:$0xf] %vm221, %v219
      %287 = vst.msk [vmem:[#allocation2 + $0x10] sm:$0xf] %vm221, %v219
      %288 = vst.msk [vmem:[#allocation2 + $0x1c] sm:$0xf] %vm221, %v219
      %289 = vst.msk [vmem:[#allocation2 + $0x28] sm:$0xf] %vm221, %v219
      %290 = vst.msk [vmem:[#allocation2 + $0x34] sm:$0xf] %vm221, %v219
      %291 = vst.msk [vmem:[#allocation2 + $0x40] sm:$0xf] %vm221, %v219
      %292 = vst.msk [vmem:[#allocation2 + $0x4c] sm:$0xf] %vm221, %v219
      %293 = vst.msk [vmem:[#allocation2 + $0x58] sm:$0xf] %vm221, %v219
      %294 = vst.msk [vmem:[#allocation2 + $0x64] sm:$0xf] %vm221, %v219
      %295 = vst.msk [vmem:[#allocation2 + $0x70] sm:$0xf] %vm221, %v219
      %296 = vst.msk [vmem:[#allocation2 + $0x7c] sm:$0xf] %vm221, %v219
      %297 = vst.msk [vmem:[#allocation2 + $0x88] sm:$0xf] %vm221, %v219
      %298 = vst.msk [vmem:[#allocation2 + $0x94] sm:$0xf] %vm221, %v219
      %299 = vst.msk [vmem:[#allocation2 + $0xa0] sm:$0xf] %vm221, %v219
      %300 = vst.msk [vmem:[#allocation2 + $0xac] sm:$0xf] %vm221, %v219
      %301 = vst.msk [vmem:[#allocation2 + $0xb8] sm:$0xf] %vm221, %v219
      %302 = vst.msk [vmem:[#allocation2 + $0x8] sm:$0xf] %vm158, %v157
      %303 = vst.msk [vmem:[#allocation2 + $0x14] sm:$0xf] %vm158, %v157
      %304 = vst.msk [vmem:[#allocation2 + $0x20] sm:$0xf] %vm158, %v157
      %305 = vst.msk [vmem:[#allocation2 + $0x2c] sm:$0xf] %vm158, %v157
      %306 = vst.msk [vmem:[#allocation2 + $0x38] sm:$0xf] %vm158, %v157
      %307 = vst.msk [vmem:[#allocation2 + $0x44] sm:$0xf] %vm158, %v157
      %308 = vst.msk [vmem:[#allocation2 + $0x50] sm:$0xf] %vm158, %v157
      %309 = vst.msk [vmem:[#allocation2 + $0x5c] sm:$0xf] %vm158, %v157
      %310 = vst.msk [vmem:[#allocation2 + $0x68] sm:$0xf] %vm158, %v157
      %311 = vst.msk [vmem:[#allocation2 + $0x74] sm:$0xf] %vm158, %v157
      %312 = vst.msk [vmem:[#allocation2 + $0x80] sm:$0xf] %vm158, %v157
      %313 = vst.msk [vmem:[#allocation2 + $0x8c] sm:$0xf] %vm158, %v157
      %314 = vst.msk [vmem:[#allocation2 + $0x98] sm:$0xf] %vm158, %v157
      %315 = vst.msk [vmem:[#allocation2 + $0xa4] sm:$0xf] %vm158, %v157
      %316 = vst.msk [vmem:[#allocation2 + $0xb0] sm:$0xf] %vm158, %v157
      %317 = vst.msk [vmem:[#allocation2 + $0xbc] sm:$0xf] %vm158, %v157
    $region25: #{_lambda_.13} parent=1 // pred_fallthru
      _
    %v318 = vpack.c.bf16 %v132, %v131
    %v319 = vpack.c.bf16 %v134, %v133
    %v320 = vpack.c.bf16 %v136, %v135
    %v321 = vpack.c.bf16 %v138, %v137
    %v322 = vpack.c.bf16 %v140, %v139
    %v323 = vpack.c.bf16 %v142, %v141
    %v324 = vpack.c.bf16 %v144, %v143
    %v325 = vpack.c.bf16 %v146, %v145
    %v334 = vunpack.c.l.b16 %v318
    %v335 = vunpack.c.h.b16 %v318
    %v336 = vunpack.c.l.b16 %v319
    %v337 = vunpack.c.h.b16 %v319
    %v338 = vunpack.c.l.b16 %v320
    %v339 = vunpack.c.h.b16 %v320
    %v340 = vunpack.c.l.b16 %v321
    %v341 = vunpack.c.h.b16 %v321
    %v342 = vunpack.c.l.b16 %v322
    %v343 = vunpack.c.h.b16 %v322
    %v344 = vunpack.c.l.b16 %v323
    %v345 = vunpack.c.h.b16 %v323
    %v346 = vunpack.c.l.b16 %v324
    %v347 = vunpack.c.h.b16 %v324
    %v348 = vunpack.c.l.b16 %v325
    %v349 = vunpack.c.h.b16 %v325
    %v350 = vpack.c.b16 %v334, %v334
    %v351 = vpack.c.b16 %v335, %v335
    %v352 = vpack.c.b16 %v336, %v336
    %v353 = vpack.c.b16 %v337, %v337
    %v354 = vpack.c.b16 %v338, %v338
    %v355 = vpack.c.b16 %v339, %v339
    %v356 = vpack.c.b16 %v340, %v340
    %v357 = vpack.c.b16 %v341, %v341
    %v358 = vpack.c.b16 %v342, %v342
    %v359 = vpack.c.b16 %v343, %v343
    %v360 = vpack.c.b16 %v344, %v344
    %v361 = vpack.c.b16 %v345, %v345
    %v362 = vpack.c.b16 %v346, %v346
    %v363 = vpack.c.b16 %v347, %v347
    %v364 = vpack.c.b16 %v348, %v348
    %v365 = vpack.c.b16 %v349, %v349
    %v383 = vshrl.u32 %v350, 16
    %v385 = vrot.slane %v383, 7
    %v386 = vshll.u32 %v350, 16
    %v388 = vor.u32 %v385, %v386
    %v390 = vshrl.u32 %v351, 16
    %v392 = vrot.slane %v390, 7
    %v393 = vshll.u32 %v351, 16
    %v395 = vor.u32 %v392, %v393
    %v397 = vshrl.u32 %v352, 16
    %v399 = vrot.slane %v397, 7
    %v400 = vshll.u32 %v352, 16
    %v402 = vor.u32 %v399, %v400
    %v404 = vshrl.u32 %v353, 16
    %v406 = vrot.slane %v404, 7
    %v407 = vshll.u32 %v353, 16
    %v409 = vor.u32 %v406, %v407
    %v411 = vshrl.u32 %v354, 16
    %v413 = vrot.slane %v411, 7
    %v414 = vshll.u32 %v354, 16
    %v416 = vor.u32 %v413, %v414
    %v418 = vshrl.u32 %v355, 16
    %v420 = vrot.slane %v418, 7
    %v421 = vshll.u32 %v355, 16
    %v423 = vor.u32 %v420, %v421
    %v425 = vshrl.u32 %v356, 16
    %v427 = vrot.slane %v425, 7
    %v428 = vshll.u32 %v356, 16
    %v430 = vor.u32 %v427, %v428
    %v432 = vshrl.u32 %v358, 16
    %v434 = vrot.slane %v432, 7
    %v435 = vshll.u32 %v358, 16
    %v437 = vor.u32 %v434, %v435
    %v439 = vshrl.u32 %v359, 16
    %v441 = vrot.slane %v439, 7
    %v442 = vshll.u32 %v359, 16
    %v444 = vor.u32 %v441, %v442
    %v446 = vshrl.u32 %v360, 16
    %v448 = vrot.slane %v446, 7
    %v449 = vshll.u32 %v360, 16
    %v451 = vor.u32 %v448, %v449
    %v453 = vshrl.u32 %v361, 16
    %v455 = vrot.slane %v453, 7
    %v456 = vshll.u32 %v361, 16
    %v458 = vor.u32 %v455, %v456
    %v460 = vshrl.u32 %v362, 16
    %v462 = vrot.slane %v460, 7
    %v463 = vshll.u32 %v362, 16
    %v465 = vor.u32 %v462, %v463
    %v467 = vshrl.u32 %v363, 16
    %v469 = vrot.slane %v467, 7
    %v470 = vshll.u32 %v363, 16
    %v472 = vor.u32 %v469, %v470
    %v474 = vshrl.u32 %v364, 16
    %v476 = vrot.slane %v474, 7
    %v477 = vshll.u32 %v364, 16
    %v479 = vor.u32 %v476, %v477
    %s494 = scalar_lea.vmem [#allocation2], 12
    %vm495 = vcmask 257024
    %vm496 = vsmask.f32 7938
    %vm497 = vmand %vm495, %vm496
    %v498 = vld [vmem:[%s494] sm:$0xf]
    %v499 = vsel %vm497, %v388, %v498
    %500 = vst [vmem:[%s494] sm:$0xf] %v499
    %v501 = vld [vmem:[%s494 + $0xc] sm:$0xf]
    %v502 = vsel %vm497, %v395, %v501
    %503 = vst [vmem:[%s494 + $0xc] sm:$0xf] %v502
    %v504 = vld [vmem:[%s494 + $0x18] sm:$0xf]
    %v505 = vsel %vm497, %v402, %v504
    %506 = vst [vmem:[%s494 + $0x18] sm:$0xf] %v505
    %v507 = vld [vmem:[%s494 + $0x24] sm:$0xf]
    %v508 = vsel %vm497, %v409, %v507
    %509 = vst [vmem:[%s494 + $0x24] sm:$0xf] %v508
    %v510 = vld [vmem:[%s494 + $0x30] sm:$0xf]
    %v511 = vsel %vm497, %v416, %v510
    %512 = vst [vmem:[%s494 + $0x30] sm:$0xf] %v511
    %v513 = vld [vmem:[%s494 + $0x3c] sm:$0xf]
    %v514 = vsel %vm497, %v423, %v513
    %515 = vst [vmem:[%s494 + $0x3c] sm:$0xf] %v514
    %v516 = vld [vmem:[%s494 + $0x48] sm:$0xf]
    %v517 = vsel %vm497, %v430, %v516
    %518 = vst [vmem:[%s494 + $0x48] sm:$0xf] %v517
    %v519 = vld [vmem:[%s494 + $0x60] sm:$0xf]
    %v520 = vsel %vm497, %v437, %v519
    %521 = vst [vmem:[%s494 + $0x60] sm:$0xf] %v520
    %v522 = vld [vmem:[%s494 + $0x6c] sm:$0xf]
    %v523 = vsel %vm497, %v444, %v522
    %524 = vst [vmem:[%s494 + $0x6c] sm:$0xf] %v523
    %v525 = vld [vmem:[%s494 + $0x78] sm:$0xf]
    %v526 = vsel %vm497, %v451, %v525
    %527 = vst [vmem:[%s494 + $0x78] sm:$0xf] %v526
    %v528 = vld [vmem:[%s494 + $0x84] sm:$0xf]
    %v529 = vsel %vm497, %v458, %v528
    %530 = vst [vmem:[%s494 + $0x84] sm:$0xf] %v529
    %v531 = vld [vmem:[%s494 + $0x90] sm:$0xf]
    %v532 = vsel %vm497, %v465, %v531
    %533 = vst [vmem:[%s494 + $0x90] sm:$0xf] %v532
    %v534 = vld [vmem:[%s494 + $0x9c] sm:$0xf]
    %v535 = vsel %vm497, %v472, %v534
    %536 = vst [vmem:[%s494 + $0x9c] sm:$0xf] %v535
    %v537 = vld [vmem:[%s494 + $0xa8] sm:$0xf]
    %v538 = vsel %vm497, %v479, %v537
    %539 = vst [vmem:[%s494 + $0xa8] sm:$0xf] %v538
    %540 = vrot.lane.b32.xlu0 %v350, 32
    %v541 = vpop.permute.xlu0 %540
    %542 = vrot.lane.b32.xlu0 %v351, 32
    %v543 = vpop.permute.xlu0 %542
    %544 = vrot.lane.b32.xlu0 %v352, 32
    %v545 = vpop.permute.xlu0 %544
    %546 = vrot.lane.b32.xlu0 %v353, 32
    %v547 = vpop.permute.xlu0 %546
    %548 = vrot.lane.b32.xlu0 %v354, 32
    %v549 = vpop.permute.xlu0 %548
    %550 = vrot.lane.b32.xlu0 %v355, 32
    %v551 = vpop.permute.xlu0 %550
    %552 = vrot.lane.b32.xlu0 %v356, 32
    %v553 = vpop.permute.xlu0 %552
    %554 = vrot.lane.b32.xlu0 %v358, 32
    %v555 = vpop.permute.xlu0 %554
    %556 = vrot.lane.b32.xlu0 %v359, 32
    %v557 = vpop.permute.xlu0 %556
    %558 = vrot.lane.b32.xlu0 %v360, 32
    %v559 = vpop.permute.xlu0 %558
    %560 = vrot.lane.b32.xlu0 %v361, 32
    %v561 = vpop.permute.xlu0 %560
    %562 = vrot.lane.b32.xlu0 %v362, 32
    %v563 = vpop.permute.xlu0 %562
    %564 = vrot.lane.b32.xlu0 %v363, 32
    %v565 = vpop.permute.xlu0 %564
    %566 = vrot.lane.b32.xlu0 %v364, 32
    %v567 = vpop.permute.xlu0 %566
    %vm582 = vcmask 519424
    %583 = vst.msk [vmem:[%s494] sm:$0xf] %vm582, %v541
    %584 = vst.msk [vmem:[%s494 + $0xc] sm:$0xf] %vm582, %v543
    %585 = vst.msk [vmem:[%s494 + $0x18] sm:$0xf] %vm582, %v545
    %586 = vst.msk [vmem:[%s494 + $0x24] sm:$0xf] %vm582, %v547
    %587 = vst.msk [vmem:[%s494 + $0x30] sm:$0xf] %vm582, %v549
    %588 = vst.msk [vmem:[%s494 + $0x3c] sm:$0xf] %vm582, %v551
    %589 = vst.msk [vmem:[%s494 + $0x48] sm:$0xf] %vm582, %v553
    %590 = vst.msk [vmem:[%s494 + $0x60] sm:$0xf] %vm582, %v555
    %591 = vst.msk [vmem:[%s494 + $0x6c] sm:$0xf] %vm582, %v557
    %592 = vst.msk [vmem:[%s494 + $0x78] sm:$0xf] %vm582, %v559
    %593 = vst.msk [vmem:[%s494 + $0x84] sm:$0xf] %vm582, %v561
    %594 = vst.msk [vmem:[%s494 + $0x90] sm:$0xf] %vm582, %v563
    %595 = vst.msk [vmem:[%s494 + $0x9c] sm:$0xf] %vm582, %v565
    %596 = vst.msk [vmem:[%s494 + $0xa8] sm:$0xf] %vm582, %v567
    %v597 = vrot.slane %v383, 4
    %v598 = vrot.slane %v386, 5
    %v599 = vor.u32 %v597, %v598
    %v600 = vrot.slane %v599, 4
    %v601 = vrot.slane %v390, 4
    %v602 = vrot.slane %v393, 5
    %v603 = vor.u32 %v601, %v602
    %v604 = vrot.slane %v603, 4
    %v605 = vrot.slane %v397, 4
    %v606 = vrot.slane %v400, 5
    %v607 = vor.u32 %v605, %v606
    %v608 = vrot.slane %v607, 4
    %v609 = vrot.slane %v404, 4
    %v610 = vrot.slane %v407, 5
    %v611 = vor.u32 %v609, %v610
    %v612 = vrot.slane %v611, 4
    %v613 = vrot.slane %v411, 4
    %v614 = vrot.slane %v414, 5
    %v615 = vor.u32 %v613, %v614
    %v616 = vrot.slane %v615, 4
    %v617 = vrot.slane %v418, 4
    %v618 = vrot.slane %v421, 5
    %v619 = vor.u32 %v617, %v618
    %v620 = vrot.slane %v619, 4
    %v621 = vrot.slane %v425, 4
    %v622 = vrot.slane %v428, 5
    %v623 = vor.u32 %v621, %v622
    %v624 = vrot.slane %v623, 4
    %v625 = vrot.slane %v432, 4
    %v626 = vrot.slane %v435, 5
    %v627 = vor.u32 %v625, %v626
    %v628 = vrot.slane %v627, 4
    %v629 = vrot.slane %v439, 4
    %v630 = vrot.slane %v442, 5
    %v631 = vor.u32 %v629, %v630
    %v632 = vrot.slane %v631, 4
    %v633 = vrot.slane %v446, 4
    %v634 = vrot.slane %v449, 5
    %v635 = vor.u32 %v633, %v634
    %v636 = vrot.slane %v635, 4
    %v637 = vrot.slane %v453, 4
    %v638 = vrot.slane %v456, 5
    %v639 = vor.u32 %v637, %v638
    %v640 = vrot.slane %v639, 4
    %v641 = vrot.slane %v460, 4
    %v642 = vrot.slane %v463, 5
    %v643 = vor.u32 %v641, %v642
    %v644 = vrot.slane %v643, 4
    %v645 = vrot.slane %v467, 4
    %v646 = vrot.slane %v470, 5
    %v647 = vor.u32 %v645, %v646
    %v648 = vrot.slane %v647, 4
    %v649 = vrot.slane %v474, 4
    %v650 = vrot.slane %v477, 5
    %v651 = vor.u32 %v649, %v650
    %v652 = vrot.slane %v651, 4
    %653 = vrot.lane.b32.xlu0 %v600, 64
    %v654 = vpop.permute.xlu0 %653
    %655 = vrot.lane.b32.xlu0 %v604, 64
    %v656 = vpop.permute.xlu0 %655
    %657 = vrot.lane.b32.xlu0 %v608, 64
    %v658 = vpop.permute.xlu0 %657
    %659 = vrot.lane.b32.xlu0 %v612, 64
    %v660 = vpop.permute.xlu0 %659
    %661 = vrot.lane.b32.xlu0 %v616, 64
    %v662 = vpop.permute.xlu0 %661
    %663 = vrot.lane.b32.xlu0 %v620, 64
    %v664 = vpop.permute.xlu0 %663
    %665 = vrot.lane.b32.xlu0 %v624, 64
    %v666 = vpop.permute.xlu0 %665
    %667 = vrot.lane.b32.xlu0 %v628, 64
    %v668 = vpop.permute.xlu0 %667
    %669 = vrot.lane.b32.xlu0 %v632, 64
    %v670 = vpop.permute.xlu0 %669
    %671 = vrot.lane.b32.xlu0 %v636, 64
    %v672 = vpop.permute.xlu0 %671
    %673 = vrot.lane.b32.xlu0 %v640, 64
    %v674 = vpop.permute.xlu0 %673
    %675 = vrot.lane.b32.xlu0 %v644, 64
    %v676 = vpop.permute.xlu0 %675
    %677 = vrot.lane.b32.xlu0 %v648, 64
    %v678 = vpop.permute.xlu0 %677
    %679 = vrot.lane.b32.xlu0 %v652, 64
    %v680 = vpop.permute.xlu0 %679
    %vm695 = vcmask 781824
    %vm696 = vsmask.f32 3328
    %vm697 = vmand %vm695, %vm696
    %v698 = vld [vmem:[%s494] sm:$0xf]
    %v699 = vsel %vm697, %v654, %v698
    %700 = vst [vmem:[%s494] sm:$0xf] %v699
    %v701 = vld [vmem:[%s494 + $0xc] sm:$0xf]
    %v702 = vsel %vm697, %v656, %v701
    %703 = vst [vmem:[%s494 + $0xc] sm:$0xf] %v702
    %v704 = vld [vmem:[%s494 + $0x18] sm:$0xf]
    %v705 = vsel %vm697, %v658, %v704
    %706 = vst [vmem:[%s494 + $0x18] sm:$0xf] %v705
    %v707 = vld [vmem:[%s494 + $0x24] sm:$0xf]
    %v708 = vsel %vm697, %v660, %v707
    %709 = vst [vmem:[%s494 + $0x24] sm:$0xf] %v708
    %v710 = vld [vmem:[%s494 + $0x30] sm:$0xf]
    %v711 = vsel %vm697, %v662, %v710
    %712 = vst [vmem:[%s494 + $0x30] sm:$0xf] %v711
    %v713 = vld [vmem:[%s494 + $0x3c] sm:$0xf]
    %v714 = vsel %vm697, %v664, %v713
    %715 = vst [vmem:[%s494 + $0x3c] sm:$0xf] %v714
    %v716 = vld [vmem:[%s494 + $0x48] sm:$0xf]
    %v717 = vsel %vm697, %v666, %v716
    %718 = vst [vmem:[%s494 + $0x48] sm:$0xf] %v717
    %v719 = vld [vmem:[%s494 + $0x60] sm:$0xf]
    %v720 = vsel %vm697, %v668, %v719
    %721 = vst [vmem:[%s494 + $0x60] sm:$0xf] %v720
    %v722 = vld [vmem:[%s494 + $0x6c] sm:$0xf]
    %v723 = vsel %vm697, %v670, %v722
    %724 = vst [vmem:[%s494 + $0x6c] sm:$0xf] %v723
    %v725 = vld [vmem:[%s494 + $0x78] sm:$0xf]
    %v726 = vsel %vm697, %v672, %v725
    %727 = vst [vmem:[%s494 + $0x78] sm:$0xf] %v726
    %v728 = vld [vmem:[%s494 + $0x84] sm:$0xf]
    %v729 = vsel %vm697, %v674, %v728
    %730 = vst [vmem:[%s494 + $0x84] sm:$0xf] %v729
    %v731 = vld [vmem:[%s494 + $0x90] sm:$0xf]
    %v732 = vsel %vm697, %v676, %v731
    %733 = vst [vmem:[%s494 + $0x90] sm:$0xf] %v732
    %v734 = vld [vmem:[%s494 + $0x9c] sm:$0xf]
    %v735 = vsel %vm697, %v678, %v734
    %736 = vst [vmem:[%s494 + $0x9c] sm:$0xf] %v735
    %v737 = vld [vmem:[%s494 + $0xa8] sm:$0xf]
    %v738 = vsel %vm697, %v680, %v737
    %739 = vst [vmem:[%s494 + $0xa8] sm:$0xf] %v738
    %v741 = vshrl.u32 %v357, 16
    %v743 = vrot.slane %v741, 7
    %v744 = vshll.u32 %v357, 16
    %v746 = vor.u32 %v743, %v744
    %v748 = vshrl.u32 %v365, 16
    %v750 = vrot.slane %v748, 7
    %v751 = vshll.u32 %v365, 16
    %v753 = vor.u32 %v750, %v751
    %754 = vrot.lane.b32.xlu0 %v388, 96
    %v755 = vpop.permute.xlu0 %754
    %756 = vrot.lane.b32.xlu0 %v395, 96
    %v757 = vpop.permute.xlu0 %756
    %758 = vrot.lane.b32.xlu0 %v402, 96
    %v759 = vpop.permute.xlu0 %758
    %760 = vrot.lane.b32.xlu0 %v409, 96
    %v761 = vpop.permute.xlu0 %760
    %762 = vrot.lane.b32.xlu0 %v416, 96
    %v763 = vpop.permute.xlu0 %762
    %764 = vrot.lane.b32.xlu0 %v423, 96
    %v765 = vpop.permute.xlu0 %764
    %766 = vrot.lane.b32.xlu0 %v430, 96
    %v767 = vpop.permute.xlu0 %766
    %768 = vrot.lane.b32.xlu0 %v746, 96
    %v769 = vpop.permute.xlu0 %768
    %770 = vrot.lane.b32.xlu0 %v437, 96
    %v771 = vpop.permute.xlu0 %770
    %772 = vrot.lane.b32.xlu0 %v444, 96
    %v773 = vpop.permute.xlu0 %772
    %774 = vrot.lane.b32.xlu0 %v451, 96
    %v775 = vpop.permute.xlu0 %774
    %776 = vrot.lane.b32.xlu0 %v458, 96
    %v777 = vpop.permute.xlu0 %776
    %778 = vrot.lane.b32.xlu0 %v465, 96
    %v779 = vpop.permute.xlu0 %778
    %780 = vrot.lane.b32.xlu0 %v472, 96
    %v781 = vpop.permute.xlu0 %780
    %782 = vrot.lane.b32.xlu0 %v479, 96
    %v783 = vpop.permute.xlu0 %782
    %784 = vrot.lane.b32.xlu0 %v753, 96
    %v785 = vpop.permute.xlu0 %784
    %vm802 = vcmask 1044224
    %vm803 = vmand %vm802, %vm496
    %v804 = vld [vmem:[#allocation2] sm:$0xf]
    %v805 = vsel %vm803, %v755, %v804
    %806 = vst [vmem:[#allocation2] sm:$0xf] %v805
    %v807 = vld [vmem:[#allocation2 + $0xc] sm:$0xf]
    %v808 = vsel %vm803, %v757, %v807
    %809 = vst [vmem:[#allocation2 + $0xc] sm:$0xf] %v808
    %v810 = vld [vmem:[#allocation2 + $0x18] sm:$0xf]
    %v811 = vsel %vm803, %v759, %v810
    %812 = vst [vmem:[#allocation2 + $0x18] sm:$0xf] %v811
    %v813 = vld [vmem:[#allocation2 + $0x24] sm:$0xf]
    %v814 = vsel %vm803, %v761, %v813
    %815 = vst [vmem:[#allocation2 + $0x24] sm:$0xf] %v814
    %v816 = vld [vmem:[#allocation2 + $0x30] sm:$0xf]
    %v817 = vsel %vm803, %v763, %v816
    %818 = vst [vmem:[#allocation2 + $0x30] sm:$0xf] %v817
    %v819 = vld [vmem:[#allocation2 + $0x3c] sm:$0xf]
    %v820 = vsel %vm803, %v765, %v819
    %821 = vst [vmem:[#allocation2 + $0x3c] sm:$0xf] %v820
    %v822 = vld [vmem:[#allocation2 + $0x48] sm:$0xf]
    %v823 = vsel %vm803, %v767, %v822
    %824 = vst [vmem:[#allocation2 + $0x48] sm:$0xf] %v823
    %v825 = vld [vmem:[#allocation2 + $0x54] sm:$0xf]
    %v826 = vsel %vm803, %v769, %v825
    %827 = vst [vmem:[#allocation2 + $0x54] sm:$0xf] %v826
    %v828 = vld [vmem:[#allocation2 + $0x60] sm:$0xf]
    %v829 = vsel %vm803, %v771, %v828
    %830 = vst [vmem:[#allocation2 + $0x60] sm:$0xf] %v829
    %v831 = vld [vmem:[#allocation2 + $0x6c] sm:$0xf]
    %v832 = vsel %vm803, %v773, %v831
    %833 = vst [vmem:[#allocation2 + $0x6c] sm:$0xf] %v832
    %v834 = vld [vmem:[#allocation2 + $0x78] sm:$0xf]
    %v835 = vsel %vm803, %v775, %v834
    %836 = vst [vmem:[#allocation2 + $0x78] sm:$0xf] %v835
    %v837 = vld [vmem:[#allocation2 + $0x84] sm:$0xf]
    %v838 = vsel %vm803, %v777, %v837
    %839 = vst [vmem:[#allocation2 + $0x84] sm:$0xf] %v838
    %v840 = vld [vmem:[#allocation2 + $0x90] sm:$0xf]
    %v841 = vsel %vm803, %v779, %v840
    %842 = vst [vmem:[#allocation2 + $0x90] sm:$0xf] %v841
    %v843 = vld [vmem:[#allocation2 + $0x9c] sm:$0xf]
    %v844 = vsel %vm803, %v781, %v843
    %845 = vst [vmem:[#allocation2 + $0x9c] sm:$0xf] %v844
    %v846 = vld [vmem:[#allocation2 + $0xa8] sm:$0xf]
    %v847 = vsel %vm803, %v783, %v846
    %848 = vst [vmem:[#allocation2 + $0xa8] sm:$0xf] %v847
    %v849 = vld [vmem:[#allocation2 + $0xb4] sm:$0xf]
    %v850 = vsel %vm803, %v785, %v849
    %851 = vst [vmem:[#allocation2 + $0xb4] sm:$0xf] %v850
    %vm852 = vcmask 257024
    %853 = vst.msk [vmem:[#allocation2 + $0x4] sm:$0xf] %vm852, %v350
    %854 = vst.msk [vmem:[#allocation2 + $0x10] sm:$0xf] %vm852, %v351
    %855 = vst.msk [vmem:[#allocation2 + $0x1c] sm:$0xf] %vm852, %v352
    %856 = vst.msk [vmem:[#allocation2 + $0x28] sm:$0xf] %vm852, %v353
    %857 = vst.msk [vmem:[#allocation2 + $0x34] sm:$0xf] %vm852, %v354
    %858 = vst.msk [vmem:[#allocation2 + $0x40] sm:$0xf] %vm852, %v355
    %859 = vst.msk [vmem:[#allocation2 + $0x4c] sm:$0xf] %vm852, %v356
    %860 = vst.msk [vmem:[#allocation2 + $0x58] sm:$0xf] %vm852, %v357
    %861 = vst.msk [vmem:[#allocation2 + $0x64] sm:$0xf] %vm852, %v358
    %862 = vst.msk [vmem:[#allocation2 + $0x70] sm:$0xf] %vm852, %v359
    %863 = vst.msk [vmem:[#allocation2 + $0x7c] sm:$0xf] %vm852, %v360
    %864 = vst.msk [vmem:[#allocation2 + $0x88] sm:$0xf] %vm852, %v361
    %865 = vst.msk [vmem:[#allocation2 + $0x94] sm:$0xf] %vm852, %v362
    %866 = vst.msk [vmem:[#allocation2 + $0xa0] sm:$0xf] %vm852, %v363
    %867 = vst.msk [vmem:[#allocation2 + $0xac] sm:$0xf] %vm852, %v364
    %868 = vst.msk [vmem:[#allocation2 + $0xb8] sm:$0xf] %vm852, %v365
    %v869 = vrot.slane %v741, 4
    %v870 = vrot.slane %v744, 5
    %v871 = vor.u32 %v869, %v870
    %v872 = vrot.slane %v871, 4
    %v873 = vrot.slane %v748, 4
    %v874 = vrot.slane %v751, 5
    %v875 = vor.u32 %v873, %v874
    %v876 = vrot.slane %v875, 4
    %877 = vrot.lane.b32.xlu0 %v600, 32
    %v878 = vpop.permute.xlu0 %877
    %879 = vrot.lane.b32.xlu0 %v604, 32
    %v880 = vpop.permute.xlu0 %879
    %881 = vrot.lane.b32.xlu0 %v608, 32
    %v882 = vpop.permute.xlu0 %881
    %883 = vrot.lane.b32.xlu0 %v612, 32
    %v884 = vpop.permute.xlu0 %883
    %885 = vrot.lane.b32.xlu0 %v616, 32
    %v886 = vpop.permute.xlu0 %885
    %887 = vrot.lane.b32.xlu0 %v620, 32
    %v888 = vpop.permute.xlu0 %887
    %889 = vrot.lane.b32.xlu0 %v624, 32
    %v890 = vpop.permute.xlu0 %889
    %891 = vrot.lane.b32.xlu0 %v872, 32
    %v892 = vpop.permute.xlu0 %891
    %893 = vrot.lane.b32.xlu0 %v628, 32
    %v894 = vpop.permute.xlu0 %893
    %895 = vrot.lane.b32.xlu0 %v632, 32
    %v896 = vpop.permute.xlu0 %895
    %897 = vrot.lane.b32.xlu0 %v636, 32
    %v898 = vpop.permute.xlu0 %897
    %899 = vrot.lane.b32.xlu0 %v640, 32
    %v900 = vpop.permute.xlu0 %899
    %901 = vrot.lane.b32.xlu0 %v644, 32
    %v902 = vpop.permute.xlu0 %901
    %903 = vrot.lane.b32.xlu0 %v648, 32
    %v904 = vpop.permute.xlu0 %903
    %905 = vrot.lane.b32.xlu0 %v652, 32
    %v906 = vpop.permute.xlu0 %905
    %907 = vrot.lane.b32.xlu0 %v876, 32
    %v908 = vpop.permute.xlu0 %907
    %vm925 = vcmask 519424
    %vm926 = vmand %vm925, %vm696
    %v927 = vld [vmem:[#allocation2 + $0x4] sm:$0xf]
    %v928 = vsel %vm926, %v878, %v927
    %929 = vst [vmem:[#allocation2 + $0x4] sm:$0xf] %v928
    %v930 = vld [vmem:[#allocation2 + $0x10] sm:$0xf]
    %v931 = vsel %vm926, %v880, %v930
    %932 = vst [vmem:[#allocation2 + $0x10] sm:$0xf] %v931
    %v933 = vld [vmem:[#allocation2 + $0x1c] sm:$0xf]
    %v934 = vsel %vm926, %v882, %v933
    %935 = vst [vmem:[#allocation2 + $0x1c] sm:$0xf] %v934
    %v936 = vld [vmem:[#allocation2 + $0x28] sm:$0xf]
    %v937 = vsel %vm926, %v884, %v936
    %938 = vst [vmem:[#allocation2 + $0x28] sm:$0xf] %v937
    %v939 = vld [vmem:[#allocation2 + $0x34] sm:$0xf]
    %v940 = vsel %vm926, %v886, %v939
    %941 = vst [vmem:[#allocation2 + $0x34] sm:$0xf] %v940
    %v942 = vld [vmem:[#allocation2 + $0x40] sm:$0xf]
    %v943 = vsel %vm926, %v888, %v942
    %944 = vst [vmem:[#allocation2 + $0x40] sm:$0xf] %v943
    %v945 = vld [vmem:[#allocation2 + $0x4c] sm:$0xf]
    %v946 = vsel %vm926, %v890, %v945
    %947 = vst [vmem:[#allocation2 + $0x4c] sm:$0xf] %v946
    %v948 = vld [vmem:[#allocation2 + $0x58] sm:$0xf]
    %v949 = vsel %vm926, %v892, %v948
    %950 = vst [vmem:[#allocation2 + $0x58] sm:$0xf] %v949
    %v951 = vld [vmem:[#allocation2 + $0x64] sm:$0xf]
    %v952 = vsel %vm926, %v894, %v951
    %953 = vst [vmem:[#allocation2 + $0x64] sm:$0xf] %v952
    %v954 = vld [vmem:[#allocation2 + $0x70] sm:$0xf]
    %v955 = vsel %vm926, %v896, %v954
    %956 = vst [vmem:[#allocation2 + $0x70] sm:$0xf] %v955
    %v957 = vld [vmem:[#allocation2 + $0x7c] sm:$0xf]
    %v958 = vsel %vm926, %v898, %v957
    %959 = vst [vmem:[#allocation2 + $0x7c] sm:$0xf] %v958
    %v960 = vld [vmem:[#allocation2 + $0x88] sm:$0xf]
    %v961 = vsel %vm926, %v900, %v960
    %962 = vst [vmem:[#allocation2 + $0x88] sm:$0xf] %v961
    %v963 = vld [vmem:[#allocation2 + $0x94] sm:$0xf]
    %v964 = vsel %vm926, %v902, %v963
    %965 = vst [vmem:[#allocation2 + $0x94] sm:$0xf] %v964
    %v966 = vld [vmem:[#allocation2 + $0xa0] sm:$0xf]
    %v967 = vsel %vm926, %v904, %v966
    %968 = vst [vmem:[#allocation2 + $0xa0] sm:$0xf] %v967
    %v969 = vld [vmem:[#allocation2 + $0xac] sm:$0xf]
    %v970 = vsel %vm926, %v906, %v969
    %971 = vst [vmem:[#allocation2 + $0xac] sm:$0xf] %v970
    %v972 = vld [vmem:[#allocation2 + $0xb8] sm:$0xf]
    %v973 = vsel %vm926, %v908, %v972
    %974 = vst [vmem:[#allocation2 + $0xb8] sm:$0xf] %v973
    %975 = vrot.lane.b32.xlu0 %v395, 64
    %v976 = vpop.permute.xlu0 %975
    %977 = vrot.lane.b32.xlu0 %v402, 64
    %v978 = vpop.permute.xlu0 %977
    %979 = vrot.lane.b32.xlu0 %v409, 64
    %v980 = vpop.permute.xlu0 %979
    %981 = vrot.lane.b32.xlu0 %v416, 64
    %v982 = vpop.permute.xlu0 %981
    %983 = vrot.lane.b32.xlu0 %v423, 64
    %v984 = vpop.permute.xlu0 %983
    %985 = vrot.lane.b32.xlu0 %v430, 64
    %v986 = vpop.permute.xlu0 %985
    %987 = vrot.lane.b32.xlu0 %v746, 64
    %v988 = vpop.permute.xlu0 %987
    %989 = vrot.lane.b32.xlu0 %v444, 64
    %v990 = vpop.permute.xlu0 %989
    %991 = vrot.lane.b32.xlu0 %v451, 64
    %v992 = vpop.permute.xlu0 %991
    %993 = vrot.lane.b32.xlu0 %v458, 64
    %v994 = vpop.permute.xlu0 %993
    %995 = vrot.lane.b32.xlu0 %v465, 64
    %v996 = vpop.permute.xlu0 %995
    %997 = vrot.lane.b32.xlu0 %v472, 64
    %v998 = vpop.permute.xlu0 %997
    %999 = vrot.lane.b32.xlu0 %v479, 64
    %v1000 = vpop.permute.xlu0 %999
    %1001 = vrot.lane.b32.xlu0 %v753, 64
    %v1002 = vpop.permute.xlu0 %1001
    %vm1017 = vmand %vm695, %vm496
    %v1018 = vld [vmem:[#allocation2 + $0x4] sm:$0xf]
    %v1019 = vsel %vm1017, %v976, %v1018
    %1020 = vst [vmem:[#allocation2 + $0x4] sm:$0xf] %v1019
    %v1021 = vld [vmem:[#allocation2 + $0x10] sm:$0xf]
    %v1022 = vsel %vm1017, %v978, %v1021
    %1023 = vst [vmem:[#allocation2 + $0x10] sm:$0xf] %v1022
    %v1024 = vld [vmem:[#allocation2 + $0x1c] sm:$0xf]
    %v1025 = vsel %vm1017, %v980, %v1024
    %1026 = vst [vmem:[#allocation2 + $0x1c] sm:$0xf] %v1025
    %v1027 = vld [vmem:[#allocation2 + $0x28] sm:$0xf]
    %v1028 = vsel %vm1017, %v982, %v1027
    %1029 = vst [vmem:[#allocation2 + $0x28] sm:$0xf] %v1028
    %v1030 = vld [vmem:[#allocation2 + $0x34] sm:$0xf]
    %v1031 = vsel %vm1017, %v984, %v1030
    %1032 = vst [vmem:[#allocation2 + $0x34] sm:$0xf] %v1031
    %v1033 = vld [vmem:[#allocation2 + $0x40] sm:$0xf]
    %v1034 = vsel %vm1017, %v986, %v1033
    %1035 = vst [vmem:[#allocation2 + $0x40] sm:$0xf] %v1034
    %v1036 = vld [vmem:[#allocation2 + $0x4c] sm:$0xf]
    %v1037 = vsel %vm1017, %v988, %v1036
    %1038 = vst [vmem:[#allocation2 + $0x4c] sm:$0xf] %v1037
    %v1039 = vld [vmem:[#allocation2 + $0x64] sm:$0xf]
    %v1040 = vsel %vm1017, %v990, %v1039
    %1041 = vst [vmem:[#allocation2 + $0x64] sm:$0xf] %v1040
    %v1042 = vld [vmem:[#allocation2 + $0x70] sm:$0xf]
    %v1043 = vsel %vm1017, %v992, %v1042
    %1044 = vst [vmem:[#allocation2 + $0x70] sm:$0xf] %v1043
    %v1045 = vld [vmem:[#allocation2 + $0x7c] sm:$0xf]
    %v1046 = vsel %vm1017, %v994, %v1045
    %1047 = vst [vmem:[#allocation2 + $0x7c] sm:$0xf] %v1046
    %v1048 = vld [vmem:[#allocation2 + $0x88] sm:$0xf]
    %v1049 = vsel %vm1017, %v996, %v1048
    %1050 = vst [vmem:[#allocation2 + $0x88] sm:$0xf] %v1049
    %v1051 = vld [vmem:[#allocation2 + $0x94] sm:$0xf]
    %v1052 = vsel %vm1017, %v998, %v1051
    %1053 = vst [vmem:[#allocation2 + $0x94] sm:$0xf] %v1052
    %v1054 = vld [vmem:[#allocation2 + $0xa0] sm:$0xf]
    %v1055 = vsel %vm1017, %v1000, %v1054
    %1056 = vst [vmem:[#allocation2 + $0xa0] sm:$0xf] %v1055
    %v1057 = vld [vmem:[#allocation2 + $0xac] sm:$0xf]
    %v1058 = vsel %vm1017, %v1002, %v1057
    %1059 = vst [vmem:[#allocation2 + $0xac] sm:$0xf] %v1058
    %1060 = vrot.lane.b32.xlu0 %v351, 96
    %v1061 = vpop.permute.xlu0 %1060
    %1062 = vrot.lane.b32.xlu0 %v352, 96
    %v1063 = vpop.permute.xlu0 %1062
    %1064 = vrot.lane.b32.xlu0 %v353, 96
    %v1065 = vpop.permute.xlu0 %1064
    %1066 = vrot.lane.b32.xlu0 %v354, 96
    %v1067 = vpop.permute.xlu0 %1066
    %1068 = vrot.lane.b32.xlu0 %v355, 96
    %v1069 = vpop.permute.xlu0 %1068
    %1070 = vrot.lane.b32.xlu0 %v356, 96
    %v1071 = vpop.permute.xlu0 %1070
    %1072 = vrot.lane.b32.xlu0 %v357, 96
    %v1073 = vpop.permute.xlu0 %1072
    %1074 = vrot.lane.b32.xlu0 %v359, 96
    %v1075 = vpop.permute.xlu0 %1074
    %1076 = vrot.lane.b32.xlu0 %v360, 96
    %v1077 = vpop.permute.xlu0 %1076
    %1078 = vrot.lane.b32.xlu0 %v361, 96
    %v1079 = vpop.permute.xlu0 %1078
    %1080 = vrot.lane.b32.xlu0 %v362, 96
    %v1081 = vpop.permute.xlu0 %1080
    %1082 = vrot.lane.b32.xlu0 %v363, 96
    %v1083 = vpop.permute.xlu0 %1082
    %1084 = vrot.lane.b32.xlu0 %v364, 96
    %v1085 = vpop.permute.xlu0 %1084
    %1086 = vrot.lane.b32.xlu0 %v365, 96
    %v1087 = vpop.permute.xlu0 %1086
    %vm1102 = vcmask 1044224
    %1103 = vst.msk [vmem:[#allocation2 + $0x4] sm:$0xf] %vm1102, %v1061
    %1104 = vst.msk [vmem:[#allocation2 + $0x10] sm:$0xf] %vm1102, %v1063
    %1105 = vst.msk [vmem:[#allocation2 + $0x1c] sm:$0xf] %vm1102, %v1065
    %1106 = vst.msk [vmem:[#allocation2 + $0x28] sm:$0xf] %vm1102, %v1067
    %1107 = vst.msk [vmem:[#allocation2 + $0x34] sm:$0xf] %vm1102, %v1069
    %1108 = vst.msk [vmem:[#allocation2 + $0x40] sm:$0xf] %vm1102, %v1071
    %1109 = vst.msk [vmem:[#allocation2 + $0x4c] sm:$0xf] %vm1102, %v1073
    %1110 = vst.msk [vmem:[#allocation2 + $0x64] sm:$0xf] %vm1102, %v1075
    %1111 = vst.msk [vmem:[#allocation2 + $0x70] sm:$0xf] %vm1102, %v1077
    %1112 = vst.msk [vmem:[#allocation2 + $0x7c] sm:$0xf] %vm1102, %v1079
    %1113 = vst.msk [vmem:[#allocation2 + $0x88] sm:$0xf] %vm1102, %v1081
    %1114 = vst.msk [vmem:[#allocation2 + $0x94] sm:$0xf] %vm1102, %v1083
    %1115 = vst.msk [vmem:[#allocation2 + $0xa0] sm:$0xf] %vm1102, %v1085
    %1116 = vst.msk [vmem:[#allocation2 + $0xac] sm:$0xf] %vm1102, %v1087
    %vm1131 = vmand %vm495, %vm696
    %v1132 = vld [vmem:[#allocation2 + $0x8] sm:$0xf]
    %v1133 = vsel %vm1131, %v604, %v1132
    %1134 = vst [vmem:[#allocation2 + $0x8] sm:$0xf] %v1133
    %v1135 = vld [vmem:[#allocation2 + $0x14] sm:$0xf]
    %v1136 = vsel %vm1131, %v608, %v1135
    %1137 = vst [vmem:[#allocation2 + $0x14] sm:$0xf] %v1136
    %v1138 = vld [vmem:[#allocation2 + $0x20] sm:$0xf]
    %v1139 = vsel %vm1131, %v612, %v1138
    %1140 = vst [vmem:[#allocation2 + $0x20] sm:$0xf] %v1139
    %v1141 = vld [vmem:[#allocation2 + $0x2c] sm:$0xf]
    %v1142 = vsel %vm1131, %v616, %v1141
    %1143 = vst [vmem:[#allocation2 + $0x2c] sm:$0xf] %v1142
    %v1144 = vld [vmem:[#allocation2 + $0x38] sm:$0xf]
    %v1145 = vsel %vm1131, %v620, %v1144
    %1146 = vst [vmem:[#allocation2 + $0x38] sm:$0xf] %v1145
    %v1147 = vld [vmem:[#allocation2 + $0x44] sm:$0xf]
    %v1148 = vsel %vm1131, %v624, %v1147
    %1149 = vst [vmem:[#allocation2 + $0x44] sm:$0xf] %v1148
    %v1150 = vld [vmem:[#allocation2 + $0x50] sm:$0xf]
    %v1151 = vsel %vm1131, %v872, %v1150
    %1152 = vst [vmem:[#allocation2 + $0x50] sm:$0xf] %v1151
    %v1153 = vld [vmem:[#allocation2 + $0x68] sm:$0xf]
    %v1154 = vsel %vm1131, %v632, %v1153
    %1155 = vst [vmem:[#allocation2 + $0x68] sm:$0xf] %v1154
    %v1156 = vld [vmem:[#allocation2 + $0x74] sm:$0xf]
    %v1157 = vsel %vm1131, %v636, %v1156
    %1158 = vst [vmem:[#allocation2 + $0x74] sm:$0xf] %v1157
    %v1159 = vld [vmem:[#allocation2 + $0x80] sm:$0xf]
    %v1160 = vsel %vm1131, %v640, %v1159
    %1161 = vst [vmem:[#allocation2 + $0x80] sm:$0xf] %v1160
    %v1162 = vld [vmem:[#allocation2 + $0x8c] sm:$0xf]
    %v1163 = vsel %vm1131, %v644, %v1162
    %1164 = vst [vmem:[#allocation2 + $0x8c] sm:$0xf] %v1163
    %v1165 = vld [vmem:[#allocation2 + $0x98] sm:$0xf]
    %v1166 = vsel %vm1131, %v648, %v1165
    %1167 = vst [vmem:[#allocation2 + $0x98] sm:$0xf] %v1166
    %v1168 = vld [vmem:[#allocation2 + $0xa4] sm:$0xf]
    %v1169 = vsel %vm1131, %v652, %v1168
    %1170 = vst [vmem:[#allocation2 + $0xa4] sm:$0xf] %v1169
    %v1171 = vld [vmem:[#allocation2 + $0xb0] sm:$0xf]
    %v1172 = vsel %vm1131, %v876, %v1171
    %1173 = vst [vmem:[#allocation2 + $0xb0] sm:$0xf] %v1172
    %v1174 = vld [vmem:[#allocation2] sm:$0xff]
    %v1175 = vld [vmem:[#allocation2 + $0x8] sm:$0xf]
    %v1176 = vld [vmem:[#allocation2 + $0xc] sm:$0xff]
    %v1177 = vld [vmem:[#allocation2 + $0x14] sm:$0xf]
    %v1178 = vld [vmem:[#allocation2 + $0x18] sm:$0xff]
    %v1179 = vld [vmem:[#allocation2 + $0x20] sm:$0xf]
    %v1180 = vld [vmem:[#allocation2 + $0x24] sm:$0xff]
    %v1181 = vld [vmem:[#allocation2 + $0x2c] sm:$0xf]
    %v1182 = vld [vmem:[#allocation2 + $0x30] sm:$0xff]
    %v1183 = vld [vmem:[#allocation2 + $0x38] sm:$0xf]
    %v1184 = vld [vmem:[#allocation2 + $0x3c] sm:$0xff]
    %v1185 = vld [vmem:[#allocation2 + $0x44] sm:$0xf]
    %v1186 = vld [vmem:[#allocation2 + $0x48] sm:$0xff]
    %v1187 = vld [vmem:[#allocation2 + $0x50] sm:$0xf]
    %v1188 = vld [vmem:[#allocation2 + $0x54] sm:$0xff]
    %v1189 = vld [vmem:[#allocation2 + $0x5c] sm:$0xf]
    %v1190 = vld [vmem:[#allocation2 + $0x60] sm:$0xff]
    %v1191 = vld [vmem:[#allocation2 + $0x68] sm:$0xf]
    %v1192 = vld [vmem:[#allocation2 + $0x6c] sm:$0xff]
    %v1193 = vld [vmem:[#allocation2 + $0x74] sm:$0xf]
    %v1194 = vld [vmem:[#allocation2 + $0x78] sm:$0xff]
    %v1195 = vld [vmem:[#allocation2 + $0x80] sm:$0xf]
    %v1196 = vld [vmem:[#allocation2 + $0x84] sm:$0xff]
    %v1197 = vld [vmem:[#allocation2 + $0x8c] sm:$0xf]
    %v1198 = vld [vmem:[#allocation2 + $0x90] sm:$0xff]
    %v1199 = vld [vmem:[#allocation2 + $0x98] sm:$0xf]
    %v1200 = vld [vmem:[#allocation2 + $0x9c] sm:$0xff]
    %v1201 = vld [vmem:[#allocation2 + $0xa4] sm:$0xf]
    %v1202 = vld [vmem:[#allocation2 + $0xa8] sm:$0xff]
    %v1203 = vld [vmem:[#allocation2 + $0xb0] sm:$0xf]
    %v1204 = vld [vmem:[#allocation2 + $0xb4] sm:$0xff]
    %v1205 = vld [vmem:[#allocation2 + $0xbc] sm:$0xf]
    %v1206 = vld [vmem:[%s3] sm:$0xf]
    %v1207 = vld [vmem:[%s3 + $0x4] sm:$0xf]
    %v1208 = vld [vmem:[%s3 + $0x8] sm:$0xf]
    %v1209 = vld [vmem:[%s3 + $0xc] sm:$0xf]
    %v1210 = vld [vmem:[%s3 + $0x10] sm:$0xf]
    %v1211 = vld [vmem:[%s3 + $0x14] sm:$0xf]
    %v1212 = vld [vmem:[%s3 + $0x18] sm:$0xf]
    %v1213 = vld [vmem:[%s3 + $0x1c] sm:$0xf]
    %v1214 = vld [vmem:[%s3 + $0x20] sm:$0xf]
    %v1215 = vld [vmem:[%s3 + $0x24] sm:$0xf]
    %v1216 = vld [vmem:[%s3 + $0x28] sm:$0xf]
    %v1217 = vld [vmem:[%s3 + $0x2c] sm:$0xf]
    %v1218 = vld [vmem:[%s3 + $0x30] sm:$0xf]
    %v1219 = vld [vmem:[%s3 + $0x34] sm:$0xf]
    %v1220 = vld [vmem:[%s3 + $0x38] sm:$0xf]
    %v1221 = vld [vmem:[%s3 + $0x3c] sm:$0xf]
    %v1222 = vld [vmem:[%s3 + $0x40] sm:$0xf]
    %v1223 = vld [vmem:[%s3 + $0x44] sm:$0xf]
    %v1224 = vld [vmem:[%s3 + $0x48] sm:$0xf]
    %v1225 = vld [vmem:[%s3 + $0x4c] sm:$0xf]
    %v1226 = vld [vmem:[%s3 + $0x50] sm:$0xf]
    %v1227 = vld [vmem:[%s3 + $0x54] sm:$0xf]
    %v1228 = vld [vmem:[%s3 + $0x58] sm:$0xf]
    %v1229 = vld [vmem:[%s3 + $0x5c] sm:$0xf]
    %v1230 = vld [vmem:[%s3 + $0x60] sm:$0xf]
    %v1231 = vld [vmem:[%s3 + $0x64] sm:$0xf]
    %v1232 = vld [vmem:[%s3 + $0x68] sm:$0xf]
    %v1233 = vld [vmem:[%s3 + $0x6c] sm:$0xf]
    %v1234 = vld [vmem:[%s3 + $0x70] sm:$0xf]
    %v1235 = vld [vmem:[%s3 + $0x74] sm:$0xf]
    %v1236 = vld [vmem:[%s3 + $0x78] sm:$0xf]
    %v1237 = vld [vmem:[%s3 + $0x7c] sm:$0xf]
    %v1238 = vld [vmem:[%s3 + $0x80] sm:$0xf]
    %v1239 = vld [vmem:[%s3 + $0x84] sm:$0xf]
    %v1240 = vld [vmem:[%s3 + $0x88] sm:$0xf]
    %v1241 = vld [vmem:[%s3 + $0x8c] sm:$0xf]
    %v1242 = vld [vmem:[%s4] sm:$0x1]
    %v1244 = vlaneseq
    %v1245 = vshrl.u32 %v1244, 7
    %v1246 = vsub.s32 0, %v1245
    %v1247 = vrot.slane %v1242, %v1246
    %v1281 = vunpack.c.l.b16 %v1174
    %v1282 = vunpack.c.h.b16 %v1174
    %v1283 = vunpack.c.l.b16 %v1175
    %v1284 = vunpack.c.l.b16 %v1176
    %v1285 = vunpack.c.h.b16 %v1176
    %v1286 = vunpack.c.l.b16 %v1177
    %v1287 = vunpack.c.l.b16 %v1178
    %v1288 = vunpack.c.h.b16 %v1178
    %v1289 = vunpack.c.l.b16 %v1179
    %v1290 = vunpack.c.l.b16 %v1180
    %v1291 = vunpack.c.h.b16 %v1180
    %v1292 = vunpack.c.l.b16 %v1181
    %v1293 = vunpack.c.l.b16 %v1182
    %v1294 = vunpack.c.h.b16 %v1182
    %v1295 = vunpack.c.l.b16 %v1183
    %v1296 = vunpack.c.l.b16 %v1184
    %v1297 = vunpack.c.h.b16 %v1184
    %v1298 = vunpack.c.l.b16 %v1185
    %v1299 = vunpack.c.l.b16 %v1186
    %v1300 = vunpack.c.h.b16 %v1186
    %v1301 = vunpack.c.l.b16 %v1187
    %v1302 = vunpack.c.l.b16 %v1188
    %v1303 = vunpack.c.h.b16 %v1188
    %v1304 = vunpack.c.l.b16 %v1189
    %v1305 = vunpack.c.l.b16 %v1190
    %v1306 = vunpack.c.h.b16 %v1190
    %v1307 = vunpack.c.l.b16 %v1191
    %v1308 = vunpack.c.l.b16 %v1192
    %v1309 = vunpack.c.h.b16 %v1192
    %v1310 = vunpack.c.l.b16 %v1193
    %v1311 = vunpack.c.l.b16 %v1194
    %v1312 = vunpack.c.h.b16 %v1194
    %v1313 = vunpack.c.l.b16 %v1195
    %v1314 = vunpack.c.l.b16 %v1196
    %v1315 = vunpack.c.h.b16 %v1196
    %v1316 = vunpack.c.l.b16 %v1197
    %v1317 = vunpack.c.l.b16 %v1198
    %v1318 = vunpack.c.h.b16 %v1198
    %v1319 = vunpack.c.l.b16 %v1199
    %v1320 = vunpack.c.l.b16 %v1200
    %v1321 = vunpack.c.h.b16 %v1200
    %v1322 = vunpack.c.l.b16 %v1201
    %v1323 = vunpack.c.l.b16 %v1202
    %v1324 = vunpack.c.h.b16 %v1202
    %v1325 = vunpack.c.l.b16 %v1203
    %v1326 = vunpack.c.l.b16 %v1204
    %v1327 = vunpack.c.h.b16 %v1204
    %v1328 = vunpack.c.l.b16 %v1205
    %v1329 = vpack.c.b16 %v1284, %v1281
    %v1330 = vpack.c.b16 %v1285, %v1282
    %v1331 = vpack.c.b16 %v1286, %v1283
    %v1332 = vpack.c.b16 %v1290, %v1287
    %v1333 = vpack.c.b16 %v1291, %v1288
    %v1334 = vpack.c.b16 %v1292, %v1289
    %v1335 = vpack.c.b16 %v1296, %v1293
    %v1336 = vpack.c.b16 %v1297, %v1294
    %v1337 = vpack.c.b16 %v1298, %v1295
    %v1338 = vpack.c.b16 %v1302, %v1299
    %v1339 = vpack.c.b16 %v1303, %v1300
    %v1340 = vpack.c.b16 %v1304, %v1301
    %v1341 = vpack.c.b16 %v1308, %v1305
    %v1342 = vpack.c.b16 %v1309, %v1306
    %v1343 = vpack.c.b16 %v1310, %v1307
    %v1344 = vpack.c.b16 %v1314, %v1311
    %v1345 = vpack.c.b16 %v1315, %v1312
    %v1346 = vpack.c.b16 %v1316, %v1313
    %v1347 = vpack.c.b16 %v1320, %v1317
    %v1348 = vpack.c.b16 %v1321, %v1318
    %v1349 = vpack.c.b16 %v1322, %v1319
    %v1350 = vpack.c.b16 %v1326, %v1323
    %v1351 = vpack.c.b16 %v1327, %v1324
    %v1352 = vpack.c.b16 %v1328, %v1325
    %v1405 = vunpack.c.l.b16 %v1206
    %v1406 = vunpack.c.l.b16 %v1207
    %v1407 = vunpack.c.l.b16 %v1208
    %v1408 = vunpack.c.l.b16 %v1209
    %v1409 = vunpack.c.l.b16 %v1210
    %v1410 = vunpack.c.l.b16 %v1211
    %v1411 = vunpack.c.l.b16 %v1212
    %v1412 = vunpack.c.l.b16 %v1213
    %v1413 = vunpack.c.l.b16 %v1214
    %v1414 = vunpack.c.l.b16 %v1215
    %v1415 = vunpack.c.l.b16 %v1216
    %v1416 = vunpack.c.l.b16 %v1217
    %v1417 = vunpack.c.l.b16 %v1218
    %v1418 = vunpack.c.l.b16 %v1219
    %v1419 = vunpack.c.l.b16 %v1220
    %v1420 = vunpack.c.l.b16 %v1221
    %v1421 = vunpack.c.l.b16 %v1222
    %v1422 = vunpack.c.l.b16 %v1223
    %v1423 = vunpack.c.l.b16 %v1224
    %v1424 = vunpack.c.l.b16 %v1225
    %v1425 = vunpack.c.l.b16 %v1226
    %v1426 = vunpack.c.l.b16 %v1227
    %v1427 = vunpack.c.l.b16 %v1228
    %v1428 = vunpack.c.l.b16 %v1229
    %v1429 = vunpack.c.l.b16 %v1230
    %v1430 = vunpack.c.l.b16 %v1231
    %v1431 = vunpack.c.l.b16 %v1232
    %v1432 = vunpack.c.l.b16 %v1233
    %v1433 = vunpack.c.l.b16 %v1234
    %v1434 = vunpack.c.l.b16 %v1235
    %v1435 = vunpack.c.l.b16 %v1236
    %v1436 = vunpack.c.l.b16 %v1237
    %v1437 = vunpack.c.l.b16 %v1238
    %v1438 = vunpack.c.l.b16 %v1239
    %v1439 = vunpack.c.l.b16 %v1240
    %v1440 = vunpack.c.l.b16 %v1241
    %v1441 = vpack.c.b16 %v1406, %v1405
    %v1442 = vpack.c.b16 %v1408, %v1407
    %v1443 = vpack.c.b16 %v1410, %v1409
    %v1444 = vpack.c.b16 %v1412, %v1411
    %v1445 = vpack.c.b16 %v1414, %v1413
    %v1446 = vpack.c.b16 %v1416, %v1415
    %v1447 = vpack.c.b16 %v1418, %v1417
    %v1448 = vpack.c.b16 %v1420, %v1419
    %v1449 = vpack.c.b16 %v1422, %v1421
    %v1450 = vpack.c.b16 %v1424, %v1423
    %v1451 = vpack.c.b16 %v1426, %v1425
    %v1452 = vpack.c.b16 %v1428, %v1427
    %v1453 = vpack.c.b16 %v1430, %v1429
    %v1454 = vpack.c.b16 %v1432, %v1431
    %v1455 = vpack.c.b16 %v1434, %v1433
    %v1456 = vpack.c.b16 %v1436, %v1435
    %v1457 = vpack.c.b16 %v1438, %v1437
    %v1458 = vpack.c.b16 %v1440, %v1439
    %vm1477 = vcmask 261120
    %v1479 = vsel %vm1477, %v1331, 0
    %v1482 = vsel %vm1477, %v1334, 0
    %v1485 = vsel %vm1477, %v1337, 0
    %v1488 = vsel %vm1477, %v1340, 0
    %v1491 = vsel %vm1477, %v1343, 0
    %v1494 = vsel %vm1477, %v1346, 0
    %v1497 = vsel %vm1477, %v1349, 0
    %v1500 = vsel %vm1477, %v1352, 0
    %1502 = vmatprep.subr.bf16.mxu0 0
    %1503 = vmatpush1.bf16.msra.mxu0 %v1441
    %1504 = vmatprep.subr.bf16.mxu0 0
    %1505 = vmatpush1.bf16.msra.mxu0 %v1442
    %1506 = vmatprep.subr.bf16.mxu0 0
    %1507 = vmatpush1.bf16.msra.mxu0 %v1443
    %1508 = vmatprep.subr.bf16.mxu0 0
    %1509 = vmatpush1.bf16.msra.mxu0 %v1444
    %1510 = vmatprep.subr.bf16.mxu0 0
    %1511 = vmatpush1.bf16.msra.mxu0 %v1445
    %1512 = vmatprep.subr.bf16.mxu0 0
    %1513 = vmatpush1.bf16.msra.mxu0 %v1446
    %1514 = vmatprep.subr.bf16.mxu0 0
    %1515 = vmatpush1.bf16.msra.mxu0 %v1447
    %1516 = vmatprep.subr.bf16.mxu0 0
    %1517 = vmatpush1.bf16.msra.mxu0 %v1448
    %1518 = vmatprep.subr.bf16.mxu0 0
    %1519 = vmatpush1.bf16.msra.mxu0 %v1449
    %1520 = vmatprep.subr.bf16.mxu0 0
    %1521 = vmatpush1.bf16.msra.mxu0 %v1450
    %1522 = vmatprep.subr.bf16.mxu0 0
    %1523 = vmatpush1.bf16.msra.mxu0 %v1451
    %1524 = vmatprep.subr.bf16.mxu0 0
    %1525 = vmatpush1.bf16.msra.mxu0 %v1452
    %1526 = vmatprep.subr.bf16.mxu0 0
    %1527 = vmatpush1.bf16.msra.mxu0 %v1453
    %1528 = vmatprep.subr.bf16.mxu0 0
    %1529 = vmatpush1.bf16.msra.mxu0 %v1454
    %1530 = vmatprep.subr.bf16.mxu0 0
    %1531 = vmatpush1.bf16.msra.mxu0 %v1455
    %1532 = vmatprep.subr.bf16.mxu0 0
    %1533 = vmatpush1.bf16.msra.mxu0 %v1456
    %1534 = vmatprep.mubr.bf16.mxu0 %v1330
    %1535 = vmatmul.mubr.bf16.gmra.mrb[0].mxu0 %v1329
    %v1536 = vpop.f32.mrb[0].mxu0
    %v1537 = vadd.f32 %v1247, %v1536
    %v1538 = vpop.f32.mrb[0].mxu0
    %v1539 = vpop.f32.mrb[0].mxu0
    %v1540 = vadd.f32 %v1247, %v1539
    %v1541 = vpop.f32.mrb[0].mxu0
    %1542 = vmatprep.mubr.bf16.mxu0 %v1333
    %1543 = vmatmul.mubr.bf16.gmra.mrb[0].mxu0 %v1332
    %v1544 = vpop.f32.mrb[0].mxu0
    %v1545 = vadd.f32 %v1247, %v1544
    %v1546 = vpop.f32.mrb[0].mxu0
    %v1547 = vpop.f32.mrb[0].mxu0
    %v1548 = vadd.f32 %v1247, %v1547
    %v1549 = vpop.f32.mrb[0].mxu0
    %1550 = vmatprep.mubr.bf16.mxu0 %v1336
    %1551 = vmatmul.mubr.bf16.gmra.mrb[0].mxu0 %v1335
    %v1552 = vpop.f32.mrb[0].mxu0
    %v1553 = vadd.f32 %v1247, %v1552
    %v1554 = vpop.f32.mrb[0].mxu0
    %v1555 = vpop.f32.mrb[0].mxu0
    %v1556 = vadd.f32 %v1247, %v1555
    %v1557 = vpop.f32.mrb[0].mxu0
    %1558 = vmatprep.mubr.bf16.mxu0 %v1339
    %1559 = vmatmul.mubr.bf16.gmra.mrb[0].mxu0 %v1338
    %v1560 = vpop.f32.mrb[0].mxu0
    %v1561 = vadd.f32 %v1247, %v1560
    %v1562 = vpop.f32.mrb[0].mxu0
    %v1563 = vpop.f32.mrb[0].mxu0
    %v1564 = vadd.f32 %v1247, %v1563
    %v1565 = vpop.f32.mrb[0].mxu0
    %1566 = vmatprep.mubr.bf16.mxu0 %v1342
    %1567 = vmatmul.mubr.bf16.gmra.mrb[0].mxu0 %v1341
    %v1568 = vpop.f32.mrb[0].mxu0
    %v1569 = vadd.f32 %v1247, %v1568
    %v1570 = vpop.f32.mrb[0].mxu0
    %v1571 = vpop.f32.mrb[0].mxu0
    %v1572 = vadd.f32 %v1247, %v1571
    %v1573 = vpop.f32.mrb[0].mxu0
    %1574 = vmatprep.mubr.bf16.mxu0 %v1345
    %1575 = vmatmul.mubr.bf16.gmra.mrb[0].mxu0 %v1344
    %v1576 = vpop.f32.mrb[0].mxu0
    %v1577 = vadd.f32 %v1247, %v1576
    %v1578 = vpop.f32.mrb[0].mxu0
    %v1579 = vpop.f32.mrb[0].mxu0
    %v1580 = vadd.f32 %v1247, %v1579
    %v1581 = vpop.f32.mrb[0].mxu0
    %1582 = vmatprep.mubr.bf16.mxu0 %v1348
    %1583 = vmatmul.mubr.bf16.gmra.mrb[0].mxu0 %v1347
    %v1584 = vpop.f32.mrb[0].mxu0
    %v1585 = vadd.f32 %v1247, %v1584
    %v1586 = vpop.f32.mrb[0].mxu0
    %v1587 = vpop.f32.mrb[0].mxu0
    %v1588 = vadd.f32 %v1247, %v1587
    %v1589 = vpop.f32.mrb[0].mxu0
    %1590 = vmatprep.mubr.bf16.mxu0 %v1351
    %1591 = vmatmul.mubr.bf16.gmra.mrb[0].mxu0 %v1350
    %v1592 = vpop.f32.mrb[0].mxu0
    %v1593 = vadd.f32 %v1247, %v1592
    %v1594 = vpop.f32.mrb[0].mxu0
    %v1595 = vpop.f32.mrb[0].mxu0
    %v1596 = vadd.f32 %v1247, %v1595
    %v1597 = vpop.f32.mrb[0].mxu0
    %1598 = vdwg.mxu0
    %1599 = vmatprep.subr.bf16.mxu0 0
    %1600 = vmatpush1.bf16.msra.mxu0 %v1457
    %1601 = vmatprep.subr.bf16.mxu0 0
    %1602 = vmatpush1.bf16.msra.mxu0 %v1458
    %1603 = vmatprep.subr.bf16.mxu0 0
    %1604 = vmatpush1.bf16.msra.mxu0 0
    %1605 = vmatprep.subr.bf16.mxu0 0
    %1606 = vmatpush1.bf16.msra.mxu0 0
    %1607 = vmatprep.subr.bf16.mxu0 0
    %1608 = vmatpush1.bf16.msra.mxu0 0
    %1609 = vmatprep.subr.bf16.mxu0 0
    %1610 = vmatpush1.bf16.msra.mxu0 0
    %1611 = vmatprep.subr.bf16.mxu0 0
    %1612 = vmatpush1.bf16.msra.mxu0 0
    %1613 = vmatprep.subr.bf16.mxu0 0
    %1614 = vmatpush1.bf16.msra.mxu0 0
    %1615 = vmatprep.subr.bf16.mxu0 0
    %1616 = vmatpush1.bf16.msra.mxu0 0
    %1617 = vmatprep.subr.bf16.mxu0 0
    %1618 = vmatpush1.bf16.msra.mxu0 0
    %1619 = vmatprep.subr.bf16.mxu0 0
    %1620 = vmatpush1.bf16.msra.mxu0 0
    %1621 = vmatprep.subr.bf16.mxu0 0
    %1622 = vmatpush1.bf16.msra.mxu0 0
    %1623 = vmatprep.subr.bf16.mxu0 0
    %1624 = vmatpush1.bf16.msra.mxu0 0
    %1625 = vmatprep.subr.bf16.mxu0 0
    %1626 = vmatpush1.bf16.msra.mxu0 0
    %1627 = vmatprep.subr.bf16.mxu0 0
    %1628 = vmatpush1.bf16.msra.mxu0 0
    %1629 = vmatprep.subr.bf16.mxu0 0
    %1630 = vmatpush1.bf16.msra.mxu0 0
    %1631 = vmatprep.mubr.bf16.mxu0 0
    %1632 = vmatmul.mubr.bf16.gmra.mrb[0].mxu0 %v1479
    %v1633 = vpop.f32.mrb[0].mxu0
    %v1634 = vadd.f32 %v1537, %v1633
    %v1635 = vpop.f32.mrb[0].mxu0
    %v1636 = vpop.f32.mrb[0].mxu0
    %v1637 = vadd.f32 %v1540, %v1636
    %v1638 = vpop.f32.mrb[0].mxu0
    %1639 = vmatprep.mubr.bf16.mxu0 0
    %1640 = vmatmul.mubr.bf16.gmra.mrb[0].mxu0 %v1482
    %v1641 = vpop.f32.mrb[0].mxu0
    %v1642 = vadd.f32 %v1545, %v1641
    %v1643 = vpop.f32.mrb[0].mxu0
    %v1644 = vpop.f32.mrb[0].mxu0
    %v1645 = vadd.f32 %v1548, %v1644
    %v1646 = vpop.f32.mrb[0].mxu0
    %1647 = vmatprep.mubr.bf16.mxu0 0
    %1648 = vmatmul.mubr.bf16.gmra.mrb[0].mxu0 %v1485
    %v1649 = vpop.f32.mrb[0].mxu0
    %v1650 = vadd.f32 %v1553, %v1649
    %v1651 = vpop.f32.mrb[0].mxu0
    %v1652 = vpop.f32.mrb[0].mxu0
    %v1653 = vadd.f32 %v1556, %v1652
    %v1654 = vpop.f32.mrb[0].mxu0
    %1655 = vmatprep.mubr.bf16.mxu0 0
    %1656 = vmatmul.mubr.bf16.gmra.mrb[0].mxu0 %v1488
    %v1657 = vpop.f32.mrb[0].mxu0
    %v1658 = vadd.f32 %v1561, %v1657
    %v1659 = vpop.f32.mrb[0].mxu0
    %v1660 = vpop.f32.mrb[0].mxu0
    %v1661 = vadd.f32 %v1564, %v1660
    %v1662 = vpop.f32.mrb[0].mxu0
    %1663 = vmatprep.mubr.bf16.mxu0 0
    %1664 = vmatmul.mubr.bf16.gmra.mrb[0].mxu0 %v1491
    %v1665 = vpop.f32.mrb[0].mxu0
    %v1666 = vadd.f32 %v1569, %v1665
    %v1667 = vpop.f32.mrb[0].mxu0
    %v1668 = vpop.f32.mrb[0].mxu0
    %v1669 = vadd.f32 %v1572, %v1668
    %v1670 = vpop.f32.mrb[0].mxu0
    %1671 = vmatprep.mubr.bf16.mxu0 0
    %1672 = vmatmul.mubr.bf16.gmra.mrb[0].mxu0 %v1494
    %v1673 = vpop.f32.mrb[0].mxu0
    %v1674 = vadd.f32 %v1577, %v1673
    %v1675 = vpop.f32.mrb[0].mxu0
    %v1676 = vpop.f32.mrb[0].mxu0
    %v1677 = vadd.f32 %v1580, %v1676
    %v1678 = vpop.f32.mrb[0].mxu0
    %1679 = vmatprep.mubr.bf16.mxu0 0
    %1680 = vmatmul.mubr.bf16.gmra.mrb[0].mxu0 %v1497
    %v1681 = vpop.f32.mrb[0].mxu0
    %v1682 = vadd.f32 %v1585, %v1681
    %v1683 = vpop.f32.mrb[0].mxu0
    %v1684 = vpop.f32.mrb[0].mxu0
    %v1685 = vadd.f32 %v1588, %v1684
    %v1686 = vpop.f32.mrb[0].mxu0
    %1687 = vmatprep.mubr.bf16.mxu0 0
    %1688 = vmatmul.mubr.bf16.gmra.mrb[0].mxu0 %v1500
    %v1689 = vpop.f32.mrb[0].mxu0
    %v1690 = vadd.f32 %v1593, %v1689
    %v1691 = vpop.f32.mrb[0].mxu0
    %v1692 = vpop.f32.mrb[0].mxu0
    %v1693 = vadd.f32 %v1596, %v1692
    %v1694 = vpop.f32.mrb[0].mxu0
    %1695 = vdwg.mxu0
    %v1696 = vadd.f32 %v1634, 2.0
    %v1697 = vadd.f32 %v1637, 2.0
    %v1698 = vadd.f32 %v1642, 2.0
    %v1699 = vadd.f32 %v1645, 2.0
    %v1700 = vadd.f32 %v1650, 2.0
    %v1701 = vadd.f32 %v1653, 2.0
    %v1702 = vadd.f32 %v1658, 2.0
    %v1703 = vadd.f32 %v1661, 2.0
    %v1704 = vadd.f32 %v1666, 2.0
    %v1705 = vadd.f32 %v1669, 2.0
    %v1706 = vadd.f32 %v1674, 2.0
    %v1707 = vadd.f32 %v1677, 2.0
    %v1708 = vadd.f32 %v1682, 2.0
    %v1709 = vadd.f32 %v1685, 2.0
    %v1710 = vadd.f32 %v1690, 2.0
    %v1711 = vadd.f32 %v1693, 2.0
    %v1712 = vxor.u32 %v1696, 2147483648
    %v1713 = vxor.u32 %v1697, 2147483648
    %v1714 = vxor.u32 %v1698, 2147483648
    %v1715 = vxor.u32 %v1699, 2147483648
    %v1716 = vxor.u32 %v1700, 2147483648
    %v1717 = vxor.u32 %v1701, 2147483648
    %v1718 = vxor.u32 %v1702, 2147483648
    %v1719 = vxor.u32 %v1703, 2147483648
    %v1720 = vxor.u32 %v1704, 2147483648
    %v1721 = vxor.u32 %v1705, 2147483648
    %v1722 = vxor.u32 %v1706, 2147483648
    %v1723 = vxor.u32 %v1707, 2147483648
    %v1724 = vxor.u32 %v1708, 2147483648
    %v1725 = vxor.u32 %v1709, 2147483648
    %v1726 = vxor.u32 %v1710, 2147483648
    %v1727 = vxor.u32 %v1711, 2147483648
    %v1728 = vmul.f32 %v1712, 1.442695
    %v1729 = vpow.pop %v1728
    %v1730 = vmul.f32 %v1713, 1.442695
    %v1731 = vpow.pop %v1730
    %v1732 = vmul.f32 %v1714, 1.442695
    %v1733 = vpow.pop %v1732
    %v1734 = vmul.f32 %v1715, 1.442695
    %v1735 = vpow.pop %v1734
    %v1736 = vmul.f32 %v1716, 1.442695
    %v1737 = vpow.pop %v1736
    %v1738 = vmul.f32 %v1717, 1.442695
    %v1739 = vpow.pop %v1738
    %v1740 = vmul.f32 %v1718, 1.442695
    %v1741 = vpow.pop %v1740
    %v1742 = vmul.f32 %v1719, 1.442695
    %v1743 = vpow.pop %v1742
    %v1744 = vmul.f32 %v1720, 1.442695
    %v1745 = vpow.pop %v1744
    %v1746 = vmul.f32 %v1721, 1.442695
    %v1747 = vpow.pop %v1746
    %v1748 = vmul.f32 %v1722, 1.442695
    %v1749 = vpow.pop %v1748
    %v1750 = vmul.f32 %v1723, 1.442695
    %v1751 = vpow.pop %v1750
    %v1752 = vmul.f32 %v1724, 1.442695
    %v1753 = vpow.pop %v1752
    %v1754 = vmul.f32 %v1725, 1.442695
    %v1755 = vpow.pop %v1754
    %v1756 = vmul.f32 %v1726, 1.442695
    %v1757 = vpow.pop %v1756
    %v1758 = vmul.f32 %v1727, 1.442695
    %v1759 = vpow.pop %v1758
    %v1760 = vadd.f32 %v1729, 1.0
    %v1761 = vadd.f32 %v1731, 1.0
    %v1762 = vadd.f32 %v1733, 1.0
    %v1763 = vadd.f32 %v1735, 1.0
    %v1764 = vadd.f32 %v1737, 1.0
    %v1765 = vadd.f32 %v1739, 1.0
    %v1766 = vadd.f32 %v1741, 1.0
    %v1767 = vadd.f32 %v1743, 1.0
    %v1768 = vadd.f32 %v1745, 1.0
    %v1769 = vadd.f32 %v1747, 1.0
    %v1770 = vadd.f32 %v1749, 1.0
    %v1771 = vadd.f32 %v1751, 1.0
    %v1772 = vadd.f32 %v1753, 1.0
    %v1773 = vadd.f32 %v1755, 1.0
    %v1774 = vadd.f32 %v1757, 1.0
    %v1775 = vadd.f32 %v1759, 1.0
    %v1776 = vrcp.pop %v1760
    %v1777 = vmul.f32 1.0, %v1776
    %v1778 = vrcp.pop %v1761
    %v1779 = vmul.f32 1.0, %v1778
    %v1780 = vrcp.pop %v1762
    %v1781 = vmul.f32 1.0, %v1780
    %v1782 = vrcp.pop %v1763
    %v1783 = vmul.f32 1.0, %v1782
    %v1784 = vrcp.pop %v1764
    %v1785 = vmul.f32 1.0, %v1784
    %v1786 = vrcp.pop %v1765
    %v1787 = vmul.f32 1.0, %v1786
    %v1788 = vrcp.pop %v1766
    %v1789 = vmul.f32 1.0, %v1788
    %v1790 = vrcp.pop %v1767
    %v1791 = vmul.f32 1.0, %v1790
    %v1792 = vrcp.pop %v1768
    %v1793 = vmul.f32 1.0, %v1792
    %v1794 = vrcp.pop %v1769
    %v1795 = vmul.f32 1.0, %v1794
    %v1796 = vrcp.pop %v1770
    %v1797 = vmul.f32 1.0, %v1796
    %v1798 = vrcp.pop %v1771
    %v1799 = vmul.f32 1.0, %v1798
    %v1800 = vrcp.pop %v1772
    %v1801 = vmul.f32 1.0, %v1800
    %v1802 = vrcp.pop %v1773
    %v1803 = vmul.f32 1.0, %v1802
    %v1804 = vrcp.pop %v1774
    %v1805 = vmul.f32 1.0, %v1804
    %v1806 = vrcp.pop %v1775
    %v1807 = vmul.f32 1.0, %v1806
    %v1808 = vld [vmem:[%s1] sm:$0xff]
    %v1809 = vld [vmem:[%s1 + $0x8] sm:$0xff]
    %v1810 = vld [vmem:[%s1 + $0x10] sm:$0xff]
    %v1811 = vld [vmem:[%s1 + $0x18] sm:$0xff]
    %v1812 = vld [vmem:[%s1 + $0x20] sm:$0xff]
    %v1813 = vld [vmem:[%s1 + $0x28] sm:$0xff]
    %v1814 = vld [vmem:[%s1 + $0x30] sm:$0xff]
    %v1815 = vld [vmem:[%s1 + $0x38] sm:$0xff]
    %v1816 = vld [vmem:[%s1 + $0x40] sm:$0xff]
    %v1817 = vld [vmem:[%s1 + $0x48] sm:$0xff]
    %v1818 = vld [vmem:[%s1 + $0x50] sm:$0xff]
    %v1819 = vld [vmem:[%s1 + $0x58] sm:$0xff]
    %v1820 = vld [vmem:[%s1 + $0x60] sm:$0xff]
    %v1821 = vld [vmem:[%s1 + $0x68] sm:$0xff]
    %v1822 = vld [vmem:[%s1 + $0x70] sm:$0xff]
    %v1823 = vld [vmem:[%s1 + $0x78] sm:$0xff]
    %1840 = vrot.lane.b32.xlu0 %v1808, 8
    %v1841 = vpop.permute.xlu0 %1840
    %1842 = vrot.lane.b32.xlu0 %v1809, 8
    %v1843 = vpop.permute.xlu0 %1842
    %1844 = vrot.lane.b32.xlu0 %v1810, 8
    %v1845 = vpop.permute.xlu0 %1844
    %1846 = vrot.lane.b32.xlu0 %v1811, 8
    %v1847 = vpop.permute.xlu0 %1846
    %1848 = vrot.lane.b32.xlu0 %v1812, 8
    %v1849 = vpop.permute.xlu0 %1848
    %1850 = vrot.lane.b32.xlu0 %v1813, 8
    %v1851 = vpop.permute.xlu0 %1850
    %1852 = vrot.lane.b32.xlu0 %v1814, 8
    %v1853 = vpop.permute.xlu0 %1852
    %1854 = vrot.lane.b32.xlu0 %v1815, 8
    %v1855 = vpop.permute.xlu0 %1854
    %1856 = vrot.lane.b32.xlu0 %v1816, 8
    %v1857 = vpop.permute.xlu0 %1856
    %1858 = vrot.lane.b32.xlu0 %v1817, 8
    %v1859 = vpop.permute.xlu0 %1858
    %1860 = vrot.lane.b32.xlu0 %v1818, 8
    %v1861 = vpop.permute.xlu0 %1860
    %1862 = vrot.lane.b32.xlu0 %v1819, 8
    %v1863 = vpop.permute.xlu0 %1862
    %1864 = vrot.lane.b32.xlu0 %v1820, 8
    %v1865 = vpop.permute.xlu0 %1864
    %1866 = vrot.lane.b32.xlu0 %v1821, 8
    %v1867 = vpop.permute.xlu0 %1866
    %1868 = vrot.lane.b32.xlu0 %v1822, 8
    %v1869 = vpop.permute.xlu0 %1868
    %1870 = vrot.lane.b32.xlu0 %v1823, 8
    %v1871 = vpop.permute.xlu0 %1870
    %v1888 = vmul.f32 %v1777, %v1841
    %v1889 = vmul.f32 %v1779, %v1843
    %v1890 = vmul.f32 %v1781, %v1845
    %v1891 = vmul.f32 %v1783, %v1847
    %v1892 = vmul.f32 %v1785, %v1849
    %v1893 = vmul.f32 %v1787, %v1851
    %v1894 = vmul.f32 %v1789, %v1853
    %v1895 = vmul.f32 %v1791, %v1855
    %v1896 = vmul.f32 %v1793, %v1857
    %v1897 = vmul.f32 %v1795, %v1859
    %v1898 = vmul.f32 %v1797, %v1861
    %v1899 = vmul.f32 %v1799, %v1863
    %v1900 = vmul.f32 %v1801, %v1865
    %v1901 = vmul.f32 %v1803, %v1867
    %v1902 = vmul.f32 %v1805, %v1869
    %v1903 = vmul.f32 %v1807, %v1871
    %1920 = vrot.lane.b32.xlu0 %v1634, 8
    %v1921 = vpop.permute.xlu0 %1920
    %1922 = vrot.lane.b32.xlu0 %v1637, 8
    %v1923 = vpop.permute.xlu0 %1922
    %1924 = vrot.lane.b32.xlu0 %v1642, 8
    %v1925 = vpop.permute.xlu0 %1924
    %1926 = vrot.lane.b32.xlu0 %v1645, 8
    %v1927 = vpop.permute.xlu0 %1926
    %1928 = vrot.lane.b32.xlu0 %v1650, 8
    %v1929 = vpop.permute.xlu0 %1928
    %1930 = vrot.lane.b32.xlu0 %v1653, 8
    %v1931 = vpop.permute.xlu0 %1930
    %1932 = vrot.lane.b32.xlu0 %v1658, 8
    %v1933 = vpop.permute.xlu0 %1932
    %1934 = vrot.lane.b32.xlu0 %v1661, 8
    %v1935 = vpop.permute.xlu0 %1934
    %1936 = vrot.lane.b32.xlu0 %v1666, 8
    %v1937 = vpop.permute.xlu0 %1936
    %1938 = vrot.lane.b32.xlu0 %v1669, 8
    %v1939 = vpop.permute.xlu0 %1938
    %1940 = vrot.lane.b32.xlu0 %v1674, 8
    %v1941 = vpop.permute.xlu0 %1940
    %1942 = vrot.lane.b32.xlu0 %v1677, 8
    %v1943 = vpop.permute.xlu0 %1942
    %1944 = vrot.lane.b32.xlu0 %v1682, 8
    %v1945 = vpop.permute.xlu0 %1944
    %1946 = vrot.lane.b32.xlu0 %v1685, 8
    %v1947 = vpop.permute.xlu0 %1946
    %1948 = vrot.lane.b32.xlu0 %v1690, 8
    %v1949 = vpop.permute.xlu0 %1948
    %1950 = vrot.lane.b32.xlu0 %v1693, 8
    %v1951 = vpop.permute.xlu0 %1950
    %v1968 = vadd.f32 %v1888, %v1921
    %v1969 = vadd.f32 %v1889, %v1923
    %v1970 = vadd.f32 %v1890, %v1925
    %v1971 = vadd.f32 %v1891, %v1927
    %v1972 = vadd.f32 %v1892, %v1929
    %v1973 = vadd.f32 %v1893, %v1931
    %v1974 = vadd.f32 %v1894, %v1933
    %v1975 = vadd.f32 %v1895, %v1935
    %v1976 = vadd.f32 %v1896, %v1937
    %v1977 = vadd.f32 %v1897, %v1939
    %v1978 = vadd.f32 %v1898, %v1941
    %v1979 = vadd.f32 %v1899, %v1943
    %v1980 = vadd.f32 %v1900, %v1945
    %v1981 = vadd.f32 %v1901, %v1947
    %v1982 = vadd.f32 %v1902, %v1949
    %v1983 = vadd.f32 %v1903, %v1951
    %v1984 = vmax.f32 %v1968, -1e+09
    %v1985 = vmax.f32 %v1969, -1e+09
    %v1986 = vmax.f32 %v1970, -1e+09
    %v1987 = vmax.f32 %v1971, -1e+09
    %v1988 = vmax.f32 %v1972, -1e+09
    %v1989 = vmax.f32 %v1973, -1e+09
    %v1990 = vmax.f32 %v1974, -1e+09
    %v1991 = vmax.f32 %v1975, -1e+09
    %v1992 = vmax.f32 %v1976, -1e+09
    %v1993 = vmax.f32 %v1977, -1e+09
    %v1994 = vmax.f32 %v1978, -1e+09
    %v1995 = vmax.f32 %v1979, -1e+09
    %v1996 = vmax.f32 %v1980, -1e+09
    %v1997 = vmax.f32 %v1981, -1e+09
    %v1998 = vmax.f32 %v1982, -1e+09
    %v1999 = vmax.f32 %v1983, -1e+09
    %v2000 = vmin.f32 %v1984, 1e+09
    %v2001 = vmin.f32 %v1985, 1e+09
    %v2002 = vmin.f32 %v1986, 1e+09
    %v2003 = vmin.f32 %v1987, 1e+09
    %v2004 = vmin.f32 %v1988, 1e+09
    %v2005 = vmin.f32 %v1989, 1e+09
    %v2006 = vmin.f32 %v1990, 1e+09
    %v2007 = vmin.f32 %v1991, 1e+09
    %v2008 = vmin.f32 %v1992, 1e+09
    %v2009 = vmin.f32 %v1993, 1e+09
    %v2010 = vmin.f32 %v1994, 1e+09
    %v2011 = vmin.f32 %v1995, 1e+09
    %v2012 = vmin.f32 %v1996, 1e+09
    %v2013 = vmin.f32 %v1997, 1e+09
    %v2014 = vmin.f32 %v1998, 1e+09
    %v2015 = vmin.f32 %v1999, 1e+09
    %2032 = vrot.lane.b32.xlu0 %v2000, 120
    %v2033 = vpop.permute.xlu0 %2032
    %2034 = vrot.lane.b32.xlu0 %v2001, 120
    %v2035 = vpop.permute.xlu0 %2034
    %2036 = vrot.lane.b32.xlu0 %v2002, 120
    %v2037 = vpop.permute.xlu0 %2036
    %2038 = vrot.lane.b32.xlu0 %v2003, 120
    %v2039 = vpop.permute.xlu0 %2038
    %2040 = vrot.lane.b32.xlu0 %v2004, 120
    %v2041 = vpop.permute.xlu0 %2040
    %2042 = vrot.lane.b32.xlu0 %v2005, 120
    %v2043 = vpop.permute.xlu0 %2042
    %2044 = vrot.lane.b32.xlu0 %v2006, 120
    %v2045 = vpop.permute.xlu0 %2044
    %2046 = vrot.lane.b32.xlu0 %v2007, 120
    %v2047 = vpop.permute.xlu0 %2046
    %2048 = vrot.lane.b32.xlu0 %v2008, 120
    %v2049 = vpop.permute.xlu0 %2048
    %2050 = vrot.lane.b32.xlu0 %v2009, 120
    %v2051 = vpop.permute.xlu0 %2050
    %2052 = vrot.lane.b32.xlu0 %v2010, 120
    %v2053 = vpop.permute.xlu0 %2052
    %2054 = vrot.lane.b32.xlu0 %v2011, 120
    %v2055 = vpop.permute.xlu0 %2054
    %2056 = vrot.lane.b32.xlu0 %v2012, 120
    %v2057 = vpop.permute.xlu0 %2056
    %2058 = vrot.lane.b32.xlu0 %v2013, 120
    %v2059 = vpop.permute.xlu0 %2058
    %2060 = vrot.lane.b32.xlu0 %v2014, 120
    %v2061 = vpop.permute.xlu0 %2060
    %2062 = vrot.lane.b32.xlu0 %v2015, 120
    %v2063 = vpop.permute.xlu0 %2062
    %vm2080 = vcmask 64512
    %2081 = vst.msk [vmem:[%s5] sm:$0xff] %vm2080, %v2033
    %2082 = vst.msk [vmem:[%s5 + $0x8] sm:$0xff] %vm2080, %v2035
    %2083 = vst.msk [vmem:[%s5 + $0x10] sm:$0xff] %vm2080, %v2037
    %2084 = vst.msk [vmem:[%s5 + $0x18] sm:$0xff] %vm2080, %v2039
    %2085 = vst.msk [vmem:[%s5 + $0x20] sm:$0xff] %vm2080, %v2041
    %2086 = vst.msk [vmem:[%s5 + $0x28] sm:$0xff] %vm2080, %v2043
    %2087 = vst.msk [vmem:[%s5 + $0x30] sm:$0xff] %vm2080, %v2045
    %2088 = vst.msk [vmem:[%s5 + $0x38] sm:$0xff] %vm2080, %v2047
    %2089 = vst.msk [vmem:[%s5 + $0x40] sm:$0xff] %vm2080, %v2049
    %2090 = vst.msk [vmem:[%s5 + $0x48] sm:$0xff] %vm2080, %v2051
    %2091 = vst.msk [vmem:[%s5 + $0x50] sm:$0xff] %vm2080, %v2053
    %2092 = vst.msk [vmem:[%s5 + $0x58] sm:$0xff] %vm2080, %v2055
    %2093 = vst.msk [vmem:[%s5 + $0x60] sm:$0xff] %vm2080, %v2057
    %2094 = vst.msk [vmem:[%s5 + $0x68] sm:$0xff] %vm2080, %v2059
    %2095 = vst.msk [vmem:[%s5 + $0x70] sm:$0xff] %vm2080, %v2061
    %2096 = vst.msk [vmem:[%s5 + $0x78] sm:$0xff] %vm2080, %v2063
    %vm2097 = vcmask 130112
    %v2098 = vsel %vm2097, %v2000, 0.0
    %v2099 = vsel %vm2097, %v2001, 0.0
    %v2100 = vadd.f32 %v2098, %v2099
    %v2101 = vsel %vm2097, %v2002, 0.0
    %v2102 = vadd.f32 %v2100, %v2101
    %v2103 = vsel %vm2097, %v2003, 0.0
    %v2104 = vadd.f32 %v2102, %v2103
    %v2105 = vsel %vm2097, %v2004, 0.0
    %v2106 = vadd.f32 %v2104, %v2105
    %v2107 = vsel %vm2097, %v2005, 0.0
    %v2108 = vadd.f32 %v2106, %v2107
    %v2109 = vsel %vm2097, %v2006, 0.0
    %v2110 = vadd.f32 %v2108, %v2109
    %v2111 = vsel %vm2097, %v2007, 0.0
    %v2112 = vadd.f32 %v2110, %v2111
    %v2113 = vsel %vm2097, %v2008, 0.0
    %v2114 = vadd.f32 %v2112, %v2113
    %v2115 = vsel %vm2097, %v2009, 0.0
    %v2116 = vadd.f32 %v2114, %v2115
    %v2117 = vsel %vm2097, %v2010, 0.0
    %v2118 = vadd.f32 %v2116, %v2117
    %v2119 = vsel %vm2097, %v2011, 0.0
    %v2120 = vadd.f32 %v2118, %v2119
    %v2121 = vsel %vm2097, %v2012, 0.0
    %v2122 = vadd.f32 %v2120, %v2121
    %v2123 = vsel %vm2097, %v2013, 0.0
    %v2124 = vadd.f32 %v2122, %v2123
    %v2125 = vsel %vm2097, %v2014, 0.0
    %v2126 = vadd.f32 %v2124, %v2125
    %v2127 = vsel %vm2097, %v2015, 0.0
    %v2128 = vadd.f32 %v2126, %v2127
    %v2129 = vrot.slane %v2128, 4
    %v2130 = vadd.f32 %v2128, %v2129
    %v2131 = vrot.slane %v2130, 2
    %v2132 = vadd.f32 %v2130, %v2131
    %v2133 = vrot.slane %v2132, 1
    %v2134 = vadd.f32 %v2132, %v2133
    %v2135 = vmul.f32 %v2000, %v2000
    %v2136 = vmul.f32 %v2001, %v2001
    %v2137 = vmul.f32 %v2002, %v2002
    %v2138 = vmul.f32 %v2003, %v2003
    %v2139 = vmul.f32 %v2004, %v2004
    %v2140 = vmul.f32 %v2005, %v2005
    %v2141 = vmul.f32 %v2006, %v2006
    %v2142 = vmul.f32 %v2007, %v2007
    %v2143 = vmul.f32 %v2008, %v2008
    %v2144 = vmul.f32 %v2009, %v2009
    %v2145 = vmul.f32 %v2010, %v2010
    %v2146 = vmul.f32 %v2011, %v2011
    %v2147 = vmul.f32 %v2012, %v2012
    %v2148 = vmul.f32 %v2013, %v2013
    %v2149 = vmul.f32 %v2014, %v2014
    %v2150 = vmul.f32 %v2015, %v2015
    %v2151 = vsel %vm2097, %v2135, 0.0
    %v2152 = vsel %vm2097, %v2136, 0.0
    %v2153 = vadd.f32 %v2151, %v2152
    %v2154 = vsel %vm2097, %v2137, 0.0
    %v2155 = vadd.f32 %v2153, %v2154
    %v2156 = vsel %vm2097, %v2138, 0.0
    %v2157 = vadd.f32 %v2155, %v2156
    %v2158 = vsel %vm2097, %v2139, 0.0
    %v2159 = vadd.f32 %v2157, %v2158
    %v2160 = vsel %vm2097, %v2140, 0.0
    %v2161 = vadd.f32 %v2159, %v2160
    %v2162 = vsel %vm2097, %v2141, 0.0
    %v2163 = vadd.f32 %v2161, %v2162
    %v2164 = vsel %vm2097, %v2142, 0.0
    %v2165 = vadd.f32 %v2163, %v2164
    %v2166 = vsel %vm2097, %v2143, 0.0
    %v2167 = vadd.f32 %v2165, %v2166
    %v2168 = vsel %vm2097, %v2144, 0.0
    %v2169 = vadd.f32 %v2167, %v2168
    %v2170 = vsel %vm2097, %v2145, 0.0
    %v2171 = vadd.f32 %v2169, %v2170
    %v2172 = vsel %vm2097, %v2146, 0.0
    %v2173 = vadd.f32 %v2171, %v2172
    %v2174 = vsel %vm2097, %v2147, 0.0
    %v2175 = vadd.f32 %v2173, %v2174
    %v2176 = vsel %vm2097, %v2148, 0.0
    %v2177 = vadd.f32 %v2175, %v2176
    %v2178 = vsel %vm2097, %v2149, 0.0
    %v2179 = vadd.f32 %v2177, %v2178
    %v2180 = vsel %vm2097, %v2150, 0.0
    %v2181 = vadd.f32 %v2179, %v2180
    %v2182 = vrot.slane %v2181, 4
    %v2183 = vadd.f32 %v2181, %v2182
    %v2184 = vrot.slane %v2183, 2
    %v2185 = vadd.f32 %v2183, %v2184
    %v2186 = vrot.slane %v2185, 1
    %v2187 = vadd.f32 %v2185, %v2186
    %vm2188 = vcmask 1040384
    %v2189 = vsel %vm2188, %v2134, %v2187
    %2191 = vrot.lane.b32.xlu0 %v2189, 120
    %v2192 = vpop.permute.xlu0 %2191
    %vm2194 = vcmask 58368
    %2195 = vst.msk [vmem:[#allocation3] sm:$0x3] %vm2194, %v2192
    // Predicated region
    $region26: #{_lambda_.13} parent=1 // pred_check
      _
    $region27: #{_lambda_.13} parent=1 // pred_check_branch
      %2197 = sbr.rel (0) target = $region29
    $region28: #{_lambda_.13} parent=1 // pred_region
      _
    $region29: #{_lambda_.13} parent=1 // pred_fallthru
      _
    // Predicated region
    $region30: #{_lambda_.13} parent=1 // pred_check
      _
    $region31: #{_lambda_.13} parent=1 // pred_check_branch
      %2199 = sbr.rel (0) target = $region33
    $region32: #{_lambda_.13} parent=1 // pred_region
      %s2201 = ssub.s32 32, 32
      %2202 = vsyncadd [#allocation4], %s2201
      %s2204 = sshll.u32 [#allocation3], 4
      %s2205 = int_to_ptr.vmem [resolvable:$true] %s2204
      %2207 = dma.vmem_to_hbm [thread:$0]  %s2205, 32, %s6, [#allocation4]
    $region33: #{_lambda_.13} parent=1 // pred_fallthru
      _
    // Predicated region
    $region34: #{_lambda_.13} parent=1 // pred_check
      _
    $region35: #{_lambda_.13} parent=1 // pred_check_branch
      %2209 = sbr.rel (0) target = $region37
    $region36: #{_lambda_.13} parent=1 // pred_region
      _
    $region37: #{_lambda_.13} parent=1 // pred_fallthru
      _
    // Predicated region
    $region38: #{_lambda_.13} parent=1 // pred_check
      _
    $region39: #{_lambda_.13} parent=1 // pred_check_branch
      %2211 = sbr.rel (0) target = $region41
    $region40: #{_lambda_.13} parent=1 // pred_region
      %2212 = dma.done [#allocation4], 32
    $region41: #{_lambda_.13} parent=1 // pred_fallthru
      _
    %2213 = vsyncpa [#allocation4], 1

</llo_original>
